<compile_context>
chip_gen: v6e
topology: v6e:2x2x1
jax: 0.10.0
libtpu: 0.0.40
codegen_flags: <defaults>
</compile_context>

<pallas_src>
import functools

import numpy as np
import jax
import jax.numpy as jnp
from jax.experimental import pallas as pl
from jax.experimental.pallas import tpu as pltpu

EPS = 1e-5          # nn.BatchNorm2d default eps
LANE = 128          # TPU lane width


# ----------------------------- small helpers --------------------------------

def _round_up(v, m):
    return (v + m - 1) // m * m


def _pad_axis(a, size, axis):
    pad = size - a.shape[axis]
    if pad == 0:
        return a
    cfg = [(0, 0)] * a.ndim
    cfg[axis] = (0, pad)
    return jnp.pad(a, cfg)


def _pick_row_tile(P, target=512):
    """Largest row tile <= target that divides P (multiple of 8), else full P."""
    if P <= target:
        return P
    for t in range(target, 0, -8):
        if P % t == 0:
            return t
    return P


# ------------------------------- kernels ------------------------------------
# grid = (phase, tile): phase 0 accumulates BN sum/sumsq, phase 1 normalizes.

def _mm_bn_relu_kernel(x_ref, w_ref, g_ref, b_ref, o_ref, stats_ref, sc_ref,
                       *, inv_n):
    p = pl.program_id(0)
    t = pl.program_id(1)

    @pl.when((p == 0) & (t == 0))
    def _init():
        stats_ref[...] = jnp.zeros_like(stats_ref)

    # bf16 x bf16 -> f32 accumulate on the MXU
    y = jnp.dot(x_ref[...], w_ref[...], preferred_element_type=jnp.float32)

    @pl.when(p == 0)
    def _accumulate():
        stats_ref[0:1, :] += jnp.sum(y, axis=0, keepdims=True)
        stats_ref[1:2, :] += jnp.sum(y * y, axis=0, keepdims=True)

    @pl.when((p == 1) & (t == 0))
    def _finalize():  # scale/shift computed once per channel (EUP rsqrt once)
        mean = stats_ref[0:1, :] * inv_n
        var = stats_ref[1:2, :] * inv_n - mean * mean
        scale = g_ref[...] * jax.lax.rsqrt(var + EPS)
        sc_ref[0:1, :] = scale
        sc_ref[1:2, :] = b_ref[...] - mean * scale

    @pl.when(p == 1)
    def _normalize():
        o_ref[...] = jnp.maximum(
            y * sc_ref[0:1, :] + sc_ref[1:2, :], 0.0).astype(o_ref.dtype)


def _mm_bn_add_relu_kernel(x_ref, w_ref, g_ref, b_ref, res_ref, o_ref,
                           stats_ref, sc_ref, *, inv_n):
    p = pl.program_id(0)
    t = pl.program_id(1)

    @pl.when((p == 0) & (t == 0))
    def _init():
        stats_ref[...] = jnp.zeros_like(stats_ref)

    y = jnp.dot(x_ref[...], w_ref[...], preferred_element_type=jnp.float32)

    @pl.when(p == 0)
    def _accumulate():
        stats_ref[0:1, :] += jnp.sum(y, axis=0, keepdims=True)
        stats_ref[1:2, :] += jnp.sum(y * y, axis=0, keepdims=True)

    @pl.when((p == 1) & (t == 0))
    def _finalize():
        mean = stats_ref[0:1, :] * inv_n
        var = stats_ref[1:2, :] * inv_n - mean * mean
        scale = g_ref[...] * jax.lax.rsqrt(var + EPS)
        sc_ref[0:1, :] = scale
        sc_ref[1:2, :] = b_ref[...] - mean * scale

    @pl.when(p == 1)
    def _normalize():
        res = res_ref[...].astype(jnp.float32)
        o_ref[...] = jnp.maximum(
            y * sc_ref[0:1, :] + sc_ref[1:2, :] + res, 0.0).astype(o_ref.dtype)


def _conv3x3_bn_relu_kernel(x_ref, w2_ref, g_ref, b_ref, o_ref,
                            stats_ref, sc_ref, *, H, W, C, inv_n):
    """3x3, stride 1, pad 1 conv on one image tile (HW, C) + two-sweep BN+ReLU.

    The nine shifted operands are built in VMEM (static slices + zero fill +
    a per-column validity mask), so no im2col tensor ever touches HBM.
    """
    p = pl.program_id(0)
    n = pl.program_id(1)
    HW = H * W

    @pl.when((p == 0) & (n == 0))
    def _init():
        stats_ref[...] = jnp.zeros_like(stats_ref)

    x = x_ref[0]                                        # (HW, C) bf16
    col = jax.lax.broadcasted_iota(jnp.int32, (HW, 1), 0) % W
    zeros = jnp.zeros_like(x)
    # dw=+1 reads source column w+1 -> a wrapped read would hit column 0;
    # dw=-1 reads source column w-1 -> a wrapped read would hit column W-1.
    x_by_dw = {
        -1: jnp.where(col == W - 1, zeros, x),
        0: x,
        1: jnp.where(col == 0, zeros, x),
    }

    y = jnp.zeros((HW, C), jnp.float32)
    for dh in (-1, 0, 1):
        for dw in (-1, 0, 1):
            k = (dh + 1) * 3 + (dw + 1)                 # HWIO kernel tap index
            s = dh * W + dw                             # flat row shift
            src = x_by_dw[dw]
            if s > 0:
                shifted = jnp.concatenate(
                    [src[s:, :], jnp.zeros((s, C), src.dtype)], axis=0)
            elif s < 0:
                shifted = jnp.concatenate(
                    [jnp.zeros((-s, C), src.dtype), src[:HW + s, :]], axis=0)
            else:
                shifted = src
            y = y + jnp.dot(shifted, w2_ref[k],
                            preferred_element_type=jnp.float32)

    @pl.when(p == 0)
    def _accumulate():
        stats_ref[0:1, :] += jnp.sum(y, axis=0, keepdims=True)
        stats_ref[1:2, :] += jnp.sum(y * y, axis=0, keepdims=True)

    @pl.when((p == 1) & (n == 0))
    def _finalize():
        mean = stats_ref[0:1, :] * inv_n
        var = stats_ref[1:2, :] * inv_n - mean * mean
        scale = g_ref[...] * jax.lax.rsqrt(var + EPS)
        sc_ref[0:1, :] = scale
        sc_ref[1:2, :] = b_ref[...] - mean * scale

    @pl.when(p == 1)
    def _normalize():
        o_ref[0] = jnp.maximum(
            y * sc_ref[0:1, :] + sc_ref[1:2, :], 0.0).astype(o_ref.dtype)


# ------------------------------- wrapper -------------------------------------

def bottleneck_forward(x_nchw, params):
    """Bottleneck forward: stride=1, groups=1, dilation=1, downsample=None."""
    N, Cin, H, W = x_nchw.shape
    width = params["w1"].shape[1]
    cout = params["w3"].shape[1]
    assert Cin == cout, "identity shortcut requires inplanes == planes*expansion"
    HW = H * W
    P = N * HW

    CinP = _round_up(Cin, LANE)
    WdP = _round_up(width, LANE)
    CoutP = _round_up(cout, LANE)
    assert CinP == CoutP

    # layout: NCHW -> NHWC -> (P, C); lane-pad channels; bf16 activations.
    x2d = jnp.transpose(x_nchw, (0, 2, 3, 1)).reshape(P, Cin)
    x2d = _pad_axis(x2d, CinP, 1).astype(jnp.bfloat16)

    w1 = _pad_axis(_pad_axis(params["w1"], CinP, 0), WdP, 1).astype(jnp.bfloat16)
    w2 = _pad_axis(_pad_axis(params["w2"], WdP, 2), WdP, 3)
    w2 = w2.astype(jnp.bfloat16).reshape(9, WdP, WdP)            # HWIO taps
    w3 = _pad_axis(_pad_axis(params["w3"], WdP, 0), CoutP, 1).astype(jnp.bfloat16)

    def row_f32(v, size):
        return _pad_axis(v.reshape(1, -1).astype(jnp.float32), size, 1)

    g1, b1 = row_f32(params["g1"], WdP), row_f32(params["b1"], WdP)
    g2, b2 = row_f32(params["g2"], WdP), row_f32(params["b2"], WdP)
    g3, b3 = row_f32(params["g3"], CoutP), row_f32(params["b3"], CoutP)

    row_tile = _pick_row_tile(P)
    T = P // row_tile
    inv_p = 1.0 / P

    cparams = pltpu.CompilerParams(
        # Both axes "arbitrary": phase order matters, and row tiles feed a
        # shared cross-tile BN accumulator (cannot shard across TensorCores).
        dimension_semantics=("arbitrary", "arbitrary"),
        vmem_limit_bytes=48 * 1024 * 1024,   # safe on v5e/v6e/v7x
    )

    def full_spec(shape):
        nd = len(shape)
        return pl.BlockSpec(shape, lambda *_: (0,) * nd)

    stat_scratch = lambda c: [pltpu.VMEM((2, c), jnp.float32),
                              pltpu.VMEM((2, c), jnp.float32)]

    # ---- stage 1: 1x1 conv + BN + ReLU (row-tiled, two-sweep) ----
    o1 = pl.pallas_call(
        functools.partial(_mm_bn_relu_kernel, inv_n=inv_p),
        out_shape=jax.ShapeDtypeStruct((P, WdP), jnp.bfloat16),
        grid=(2, T),
        in_specs=[
            pl.BlockSpec((row_tile, CinP), lambda ph, t: (t, 0)),
            full_spec((CinP, WdP)),
            full_spec((1, WdP)),
            full_spec((1, WdP)),
        ],
        # phase 0 never writes: keep the out block index parked at 0 so no
        # garbage writebacks happen before phase 1 produces real data.
        out_specs=pl.BlockSpec((row_tile, WdP), lambda ph, t: (t * ph, 0)),
        scratch_shapes=stat_scratch(WdP),
        compiler_params=cparams,
    )(x2d, w1, g1, b1)

    # ---- stage 2: 3x3 conv + BN + ReLU (per-image tiles, in-kernel patches) ----
    o1_img = o1.reshape(N, HW, WdP)
    o2 = pl.pallas_call(
        functools.partial(_conv3x3_bn_relu_kernel, H=H, W=W, C=WdP, inv_n=inv_p),
        out_shape=jax.ShapeDtypeStruct((N, HW, WdP), jnp.bfloat16),
        grid=(2, N),
        in_specs=[
            pl.BlockSpec((1, HW, WdP), lambda ph, n: (n, 0, 0)),
            full_spec((9, WdP, WdP)),
            full_spec((1, WdP)),
            full_spec((1, WdP)),
        ],
        out_specs=pl.BlockSpec((1, HW, WdP), lambda ph, n: (n * ph, 0, 0)),
        scratch_shapes=stat_scratch(WdP),
        compiler_params=cparams,
    )(o1_img, w2, g2, b2)

    # ---- stage 3: 1x1 conv + BN + residual add + ReLU (row-tiled) ----
    o2_2d = o2.reshape(P, WdP)
    out = pl.pallas_call(
        functools.partial(_mm_bn_add_relu_kernel, inv_n=inv_p),
        out_shape=jax.ShapeDtypeStruct((P, CoutP), jnp.float32),
        grid=(2, T),
        in_specs=[
            pl.BlockSpec((row_tile, WdP), lambda ph, t: (t, 0)),
            full_spec((WdP, CoutP)),
            full_spec((1, CoutP)),
            full_spec((1, CoutP)),
            pl.BlockSpec((row_tile, CoutP), lambda ph, t: (t, 0)),   # residual
        ],
        out_specs=pl.BlockSpec((row_tile, CoutP), lambda ph, t: (t * ph, 0)),
        scratch_shapes=stat_scratch(CoutP),
        compiler_params=cparams,
    )(o2_2d, w3, g3, b3, x2d)

    out = out[:, :cout].reshape(N, H, W, cout)
    return jnp.transpose(out, (0, 3, 1, 2))             # back to NCHW


# -------------------- pure-JAX reference (same precision policy) -------------

def bottleneck_reference(x_nchw, params):
    bf = lambda a: a.astype(jnp.bfloat16).astype(jnp.float32)
    x = bf(jnp.transpose(x_nchw, (0, 2, 3, 1)))

    def bn(y, g, b):
        mu = jnp.mean(y, axis=(0, 1, 2), keepdims=True)
        var = jnp.mean(jnp.square(y - mu), axis=(0, 1, 2), keepdims=True)
        return (y - mu) * jax.lax.rsqrt(var + EPS) * g + b

    o = jnp.einsum("nhwc,cd->nhwd", x, bf(params["w1"]))
    o = bf(jax.nn.relu(bn(o, params["g1"], params["b1"])))   # bf16 inter-stage
    o = jax.lax.conv_general_dilated(
        o, bf(params["w2"]), window_strides=(1, 1), padding=((1, 1), (1, 1)),
        dimension_numbers=("NHWC", "HWIO", "NHWC"))
    o = bf(jax.nn.relu(bn(o, params["g2"], params["b2"])))
    o = jnp.einsum("nhwc,cd->nhwd", o, bf(params["w3"]))
    o = jax.nn.relu(bn(o, params["g3"], params["b3"]) + x)
    return jnp.transpose(o, (0, 3, 1, 2))


# --------------------------------- main ---------------------------------------

if __name__ == "__main__":
    # Bottleneck(inplanes=16, planes=4): width=4, out=16 (expansion=4,
    # identity shortcut).  P = N*H*W = 1024 -> two 512-row tiles.
    N, H, W = 4, 16, 16
    planes = 4
    inplanes = planes * 4
    width = planes

    keys = jax.random.split(jax.random.PRNGKey(0), 10)
    x = jax.random.normal(keys[0], (N, inplanes, H, W), jnp.float32)

    params = {
        "w1": 0.2 * jax.random.normal(keys[1], (inplanes, width), jnp.float32),
        "g1": 1.0 + 0.1 * jax.random.normal(keys[2], (width,), jnp.float32),
        "b1": 0.1 * jax.random.normal(keys[3], (width,), jnp.float32),
        "w2": 0.2 * jax.random.normal(keys[4], (3, 3, width, width), jnp.float32),
        "g2": 1.0 + 0.1 * jax.random.normal(keys[5], (width,), jnp.float32),
        "b2": 0.1 * jax.random.normal(keys[6], (width,), jnp.float32),
        "w3": 0.2 * jax.random.normal(keys[7], (width, inplanes), jnp.float32),
        "g3": 1.0 + 0.1 * jax.random.normal(keys[8], (inplanes,), jnp.float32),
        "b3": 0.1 * jax.random.normal(keys[9], (inplanes,), jnp.float32),
    }

    out = jax.block_until_ready(jax.jit(bottleneck_forward)(x, params))
    ref = jax.block_until_ready(bottleneck_reference(x, params))

    np.testing.assert_allclose(np.asarray(out), np.asarray(ref),
                               rtol=2e-2, atol=2e-2)
    print("KERNEL_OK")
</pallas_src>

<mosaic_0001>
module attributes {stable_mosaic.version = 11 : i64} {
  func.func @_mm_bn_relu_kernel(%arg0: i32, %arg1: i32, %arg2: memref<512x128xbf16, #tpu.memory_space<vmem>>, %arg3: memref<128x128xbf16, #tpu.memory_space<vmem>>, %arg4: memref<1x128xf32, #tpu.memory_space<vmem>>, %arg5: memref<1x128xf32, #tpu.memory_space<vmem>>, %arg6: memref<512x128xbf16, #tpu.memory_space<vmem>>, %arg7: memref<2x128xf32, #tpu.memory_space<vmem>>, %arg8: memref<2x128xf32, #tpu.memory_space<vmem>>) attributes {dimension_semantics = [#tpu.dimension_semantics<arbitrary>, #tpu.dimension_semantics<arbitrary>], iteration_bounds = array<i64: 2, 2>, scalar_prefetch = 0 : i64, scratch_operands = 2 : i64, tpu.core_type = #tpu.core_type<tc>, window_params = [{transform_indices = @transform_0, window_bounds = array<i64: 512, 128>}, {pipeline_mode = #tpu.pipeline_mode<synchronous>, transform_indices = @transform_1, window_bounds = array<i64: 128, 128>}, {pipeline_mode = #tpu.pipeline_mode<synchronous>, transform_indices = @transform_2, window_bounds = array<i64: 1, 128>}, {pipeline_mode = #tpu.pipeline_mode<synchronous>, transform_indices = @transform_3, window_bounds = array<i64: 1, 128>}, {transform_indices = @transform_4, window_bounds = array<i64: 512, 128>}]} {
    %c0_i32 = arith.constant 0 : i32
    %0 = arith.cmpi eq, %arg0, %c0_i32 : i32
    %c0_i32_0 = arith.constant 0 : i32
    %1 = arith.cmpi eq, %arg1, %c0_i32_0 : i32
    %2 = arith.andi %0, %1 : i1
    %3 = arith.extui %2 : i1 to i32
    %c0_i32_1 = arith.constant 0 : i32
    %4 = arith.cmpi ne, %3, %c0_i32_1 : i32
    scf.if %4 {
      %cst_11 = arith.constant 0.000000e+00 : f32
      %19 = vector.broadcast %cst_11 : f32 to vector<2x128xf32>
      %c0_12 = arith.constant 0 : index
      %c0_13 = arith.constant 0 : index
      %20 = vector.load %arg7[%c0_12, %c0_13] : memref<2x128xf32, #tpu.memory_space<vmem>>, vector<2x128xf32>
      tpu.vector_store %arg7[%c0_12, %c0_13], %19 {strides = array<i32>} : memref<2x128xf32, #tpu.memory_space<vmem>>, vector<2x128xf32>,
    } else {
    }
    %c0 = arith.constant 0 : index
    %c0_2 = arith.constant 0 : index
    %5 = vector.load %arg2[%c0, %c0_2] : memref<512x128xbf16, #tpu.memory_space<vmem>>, vector<512x128xbf16>
    %c0_3 = arith.constant 0 : index
    %c0_4 = arith.constant 0 : index
    %6 = vector.load %arg3[%c0_3, %c0_4] : memref<128x128xbf16, #tpu.memory_space<vmem>>, vector<128x128xbf16>
    %cst = arith.constant dense<0.000000e+00> : vector<512x128xf32>
    %7 = tpu.matmul %5, %6, %cst {dimension_numbers = #tpu.dot_dimension_numbers<[1], [0], [0], [1], [0, 0, 1, 1], [], []>} : vector<512x128xbf16>, vector<128x128xbf16>, vector<512x128xf32> -> vector<512x128xf32>
    %c0_i32_5 = arith.constant 0 : i32
    %8 = arith.cmpi eq, %arg0, %c0_i32_5 : i32
    %9 = arith.extui %8 : i1 to i32
    %c0_i32_6 = arith.constant 0 : i32
    %10 = arith.cmpi ne, %9, %c0_i32_6 : i32
    scf.if %10 {
      %c0_11 = arith.constant 0 : index
      %c0_12 = arith.constant 0 : index
      %19 = vector.load %arg7[%c0_11, %c0_12] : memref<2x128xf32, #tpu.memory_space<vmem>>, vector<1x128xf32>
      %cst_13 = arith.constant dense<0.000000e+00> : vector<128xf32>
      %20 = vector.multi_reduction <add>, %7, %cst_13 [0] : vector<512x128xf32> to vector<128xf32>
      %21 = vector.shape_cast %20 : vector<128xf32> to vector<1x128xf32>
      %22 = arith.addf %19, %21 : vector<1x128xf32>
      %c0_14 = arith.constant 0 : index
      %c0_15 = arith.constant 0 : index
      %23 = vector.load %arg7[%c0_14, %c0_15] : memref<2x128xf32, #tpu.memory_space<vmem>>, vector<1x128xf32>
      tpu.vector_store %arg7[%c0_14, %c0_15], %22 {strides = array<i32>} : memref<2x128xf32, #tpu.memory_space<vmem>>, vector<1x128xf32>,
      %c1 = arith.constant 1 : index
      %c0_16 = arith.constant 0 : index
      %24 = vector.load %arg7[%c1, %c0_16] : memref<2x128xf32, #tpu.memory_space<vmem>>, vector<1x128xf32>
      %25 = arith.mulf %7, %7 : vector<512x128xf32>
      %cst_17 = arith.constant dense<0.000000e+00> : vector<128xf32>
      %26 = vector.multi_reduction <add>, %25, %cst_17 [0] : vector<512x128xf32> to vector<128xf32>
      %27 = vector.shape_cast %26 : vector<128xf32> to vector<1x128xf32>
      %28 = arith.addf %24, %27 : vector<1x128xf32>
      %c1_18 = arith.constant 1 : index
      %c0_19 = arith.constant 0 : index
      %29 = vector.load %arg7[%c1_18, %c0_19] : memref<2x128xf32, #tpu.memory_space<vmem>>, vector<1x128xf32>
      tpu.vector_store %arg7[%c1_18, %c0_19], %28 {strides = array<i32>} : memref<2x128xf32, #tpu.memory_space<vmem>>, vector<1x128xf32>,
    } else {
    }
    %c1_i32 = arith.constant 1 : i32
    %11 = arith.cmpi eq, %arg0, %c1_i32 : i32
    %c0_i32_7 = arith.constant 0 : i32
    %12 = arith.cmpi eq, %arg1, %c0_i32_7 : i32
    %13 = arith.andi %11, %12 : i1
    %14 = arith.extui %13 : i1 to i32
    %c0_i32_8 = arith.constant 0 : i32
    %15 = arith.cmpi ne, %14, %c0_i32_8 : i32
    scf.if %15 {
      %c0_11 = arith.constant 0 : index
      %c0_12 = arith.constant 0 : index
      %19 = vector.load %arg7[%c0_11, %c0_12] : memref<2x128xf32, #tpu.memory_space<vmem>>, vector<1x128xf32>
      %cst_13 = arith.constant 9.765625E-4 : f32
      %20 = vector.broadcast %cst_13 : f32 to vector<1x128xf32>
      %21 = arith.mulf %19, %20 : vector<1x128xf32>
      %c1 = arith.constant 1 : index
      %c0_14 = arith.constant 0 : index
      %22 = vector.load %arg7[%c1, %c0_14] : memref<2x128xf32, #tpu.memory_space<vmem>>, vector<1x128xf32>
      %cst_15 = arith.constant 9.765625E-4 : f32
      %23 = vector.broadcast %cst_15 : f32 to vector<1x128xf32>
      %24 = arith.mulf %22, %23 : vector<1x128xf32>
      %25 = arith.mulf %21, %21 : vector<1x128xf32>
      %26 = arith.subf %24, %25 : vector<1x128xf32>
      %c0_16 = arith.constant 0 : index
      %c0_17 = arith.constant 0 : index
      %27 = vector.load %arg4[%c0_16, %c0_17] : memref<1x128xf32, #tpu.memory_space<vmem>>, vector<1x128xf32>
      %cst_18 = arith.constant 9.99999974E-6 : f32
      %28 = vector.broadcast %cst_18 : f32 to vector<1x128xf32>
      %29 = arith.addf %26, %28 : vector<1x128xf32>
      %30 = math.rsqrt %29 : vector<1x128xf32>
      %31 = arith.mulf %27, %30 : vector<1x128xf32>
      %c0_19 = arith.constant 0 : index
      %c0_20 = arith.constant 0 : index
      %32 = vector.load %arg8[%c0_19, %c0_20] : memref<2x128xf32, #tpu.memory_space<vmem>>, vector<1x128xf32>
      tpu.vector_store %arg8[%c0_19, %c0_20], %31 {strides = array<i32>} : memref<2x128xf32, #tpu.memory_space<vmem>>, vector<1x128xf32>,
      %c0_21 = arith.constant 0 : index
      %c0_22 = arith.constant 0 : index
      %33 = vector.load %arg5[%c0_21, %c0_22] : memref<1x128xf32, #tpu.memory_space<vmem>>, vector<1x128xf32>
      %34 = arith.mulf %21, %31 : vector<1x128xf32>
      %35 = arith.subf %33, %34 : vector<1x128xf32>
      %c1_23 = arith.constant 1 : index
      %c0_24 = arith.constant 0 : index
      %36 = vector.load %arg8[%c1_23, %c0_24] : memref<2x128xf32, #tpu.memory_space<vmem>>, vector<1x128xf32>
      tpu.vector_store %arg8[%c1_23, %c0_24], %35 {strides = array<i32>} : memref<2x128xf32, #tpu.memory_space<vmem>>, vector<1x128xf32>,
    } else {
    }
    %c1_i32_9 = arith.constant 1 : i32
    %16 = arith.cmpi eq, %arg0, %c1_i32_9 : i32
    %17 = arith.extui %16 : i1 to i32
    %c0_i32_10 = arith.constant 0 : i32
    %18 = arith.cmpi ne, %17, %c0_i32_10 : i32
    scf.if %18 {
      %c0_11 = arith.constant 0 : index
      %c0_12 = arith.constant 0 : index
      %19 = vector.load %arg8[%c0_11, %c0_12] : memref<2x128xf32, #tpu.memory_space<vmem>>, vector<1x128xf32>
      %20 = vector.broadcast %19 : vector<1x128xf32> to vector<512x128xf32>
      %21 = arith.mulf %7, %20 : vector<512x128xf32>
      %c1 = arith.constant 1 : index
      %c0_13 = arith.constant 0 : index
      %22 = vector.load %arg8[%c1, %c0_13] : memref<2x128xf32, #tpu.memory_space<vmem>>, vector<1x128xf32>
      %23 = vector.broadcast %22 : vector<1x128xf32> to vector<512x128xf32>
      %24 = arith.addf %21, %23 : vector<512x128xf32>
      %cst_14 = arith.constant 0.000000e+00 : f32
      %25 = vector.broadcast %cst_14 : f32 to vector<512x128xf32>
      %26 = arith.maximumf %24, %25 : vector<512x128xf32>
      %27 = arith.truncf %26 : vector<512x128xf32> to vector<512x128xbf16>
      %c0_15 = arith.constant 0 : index
      %c0_16 = arith.constant 0 : index
      %28 = vector.load %arg6[%c0_15, %c0_16] : memref<512x128xbf16, #tpu.memory_space<vmem>>, vector<512x128xbf16>
      tpu.vector_store %arg6[%c0_15, %c0_16], %27 {strides = array<i32>} : memref<512x128xbf16, #tpu.memory_space<vmem>>, vector<512x128xbf16>,
    } else {
    }
    return
  }
  func.func @transform_0(%arg0: i32, %arg1: i32) -> (i32, i32) {
    %c0_i32 = arith.constant 0 : i32
    %c0_i32_0 = arith.constant 0 : i32
    return %arg1, %c0_i32 : i32, i32
  }
  func.func @transform_1(%arg0: i32, %arg1: i32) -> (i32, i32) {
    %c0_i32 = arith.constant 0 : i32
    %c0_i32_0 = arith.constant 0 : i32
    %c0_i32_1 = arith.constant 0 : i32
    return %c0_i32, %c0_i32_0 : i32, i32
  }
  func.func @transform_2(%arg0: i32, %arg1: i32) -> (i32, i32) {
    %c0_i32 = arith.constant 0 : i32
    %c0_i32_0 = arith.constant 0 : i32
    %c0_i32_1 = arith.constant 0 : i32
    return %c0_i32, %c0_i32_0 : i32, i32
  }
  func.func @transform_3(%arg0: i32, %arg1: i32) -> (i32, i32) {
    %c0_i32 = arith.constant 0 : i32
    %c0_i32_0 = arith.constant 0 : i32
    %c0_i32_1 = arith.constant 0 : i32
    return %c0_i32, %c0_i32_0 : i32, i32
  }
  func.func @transform_4(%arg0: i32, %arg1: i32) -> (i32, i32) {
    %0 = arith.muli %arg1, %arg0 : i32
    %c0_i32 = arith.constant 0 : i32
    %c0_i32_0 = arith.constant 0 : i32
    return %0, %c0_i32 : i32, i32
  }
}

module attributes {stable_mosaic.version = 11 : i64} {
  func.func @_conv3x3_bn_relu_kernel(%arg0: i32, %arg1: i32, %arg2: memref<1x256x128xbf16, #tpu.memory_space<vmem>>, %arg3: memref<9x128x128xbf16, #tpu.memory_space<vmem>>, %arg4: memref<1x128xf32, #tpu.memory_space<vmem>>, %arg5: memref<1x128xf32, #tpu.memory_space<vmem>>, %arg6: memref<1x256x128xbf16, #tpu.memory_space<vmem>>, %arg7: memref<2x128xf32, #tpu.memory_space<vmem>>, %arg8: memref<2x128xf32, #tpu.memory_space<vmem>>) attributes {dimension_semantics = [#tpu.dimension_semantics<arbitrary>, #tpu.dimension_semantics<arbitrary>], iteration_bounds = array<i64: 2, 4>, scalar_prefetch = 0 : i64, scratch_operands = 2 : i64, tpu.core_type = #tpu.core_type<tc>, window_params = [{transform_indices = @transform_0, window_bounds = array<i64: 1, 256, 128>}, {pipeline_mode = #tpu.pipeline_mode<synchronous>, transform_indices = @transform_1, window_bounds = array<i64: 9, 128, 128>}, {pipeline_mode = #tpu.pipeline_mode<synchronous>, transform_indices = @transform_2, window_bounds = array<i64: 1, 128>}, {pipeline_mode = #tpu.pipeline_mode<synchronous>, transform_indices = @transform_3, window_bounds = array<i64: 1, 128>}, {transform_indices = @transform_4, window_bounds = array<i64: 1, 256, 128>}]} {
    %c0_i32 = arith.constant 0 : i32
    %0 = arith.cmpi eq, %arg0, %c0_i32 : i32
    %c0_i32_0 = arith.constant 0 : i32
    %1 = arith.cmpi eq, %arg1, %c0_i32_0 : i32
    %2 = arith.andi %0, %1 : i1
    %3 = arith.extui %2 : i1 to i32
    %c0_i32_1 = arith.constant 0 : i32
    %4 = arith.cmpi ne, %3, %c0_i32_1 : i32
    scf.if %4 {
      %cst_53 = arith.constant 0.000000e+00 : f32
      %107 = vector.broadcast %cst_53 : f32 to vector<2x128xf32>
      %c0_54 = arith.constant 0 : index
      %c0_55 = arith.constant 0 : index
      %108 = vector.load %arg7[%c0_54, %c0_55] : memref<2x128xf32, #tpu.memory_space<vmem>>, vector<2x128xf32>
      tpu.vector_store %arg7[%c0_54, %c0_55], %107 {strides = array<i32>} : memref<2x128xf32, #tpu.memory_space<vmem>>, vector<2x128xf32>,
    } else {
    }
    %c0 = arith.constant 0 : index
    %c0_2 = arith.constant 0 : index
    %c0_3 = arith.constant 0 : index
    %5 = vector.load %arg2[%c0, %c0_2, %c0_3] : memref<1x256x128xbf16, #tpu.memory_space<vmem>>, vector<1x256x128xbf16>
    %6 = vector.shape_cast %5 : vector<1x256x128xbf16> to vector<256x128xbf16>
    %7 = tpu.iota {dimensions = array<i32: 0>} : vector<256x1xi32>
    %c16_i32 = arith.constant 16 : i32
    %c0_i32_4 = arith.constant 0 : i32
    %8 = arith.cmpi eq, %c16_i32, %c0_i32_4 : i32
    %c1_i32 = arith.constant 1 : i32
    %9 = arith.select %8, %c1_i32, %c16_i32 : i32
    %10 = vector.broadcast %9 : i32 to vector<256x1xi32>
    %11 = arith.remsi %7, %10 : vector<256x1xi32>
    %c0_i32_5 = arith.constant 0 : i32
    %12 = vector.broadcast %c0_i32_5 : i32 to vector<256x1xi32>
    %13 = arith.cmpi ne, %11, %12 : vector<256x1xi32>
    %c0_i32_6 = arith.constant 0 : i32
    %14 = vector.broadcast %c0_i32_6 : i32 to vector<256x1xi32>
    %15 = arith.cmpi slt, %11, %14 : vector<256x1xi32>
    %c0_i32_7 = arith.constant 0 : i32
    %16 = arith.cmpi slt, %9, %c0_i32_7 : i32
    %17 = vector.broadcast %16 : i1 to vector<256x1xi1>
    %18 = vector.broadcast %17 : vector<256x1xi1> to vector<256x1xi1>
    %19 = arith.xori %15, %18 : vector<256x1xi1>
    %20 = arith.andi %19, %13 : vector<256x1xi1>
    %21 = vector.broadcast %9 : i32 to vector<256x1xi32>
    %22 = arith.addi %11, %21 : vector<256x1xi32>
    %23 = arith.select %20, %22, %11 : vector<256x1xi1>, vector<256x1xi32>
    %cst = arith.constant 0.000000e+00 : bf16
    %24 = vector.broadcast %cst : bf16 to vector<256x128xbf16>
    %c15_i32 = arith.constant 15 : i32
    %25 = vector.broadcast %c15_i32 : i32 to vector<256x1xi32>
    %26 = arith.cmpi eq, %23, %25 : vector<256x1xi32>
    %27 = vector.shape_cast %26 : vector<256x1xi1> to vector<256x1xi1>
    %28 = vector.broadcast %27 : vector<256x1xi1> to vector<256x128xi1>
    %29 = arith.select %28, %24, %6 : vector<256x128xi1>, vector<256x128xbf16>
    %c0_i32_8 = arith.constant 0 : i32
    %30 = vector.broadcast %c0_i32_8 : i32 to vector<256x1xi32>
    %31 = arith.cmpi eq, %23, %30 : vector<256x1xi32>
    %32 = vector.shape_cast %31 : vector<256x1xi1> to vector<256x1xi1>
    %33 = vector.broadcast %32 : vector<256x1xi1> to vector<256x128xi1>
    %34 = arith.select %33, %24, %6 : vector<256x128xi1>, vector<256x128xbf16>
    %cst_9 = arith.constant 0.000000e+00 : f32
    %35 = vector.broadcast %cst_9 : f32 to vector<256x128xf32>
    %cst_10 = arith.constant 0.000000e+00 : bf16
    %36 = vector.broadcast %cst_10 : bf16 to vector<17x128xbf16>
    %37 = vector.extract_strided_slice %29 {offsets = [0, 0], sizes = [239, 128], strides = [1, 1]} : vector<256x128xbf16> to vector<239x128xbf16>
    %38 = tpu.concatenate %36, %37 in 0 : vector<17x128xbf16>, vector<239x128xbf16> -> vector<256x128xbf16>
    %c0_11 = arith.constant 0 : index
    %c0_12 = arith.constant 0 : index
    %c0_13 = arith.constant 0 : index
    %39 = vector.load %arg3[%c0_11, %c0_12, %c0_13] : memref<9x128x128xbf16, #tpu.memory_space<vmem>>, vector<1x128x128xbf16>
    %40 = vector.shape_cast %39 : vector<1x128x128xbf16> to vector<128x128xbf16>
    %cst_14 = arith.constant dense<0.000000e+00> : vector<256x128xf32>
    %41 = tpu.matmul %38, %40, %cst_14 {dimension_numbers = #tpu.dot_dimension_numbers<[1], [0], [0], [1], [0, 0, 1, 1], [], []>} : vector<256x128xbf16>, vector<128x128xbf16>, vector<256x128xf32> -> vector<256x128xf32>
    %42 = arith.addf %35, %41 : vector<256x128xf32>
    %cst_15 = arith.constant 0.000000e+00 : bf16
    %43 = vector.broadcast %cst_15 : bf16 to vector<16x128xbf16>
    %44 = vector.extract_strided_slice %6 {offsets = [0, 0], sizes = [240, 128], strides = [1, 1]} : vector<256x128xbf16> to vector<240x128xbf16>
    %45 = tpu.concatenate %43, %44 in 0 : vector<16x128xbf16>, vector<240x128xbf16> -> vector<256x128xbf16>
    %c1 = arith.constant 1 : index
    %c0_16 = arith.constant 0 : index
    %c0_17 = arith.constant 0 : index
    %46 = vector.load %arg3[%c1, %c0_16, %c0_17] : memref<9x128x128xbf16, #tpu.memory_space<vmem>>, vector<1x128x128xbf16>
    %47 = vector.shape_cast %46 : vector<1x128x128xbf16> to vector<128x128xbf16>
    %cst_18 = arith.constant dense<0.000000e+00> : vector<256x128xf32>
    %48 = tpu.matmul %45, %47, %cst_18 {dimension_numbers = #tpu.dot_dimension_numbers<[1], [0], [0], [1], [0, 0, 1, 1], [], []>} : vector<256x128xbf16>, vector<128x128xbf16>, vector<256x128xf32> -> vector<256x128xf32>
    %49 = arith.addf %42, %48 : vector<256x128xf32>
    %cst_19 = arith.constant 0.000000e+00 : bf16
    %50 = vector.broadcast %cst_19 : bf16 to vector<15x128xbf16>
    %51 = vector.extract_strided_slice %34 {offsets = [0, 0], sizes = [241, 128], strides = [1, 1]} : vector<256x128xbf16> to vector<241x128xbf16>
    %52 = tpu.concatenate %50, %51 in 0 : vector<15x128xbf16>, vector<241x128xbf16> -> vector<256x128xbf16>
    %c2 = arith.constant 2 : index
    %c0_20 = arith.constant 0 : index
    %c0_21 = arith.constant 0 : index
    %53 = vector.load %arg3[%c2, %c0_20, %c0_21] : memref<9x128x128xbf16, #tpu.memory_space<vmem>>, vector<1x128x128xbf16>
    %54 = vector.shape_cast %53 : vector<1x128x128xbf16> to vector<128x128xbf16>
    %cst_22 = arith.constant dense<0.000000e+00> : vector<256x128xf32>
    %55 = tpu.matmul %52, %54, %cst_22 {dimension_numbers = #tpu.dot_dimension_numbers<[1], [0], [0], [1], [0, 0, 1, 1], [], []>} : vector<256x128xbf16>, vector<128x128xbf16>, vector<256x128xf32> -> vector<256x128xf32>
    %56 = arith.addf %49, %55 : vector<256x128xf32>
    %cst_23 = arith.constant 0.000000e+00 : bf16
    %57 = vector.broadcast %cst_23 : bf16 to vector<1x128xbf16>
    %58 = vector.extract_strided_slice %29 {offsets = [0, 0], sizes = [255, 128], strides = [1, 1]} : vector<256x128xbf16> to vector<255x128xbf16>
    %59 = tpu.concatenate %57, %58 in 0 : vector<1x128xbf16>, vector<255x128xbf16> -> vector<256x128xbf16>
    %c3 = arith.constant 3 : index
    %c0_24 = arith.constant 0 : index
    %c0_25 = arith.constant 0 : index
    %60 = vector.load %arg3[%c3, %c0_24, %c0_25] : memref<9x128x128xbf16, #tpu.memory_space<vmem>>, vector<1x128x128xbf16>
    %61 = vector.shape_cast %60 : vector<1x128x128xbf16> to vector<128x128xbf16>
    %cst_26 = arith.constant dense<0.000000e+00> : vector<256x128xf32>
    %62 = tpu.matmul %59, %61, %cst_26 {dimension_numbers = #tpu.dot_dimension_numbers<[1], [0], [0], [1], [0, 0, 1, 1], [], []>} : vector<256x128xbf16>, vector<128x128xbf16>, vector<256x128xf32> -> vector<256x128xf32>
    %63 = arith.addf %56, %62 : vector<256x128xf32>
    %c4 = arith.constant 4 : index
    %c0_27 = arith.constant 0 : index
    %c0_28 = arith.constant 0 : index
    %64 = vector.load %arg3[%c4, %c0_27, %c0_28] : memref<9x128x128xbf16, #tpu.memory_space<vmem>>, vector<1x128x128xbf16>
    %65 = vector.shape_cast %64 : vector<1x128x128xbf16> to vector<128x128xbf16>
    %cst_29 = arith.constant dense<0.000000e+00> : vector<256x128xf32>
    %66 = tpu.matmul %6, %65, %cst_29 {dimension_numbers = #tpu.dot_dimension_numbers<[1], [0], [0], [1], [0, 0, 1, 1], [], []>} : vector<256x128xbf16>, vector<128x128xbf16>, vector<256x128xf32> -> vector<256x128xf32>
    %67 = arith.addf %63, %66 : vector<256x128xf32>
    %68 = vector.extract_strided_slice %34 {offsets = [1, 0], sizes = [255, 128], strides = [1, 1]} : vector<256x128xbf16> to vector<255x128xbf16>
    %cst_30 = arith.constant 0.000000e+00 : bf16
    %69 = vector.broadcast %cst_30 : bf16 to vector<1x128xbf16>
    %70 = tpu.concatenate %68, %69 in 0 : vector<255x128xbf16>, vector<1x128xbf16> -> vector<256x128xbf16>
    %c5 = arith.constant 5 : index
    %c0_31 = arith.constant 0 : index
    %c0_32 = arith.constant 0 : index
    %71 = vector.load %arg3[%c5, %c0_31, %c0_32] : memref<9x128x128xbf16, #tpu.memory_space<vmem>>, vector<1x128x128xbf16>
    %72 = vector.shape_cast %71 : vector<1x128x128xbf16> to vector<128x128xbf16>
    %cst_33 = arith.constant dense<0.000000e+00> : vector<256x128xf32>
    %73 = tpu.matmul %70, %72, %cst_33 {dimension_numbers = #tpu.dot_dimension_numbers<[1], [0], [0], [1], [0, 0, 1, 1], [], []>} : vector<256x128xbf16>, vector<128x128xbf16>, vector<256x128xf32> -> vector<256x128xf32>
    %74 = arith.addf %67, %73 : vector<256x128xf32>
    %75 = vector.extract_strided_slice %29 {offsets = [15, 0], sizes = [241, 128], strides = [1, 1]} : vector<256x128xbf16> to vector<241x128xbf16>
    %cst_34 = arith.constant 0.000000e+00 : bf16
    %76 = vector.broadcast %cst_34 : bf16 to vector<15x128xbf16>
    %77 = tpu.concatenate %75, %76 in 0 : vector<241x128xbf16>, vector<15x128xbf16> -> vector<256x128xbf16>
    %c6 = arith.constant 6 : index
    %c0_35 = arith.constant 0 : index
    %c0_36 = arith.constant 0 : index
    %78 = vector.load %arg3[%c6, %c0_35, %c0_36] : memref<9x128x128xbf16, #tpu.memory_space<vmem>>, vector<1x128x128xbf16>
    %79 = vector.shape_cast %78 : vector<1x128x128xbf16> to vector<128x128xbf16>
    %cst_37 = arith.constant dense<0.000000e+00> : vector<256x128xf32>
    %80 = tpu.matmul %77, %79, %cst_37 {dimension_numbers = #tpu.dot_dimension_numbers<[1], [0], [0], [1], [0, 0, 1, 1], [], []>} : vector<256x128xbf16>, vector<128x128xbf16>, vector<256x128xf32> -> vector<256x128xf32>
    %81 = arith.addf %74, %80 : vector<256x128xf32>
    %82 = vector.extract_strided_slice %6 {offsets = [16, 0], sizes = [240, 128], strides = [1, 1]} : vector<256x128xbf16> to vector<240x128xbf16>
    %cst_38 = arith.constant 0.000000e+00 : bf16
    %83 = vector.broadcast %cst_38 : bf16 to vector<16x128xbf16>
    %84 = tpu.concatenate %82, %83 in 0 : vector<240x128xbf16>, vector<16x128xbf16> -> vector<256x128xbf16>
    %c7 = arith.constant 7 : index
    %c0_39 = arith.constant 0 : index
    %c0_40 = arith.constant 0 : index
    %85 = vector.load %arg3[%c7, %c0_39, %c0_40] : memref<9x128x128xbf16, #tpu.memory_space<vmem>>, vector<1x128x128xbf16>
    %86 = vector.shape_cast %85 : vector<1x128x128xbf16> to vector<128x128xbf16>
    %cst_41 = arith.constant dense<0.000000e+00> : vector<256x128xf32>
    %87 = tpu.matmul %84, %86, %cst_41 {dimension_numbers = #tpu.dot_dimension_numbers<[1], [0], [0], [1], [0, 0, 1, 1], [], []>} : vector<256x128xbf16>, vector<128x128xbf16>, vector<256x128xf32> -> vector<256x128xf32>
    %88 = arith.addf %81, %87 : vector<256x128xf32>
    %89 = vector.extract_strided_slice %34 {offsets = [17, 0], sizes = [239, 128], strides = [1, 1]} : vector<256x128xbf16> to vector<239x128xbf16>
    %cst_42 = arith.constant 0.000000e+00 : bf16
    %90 = vector.broadcast %cst_42 : bf16 to vector<17x128xbf16>
    %91 = tpu.concatenate %89, %90 in 0 : vector<239x128xbf16>, vector<17x128xbf16> -> vector<256x128xbf16>
    %c8 = arith.constant 8 : index
    %c0_43 = arith.constant 0 : index
    %c0_44 = arith.constant 0 : index
    %92 = vector.load %arg3[%c8, %c0_43, %c0_44] : memref<9x128x128xbf16, #tpu.memory_space<vmem>>, vector<1x128x128xbf16>
    %93 = vector.shape_cast %92 : vector<1x128x128xbf16> to vector<128x128xbf16>
    %cst_45 = arith.constant dense<0.000000e+00> : vector<256x128xf32>
    %94 = tpu.matmul %91, %93, %cst_45 {dimension_numbers = #tpu.dot_dimension_numbers<[1], [0], [0], [1], [0, 0, 1, 1], [], []>} : vector<256x128xbf16>, vector<128x128xbf16>, vector<256x128xf32> -> vector<256x128xf32>
    %95 = arith.addf %88, %94 : vector<256x128xf32>
    %c0_i32_46 = arith.constant 0 : i32
    %96 = arith.cmpi eq, %arg0, %c0_i32_46 : i32
    %97 = arith.extui %96 : i1 to i32
    %c0_i32_47 = arith.constant 0 : i32
    %98 = arith.cmpi ne, %97, %c0_i32_47 : i32
    scf.if %98 {
      %c0_53 = arith.constant 0 : index
      %c0_54 = arith.constant 0 : index
      %107 = vector.load %arg7[%c0_53, %c0_54] : memref<2x128xf32, #tpu.memory_space<vmem>>, vector<1x128xf32>
      %cst_55 = arith.constant dense<0.000000e+00> : vector<128xf32>
      %108 = vector.multi_reduction <add>, %95, %cst_55 [0] : vector<256x128xf32> to vector<128xf32>
      %109 = vector.shape_cast %108 : vector<128xf32> to vector<1x128xf32>
      %110 = arith.addf %107, %109 : vector<1x128xf32>
      %c0_56 = arith.constant 0 : index
      %c0_57 = arith.constant 0 : index
      %111 = vector.load %arg7[%c0_56, %c0_57] : memref<2x128xf32, #tpu.memory_space<vmem>>, vector<1x128xf32>
      tpu.vector_store %arg7[%c0_56, %c0_57], %110 {strides = array<i32>} : memref<2x128xf32, #tpu.memory_space<vmem>>, vector<1x128xf32>,
      %c1_58 = arith.constant 1 : index
      %c0_59 = arith.constant 0 : index
      %112 = vector.load %arg7[%c1_58, %c0_59] : memref<2x128xf32, #tpu.memory_space<vmem>>, vector<1x128xf32>
      %113 = arith.mulf %95, %95 : vector<256x128xf32>
      %cst_60 = arith.constant dense<0.000000e+00> : vector<128xf32>
      %114 = vector.multi_reduction <add>, %113, %cst_60 [0] : vector<256x128xf32> to vector<128xf32>
      %115 = vector.shape_cast %114 : vector<128xf32> to vector<1x128xf32>
      %116 = arith.addf %112, %115 : vector<1x128xf32>
      %c1_61 = arith.constant 1 : index
      %c0_62 = arith.constant 0 : index
      %117 = vector.load %arg7[%c1_61, %c0_62] : memref<2x128xf32, #tpu.memory_space<vmem>>, vector<1x128xf32>
      tpu.vector_store %arg7[%c1_61, %c0_62], %116 {strides = array<i32>} : memref<2x128xf32, #tpu.memory_space<vmem>>, vector<1x128xf32>,
    } else {
    }
    %c1_i32_48 = arith.constant 1 : i32
    %99 = arith.cmpi eq, %arg0, %c1_i32_48 : i32
    %c0_i32_49 = arith.constant 0 : i32
    %100 = arith.cmpi eq, %arg1, %c0_i32_49 : i32
    %101 = arith.andi %99, %100 : i1
    %102 = arith.extui %101 : i1 to i32
    %c0_i32_50 = arith.constant 0 : i32
    %103 = arith.cmpi ne, %102, %c0_i32_50 : i32
    scf.if %103 {
      %c0_53 = arith.constant 0 : index
      %c0_54 = arith.constant 0 : index
      %107 = vector.load %arg7[%c0_53, %c0_54] : memref<2x128xf32, #tpu.memory_space<vmem>>, vector<1x128xf32>
      %cst_55 = arith.constant 9.765625E-4 : f32
      %108 = vector.broadcast %cst_55 : f32 to vector<1x128xf32>
      %109 = arith.mulf %107, %108 : vector<1x128xf32>
      %c1_56 = arith.constant 1 : index
      %c0_57 = arith.constant 0 : index
      %110 = vector.load %arg7[%c1_56, %c0_57] : memref<2x128xf32, #tpu.memory_space<vmem>>, vector<1x128xf32>
      %cst_58 = arith.constant 9.765625E-4 : f32
      %111 = vector.broadcast %cst_58 : f32 to vector<1x128xf32>
      %112 = arith.mulf %110, %111 : vector<1x128xf32>
      %113 = arith.mulf %109, %109 : vector<1x128xf32>
      %114 = arith.subf %112, %113 : vector<1x128xf32>
      %c0_59 = arith.constant 0 : index
      %c0_60 = arith.constant 0 : index
      %115 = vector.load %arg4[%c0_59, %c0_60] : memref<1x128xf32, #tpu.memory_space<vmem>>, vector<1x128xf32>
      %cst_61 = arith.constant 9.99999974E-6 : f32
      %116 = vector.broadcast %cst_61 : f32 to vector<1x128xf32>
      %117 = arith.addf %114, %116 : vector<1x128xf32>
      %118 = math.rsqrt %117 : vector<1x128xf32>
      %119 = arith.mulf %115, %118 : vector<1x128xf32>
      %c0_62 = arith.constant 0 : index
      %c0_63 = arith.constant 0 : index
      %120 = vector.load %arg8[%c0_62, %c0_63] : memref<2x128xf32, #tpu.memory_space<vmem>>, vector<1x128xf32>
      tpu.vector_store %arg8[%c0_62, %c0_63], %119 {strides = array<i32>} : memref<2x128xf32, #tpu.memory_space<vmem>>, vector<1x128xf32>,
      %c0_64 = arith.constant 0 : index
      %c0_65 = arith.constant 0 : index
      %121 = vector.load %arg5[%c0_64, %c0_65] : memref<1x128xf32, #tpu.memory_space<vmem>>, vector<1x128xf32>
      %122 = arith.mulf %109, %119 : vector<1x128xf32>
      %123 = arith.subf %121, %122 : vector<1x128xf32>
      %c1_66 = arith.constant 1 : index
      %c0_67 = arith.constant 0 : index
      %124 = vector.load %arg8[%c1_66, %c0_67] : memref<2x128xf32, #tpu.memory_space<vmem>>, vector<1x128xf32>
      tpu.vector_store %arg8[%c1_66, %c0_67], %123 {strides = array<i32>} : memref<2x128xf32, #tpu.memory_space<vmem>>, vector<1x128xf32>,
    } else {
    }
    %c1_i32_51 = arith.constant 1 : i32
    %104 = arith.cmpi eq, %arg0, %c1_i32_51 : i32
    %105 = arith.extui %104 : i1 to i32
    %c0_i32_52 = arith.constant 0 : i32
    %106 = arith.cmpi ne, %105, %c0_i32_52 : i32
    scf.if %106 {
      %c0_53 = arith.constant 0 : index
      %c0_54 = arith.constant 0 : index
      %107 = vector.load %arg8[%c0_53, %c0_54] : memref<2x128xf32, #tpu.memory_space<vmem>>, vector<1x128xf32>
      %108 = vector.broadcast %107 : vector<1x128xf32> to vector<256x128xf32>
      %109 = arith.mulf %95, %108 : vector<256x128xf32>
      %c1_55 = arith.constant 1 : index
      %c0_56 = arith.constant 0 : index
      %110 = vector.load %arg8[%c1_55, %c0_56] : memref<2x128xf32, #tpu.memory_space<vmem>>, vector<1x128xf32>
      %111 = vector.broadcast %110 : vector<1x128xf32> to vector<256x128xf32>
      %112 = arith.addf %109, %111 : vector<256x128xf32>
      %cst_57 = arith.constant 0.000000e+00 : f32
      %113 = vector.broadcast %cst_57 : f32 to vector<256x128xf32>
      %114 = arith.maximumf %112, %113 : vector<256x128xf32>
      %115 = arith.truncf %114 : vector<256x128xf32> to vector<256x128xbf16>
      %c0_58 = arith.constant 0 : index
      %c0_59 = arith.constant 0 : index
      %c0_60 = arith.constant 0 : index
      %116 = vector.load %arg6[%c0_58, %c0_59, %c0_60] : memref<1x256x128xbf16, #tpu.memory_space<vmem>>, vector<1x256x128xbf16>
      %117 = vector.shape_cast %116 : vector<1x256x128xbf16> to vector<256x128xbf16>
      %118 = vector.shape_cast %115 : vector<256x128xbf16> to vector<1x256x128xbf16>
      tpu.vector_store %arg6[%c0_58, %c0_59, %c0_60], %118 {strides = array<i32>} : memref<1x256x128xbf16, #tpu.memory_space<vmem>>, vector<1x256x128xbf16>,
    } else {
    }
    return
  }
  func.func @transform_0(%arg0: i32, %arg1: i32) -> (i32, i32, i32) {
    %c0_i32 = arith.constant 0 : i32
    %c0_i32_0 = arith.constant 0 : i32
    %c0_i32_1 = arith.constant 0 : i32
    return %arg1, %c0_i32, %c0_i32_0 : i32, i32, i32
  }
  func.func @transform_1(%arg0: i32, %arg1: i32) -> (i32, i32, i32) {
    %c0_i32 = arith.constant 0 : i32
    %c0_i32_0 = arith.constant 0 : i32
    %c0_i32_1 = arith.constant 0 : i32
    %c0_i32_2 = arith.constant 0 : i32
    return %c0_i32, %c0_i32_0, %c0_i32_1 : i32, i32, i32
  }
  func.func @transform_2(%arg0: i32, %arg1: i32) -> (i32, i32) {
    %c0_i32 = arith.constant 0 : i32
    %c0_i32_0 = arith.constant 0 : i32
    %c0_i32_1 = arith.constant 0 : i32
    return %c0_i32, %c0_i32_0 : i32, i32
  }
  func.func @transform_3(%arg0: i32, %arg1: i32) -> (i32, i32) {
    %c0_i32 = arith.constant 0 : i32
    %c0_i32_0 = arith.constant 0 : i32
    %c0_i32_1 = arith.constant 0 : i32
    return %c0_i32, %c0_i32_0 : i32, i32
  }
  func.func @transform_4(%arg0: i32, %arg1: i32) -> (i32, i32, i32) {
    %0 = arith.muli %arg1, %arg0 : i32
    %c0_i32 = arith.constant 0 : i32
    %c0_i32_0 = arith.constant 0 : i32
    %c0_i32_1 = arith.constant 0 : i32
    return %0, %c0_i32, %c0_i32_0 : i32, i32, i32
  }
}

module attributes {stable_mosaic.version = 11 : i64} {
  func.func @_mm_bn_add_relu_kernel(%arg0: i32, %arg1: i32, %arg2: memref<512x128xbf16, #tpu.memory_space<vmem>>, %arg3: memref<128x128xbf16, #tpu.memory_space<vmem>>, %arg4: memref<1x128xf32, #tpu.memory_space<vmem>>, %arg5: memref<1x128xf32, #tpu.memory_space<vmem>>, %arg6: memref<512x128xbf16, #tpu.memory_space<vmem>>, %arg7: memref<512x128xf32, #tpu.memory_space<vmem>>, %arg8: memref<2x128xf32, #tpu.memory_space<vmem>>, %arg9: memref<2x128xf32, #tpu.memory_space<vmem>>) attributes {dimension_semantics = [#tpu.dimension_semantics<arbitrary>, #tpu.dimension_semantics<arbitrary>], iteration_bounds = array<i64: 2, 2>, scalar_prefetch = 0 : i64, scratch_operands = 2 : i64, tpu.core_type = #tpu.core_type<tc>, window_params = [{transform_indices = @transform_0, window_bounds = array<i64: 512, 128>}, {pipeline_mode = #tpu.pipeline_mode<synchronous>, transform_indices = @transform_1, window_bounds = array<i64: 128, 128>}, {pipeline_mode = #tpu.pipeline_mode<synchronous>, transform_indices = @transform_2, window_bounds = array<i64: 1, 128>}, {pipeline_mode = #tpu.pipeline_mode<synchronous>, transform_indices = @transform_3, window_bounds = array<i64: 1, 128>}, {transform_indices = @transform_4, window_bounds = array<i64: 512, 128>}, {transform_indices = @transform_5, window_bounds = array<i64: 512, 128>}]} {
    %c0_i32 = arith.constant 0 : i32
    %0 = arith.cmpi eq, %arg0, %c0_i32 : i32
    %c0_i32_0 = arith.constant 0 : i32
    %1 = arith.cmpi eq, %arg1, %c0_i32_0 : i32
    %2 = arith.andi %0, %1 : i1
    %3 = arith.extui %2 : i1 to i32
    %c0_i32_1 = arith.constant 0 : i32
    %4 = arith.cmpi ne, %3, %c0_i32_1 : i32
    scf.if %4 {
      %cst_11 = arith.constant 0.000000e+00 : f32
      %19 = vector.broadcast %cst_11 : f32 to vector<2x128xf32>
      %c0_12 = arith.constant 0 : index
      %c0_13 = arith.constant 0 : index
      %20 = vector.load %arg8[%c0_12, %c0_13] : memref<2x128xf32, #tpu.memory_space<vmem>>, vector<2x128xf32>
      tpu.vector_store %arg8[%c0_12, %c0_13], %19 {strides = array<i32>} : memref<2x128xf32, #tpu.memory_space<vmem>>, vector<2x128xf32>,
    } else {
    }
    %c0 = arith.constant 0 : index
    %c0_2 = arith.constant 0 : index
    %5 = vector.load %arg2[%c0, %c0_2] : memref<512x128xbf16, #tpu.memory_space<vmem>>, vector<512x128xbf16>
    %c0_3 = arith.constant 0 : index
    %c0_4 = arith.constant 0 : index
    %6 = vector.load %arg3[%c0_3, %c0_4] : memref<128x128xbf16, #tpu.memory_space<vmem>>, vector<128x128xbf16>
    %cst = arith.constant dense<0.000000e+00> : vector<512x128xf32>
    %7 = tpu.matmul %5, %6, %cst {dimension_numbers = #tpu.dot_dimension_numbers<[1], [0], [0], [1], [0, 0, 1, 1], [], []>} : vector<512x128xbf16>, vector<128x128xbf16>, vector<512x128xf32> -> vector<512x128xf32>
    %c0_i32_5 = arith.constant 0 : i32
    %8 = arith.cmpi eq, %arg0, %c0_i32_5 : i32
    %9 = arith.extui %8 : i1 to i32
    %c0_i32_6 = arith.constant 0 : i32
    %10 = arith.cmpi ne, %9, %c0_i32_6 : i32
    scf.if %10 {
      %c0_11 = arith.constant 0 : index
      %c0_12 = arith.constant 0 : index
      %19 = vector.load %arg8[%c0_11, %c0_12] : memref<2x128xf32, #tpu.memory_space<vmem>>, vector<1x128xf32>
      %cst_13 = arith.constant dense<0.000000e+00> : vector<128xf32>
      %20 = vector.multi_reduction <add>, %7, %cst_13 [0] : vector<512x128xf32> to vector<128xf32>
      %21 = vector.shape_cast %20 : vector<128xf32> to vector<1x128xf32>
      %22 = arith.addf %19, %21 : vector<1x128xf32>
      %c0_14 = arith.constant 0 : index
      %c0_15 = arith.constant 0 : index
      %23 = vector.load %arg8[%c0_14, %c0_15] : memref<2x128xf32, #tpu.memory_space<vmem>>, vector<1x128xf32>
      tpu.vector_store %arg8[%c0_14, %c0_15], %22 {strides = array<i32>} : memref<2x128xf32, #tpu.memory_space<vmem>>, vector<1x128xf32>,
      %c1 = arith.constant 1 : index
      %c0_16 = arith.constant 0 : index
      %24 = vector.load %arg8[%c1, %c0_16] : memref<2x128xf32, #tpu.memory_space<vmem>>, vector<1x128xf32>
      %25 = arith.mulf %7, %7 : vector<512x128xf32>
      %cst_17 = arith.constant dense<0.000000e+00> : vector<128xf32>
      %26 = vector.multi_reduction <add>, %25, %cst_17 [0] : vector<512x128xf32> to vector<128xf32>
      %27 = vector.shape_cast %26 : vector<128xf32> to vector<1x128xf32>
      %28 = arith.addf %24, %27 : vector<1x128xf32>
      %c1_18 = arith.constant 1 : index
      %c0_19 = arith.constant 0 : index
      %29 = vector.load %arg8[%c1_18, %c0_19] : memref<2x128xf32, #tpu.memory_space<vmem>>, vector<1x128xf32>
      tpu.vector_store %arg8[%c1_18, %c0_19], %28 {strides = array<i32>} : memref<2x128xf32, #tpu.memory_space<vmem>>, vector<1x128xf32>,
    } else {
    }
    %c1_i32 = arith.constant 1 : i32
    %11 = arith.cmpi eq, %arg0, %c1_i32 : i32
    %c0_i32_7 = arith.constant 0 : i32
    %12 = arith.cmpi eq, %arg1, %c0_i32_7 : i32
    %13 = arith.andi %11, %12 : i1
    %14 = arith.extui %13 : i1 to i32
    %c0_i32_8 = arith.constant 0 : i32
    %15 = arith.cmpi ne, %14, %c0_i32_8 : i32
    scf.if %15 {
      %c0_11 = arith.constant 0 : index
      %c0_12 = arith.constant 0 : index
      %19 = vector.load %arg8[%c0_11, %c0_12] : memref<2x128xf32, #tpu.memory_space<vmem>>, vector<1x128xf32>
      %cst_13 = arith.constant 9.765625E-4 : f32
      %20 = vector.broadcast %cst_13 : f32 to vector<1x128xf32>
      %21 = arith.mulf %19, %20 : vector<1x128xf32>
      %c1 = arith.constant 1 : index
      %c0_14 = arith.constant 0 : index
      %22 = vector.load %arg8[%c1, %c0_14] : memref<2x128xf32, #tpu.memory_space<vmem>>, vector<1x128xf32>
      %cst_15 = arith.constant 9.765625E-4 : f32
      %23 = vector.broadcast %cst_15 : f32 to vector<1x128xf32>
      %24 = arith.mulf %22, %23 : vector<1x128xf32>
      %25 = arith.mulf %21, %21 : vector<1x128xf32>
      %26 = arith.subf %24, %25 : vector<1x128xf32>
      %c0_16 = arith.constant 0 : index
      %c0_17 = arith.constant 0 : index
      %27 = vector.load %arg4[%c0_16, %c0_17] : memref<1x128xf32, #tpu.memory_space<vmem>>, vector<1x128xf32>
      %cst_18 = arith.constant 9.99999974E-6 : f32
      %28 = vector.broadcast %cst_18 : f32 to vector<1x128xf32>
      %29 = arith.addf %26, %28 : vector<1x128xf32>
      %30 = math.rsqrt %29 : vector<1x128xf32>
      %31 = arith.mulf %27, %30 : vector<1x128xf32>
      %c0_19 = arith.constant 0 : index
      %c0_20 = arith.constant 0 : index
      %32 = vector.load %arg9[%c0_19, %c0_20] : memref<2x128xf32, #tpu.memory_space<vmem>>, vector<1x128xf32>
      tpu.vector_store %arg9[%c0_19, %c0_20], %31 {strides = array<i32>} : memref<2x128xf32, #tpu.memory_space<vmem>>, vector<1x128xf32>,
      %c0_21 = arith.constant 0 : index
      %c0_22 = arith.constant 0 : index
      %33 = vector.load %arg5[%c0_21, %c0_22] : memref<1x128xf32, #tpu.memory_space<vmem>>, vector<1x128xf32>
      %34 = arith.mulf %21, %31 : vector<1x128xf32>
      %35 = arith.subf %33, %34 : vector<1x128xf32>
      %c1_23 = arith.constant 1 : index
      %c0_24 = arith.constant 0 : index
      %36 = vector.load %arg9[%c1_23, %c0_24] : memref<2x128xf32, #tpu.memory_space<vmem>>, vector<1x128xf32>
      tpu.vector_store %arg9[%c1_23, %c0_24], %35 {strides = array<i32>} : memref<2x128xf32, #tpu.memory_space<vmem>>, vector<1x128xf32>,
    } else {
    }
    %c1_i32_9 = arith.constant 1 : i32
    %16 = arith.cmpi eq, %arg0, %c1_i32_9 : i32
    %17 = arith.extui %16 : i1 to i32
    %c0_i32_10 = arith.constant 0 : i32
    %18 = arith.cmpi ne, %17, %c0_i32_10 : i32
    scf.if %18 {
      %c0_11 = arith.constant 0 : index
      %c0_12 = arith.constant 0 : index
      %19 = vector.load %arg6[%c0_11, %c0_12] : memref<512x128xbf16, #tpu.memory_space<vmem>>, vector<512x128xbf16>
      %20 = arith.extf %19 : vector<512x128xbf16> to vector<512x128xf32>
      %c0_13 = arith.constant 0 : index
      %c0_14 = arith.constant 0 : index
      %21 = vector.load %arg9[%c0_13, %c0_14] : memref<2x128xf32, #tpu.memory_space<vmem>>, vector<1x128xf32>
      %22 = vector.broadcast %21 : vector<1x128xf32> to vector<512x128xf32>
      %23 = arith.mulf %7, %22 : vector<512x128xf32>
      %c1 = arith.constant 1 : index
      %c0_15 = arith.constant 0 : index
      %24 = vector.load %arg9[%c1, %c0_15] : memref<2x128xf32, #tpu.memory_space<vmem>>, vector<1x128xf32>
      %25 = vector.broadcast %24 : vector<1x128xf32> to vector<512x128xf32>
      %26 = arith.addf %23, %25 : vector<512x128xf32>
      %27 = arith.addf %26, %20 : vector<512x128xf32>
      %cst_16 = arith.constant 0.000000e+00 : f32
      %28 = vector.broadcast %cst_16 : f32 to vector<512x128xf32>
      %29 = arith.maximumf %27, %28 : vector<512x128xf32>
      %c0_17 = arith.constant 0 : index
      %c0_18 = arith.constant 0 : index
      %30 = vector.load %arg7[%c0_17, %c0_18] : memref<512x128xf32, #tpu.memory_space<vmem>>, vector<512x128xf32>
      tpu.vector_store %arg7[%c0_17, %c0_18], %29 {strides = array<i32>} : memref<512x128xf32, #tpu.memory_space<vmem>>, vector<512x128xf32>,
    } else {
    }
    return
  }
  func.func @transform_0(%arg0: i32, %arg1: i32) -> (i32, i32) {
    %c0_i32 = arith.constant 0 : i32
    %c0_i32_0 = arith.constant 0 : i32
    return %arg1, %c0_i32 : i32, i32
  }
  func.func @transform_1(%arg0: i32, %arg1: i32) -> (i32, i32) {
    %c0_i32 = arith.constant 0 : i32
    %c0_i32_0 = arith.constant 0 : i32
    %c0_i32_1 = arith.constant 0 : i32
    return %c0_i32, %c0_i32_0 : i32, i32
  }
  func.func @transform_2(%arg0: i32, %arg1: i32) -> (i32, i32) {
    %c0_i32 = arith.constant 0 : i32
    %c0_i32_0 = arith.constant 0 : i32
    %c0_i32_1 = arith.constant 0 : i32
    return %c0_i32, %c0_i32_0 : i32, i32
  }
  func.func @transform_3(%arg0: i32, %arg1: i32) -> (i32, i32) {
    %c0_i32 = arith.constant 0 : i32
    %c0_i32_0 = arith.constant 0 : i32
    %c0_i32_1 = arith.constant 0 : i32
    return %c0_i32, %c0_i32_0 : i32, i32
  }
  func.func @transform_4(%arg0: i32, %arg1: i32) -> (i32, i32) {
    %c0_i32 = arith.constant 0 : i32
    %c0_i32_0 = arith.constant 0 : i32
    return %arg1, %c0_i32 : i32, i32
  }
  func.func @transform_5(%arg0: i32, %arg1: i32) -> (i32, i32) {
    %0 = arith.muli %arg1, %arg0 : i32
    %c0_i32 = arith.constant 0 : i32
    %c0_i32_0 = arith.constant 0 : i32
    return %0, %c0_i32 : i32, i32
  }
}

</mosaic_0001>

<llo_original>
// kernel: bottleneck_forward.3
$region0: #{bottleneck_forward.3}
  #allocation0 [shape = 'u32[]', space=smem, size = 0x4, offset = 0x4, fixed_abs, tag = 'smem constant byte address 0x4 - core index']
  #allocation1 [shape = 'u32[144,128]{1,0:T(1,128)}', space=vmem, size = 0x12000, scoped, tag = 'internal scratch']
  #allocation2 [shape = 'f32[2,128]{1,0:T(2,128)}', space=vmem, size = 0x400, scoped, tag = 'scratch operand']
  #allocation3 [shape = 'f32[2,128]{1,0:T(2,128)}', space=vmem, size = 0x400, scoped, tag = 'scratch operand']
  %s0 = inlined_call_operand.vmem [shape: bf16[1024,128], index: 0, kind: input, shape index: {}]
  %s1 = inlined_call_operand.vmem [shape: bf16[128,128], index: 1, kind: input, shape index: {}]
  %s2 = inlined_call_operand.vmem [shape: f32[1,128], index: 2, kind: input, shape index: {}]
  %s3 = inlined_call_operand.vmem [shape: f32[1,128], index: 3, kind: input, shape index: {}]
  %s4 = inlined_call_operand.vmem [shape: bf16[1024,128], index: 4, kind: output, shape index: {}]
  %s5 = sld [smem:[#allocation0]]
  $region65: #{bottleneck_forward.3} parent=0
    _
  %s7 = ssub.s32 1, %s5
  %s8 = scalar_select 0, %s7, %s5
  loop: start=0, step=1, limit=6
  $region2: #{bottleneck_forward.3} parent=0 // loop_pre_header
    _
  $region3: #{bottleneck_forward.3} parent=0 // loop_header
    %s10 = sphi 0, %s14
    %p11 = scmp.ge.s32.totalorder %s10, 6
    %s17 = sphi 0, %s29
    %s18 = sphi 0, %s25
    %s19 = sphi 0, %s17
    %s20 = sphi 0, %s18
    %s21 = sphi 0, %s19
    %s22 = sphi 0, %s20
    %s32 = sphi 0, %s34
    %s35 = sphi 0, %s32
    %s36 = sphi 0, %s35
    %s52 = sphi 0, %s36
    %s56 = sphi 0, %s56
    %s58 = sphi 0, %s56
    %s59 = sphi 0, %s58
    %s73 = sphi 0, %s59
    %s77 = sphi 0, %s77
    %s79 = sphi 0, %s77
    %s80 = sphi 0, %s79
    %s94 = sphi 0, %s80
    %s98 = sphi 0, %s98
    %s100 = sphi 0, %s98
    %s101 = sphi 0, %s100
    %s115 = sphi 0, %s101
    %s123 = sphi 0, %s125
    %s126 = sphi 0, %s123
    %s127 = sphi 0, %s126
    %s143 = sphi 0, %s127
  $region4: #{bottleneck_forward.3} parent=0 // loop_header_branch
    %13 = sbr.rel (%p11) target = $region8
  $region5: #{bottleneck_forward.3} parent=0 // loop_body
    %s15 = ssub.s32 %s10, 1
    %s16 = ssub.s32 %s10, 2
    %s23 = sadd.s32 1, %s18
    %p24 = scmp.ge.s32.totalorder %s23, 2
    %s25 = scalar_select %p24, 0, %s23
    %s26 = sadd.s32 1, %s17
    %s27 = scalar_select %p24, %s26, %s17
    %p28 = scmp.ge.s32.totalorder %s27, 2
    %s29 = scalar_select %p28, 0, %s27
    %s30 = ssub.s32 %s18, %s25
    %p31 = scmp.eq.s32.totalorder %s30, 0
    %s33 = sadd.s32 %s32, 1
    %s34 = scalar_select %p31, %s32, %s33
    %p37 = pneg %p31
    %p38 = scmp.eq.s32.totalorder %s10, 3
    %p39 = por %p37, %p38
    %p40 = scmp.ne.s32.totalorder %s32, %s35
    %p41 = scmp.eq.s32.totalorder %s10, 0
    %p42 = por %p40, %p41
    %p43 = scmp.ne.s32.totalorder %s32, %s35
    %p44 = scmp.eq.s32.totalorder %s15, 3
    %p45 = por %p43, %p44
    %p46 = scmp.ne.s32.totalorder %s35, %s36
    %p47 = scmp.eq.s32.totalorder %s15, 0
    %p48 = por %p46, %p47
    %p49 = scmp.ne.s32.totalorder %s35, %s36
    %p50 = scmp.eq.s32.totalorder %s16, 3
    %p51 = por %p49, %p50
    %p53 = scmp.ne.s32.totalorder %s36, %s52
    %p54 = scmp.eq.s32.totalorder %s16, 0
    %p55 = por %p53, %p54
    %s57 = sadd.s32 %s56, 1
    %p60 = scmp.eq.s32.totalorder %s10, 3
    %p61 = scmp.ne.s32.totalorder %s56, %s58
    %p62 = scmp.eq.s32.totalorder %s10, 0
    %p63 = por %p61, %p62
    %p64 = scmp.ne.s32.totalorder %s56, %s58
    %p65 = scmp.eq.s32.totalorder %s15, 3
    %p66 = por %p64, %p65
    %p67 = scmp.ne.s32.totalorder %s58, %s59
    %p68 = scmp.eq.s32.totalorder %s15, 0
    %p69 = por %p67, %p68
    %p70 = scmp.ne.s32.totalorder %s58, %s59
    %p71 = scmp.eq.s32.totalorder %s16, 3
    %p72 = por %p70, %p71
    %p74 = scmp.ne.s32.totalorder %s59, %s73
    %p75 = scmp.eq.s32.totalorder %s16, 0
    %p76 = por %p74, %p75
    %s78 = sadd.s32 %s77, 1
    %p81 = scmp.eq.s32.totalorder %s10, 3
    %p82 = scmp.ne.s32.totalorder %s77, %s79
    %p83 = scmp.eq.s32.totalorder %s10, 0
    %p84 = por %p82, %p83
    %p85 = scmp.ne.s32.totalorder %s77, %s79
    %p86 = scmp.eq.s32.totalorder %s15, 3
    %p87 = por %p85, %p86
    %p88 = scmp.ne.s32.totalorder %s79, %s80
    %p89 = scmp.eq.s32.totalorder %s15, 0
    %p90 = por %p88, %p89
    %p91 = scmp.ne.s32.totalorder %s79, %s80
    %p92 = scmp.eq.s32.totalorder %s16, 3
    %p93 = por %p91, %p92
    %p95 = scmp.ne.s32.totalorder %s80, %s94
    %p96 = scmp.eq.s32.totalorder %s16, 0
    %p97 = por %p95, %p96
    %s99 = sadd.s32 %s98, 1
    %p102 = scmp.eq.s32.totalorder %s10, 3
    %p103 = scmp.ne.s32.totalorder %s98, %s100
    %p104 = scmp.eq.s32.totalorder %s10, 0
    %p105 = por %p103, %p104
    %p106 = scmp.ne.s32.totalorder %s98, %s100
    %p107 = scmp.eq.s32.totalorder %s15, 3
    %p108 = por %p106, %p107
    %p109 = scmp.ne.s32.totalorder %s100, %s101
    %p110 = scmp.eq.s32.totalorder %s15, 0
    %p111 = por %p109, %p110
    %p112 = scmp.ne.s32.totalorder %s100, %s101
    %p113 = scmp.eq.s32.totalorder %s16, 3
    %p114 = por %p112, %p113
    %p116 = scmp.ne.s32.totalorder %s101, %s115
    %p117 = scmp.eq.s32.totalorder %s16, 0
    %p118 = por %p116, %p117
    %s119 = smul.u32 %s18, %s17
    %s120 = smul.u32 %s25, %s29
    %s121 = ssub.s32 %s119, %s120
    %p122 = scmp.eq.s32.totalorder %s121, 0
    %s124 = sadd.s32 %s123, 1
    %s125 = scalar_select %p122, %s123, %s124
    %p128 = pneg %p122
    %p129 = scmp.eq.s32.totalorder %s10, 3
    %p130 = por %p128, %p129
    %p131 = scmp.ne.s32.totalorder %s123, %s126
    %p132 = scmp.eq.s32.totalorder %s10, 0
    %p133 = por %p131, %p132
    %p134 = scmp.ne.s32.totalorder %s123, %s126
    %p135 = scmp.eq.s32.totalorder %s15, 3
    %p136 = por %p134, %p135
    %p137 = scmp.ne.s32.totalorder %s126, %s127
    %p138 = scmp.eq.s32.totalorder %s15, 0
    %p139 = por %p137, %p138
    %p140 = scmp.ne.s32.totalorder %s126, %s127
    %p141 = scmp.eq.s32.totalorder %s16, 3
    %p142 = por %p140, %p141
    %p144 = scmp.ne.s32.totalorder %s127, %s143
    %p145 = scmp.eq.s32.totalorder %s16, 0
    %p146 = por %p144, %p145
    %p147 = scmp.le.s32.totalorder 1, %s10
    %p148 = scmp.lt.s32.totalorder %s10, 5
    %p149 = pnand %p147, %p148
    %p150 = pneg %p149
    // Predicated region
    $region9: #{bottleneck_forward.3} parent=5 // pred_check
      _
    $region10: #{bottleneck_forward.3} parent=5 // pred_check_branch
      %152 = sbr.rel (%p149) target = $region12
    $region11: #{bottleneck_forward.3} parent=5 // pred_region
      %s153 = ssub.s32 %s10, 1
      // Predicated region
      $region13: #{bottleneck_forward.3} parent=11 // pred_check
        %p154 = pneg %p69
      $region14: #{bottleneck_forward.3} parent=11 // pred_check_branch
        %156 = sbr.rel (%p154) target = $region16
      $region15: #{bottleneck_forward.3} parent=11 // pred_region
        _
      $region16: #{bottleneck_forward.3} parent=11 // pred_fallthru
        _
      // Predicated region
      $region17: #{bottleneck_forward.3} parent=11 // pred_check
        %p157 = pneg %p90
      $region18: #{bottleneck_forward.3} parent=11 // pred_check_branch
        %159 = sbr.rel (%p157) target = $region20
      $region19: #{bottleneck_forward.3} parent=11 // pred_region
        _
      $region20: #{bottleneck_forward.3} parent=11 // pred_fallthru
        _
      // Predicated region
      $region21: #{bottleneck_forward.3} parent=11 // pred_check
        %p160 = pneg %p111
      $region22: #{bottleneck_forward.3} parent=11 // pred_check_branch
        %162 = sbr.rel (%p160) target = $region24
      $region23: #{bottleneck_forward.3} parent=11 // pred_region
        _
      $region24: #{bottleneck_forward.3} parent=11 // pred_fallthru
        _
    $region12: #{bottleneck_forward.3} parent=5 // pred_fallthru
      _
    %p163 = scmp.lt.s32.totalorder %s10, 4
    // Predicated region
    $region25: #{bottleneck_forward.3} parent=5 // pred_check
      %p164 = pneg %p163
    $region26: #{bottleneck_forward.3} parent=5 // pred_check_branch
      %166 = sbr.rel (%p164) target = $region28
    $region27: #{bottleneck_forward.3} parent=5 // pred_region
      // Predicated region
      $region29: #{bottleneck_forward.3} parent=27 // pred_check
        %p167 = pneg %p42
      $region30: #{bottleneck_forward.3} parent=27 // pred_check_branch
        %169 = sbr.rel (%p167) target = $region32
      $region31: #{bottleneck_forward.3} parent=27 // pred_region
        %s170 = smul.u32 64, %s18
        %p171 = scmp.lt.s32.totalorder %s170, 127
        %s172 = scalar_select %p171, %s170, 127
        %s173 = smul.addr %s172, 4
        %s174 = scalar_lea.vmem %s0, %s173
        %s175 = smul.u32 64, %s18
      $region32: #{bottleneck_forward.3} parent=27 // pred_fallthru
        _
    $region28: #{bottleneck_forward.3} parent=5 // pred_fallthru
      _
    %p176 = scmp.le.s32.totalorder 1, %s10
    %p177 = scmp.lt.s32.totalorder %s10, 5
    %p178 = pnand %p176, %p177
    %p179 = pneg %p178
    // Predicated region
    $region33: #{bottleneck_forward.3} parent=5 // pred_check
      _
    $region34: #{bottleneck_forward.3} parent=5 // pred_check_branch
      %181 = sbr.rel (%p178) target = $region36
    $region35: #{bottleneck_forward.3} parent=5 // pred_region
      %s182 = ssub.s32 %s10, 1
      %s183 = smul.u32 64, %s20
      %p184 = scmp.lt.s32.totalorder %s183, 127
      %s185 = scalar_select %p184, %s183, 127
      %s186 = smul.addr %s185, 4
      %s187 = scalar_lea.vmem %s0, %s186
      %p188 = pneg %p48
      %p189 = pneg %p45
      %p190 = pneg %p69
      %p191 = pneg %p66
      %p192 = pneg %p90
      %p193 = pneg %p87
      %p194 = pneg %p111
      %p195 = pneg %p108
      %p196 = pneg %p139
      %p197 = pneg %p136
      %s198 = smul.u32 %s20, %s19
      %s199 = smul.u32 64, %s198
      %p200 = scmp.lt.s32.totalorder %s199, 127
      %s201 = scalar_select %p200, %s199, 127
      %s202 = smul.addr %s201, 4
      %s203 = scalar_lea.vmem %s4, %s202
      %s204 = smul.u32 64, %s20
      %p205 = scmp.lt.s32.totalorder %s204, 127
      %s206 = scalar_select %p205, %s204, 127
      %s207 = smul.addr %s206, 4
      %s208 = scalar_lea.vmem %s0, %s207
      %s209 = smul.u32 64, %s20
      %s210 = smul.u32 %s20, %s19
      %s211 = smul.u32 64, %s210
      %p212 = scmp.lt.s32.totalorder %s211, 127
      %s213 = scalar_select %p212, %s211, 127
      %s214 = smul.addr %s213, 4
      %s215 = scalar_lea.vmem %s4, %s214
      %s216 = smul.u32 %s20, %s19
      %s217 = smul.u32 64, %s216
      %p219 = scmp.eq.s32.totalorder %s19, 0
      %p220 = scmp.eq.s32.totalorder %s20, 0
      %p221 = pnand %p219, %p220
      %p222 = pneg %p221
      // Predicated region
      $region37: #{bottleneck_forward.3} parent=35 // pred_check
        _
      $region38: #{bottleneck_forward.3} parent=35 // pred_check_branch
        %224 = sbr.rel (%p221) target = $region40
      $region39: #{bottleneck_forward.3} parent=35 // pred_region
        %225 = vst [vmem:[#allocation2] sm:$0x3] 0.0
      $region40: #{bottleneck_forward.3} parent=35 // pred_fallthru
        _
      %v226 = vld [vmem:[%s208] sm:$0xf]
      %v227 = vld [vmem:[%s208 + $0x4] sm:$0xf]
      %v228 = vld [vmem:[%s208 + $0x8] sm:$0xf]
      %v229 = vld [vmem:[%s208 + $0xc] sm:$0xf]
      %v230 = vld [vmem:[%s208 + $0x10] sm:$0xf]
      %v231 = vld [vmem:[%s208 + $0x14] sm:$0xf]
      %v232 = vld [vmem:[%s208 + $0x18] sm:$0xf]
      %v233 = vld [vmem:[%s208 + $0x1c] sm:$0xf]
      %v234 = vld [vmem:[%s208 + $0x20] sm:$0xf]
      %v235 = vld [vmem:[%s208 + $0x24] sm:$0xf]
      %v236 = vld [vmem:[%s208 + $0x28] sm:$0xf]
      %v237 = vld [vmem:[%s208 + $0x2c] sm:$0xf]
      %v238 = vld [vmem:[%s208 + $0x30] sm:$0xf]
      %v239 = vld [vmem:[%s208 + $0x34] sm:$0xf]
      %v240 = vld [vmem:[%s208 + $0x38] sm:$0xf]
      %v241 = vld [vmem:[%s208 + $0x3c] sm:$0xf]
      %v242 = vld [vmem:[%s208 + $0x40] sm:$0xf]
      %v243 = vld [vmem:[%s208 + $0x44] sm:$0xf]
      %v244 = vld [vmem:[%s208 + $0x48] sm:$0xf]
      %v245 = vld [vmem:[%s208 + $0x4c] sm:$0xf]
      %v246 = vld [vmem:[%s208 + $0x50] sm:$0xf]
      %v247 = vld [vmem:[%s208 + $0x54] sm:$0xf]
      %v248 = vld [vmem:[%s208 + $0x58] sm:$0xf]
      %v249 = vld [vmem:[%s208 + $0x5c] sm:$0xf]
      %v250 = vld [vmem:[%s208 + $0x60] sm:$0xf]
      %v251 = vld [vmem:[%s208 + $0x64] sm:$0xf]
      %v252 = vld [vmem:[%s208 + $0x68] sm:$0xf]
      %v253 = vld [vmem:[%s208 + $0x6c] sm:$0xf]
      %v254 = vld [vmem:[%s208 + $0x70] sm:$0xf]
      %v255 = vld [vmem:[%s208 + $0x74] sm:$0xf]
      %v256 = vld [vmem:[%s208 + $0x78] sm:$0xf]
      %v257 = vld [vmem:[%s208 + $0x7c] sm:$0xf]
      %v258 = vld [vmem:[%s208 + $0x80] sm:$0xf]
      %v259 = vld [vmem:[%s208 + $0x84] sm:$0xf]
      %v260 = vld [vmem:[%s208 + $0x88] sm:$0xf]
      %v261 = vld [vmem:[%s208 + $0x8c] sm:$0xf]
      %v262 = vld [vmem:[%s208 + $0x90] sm:$0xf]
      %v263 = vld [vmem:[%s208 + $0x94] sm:$0xf]
      %v264 = vld [vmem:[%s208 + $0x98] sm:$0xf]
      %v265 = vld [vmem:[%s208 + $0x9c] sm:$0xf]
      %v266 = vld [vmem:[%s208 + $0xa0] sm:$0xf]
      %v267 = vld [vmem:[%s208 + $0xa4] sm:$0xf]
      %v268 = vld [vmem:[%s208 + $0xa8] sm:$0xf]
      %v269 = vld [vmem:[%s208 + $0xac] sm:$0xf]
      %v270 = vld [vmem:[%s208 + $0xb0] sm:$0xf]
      %v271 = vld [vmem:[%s208 + $0xb4] sm:$0xf]
      %v272 = vld [vmem:[%s208 + $0xb8] sm:$0xf]
      %v273 = vld [vmem:[%s208 + $0xbc] sm:$0xf]
      %v274 = vld [vmem:[%s208 + $0xc0] sm:$0xf]
      %v275 = vld [vmem:[%s208 + $0xc4] sm:$0xf]
      %v276 = vld [vmem:[%s208 + $0xc8] sm:$0xf]
      %v277 = vld [vmem:[%s208 + $0xcc] sm:$0xf]
      %v278 = vld [vmem:[%s208 + $0xd0] sm:$0xf]
      %v279 = vld [vmem:[%s208 + $0xd4] sm:$0xf]
      %v280 = vld [vmem:[%s208 + $0xd8] sm:$0xf]
      %v281 = vld [vmem:[%s208 + $0xdc] sm:$0xf]
      %v282 = vld [vmem:[%s208 + $0xe0] sm:$0xf]
      %v283 = vld [vmem:[%s208 + $0xe4] sm:$0xf]
      %v284 = vld [vmem:[%s208 + $0xe8] sm:$0xf]
      %v285 = vld [vmem:[%s208 + $0xec] sm:$0xf]
      %v286 = vld [vmem:[%s208 + $0xf0] sm:$0xf]
      %v287 = vld [vmem:[%s208 + $0xf4] sm:$0xf]
      %v288 = vld [vmem:[%s208 + $0xf8] sm:$0xf]
      %v289 = vld [vmem:[%s208 + $0xfc] sm:$0xf]
      %v290 = vld [vmem:[%s1] sm:$0xf]
      %v291 = vld [vmem:[%s1 + $0x4] sm:$0xf]
      %v292 = vld [vmem:[%s1 + $0x8] sm:$0xf]
      %v293 = vld [vmem:[%s1 + $0xc] sm:$0xf]
      %v294 = vld [vmem:[%s1 + $0x10] sm:$0xf]
      %v295 = vld [vmem:[%s1 + $0x14] sm:$0xf]
      %v296 = vld [vmem:[%s1 + $0x18] sm:$0xf]
      %v297 = vld [vmem:[%s1 + $0x1c] sm:$0xf]
      %v298 = vld [vmem:[%s1 + $0x20] sm:$0xf]
      %v299 = vld [vmem:[%s1 + $0x24] sm:$0xf]
      %v300 = vld [vmem:[%s1 + $0x28] sm:$0xf]
      %v301 = vld [vmem:[%s1 + $0x2c] sm:$0xf]
      %v302 = vld [vmem:[%s1 + $0x30] sm:$0xf]
      %v303 = vld [vmem:[%s1 + $0x34] sm:$0xf]
      %v304 = vld [vmem:[%s1 + $0x38] sm:$0xf]
      %v305 = vld [vmem:[%s1 + $0x3c] sm:$0xf]
      %v370 = vunpack.c.l.b16 %v226
      %v371 = vunpack.c.l.b16 %v227
      %v372 = vunpack.c.l.b16 %v228
      %v373 = vunpack.c.l.b16 %v229
      %v374 = vunpack.c.l.b16 %v230
      %v375 = vunpack.c.l.b16 %v231
      %v376 = vunpack.c.l.b16 %v232
      %v377 = vunpack.c.l.b16 %v233
      %v378 = vunpack.c.l.b16 %v234
      %v379 = vunpack.c.l.b16 %v235
      %v380 = vunpack.c.l.b16 %v236
      %v381 = vunpack.c.l.b16 %v237
      %v382 = vunpack.c.l.b16 %v238
      %v383 = vunpack.c.l.b16 %v239
      %v384 = vunpack.c.l.b16 %v240
      %v385 = vunpack.c.l.b16 %v241
      %v386 = vunpack.c.l.b16 %v242
      %v387 = vunpack.c.l.b16 %v243
      %v388 = vunpack.c.l.b16 %v244
      %v389 = vunpack.c.l.b16 %v245
      %v390 = vunpack.c.l.b16 %v246
      %v391 = vunpack.c.l.b16 %v247
      %v392 = vunpack.c.l.b16 %v248
      %v393 = vunpack.c.l.b16 %v249
      %v394 = vunpack.c.l.b16 %v250
      %v395 = vunpack.c.l.b16 %v251
      %v396 = vunpack.c.l.b16 %v252
      %v397 = vunpack.c.l.b16 %v253
      %v398 = vunpack.c.l.b16 %v254
      %v399 = vunpack.c.l.b16 %v255
      %v400 = vunpack.c.l.b16 %v256
      %v401 = vunpack.c.l.b16 %v257
      %v402 = vunpack.c.l.b16 %v258
      %v403 = vunpack.c.l.b16 %v259
      %v404 = vunpack.c.l.b16 %v260
      %v405 = vunpack.c.l.b16 %v261
      %v406 = vunpack.c.l.b16 %v262
      %v407 = vunpack.c.l.b16 %v263
      %v408 = vunpack.c.l.b16 %v264
      %v409 = vunpack.c.l.b16 %v265
      %v410 = vunpack.c.l.b16 %v266
      %v411 = vunpack.c.l.b16 %v267
      %v412 = vunpack.c.l.b16 %v268
      %v413 = vunpack.c.l.b16 %v269
      %v414 = vunpack.c.l.b16 %v270
      %v415 = vunpack.c.l.b16 %v271
      %v416 = vunpack.c.l.b16 %v272
      %v417 = vunpack.c.l.b16 %v273
      %v418 = vunpack.c.l.b16 %v274
      %v419 = vunpack.c.l.b16 %v275
      %v420 = vunpack.c.l.b16 %v276
      %v421 = vunpack.c.l.b16 %v277
      %v422 = vunpack.c.l.b16 %v278
      %v423 = vunpack.c.l.b16 %v279
      %v424 = vunpack.c.l.b16 %v280
      %v425 = vunpack.c.l.b16 %v281
      %v426 = vunpack.c.l.b16 %v282
      %v427 = vunpack.c.l.b16 %v283
      %v428 = vunpack.c.l.b16 %v284
      %v429 = vunpack.c.l.b16 %v285
      %v430 = vunpack.c.l.b16 %v286
      %v431 = vunpack.c.l.b16 %v287
      %v432 = vunpack.c.l.b16 %v288
      %v433 = vunpack.c.l.b16 %v289
      %v434 = vpack.c.b16 %v371, %v370
      %v435 = vpack.c.b16 %v373, %v372
      %v436 = vpack.c.b16 %v375, %v374
      %v437 = vpack.c.b16 %v377, %v376
      %v438 = vpack.c.b16 %v379, %v378
      %v439 = vpack.c.b16 %v381, %v380
      %v440 = vpack.c.b16 %v383, %v382
      %v441 = vpack.c.b16 %v385, %v384
      %v442 = vpack.c.b16 %v387, %v386
      %v443 = vpack.c.b16 %v389, %v388
      %v444 = vpack.c.b16 %v391, %v390
      %v445 = vpack.c.b16 %v393, %v392
      %v446 = vpack.c.b16 %v395, %v394
      %v447 = vpack.c.b16 %v397, %v396
      %v448 = vpack.c.b16 %v399, %v398
      %v449 = vpack.c.b16 %v401, %v400
      %v450 = vpack.c.b16 %v403, %v402
      %v451 = vpack.c.b16 %v405, %v404
      %v452 = vpack.c.b16 %v407, %v406
      %v453 = vpack.c.b16 %v409, %v408
      %v454 = vpack.c.b16 %v411, %v410
      %v455 = vpack.c.b16 %v413, %v412
      %v456 = vpack.c.b16 %v415, %v414
      %v457 = vpack.c.b16 %v417, %v416
      %v458 = vpack.c.b16 %v419, %v418
      %v459 = vpack.c.b16 %v421, %v420
      %v460 = vpack.c.b16 %v423, %v422
      %v461 = vpack.c.b16 %v425, %v424
      %v462 = vpack.c.b16 %v427, %v426
      %v463 = vpack.c.b16 %v429, %v428
      %v464 = vpack.c.b16 %v431, %v430
      %v465 = vpack.c.b16 %v433, %v432
      %v514 = vunpack.c.l.b16 %v290
      %v515 = vunpack.c.l.b16 %v291
      %v516 = vunpack.c.l.b16 %v292
      %v517 = vunpack.c.l.b16 %v293
      %v518 = vunpack.c.l.b16 %v294
      %v519 = vunpack.c.l.b16 %v295
      %v520 = vunpack.c.l.b16 %v296
      %v521 = vunpack.c.l.b16 %v297
      %v522 = vunpack.c.l.b16 %v298
      %v523 = vunpack.c.l.b16 %v299
      %v524 = vunpack.c.l.b16 %v300
      %v525 = vunpack.c.l.b16 %v301
      %v526 = vunpack.c.l.b16 %v302
      %v527 = vunpack.c.l.b16 %v303
      %v528 = vunpack.c.l.b16 %v304
      %v529 = vunpack.c.l.b16 %v305
      %v530 = vpack.c.b16 %v515, %v514
      %v531 = vpack.c.b16 %v517, %v516
      %v532 = vpack.c.b16 %v519, %v518
      %v533 = vpack.c.b16 %v521, %v520
      %v534 = vpack.c.b16 %v523, %v522
      %v535 = vpack.c.b16 %v525, %v524
      %v536 = vpack.c.b16 %v527, %v526
      %v537 = vpack.c.b16 %v529, %v528
      %546 = vmatprep.subr.bf16.mxu0 0
      %547 = vmatpush1.bf16.msra.mxu0 %v537
      %548 = vmatprep.subr.bf16.mxu0 0
      %549 = vmatpush1.bf16.msra.mxu0 %v536
      %550 = vmatprep.subr.bf16.mxu0 0
      %551 = vmatpush1.bf16.msra.mxu0 %v535
      %552 = vmatprep.subr.bf16.mxu0 0
      %553 = vmatpush1.bf16.msra.mxu0 %v534
      %554 = vmatprep.subr.bf16.mxu0 0
      %555 = vmatpush1.bf16.msra.mxu0 %v533
      %556 = vmatprep.subr.bf16.mxu0 0
      %557 = vmatpush1.bf16.msra.mxu0 %v532
      %558 = vmatprep.subr.bf16.mxu0 0
      %559 = vmatpush1.bf16.msra.mxu0 %v531
      %560 = vmatprep.subr.bf16.mxu0 0
      %561 = vmatpush1.bf16.msra.mxu0 %v530
      %562 = vmatprep.subr.bf16.mxu0 0
      %563 = vmatpush2.bf16.msra.mxu0 0
      %564 = vmatprep.subr.bf16.mxu0 0
      %565 = vmatpush2.bf16.msra.mxu0 0
      %566 = vmatprep.subr.bf16.mxu0 0
      %567 = vmatpush2.bf16.msra.mxu0 0
      %568 = vmatprep.subr.bf16.mxu0 0
      %569 = vmatpush2.bf16.msra.mxu0 0
      %570 = vmatprep.subr.bf16.mxu0 0
      %571 = vmatpush2.bf16.msra.mxu0 0
      %572 = vmatprep.subr.bf16.mxu0 0
      %573 = vmatpush2.bf16.msra.mxu0 0
      %574 = vmatprep.subr.bf16.mxu0 0
      %575 = vmatpush2.bf16.msra.mxu0 0
      %576 = vmatprep.subr.bf16.mxu0 0
      %577 = vmatpush2.bf16.msra.mxu0 0
      %578 = vmatprep.mubr.bf16.mxu0 0
      %579 = vmatmul.mubr.bf16.gmra.mxu0 %v434
      %v580 = vpop.f32.mrf.mxu0
      %v581 = vadd.f32 0.0, %v580
      %v582 = vpop.f32.mrf.mxu0
      %v583 = vpop.f32.mrf.mxu0
      %v584 = vadd.f32 0.0, %v583
      %v585 = vpop.f32.mrf.mxu0
      %586 = vmatprep.mubr.bf16.mxu0 0
      %587 = vmatmul.mubr.bf16.gmra.mxu0 %v435
      %v588 = vpop.f32.mrf.mxu0
      %v589 = vadd.f32 0.0, %v588
      %v590 = vpop.f32.mrf.mxu0
      %v591 = vpop.f32.mrf.mxu0
      %v592 = vadd.f32 0.0, %v591
      %v593 = vpop.f32.mrf.mxu0
      %594 = vmatprep.mubr.bf16.mxu0 0
      %595 = vmatmul.mubr.bf16.gmra.mxu0 %v436
      %v596 = vpop.f32.mrf.mxu0
      %v597 = vadd.f32 0.0, %v596
      %v598 = vpop.f32.mrf.mxu0
      %v599 = vpop.f32.mrf.mxu0
      %v600 = vadd.f32 0.0, %v599
      %v601 = vpop.f32.mrf.mxu0
      %602 = vmatprep.mubr.bf16.mxu0 0
      %603 = vmatmul.mubr.bf16.gmra.mxu0 %v437
      %v604 = vpop.f32.mrf.mxu0
      %v605 = vadd.f32 0.0, %v604
      %v606 = vpop.f32.mrf.mxu0
      %v607 = vpop.f32.mrf.mxu0
      %v608 = vadd.f32 0.0, %v607
      %v609 = vpop.f32.mrf.mxu0
      %610 = vmatprep.mubr.bf16.mxu0 0
      %611 = vmatmul.mubr.bf16.gmra.mxu0 %v438
      %v612 = vpop.f32.mrf.mxu0
      %v613 = vadd.f32 0.0, %v612
      %v614 = vpop.f32.mrf.mxu0
      %v615 = vpop.f32.mrf.mxu0
      %v616 = vadd.f32 0.0, %v615
      %v617 = vpop.f32.mrf.mxu0
      %618 = vmatprep.mubr.bf16.mxu0 0
      %619 = vmatmul.mubr.bf16.gmra.mxu0 %v439
      %v620 = vpop.f32.mrf.mxu0
      %v621 = vadd.f32 0.0, %v620
      %v622 = vpop.f32.mrf.mxu0
      %v623 = vpop.f32.mrf.mxu0
      %v624 = vadd.f32 0.0, %v623
      %v625 = vpop.f32.mrf.mxu0
      %626 = vmatprep.mubr.bf16.mxu0 0
      %627 = vmatmul.mubr.bf16.gmra.mxu0 %v440
      %v628 = vpop.f32.mrf.mxu0
      %v629 = vadd.f32 0.0, %v628
      %v630 = vpop.f32.mrf.mxu0
      %v631 = vpop.f32.mrf.mxu0
      %v632 = vadd.f32 0.0, %v631
      %v633 = vpop.f32.mrf.mxu0
      %634 = vmatprep.mubr.bf16.mxu0 0
      %635 = vmatmul.mubr.bf16.gmra.mxu0 %v441
      %v636 = vpop.f32.mrf.mxu0
      %v637 = vadd.f32 0.0, %v636
      %v638 = vpop.f32.mrf.mxu0
      %v639 = vpop.f32.mrf.mxu0
      %v640 = vadd.f32 0.0, %v639
      %v641 = vpop.f32.mrf.mxu0
      %642 = vmatprep.mubr.bf16.mxu0 0
      %643 = vmatmul.mubr.bf16.gmra.mxu0 %v442
      %v644 = vpop.f32.mrf.mxu0
      %v645 = vadd.f32 0.0, %v644
      %v646 = vpop.f32.mrf.mxu0
      %v647 = vpop.f32.mrf.mxu0
      %v648 = vadd.f32 0.0, %v647
      %v649 = vpop.f32.mrf.mxu0
      %650 = vmatprep.mubr.bf16.mxu0 0
      %651 = vmatmul.mubr.bf16.gmra.mxu0 %v443
      %v652 = vpop.f32.mrf.mxu0
      %v653 = vadd.f32 0.0, %v652
      %v654 = vpop.f32.mrf.mxu0
      %v655 = vpop.f32.mrf.mxu0
      %v656 = vadd.f32 0.0, %v655
      %v657 = vpop.f32.mrf.mxu0
      %658 = vmatprep.mubr.bf16.mxu0 0
      %659 = vmatmul.mubr.bf16.gmra.mxu0 %v444
      %v660 = vpop.f32.mrf.mxu0
      %v661 = vadd.f32 0.0, %v660
      %v662 = vpop.f32.mrf.mxu0
      %v663 = vpop.f32.mrf.mxu0
      %v664 = vadd.f32 0.0, %v663
      %v665 = vpop.f32.mrf.mxu0
      %666 = vmatprep.mubr.bf16.mxu0 0
      %667 = vmatmul.mubr.bf16.gmra.mxu0 %v445
      %v668 = vpop.f32.mrf.mxu0
      %v669 = vadd.f32 0.0, %v668
      %v670 = vpop.f32.mrf.mxu0
      %v671 = vpop.f32.mrf.mxu0
      %v672 = vadd.f32 0.0, %v671
      %v673 = vpop.f32.mrf.mxu0
      %674 = vmatprep.mubr.bf16.mxu0 0
      %675 = vmatmul.mubr.bf16.gmra.mxu0 %v446
      %v676 = vpop.f32.mrf.mxu0
      %v677 = vadd.f32 0.0, %v676
      %v678 = vpop.f32.mrf.mxu0
      %v679 = vpop.f32.mrf.mxu0
      %v680 = vadd.f32 0.0, %v679
      %v681 = vpop.f32.mrf.mxu0
      %682 = vmatprep.mubr.bf16.mxu0 0
      %683 = vmatmul.mubr.bf16.gmra.mxu0 %v447
      %v684 = vpop.f32.mrf.mxu0
      %v685 = vadd.f32 0.0, %v684
      %v686 = vpop.f32.mrf.mxu0
      %v687 = vpop.f32.mrf.mxu0
      %v688 = vadd.f32 0.0, %v687
      %v689 = vpop.f32.mrf.mxu0
      %690 = vmatprep.mubr.bf16.mxu0 0
      %691 = vmatmul.mubr.bf16.gmra.mxu0 %v448
      %v692 = vpop.f32.mrf.mxu0
      %v693 = vadd.f32 0.0, %v692
      %v694 = vpop.f32.mrf.mxu0
      %v695 = vpop.f32.mrf.mxu0
      %v696 = vadd.f32 0.0, %v695
      %v697 = vpop.f32.mrf.mxu0
      %698 = vmatprep.mubr.bf16.mxu0 0
      %699 = vmatmul.mubr.bf16.gmra.mxu0 %v449
      %v700 = vpop.f32.mrf.mxu0
      %v701 = vadd.f32 0.0, %v700
      %v702 = vpop.f32.mrf.mxu0
      %v703 = vpop.f32.mrf.mxu0
      %v704 = vadd.f32 0.0, %v703
      %v705 = vpop.f32.mrf.mxu0
      %706 = vmatprep.mubr.bf16.mxu0 0
      %707 = vmatmul.mubr.bf16.gmra.mxu0 %v450
      %v708 = vpop.f32.mrf.mxu0
      %v709 = vadd.f32 0.0, %v708
      %v710 = vpop.f32.mrf.mxu0
      %v711 = vpop.f32.mrf.mxu0
      %v712 = vadd.f32 0.0, %v711
      %v713 = vpop.f32.mrf.mxu0
      %714 = vmatprep.mubr.bf16.mxu0 0
      %715 = vmatmul.mubr.bf16.gmra.mxu0 %v451
      %v716 = vpop.f32.mrf.mxu0
      %v717 = vadd.f32 0.0, %v716
      %v718 = vpop.f32.mrf.mxu0
      %v719 = vpop.f32.mrf.mxu0
      %v720 = vadd.f32 0.0, %v719
      %v721 = vpop.f32.mrf.mxu0
      %722 = vmatprep.mubr.bf16.mxu0 0
      %723 = vmatmul.mubr.bf16.gmra.mxu0 %v452
      %v724 = vpop.f32.mrf.mxu0
      %v725 = vadd.f32 0.0, %v724
      %v726 = vpop.f32.mrf.mxu0
      %v727 = vpop.f32.mrf.mxu0
      %v728 = vadd.f32 0.0, %v727
      %v729 = vpop.f32.mrf.mxu0
      %730 = vmatprep.mubr.bf16.mxu0 0
      %731 = vmatmul.mubr.bf16.gmra.mxu0 %v453
      %v732 = vpop.f32.mrf.mxu0
      %v733 = vadd.f32 0.0, %v732
      %v734 = vpop.f32.mrf.mxu0
      %v735 = vpop.f32.mrf.mxu0
      %v736 = vadd.f32 0.0, %v735
      %v737 = vpop.f32.mrf.mxu0
      %738 = vmatprep.mubr.bf16.mxu0 0
      %739 = vmatmul.mubr.bf16.gmra.mxu0 %v454
      %v740 = vpop.f32.mrf.mxu0
      %v741 = vadd.f32 0.0, %v740
      %v742 = vpop.f32.mrf.mxu0
      %v743 = vpop.f32.mrf.mxu0
      %v744 = vadd.f32 0.0, %v743
      %v745 = vpop.f32.mrf.mxu0
      %746 = vmatprep.mubr.bf16.mxu0 0
      %747 = vmatmul.mubr.bf16.gmra.mxu0 %v455
      %v748 = vpop.f32.mrf.mxu0
      %v749 = vadd.f32 0.0, %v748
      %v750 = vpop.f32.mrf.mxu0
      %v751 = vpop.f32.mrf.mxu0
      %v752 = vadd.f32 0.0, %v751
      %v753 = vpop.f32.mrf.mxu0
      %754 = vmatprep.mubr.bf16.mxu0 0
      %755 = vmatmul.mubr.bf16.gmra.mxu0 %v456
      %v756 = vpop.f32.mrf.mxu0
      %v757 = vadd.f32 0.0, %v756
      %v758 = vpop.f32.mrf.mxu0
      %v759 = vpop.f32.mrf.mxu0
      %v760 = vadd.f32 0.0, %v759
      %v761 = vpop.f32.mrf.mxu0
      %762 = vmatprep.mubr.bf16.mxu0 0
      %763 = vmatmul.mubr.bf16.gmra.mxu0 %v457
      %v764 = vpop.f32.mrf.mxu0
      %v765 = vadd.f32 0.0, %v764
      %v766 = vpop.f32.mrf.mxu0
      %v767 = vpop.f32.mrf.mxu0
      %v768 = vadd.f32 0.0, %v767
      %v769 = vpop.f32.mrf.mxu0
      %770 = vmatprep.mubr.bf16.mxu0 0
      %771 = vmatmul.mubr.bf16.gmra.mxu0 %v458
      %v772 = vpop.f32.mrf.mxu0
      %v773 = vadd.f32 0.0, %v772
      %v774 = vpop.f32.mrf.mxu0
      %v775 = vpop.f32.mrf.mxu0
      %v776 = vadd.f32 0.0, %v775
      %v777 = vpop.f32.mrf.mxu0
      %778 = vmatprep.mubr.bf16.mxu0 0
      %779 = vmatmul.mubr.bf16.gmra.mxu0 %v459
      %v780 = vpop.f32.mrf.mxu0
      %v781 = vadd.f32 0.0, %v780
      %v782 = vpop.f32.mrf.mxu0
      %v783 = vpop.f32.mrf.mxu0
      %v784 = vadd.f32 0.0, %v783
      %v785 = vpop.f32.mrf.mxu0
      %786 = vmatprep.mubr.bf16.mxu0 0
      %787 = vmatmul.mubr.bf16.gmra.mxu0 %v460
      %v788 = vpop.f32.mrf.mxu0
      %v789 = vadd.f32 0.0, %v788
      %v790 = vpop.f32.mrf.mxu0
      %v791 = vpop.f32.mrf.mxu0
      %v792 = vadd.f32 0.0, %v791
      %v793 = vpop.f32.mrf.mxu0
      %794 = vmatprep.mubr.bf16.mxu0 0
      %795 = vmatmul.mubr.bf16.gmra.mxu0 %v461
      %v796 = vpop.f32.mrf.mxu0
      %v797 = vadd.f32 0.0, %v796
      %v798 = vpop.f32.mrf.mxu0
      %v799 = vpop.f32.mrf.mxu0
      %v800 = vadd.f32 0.0, %v799
      %v801 = vpop.f32.mrf.mxu0
      %802 = vmatprep.mubr.bf16.mxu0 0
      %803 = vmatmul.mubr.bf16.gmra.mxu0 %v462
      %v804 = vpop.f32.mrf.mxu0
      %v805 = vadd.f32 0.0, %v804
      %v806 = vpop.f32.mrf.mxu0
      %v807 = vpop.f32.mrf.mxu0
      %v808 = vadd.f32 0.0, %v807
      %v809 = vpop.f32.mrf.mxu0
      %810 = vmatprep.mubr.bf16.mxu0 0
      %811 = vmatmul.mubr.bf16.gmra.mxu0 %v463
      %v812 = vpop.f32.mrf.mxu0
      %v813 = vadd.f32 0.0, %v812
      %v814 = vpop.f32.mrf.mxu0
      %v815 = vpop.f32.mrf.mxu0
      %v816 = vadd.f32 0.0, %v815
      %v817 = vpop.f32.mrf.mxu0
      %818 = vmatprep.mubr.bf16.mxu0 0
      %819 = vmatmul.mubr.bf16.gmra.mxu0 %v464
      %v820 = vpop.f32.mrf.mxu0
      %v821 = vadd.f32 0.0, %v820
      %v822 = vpop.f32.mrf.mxu0
      %v823 = vpop.f32.mrf.mxu0
      %v824 = vadd.f32 0.0, %v823
      %v825 = vpop.f32.mrf.mxu0
      %826 = vmatprep.mubr.bf16.mxu0 0
      %827 = vmatmul.mubr.bf16.gmra.mxu0 %v465
      %v828 = vpop.f32.mrf.mxu0
      %v829 = vadd.f32 0.0, %v828
      %v830 = vpop.f32.mrf.mxu0
      %v831 = vpop.f32.mrf.mxu0
      %v832 = vadd.f32 0.0, %v831
      %v833 = vpop.f32.mrf.mxu0
      %834 = vdwg.mxu0
      // Predicated region
      $region41: #{bottleneck_forward.3} parent=35 // pred_check
        %p835 = pneg %p219
      $region42: #{bottleneck_forward.3} parent=35 // pred_check_branch
        %837 = sbr.rel (%p835) target = $region44
      $region43: #{bottleneck_forward.3} parent=35 // pred_region
        %v838 = vld [vmem:[#allocation2] sm:$0x1]
        %v839 = vadd.f32 %v581, %v584
        %v840 = vadd.f32 %v839, %v589
        %v841 = vadd.f32 %v840, %v592
        %v842 = vadd.f32 %v841, %v597
        %v843 = vadd.f32 %v842, %v600
        %v844 = vadd.f32 %v843, %v605
        %v845 = vadd.f32 %v844, %v608
        %v846 = vadd.f32 %v845, %v613
        %v847 = vadd.f32 %v846, %v616
        %v848 = vadd.f32 %v847, %v621
        %v849 = vadd.f32 %v848, %v624
        %v850 = vadd.f32 %v849, %v629
        %v851 = vadd.f32 %v850, %v632
        %v852 = vadd.f32 %v851, %v637
        %v853 = vadd.f32 %v852, %v640
        %v854 = vadd.f32 %v853, %v645
        %v855 = vadd.f32 %v854, %v648
        %v856 = vadd.f32 %v855, %v653
        %v857 = vadd.f32 %v856, %v656
        %v858 = vadd.f32 %v857, %v661
        %v859 = vadd.f32 %v858, %v664
        %v860 = vadd.f32 %v859, %v669
        %v861 = vadd.f32 %v860, %v672
        %v862 = vadd.f32 %v861, %v677
        %v863 = vadd.f32 %v862, %v680
        %v864 = vadd.f32 %v863, %v685
        %v865 = vadd.f32 %v864, %v688
        %v866 = vadd.f32 %v865, %v693
        %v867 = vadd.f32 %v866, %v696
        %v868 = vadd.f32 %v867, %v701
        %v869 = vadd.f32 %v868, %v704
        %v870 = vadd.f32 %v869, %v709
        %v871 = vadd.f32 %v870, %v712
        %v872 = vadd.f32 %v871, %v717
        %v873 = vadd.f32 %v872, %v720
        %v874 = vadd.f32 %v873, %v725
        %v875 = vadd.f32 %v874, %v728
        %v876 = vadd.f32 %v875, %v733
        %v877 = vadd.f32 %v876, %v736
        %v878 = vadd.f32 %v877, %v741
        %v879 = vadd.f32 %v878, %v744
        %v880 = vadd.f32 %v879, %v749
        %v881 = vadd.f32 %v880, %v752
        %v882 = vadd.f32 %v881, %v757
        %v883 = vadd.f32 %v882, %v760
        %v884 = vadd.f32 %v883, %v765
        %v885 = vadd.f32 %v884, %v768
        %v886 = vadd.f32 %v885, %v773
        %v887 = vadd.f32 %v886, %v776
        %v888 = vadd.f32 %v887, %v781
        %v889 = vadd.f32 %v888, %v784
        %v890 = vadd.f32 %v889, %v789
        %v891 = vadd.f32 %v890, %v792
        %v892 = vadd.f32 %v891, %v797
        %v893 = vadd.f32 %v892, %v800
        %v894 = vadd.f32 %v893, %v805
        %v895 = vadd.f32 %v894, %v808
        %v896 = vadd.f32 %v895, %v813
        %v897 = vadd.f32 %v896, %v816
        %v898 = vadd.f32 %v897, %v821
        %v899 = vadd.f32 %v898, %v824
        %v900 = vadd.f32 %v899, %v829
        %v901 = vadd.f32 %v900, %v832
        %v902 = vrot.slane %v901, 4
        %v903 = vadd.f32 %v901, %v902
        %v904 = vrot.slane %v903, 2
        %v905 = vadd.f32 %v903, %v904
        %v906 = vrot.slane %v905, 1
        %v907 = vadd.f32 %v905, %v906
        %v908 = vadd.f32 %v838, %v907
        %909 = vst [vmem:[#allocation2] sm:$0x1] %v908
        %v910 = vld [vmem:[#allocation2 + $0x1] sm:$0x1]
        %v911 = vmul.f32 %v581, %v581
        %v912 = vmul.f32 %v584, %v584
        %v913 = vmul.f32 %v589, %v589
        %v914 = vmul.f32 %v592, %v592
        %v915 = vmul.f32 %v597, %v597
        %v916 = vmul.f32 %v600, %v600
        %v917 = vmul.f32 %v605, %v605
        %v918 = vmul.f32 %v608, %v608
        %v919 = vmul.f32 %v613, %v613
        %v920 = vmul.f32 %v616, %v616
        %v921 = vmul.f32 %v621, %v621
        %v922 = vmul.f32 %v624, %v624
        %v923 = vmul.f32 %v629, %v629
        %v924 = vmul.f32 %v632, %v632
        %v925 = vmul.f32 %v637, %v637
        %v926 = vmul.f32 %v640, %v640
        %v927 = vmul.f32 %v645, %v645
        %v928 = vmul.f32 %v648, %v648
        %v929 = vmul.f32 %v653, %v653
        %v930 = vmul.f32 %v656, %v656
        %v931 = vmul.f32 %v661, %v661
        %v932 = vmul.f32 %v664, %v664
        %v933 = vmul.f32 %v669, %v669
        %v934 = vmul.f32 %v672, %v672
        %v935 = vmul.f32 %v677, %v677
        %v936 = vmul.f32 %v680, %v680
        %v937 = vmul.f32 %v685, %v685
        %v938 = vmul.f32 %v688, %v688
        %v939 = vmul.f32 %v693, %v693
        %v940 = vmul.f32 %v696, %v696
        %v941 = vmul.f32 %v701, %v701
        %v942 = vmul.f32 %v704, %v704
        %v943 = vmul.f32 %v709, %v709
        %v944 = vmul.f32 %v712, %v712
        %v945 = vmul.f32 %v717, %v717
        %v946 = vmul.f32 %v720, %v720
        %v947 = vmul.f32 %v725, %v725
        %v948 = vmul.f32 %v728, %v728
        %v949 = vmul.f32 %v733, %v733
        %v950 = vmul.f32 %v736, %v736
        %v951 = vmul.f32 %v741, %v741
        %v952 = vmul.f32 %v744, %v744
        %v953 = vmul.f32 %v749, %v749
        %v954 = vmul.f32 %v752, %v752
        %v955 = vmul.f32 %v757, %v757
        %v956 = vmul.f32 %v760, %v760
        %v957 = vmul.f32 %v765, %v765
        %v958 = vmul.f32 %v768, %v768
        %v959 = vmul.f32 %v773, %v773
        %v960 = vmul.f32 %v776, %v776
        %v961 = vmul.f32 %v781, %v781
        %v962 = vmul.f32 %v784, %v784
        %v963 = vmul.f32 %v789, %v789
        %v964 = vmul.f32 %v792, %v792
        %v965 = vmul.f32 %v797, %v797
        %v966 = vmul.f32 %v800, %v800
        %v967 = vmul.f32 %v805, %v805
        %v968 = vmul.f32 %v808, %v808
        %v969 = vmul.f32 %v813, %v813
        %v970 = vmul.f32 %v816, %v816
        %v971 = vmul.f32 %v821, %v821
        %v972 = vmul.f32 %v824, %v824
        %v973 = vmul.f32 %v829, %v829
        %v974 = vmul.f32 %v832, %v832
        %v975 = vadd.f32 %v911, %v912
        %v976 = vadd.f32 %v975, %v913
        %v977 = vadd.f32 %v976, %v914
        %v978 = vadd.f32 %v977, %v915
        %v979 = vadd.f32 %v978, %v916
        %v980 = vadd.f32 %v979, %v917
        %v981 = vadd.f32 %v980, %v918
        %v982 = vadd.f32 %v981, %v919
        %v983 = vadd.f32 %v982, %v920
        %v984 = vadd.f32 %v983, %v921
        %v985 = vadd.f32 %v984, %v922
        %v986 = vadd.f32 %v985, %v923
        %v987 = vadd.f32 %v986, %v924
        %v988 = vadd.f32 %v987, %v925
        %v989 = vadd.f32 %v988, %v926
        %v990 = vadd.f32 %v989, %v927
        %v991 = vadd.f32 %v990, %v928
        %v992 = vadd.f32 %v991, %v929
        %v993 = vadd.f32 %v992, %v930
        %v994 = vadd.f32 %v993, %v931
        %v995 = vadd.f32 %v994, %v932
        %v996 = vadd.f32 %v995, %v933
        %v997 = vadd.f32 %v996, %v934
        %v998 = vadd.f32 %v997, %v935
        %v999 = vadd.f32 %v998, %v936
        %v1000 = vadd.f32 %v999, %v937
        %v1001 = vadd.f32 %v1000, %v938
        %v1002 = vadd.f32 %v1001, %v939
        %v1003 = vadd.f32 %v1002, %v940
        %v1004 = vadd.f32 %v1003, %v941
        %v1005 = vadd.f32 %v1004, %v942
        %v1006 = vadd.f32 %v1005, %v943
        %v1007 = vadd.f32 %v1006, %v944
        %v1008 = vadd.f32 %v1007, %v945
        %v1009 = vadd.f32 %v1008, %v946
        %v1010 = vadd.f32 %v1009, %v947
        %v1011 = vadd.f32 %v1010, %v948
        %v1012 = vadd.f32 %v1011, %v949
        %v1013 = vadd.f32 %v1012, %v950
        %v1014 = vadd.f32 %v1013, %v951
        %v1015 = vadd.f32 %v1014, %v952
        %v1016 = vadd.f32 %v1015, %v953
        %v1017 = vadd.f32 %v1016, %v954
        %v1018 = vadd.f32 %v1017, %v955
        %v1019 = vadd.f32 %v1018, %v956
        %v1020 = vadd.f32 %v1019, %v957
        %v1021 = vadd.f32 %v1020, %v958
        %v1022 = vadd.f32 %v1021, %v959
        %v1023 = vadd.f32 %v1022, %v960
        %v1024 = vadd.f32 %v1023, %v961
        %v1025 = vadd.f32 %v1024, %v962
        %v1026 = vadd.f32 %v1025, %v963
        %v1027 = vadd.f32 %v1026, %v964
        %v1028 = vadd.f32 %v1027, %v965
        %v1029 = vadd.f32 %v1028, %v966
        %v1030 = vadd.f32 %v1029, %v967
        %v1031 = vadd.f32 %v1030, %v968
        %v1032 = vadd.f32 %v1031, %v969
        %v1033 = vadd.f32 %v1032, %v970
        %v1034 = vadd.f32 %v1033, %v971
        %v1035 = vadd.f32 %v1034, %v972
        %v1036 = vadd.f32 %v1035, %v973
        %v1037 = vadd.f32 %v1036, %v974
        %v1038 = vrot.slane %v1037, 4
        %v1039 = vadd.f32 %v1037, %v1038
        %v1040 = vrot.slane %v1039, 2
        %v1041 = vadd.f32 %v1039, %v1040
        %v1042 = vrot.slane %v1041, 1
        %v1043 = vadd.f32 %v1041, %v1042
        %v1044 = vadd.f32 %v910, %v1043
        %1045 = vst [vmem:[#allocation2 + $0x1] sm:$0x1] %v1044
      $region44: #{bottleneck_forward.3} parent=35 // pred_fallthru
        _
      %p1046 = scmp.eq.s32.totalorder %s19, 1
      %p1047 = pnand %p1046, %p220
      %p1048 = pneg %p1047
      // Predicated region
      $region45: #{bottleneck_forward.3} parent=35 // pred_check
        _
      $region46: #{bottleneck_forward.3} parent=35 // pred_check_branch
        %1050 = sbr.rel (%p1047) target = $region48
      $region47: #{bottleneck_forward.3} parent=35 // pred_region
        %v1051 = vld [vmem:[#allocation2] sm:$0x1]
        %v1052 = vmul.f32 %v1051, 0.0009765625
        %v1053 = vld [vmem:[#allocation2 + $0x1] sm:$0x1]
        %v1054 = vmul.f32 %v1053, 0.0009765625
        %v1055 = vmul.f32 %v1052, %v1052
        %v1056 = vsub.f32 %v1054, %v1055
        %v1057 = vld [vmem:[%s2] sm:$0x1]
        %v1058 = vadd.f32 %v1056, 1e-05
        %v1059 = vrsqrt.pop %v1058
        %v1060 = vmul.f32 %v1057, %v1059
        %1061 = vst [vmem:[#allocation3] sm:$0x1] %v1060
        %v1062 = vld [vmem:[%s3] sm:$0x1]
        %v1063 = vmul.f32 %v1052, %v1060
        %v1064 = vsub.f32 %v1062, %v1063
        %1065 = vst [vmem:[#allocation3 + $0x1] sm:$0x1] %v1064
      $region48: #{bottleneck_forward.3} parent=35 // pred_fallthru
        _
      // Predicated region
      $region49: #{bottleneck_forward.3} parent=35 // pred_check
        %p1066 = pneg %p1046
      $region50: #{bottleneck_forward.3} parent=35 // pred_check_branch
        %1068 = sbr.rel (%p1066) target = $region52
      $region51: #{bottleneck_forward.3} parent=35 // pred_region
        %v1069 = vld [vmem:[#allocation3] sm:$0x1]
        %v1070 = vlaneseq
        %v1071 = vshrl.u32 %v1070, 7
        %v1072 = vsub.s32 0, %v1071
        %v1073 = vrot.slane %v1069, %v1072
        %v1074 = vmul.f32 %v581, %v1073
        %v1075 = vmul.f32 %v584, %v1073
        %v1076 = vmul.f32 %v589, %v1073
        %v1077 = vmul.f32 %v592, %v1073
        %v1078 = vmul.f32 %v597, %v1073
        %v1079 = vmul.f32 %v600, %v1073
        %v1080 = vmul.f32 %v605, %v1073
        %v1081 = vmul.f32 %v608, %v1073
        %v1082 = vmul.f32 %v613, %v1073
        %v1083 = vmul.f32 %v616, %v1073
        %v1084 = vmul.f32 %v621, %v1073
        %v1085 = vmul.f32 %v624, %v1073
        %v1086 = vmul.f32 %v629, %v1073
        %v1087 = vmul.f32 %v632, %v1073
        %v1088 = vmul.f32 %v637, %v1073
        %v1089 = vmul.f32 %v640, %v1073
        %v1090 = vmul.f32 %v645, %v1073
        %v1091 = vmul.f32 %v648, %v1073
        %v1092 = vmul.f32 %v653, %v1073
        %v1093 = vmul.f32 %v656, %v1073
        %v1094 = vmul.f32 %v661, %v1073
        %v1095 = vmul.f32 %v664, %v1073
        %v1096 = vmul.f32 %v669, %v1073
        %v1097 = vmul.f32 %v672, %v1073
        %v1098 = vmul.f32 %v677, %v1073
        %v1099 = vmul.f32 %v680, %v1073
        %v1100 = vmul.f32 %v685, %v1073
        %v1101 = vmul.f32 %v688, %v1073
        %v1102 = vmul.f32 %v693, %v1073
        %v1103 = vmul.f32 %v696, %v1073
        %v1104 = vmul.f32 %v701, %v1073
        %v1105 = vmul.f32 %v704, %v1073
        %v1106 = vmul.f32 %v709, %v1073
        %v1107 = vmul.f32 %v712, %v1073
        %v1108 = vmul.f32 %v717, %v1073
        %v1109 = vmul.f32 %v720, %v1073
        %v1110 = vmul.f32 %v725, %v1073
        %v1111 = vmul.f32 %v728, %v1073
        %v1112 = vmul.f32 %v733, %v1073
        %v1113 = vmul.f32 %v736, %v1073
        %v1114 = vmul.f32 %v741, %v1073
        %v1115 = vmul.f32 %v744, %v1073
        %v1116 = vmul.f32 %v749, %v1073
        %v1117 = vmul.f32 %v752, %v1073
        %v1118 = vmul.f32 %v757, %v1073
        %v1119 = vmul.f32 %v760, %v1073
        %v1120 = vmul.f32 %v765, %v1073
        %v1121 = vmul.f32 %v768, %v1073
        %v1122 = vmul.f32 %v773, %v1073
        %v1123 = vmul.f32 %v776, %v1073
        %v1124 = vmul.f32 %v781, %v1073
        %v1125 = vmul.f32 %v784, %v1073
        %v1126 = vmul.f32 %v789, %v1073
        %v1127 = vmul.f32 %v792, %v1073
        %v1128 = vmul.f32 %v797, %v1073
        %v1129 = vmul.f32 %v800, %v1073
        %v1130 = vmul.f32 %v805, %v1073
        %v1131 = vmul.f32 %v808, %v1073
        %v1132 = vmul.f32 %v813, %v1073
        %v1133 = vmul.f32 %v816, %v1073
        %v1134 = vmul.f32 %v821, %v1073
        %v1135 = vmul.f32 %v824, %v1073
        %v1136 = vmul.f32 %v829, %v1073
        %v1137 = vmul.f32 %v832, %v1073
        %v1138 = vld [vmem:[#allocation3 + $0x1] sm:$0x1]
        %v1139 = vlaneseq
        %v1140 = vshrl.u32 %v1139, 7
        %v1141 = vsub.s32 0, %v1140
        %v1142 = vrot.slane %v1138, %v1141
        %v1143 = vadd.f32 %v1074, %v1142
        %v1144 = vadd.f32 %v1075, %v1142
        %v1145 = vadd.f32 %v1076, %v1142
        %v1146 = vadd.f32 %v1077, %v1142
        %v1147 = vadd.f32 %v1078, %v1142
        %v1148 = vadd.f32 %v1079, %v1142
        %v1149 = vadd.f32 %v1080, %v1142
        %v1150 = vadd.f32 %v1081, %v1142
        %v1151 = vadd.f32 %v1082, %v1142
        %v1152 = vadd.f32 %v1083, %v1142
        %v1153 = vadd.f32 %v1084, %v1142
        %v1154 = vadd.f32 %v1085, %v1142
        %v1155 = vadd.f32 %v1086, %v1142
        %v1156 = vadd.f32 %v1087, %v1142
        %v1157 = vadd.f32 %v1088, %v1142
        %v1158 = vadd.f32 %v1089, %v1142
        %v1159 = vadd.f32 %v1090, %v1142
        %v1160 = vadd.f32 %v1091, %v1142
        %v1161 = vadd.f32 %v1092, %v1142
        %v1162 = vadd.f32 %v1093, %v1142
        %v1163 = vadd.f32 %v1094, %v1142
        %v1164 = vadd.f32 %v1095, %v1142
        %v1165 = vadd.f32 %v1096, %v1142
        %v1166 = vadd.f32 %v1097, %v1142
        %v1167 = vadd.f32 %v1098, %v1142
        %v1168 = vadd.f32 %v1099, %v1142
        %v1169 = vadd.f32 %v1100, %v1142
        %v1170 = vadd.f32 %v1101, %v1142
        %v1171 = vadd.f32 %v1102, %v1142
        %v1172 = vadd.f32 %v1103, %v1142
        %v1173 = vadd.f32 %v1104, %v1142
        %v1174 = vadd.f32 %v1105, %v1142
        %v1175 = vadd.f32 %v1106, %v1142
        %v1176 = vadd.f32 %v1107, %v1142
        %v1177 = vadd.f32 %v1108, %v1142
        %v1178 = vadd.f32 %v1109, %v1142
        %v1179 = vadd.f32 %v1110, %v1142
        %v1180 = vadd.f32 %v1111, %v1142
        %v1181 = vadd.f32 %v1112, %v1142
        %v1182 = vadd.f32 %v1113, %v1142
        %v1183 = vadd.f32 %v1114, %v1142
        %v1184 = vadd.f32 %v1115, %v1142
        %v1185 = vadd.f32 %v1116, %v1142
        %v1186 = vadd.f32 %v1117, %v1142
        %v1187 = vadd.f32 %v1118, %v1142
        %v1188 = vadd.f32 %v1119, %v1142
        %v1189 = vadd.f32 %v1120, %v1142
        %v1190 = vadd.f32 %v1121, %v1142
        %v1191 = vadd.f32 %v1122, %v1142
        %v1192 = vadd.f32 %v1123, %v1142
        %v1193 = vadd.f32 %v1124, %v1142
        %v1194 = vadd.f32 %v1125, %v1142
        %v1195 = vadd.f32 %v1126, %v1142
        %v1196 = vadd.f32 %v1127, %v1142
        %v1197 = vadd.f32 %v1128, %v1142
        %v1198 = vadd.f32 %v1129, %v1142
        %v1199 = vadd.f32 %v1130, %v1142
        %v1200 = vadd.f32 %v1131, %v1142
        %v1201 = vadd.f32 %v1132, %v1142
        %v1202 = vadd.f32 %v1133, %v1142
        %v1203 = vadd.f32 %v1134, %v1142
        %v1204 = vadd.f32 %v1135, %v1142
        %v1205 = vadd.f32 %v1136, %v1142
        %v1206 = vadd.f32 %v1137, %v1142
        %v1207 = vmax.f32 %v1143, 0.0
        %v1208 = vmax.f32 %v1144, 0.0
        %v1209 = vmax.f32 %v1145, 0.0
        %v1210 = vmax.f32 %v1146, 0.0
        %v1211 = vmax.f32 %v1147, 0.0
        %v1212 = vmax.f32 %v1148, 0.0
        %v1213 = vmax.f32 %v1149, 0.0
        %v1214 = vmax.f32 %v1150, 0.0
        %v1215 = vmax.f32 %v1151, 0.0
        %v1216 = vmax.f32 %v1152, 0.0
        %v1217 = vmax.f32 %v1153, 0.0
        %v1218 = vmax.f32 %v1154, 0.0
        %v1219 = vmax.f32 %v1155, 0.0
        %v1220 = vmax.f32 %v1156, 0.0
        %v1221 = vmax.f32 %v1157, 0.0
        %v1222 = vmax.f32 %v1158, 0.0
        %v1223 = vmax.f32 %v1159, 0.0
        %v1224 = vmax.f32 %v1160, 0.0
        %v1225 = vmax.f32 %v1161, 0.0
        %v1226 = vmax.f32 %v1162, 0.0
        %v1227 = vmax.f32 %v1163, 0.0
        %v1228 = vmax.f32 %v1164, 0.0
        %v1229 = vmax.f32 %v1165, 0.0
        %v1230 = vmax.f32 %v1166, 0.0
        %v1231 = vmax.f32 %v1167, 0.0
        %v1232 = vmax.f32 %v1168, 0.0
        %v1233 = vmax.f32 %v1169, 0.0
        %v1234 = vmax.f32 %v1170, 0.0
        %v1235 = vmax.f32 %v1171, 0.0
        %v1236 = vmax.f32 %v1172, 0.0
        %v1237 = vmax.f32 %v1173, 0.0
        %v1238 = vmax.f32 %v1174, 0.0
        %v1239 = vmax.f32 %v1175, 0.0
        %v1240 = vmax.f32 %v1176, 0.0
        %v1241 = vmax.f32 %v1177, 0.0
        %v1242 = vmax.f32 %v1178, 0.0
        %v1243 = vmax.f32 %v1179, 0.0
        %v1244 = vmax.f32 %v1180, 0.0
        %v1245 = vmax.f32 %v1181, 0.0
        %v1246 = vmax.f32 %v1182, 0.0
        %v1247 = vmax.f32 %v1183, 0.0
        %v1248 = vmax.f32 %v1184, 0.0
        %v1249 = vmax.f32 %v1185, 0.0
        %v1250 = vmax.f32 %v1186, 0.0
        %v1251 = vmax.f32 %v1187, 0.0
        %v1252 = vmax.f32 %v1188, 0.0
        %v1253 = vmax.f32 %v1189, 0.0
        %v1254 = vmax.f32 %v1190, 0.0
        %v1255 = vmax.f32 %v1191, 0.0
        %v1256 = vmax.f32 %v1192, 0.0
        %v1257 = vmax.f32 %v1193, 0.0
        %v1258 = vmax.f32 %v1194, 0.0
        %v1259 = vmax.f32 %v1195, 0.0
        %v1260 = vmax.f32 %v1196, 0.0
        %v1261 = vmax.f32 %v1197, 0.0
        %v1262 = vmax.f32 %v1198, 0.0
        %v1263 = vmax.f32 %v1199, 0.0
        %v1264 = vmax.f32 %v1200, 0.0
        %v1265 = vmax.f32 %v1201, 0.0
        %v1266 = vmax.f32 %v1202, 0.0
        %v1267 = vmax.f32 %v1203, 0.0
        %v1268 = vmax.f32 %v1204, 0.0
        %v1269 = vmax.f32 %v1205, 0.0
        %v1270 = vmax.f32 %v1206, 0.0
        %v1271 = vpack.c.bf16 %v1208, %v1207
        %v1272 = vpack.c.bf16 %v1210, %v1209
        %v1273 = vpack.c.bf16 %v1212, %v1211
        %v1274 = vpack.c.bf16 %v1214, %v1213
        %v1275 = vpack.c.bf16 %v1216, %v1215
        %v1276 = vpack.c.bf16 %v1218, %v1217
        %v1277 = vpack.c.bf16 %v1220, %v1219
        %v1278 = vpack.c.bf16 %v1222, %v1221
        %v1279 = vpack.c.bf16 %v1224, %v1223
        %v1280 = vpack.c.bf16 %v1226, %v1225
        %v1281 = vpack.c.bf16 %v1228, %v1227
        %v1282 = vpack.c.bf16 %v1230, %v1229
        %v1283 = vpack.c.bf16 %v1232, %v1231
        %v1284 = vpack.c.bf16 %v1234, %v1233
        %v1285 = vpack.c.bf16 %v1236, %v1235
        %v1286 = vpack.c.bf16 %v1238, %v1237
        %v1287 = vpack.c.bf16 %v1240, %v1239
        %v1288 = vpack.c.bf16 %v1242, %v1241
        %v1289 = vpack.c.bf16 %v1244, %v1243
        %v1290 = vpack.c.bf16 %v1246, %v1245
        %v1291 = vpack.c.bf16 %v1248, %v1247
        %v1292 = vpack.c.bf16 %v1250, %v1249
        %v1293 = vpack.c.bf16 %v1252, %v1251
        %v1294 = vpack.c.bf16 %v1254, %v1253
        %v1295 = vpack.c.bf16 %v1256, %v1255
        %v1296 = vpack.c.bf16 %v1258, %v1257
        %v1297 = vpack.c.bf16 %v1260, %v1259
        %v1298 = vpack.c.bf16 %v1262, %v1261
        %v1299 = vpack.c.bf16 %v1264, %v1263
        %v1300 = vpack.c.bf16 %v1266, %v1265
        %v1301 = vpack.c.bf16 %v1268, %v1267
        %v1302 = vpack.c.bf16 %v1270, %v1269
        %v1335 = vunpack.c.l.b16 %v1271
        %v1336 = vunpack.c.h.b16 %v1271
        %v1337 = vunpack.c.l.b16 %v1272
        %v1338 = vunpack.c.h.b16 %v1272
        %v1339 = vunpack.c.l.b16 %v1273
        %v1340 = vunpack.c.h.b16 %v1273
        %v1341 = vunpack.c.l.b16 %v1274
        %v1342 = vunpack.c.h.b16 %v1274
        %v1343 = vunpack.c.l.b16 %v1275
        %v1344 = vunpack.c.h.b16 %v1275
        %v1345 = vunpack.c.l.b16 %v1276
        %v1346 = vunpack.c.h.b16 %v1276
        %v1347 = vunpack.c.l.b16 %v1277
        %v1348 = vunpack.c.h.b16 %v1277
        %v1349 = vunpack.c.l.b16 %v1278
        %v1350 = vunpack.c.h.b16 %v1278
        %v1351 = vunpack.c.l.b16 %v1279
        %v1352 = vunpack.c.h.b16 %v1279
        %v1353 = vunpack.c.l.b16 %v1280
        %v1354 = vunpack.c.h.b16 %v1280
        %v1355 = vunpack.c.l.b16 %v1281
        %v1356 = vunpack.c.h.b16 %v1281
        %v1357 = vunpack.c.l.b16 %v1282
        %v1358 = vunpack.c.h.b16 %v1282
        %v1359 = vunpack.c.l.b16 %v1283
        %v1360 = vunpack.c.h.b16 %v1283
        %v1361 = vunpack.c.l.b16 %v1284
        %v1362 = vunpack.c.h.b16 %v1284
        %v1363 = vunpack.c.l.b16 %v1285
        %v1364 = vunpack.c.h.b16 %v1285
        %v1365 = vunpack.c.l.b16 %v1286
        %v1366 = vunpack.c.h.b16 %v1286
        %v1367 = vunpack.c.l.b16 %v1287
        %v1368 = vunpack.c.h.b16 %v1287
        %v1369 = vunpack.c.l.b16 %v1288
        %v1370 = vunpack.c.h.b16 %v1288
        %v1371 = vunpack.c.l.b16 %v1289
        %v1372 = vunpack.c.h.b16 %v1289
        %v1373 = vunpack.c.l.b16 %v1290
        %v1374 = vunpack.c.h.b16 %v1290
        %v1375 = vunpack.c.l.b16 %v1291
        %v1376 = vunpack.c.h.b16 %v1291
        %v1377 = vunpack.c.l.b16 %v1292
        %v1378 = vunpack.c.h.b16 %v1292
        %v1379 = vunpack.c.l.b16 %v1293
        %v1380 = vunpack.c.h.b16 %v1293
        %v1381 = vunpack.c.l.b16 %v1294
        %v1382 = vunpack.c.h.b16 %v1294
        %v1383 = vunpack.c.l.b16 %v1295
        %v1384 = vunpack.c.h.b16 %v1295
        %v1385 = vunpack.c.l.b16 %v1296
        %v1386 = vunpack.c.h.b16 %v1296
        %v1387 = vunpack.c.l.b16 %v1297
        %v1388 = vunpack.c.h.b16 %v1297
        %v1389 = vunpack.c.l.b16 %v1298
        %v1390 = vunpack.c.h.b16 %v1298
        %v1391 = vunpack.c.l.b16 %v1299
        %v1392 = vunpack.c.h.b16 %v1299
        %v1393 = vunpack.c.l.b16 %v1300
        %v1394 = vunpack.c.h.b16 %v1300
        %v1395 = vunpack.c.l.b16 %v1301
        %v1396 = vunpack.c.h.b16 %v1301
        %v1397 = vunpack.c.l.b16 %v1302
        %v1398 = vunpack.c.h.b16 %v1302
        %v1399 = vpack.c.b16 %v1335, %v1335
        %v1400 = vpack.c.b16 %v1336, %v1336
        %v1401 = vpack.c.b16 %v1337, %v1337
        %v1402 = vpack.c.b16 %v1338, %v1338
        %v1403 = vpack.c.b16 %v1339, %v1339
        %v1404 = vpack.c.b16 %v1340, %v1340
        %v1405 = vpack.c.b16 %v1341, %v1341
        %v1406 = vpack.c.b16 %v1342, %v1342
        %v1407 = vpack.c.b16 %v1343, %v1343
        %v1408 = vpack.c.b16 %v1344, %v1344
        %v1409 = vpack.c.b16 %v1345, %v1345
        %v1410 = vpack.c.b16 %v1346, %v1346
        %v1411 = vpack.c.b16 %v1347, %v1347
        %v1412 = vpack.c.b16 %v1348, %v1348
        %v1413 = vpack.c.b16 %v1349, %v1349
        %v1414 = vpack.c.b16 %v1350, %v1350
        %v1415 = vpack.c.b16 %v1351, %v1351
        %v1416 = vpack.c.b16 %v1352, %v1352
        %v1417 = vpack.c.b16 %v1353, %v1353
        %v1418 = vpack.c.b16 %v1354, %v1354
        %v1419 = vpack.c.b16 %v1355, %v1355
        %v1420 = vpack.c.b16 %v1356, %v1356
        %v1421 = vpack.c.b16 %v1357, %v1357
        %v1422 = vpack.c.b16 %v1358, %v1358
        %v1423 = vpack.c.b16 %v1359, %v1359
        %v1424 = vpack.c.b16 %v1360, %v1360
        %v1425 = vpack.c.b16 %v1361, %v1361
        %v1426 = vpack.c.b16 %v1362, %v1362
        %v1427 = vpack.c.b16 %v1363, %v1363
        %v1428 = vpack.c.b16 %v1364, %v1364
        %v1429 = vpack.c.b16 %v1365, %v1365
        %v1430 = vpack.c.b16 %v1366, %v1366
        %v1431 = vpack.c.b16 %v1367, %v1367
        %v1432 = vpack.c.b16 %v1368, %v1368
        %v1433 = vpack.c.b16 %v1369, %v1369
        %v1434 = vpack.c.b16 %v1370, %v1370
        %v1435 = vpack.c.b16 %v1371, %v1371
        %v1436 = vpack.c.b16 %v1372, %v1372
        %v1437 = vpack.c.b16 %v1373, %v1373
        %v1438 = vpack.c.b16 %v1374, %v1374
        %v1439 = vpack.c.b16 %v1375, %v1375
        %v1440 = vpack.c.b16 %v1376, %v1376
        %v1441 = vpack.c.b16 %v1377, %v1377
        %v1442 = vpack.c.b16 %v1378, %v1378
        %v1443 = vpack.c.b16 %v1379, %v1379
        %v1444 = vpack.c.b16 %v1380, %v1380
        %v1445 = vpack.c.b16 %v1381, %v1381
        %v1446 = vpack.c.b16 %v1382, %v1382
        %v1447 = vpack.c.b16 %v1383, %v1383
        %v1448 = vpack.c.b16 %v1384, %v1384
        %v1449 = vpack.c.b16 %v1385, %v1385
        %v1450 = vpack.c.b16 %v1386, %v1386
        %v1451 = vpack.c.b16 %v1387, %v1387
        %v1452 = vpack.c.b16 %v1388, %v1388
        %v1453 = vpack.c.b16 %v1389, %v1389
        %v1454 = vpack.c.b16 %v1390, %v1390
        %v1455 = vpack.c.b16 %v1391, %v1391
        %v1456 = vpack.c.b16 %v1392, %v1392
        %v1457 = vpack.c.b16 %v1393, %v1393
        %v1458 = vpack.c.b16 %v1394, %v1394
        %v1459 = vpack.c.b16 %v1395, %v1395
        %v1460 = vpack.c.b16 %v1396, %v1396
        %v1461 = vpack.c.b16 %v1397, %v1397
        %v1462 = vpack.c.b16 %v1398, %v1398
        %1527 = vst [vmem:[%s215] sm:$0xf] %v1399
        %1528 = vst [vmem:[%s215 + $0x4] sm:$0xf] %v1400
        %1529 = vst [vmem:[%s215 + $0x8] sm:$0xf] %v1401
        %1530 = vst [vmem:[%s215 + $0xc] sm:$0xf] %v1402
        %1531 = vst [vmem:[%s215 + $0x10] sm:$0xf] %v1403
        %1532 = vst [vmem:[%s215 + $0x14] sm:$0xf] %v1404
        %1533 = vst [vmem:[%s215 + $0x18] sm:$0xf] %v1405
        %1534 = vst [vmem:[%s215 + $0x1c] sm:$0xf] %v1406
        %1535 = vst [vmem:[%s215 + $0x20] sm:$0xf] %v1407
        %1536 = vst [vmem:[%s215 + $0x24] sm:$0xf] %v1408
        %1537 = vst [vmem:[%s215 + $0x28] sm:$0xf] %v1409
        %1538 = vst [vmem:[%s215 + $0x2c] sm:$0xf] %v1410
        %1539 = vst [vmem:[%s215 + $0x30] sm:$0xf] %v1411
        %1540 = vst [vmem:[%s215 + $0x34] sm:$0xf] %v1412
        %1541 = vst [vmem:[%s215 + $0x38] sm:$0xf] %v1413
        %1542 = vst [vmem:[%s215 + $0x3c] sm:$0xf] %v1414
        %1543 = vst [vmem:[%s215 + $0x40] sm:$0xf] %v1415
        %1544 = vst [vmem:[%s215 + $0x44] sm:$0xf] %v1416
        %1545 = vst [vmem:[%s215 + $0x48] sm:$0xf] %v1417
        %1546 = vst [vmem:[%s215 + $0x4c] sm:$0xf] %v1418
        %1547 = vst [vmem:[%s215 + $0x50] sm:$0xf] %v1419
        %1548 = vst [vmem:[%s215 + $0x54] sm:$0xf] %v1420
        %1549 = vst [vmem:[%s215 + $0x58] sm:$0xf] %v1421
        %1550 = vst [vmem:[%s215 + $0x5c] sm:$0xf] %v1422
        %1551 = vst [vmem:[%s215 + $0x60] sm:$0xf] %v1423
        %1552 = vst [vmem:[%s215 + $0x64] sm:$0xf] %v1424
        %1553 = vst [vmem:[%s215 + $0x68] sm:$0xf] %v1425
        %1554 = vst [vmem:[%s215 + $0x6c] sm:$0xf] %v1426
        %1555 = vst [vmem:[%s215 + $0x70] sm:$0xf] %v1427
        %1556 = vst [vmem:[%s215 + $0x74] sm:$0xf] %v1428
        %1557 = vst [vmem:[%s215 + $0x78] sm:$0xf] %v1429
        %1558 = vst [vmem:[%s215 + $0x7c] sm:$0xf] %v1430
        %1559 = vst [vmem:[%s215 + $0x80] sm:$0xf] %v1431
        %1560 = vst [vmem:[%s215 + $0x84] sm:$0xf] %v1432
        %1561 = vst [vmem:[%s215 + $0x88] sm:$0xf] %v1433
        %1562 = vst [vmem:[%s215 + $0x8c] sm:$0xf] %v1434
        %1563 = vst [vmem:[%s215 + $0x90] sm:$0xf] %v1435
        %1564 = vst [vmem:[%s215 + $0x94] sm:$0xf] %v1436
        %1565 = vst [vmem:[%s215 + $0x98] sm:$0xf] %v1437
        %1566 = vst [vmem:[%s215 + $0x9c] sm:$0xf] %v1438
        %1567 = vst [vmem:[%s215 + $0xa0] sm:$0xf] %v1439
        %1568 = vst [vmem:[%s215 + $0xa4] sm:$0xf] %v1440
        %1569 = vst [vmem:[%s215 + $0xa8] sm:$0xf] %v1441
        %1570 = vst [vmem:[%s215 + $0xac] sm:$0xf] %v1442
        %1571 = vst [vmem:[%s215 + $0xb0] sm:$0xf] %v1443
        %1572 = vst [vmem:[%s215 + $0xb4] sm:$0xf] %v1444
        %1573 = vst [vmem:[%s215 + $0xb8] sm:$0xf] %v1445
        %1574 = vst [vmem:[%s215 + $0xbc] sm:$0xf] %v1446
        %1575 = vst [vmem:[%s215 + $0xc0] sm:$0xf] %v1447
        %1576 = vst [vmem:[%s215 + $0xc4] sm:$0xf] %v1448
        %1577 = vst [vmem:[%s215 + $0xc8] sm:$0xf] %v1449
        %1578 = vst [vmem:[%s215 + $0xcc] sm:$0xf] %v1450
        %1579 = vst [vmem:[%s215 + $0xd0] sm:$0xf] %v1451
        %1580 = vst [vmem:[%s215 + $0xd4] sm:$0xf] %v1452
        %1581 = vst [vmem:[%s215 + $0xd8] sm:$0xf] %v1453
        %1582 = vst [vmem:[%s215 + $0xdc] sm:$0xf] %v1454
        %1583 = vst [vmem:[%s215 + $0xe0] sm:$0xf] %v1455
        %1584 = vst [vmem:[%s215 + $0xe4] sm:$0xf] %v1456
        %1585 = vst [vmem:[%s215 + $0xe8] sm:$0xf] %v1457
        %1586 = vst [vmem:[%s215 + $0xec] sm:$0xf] %v1458
        %1587 = vst [vmem:[%s215 + $0xf0] sm:$0xf] %v1459
        %1588 = vst [vmem:[%s215 + $0xf4] sm:$0xf] %v1460
        %1589 = vst [vmem:[%s215 + $0xf8] sm:$0xf] %v1461
        %1590 = vst [vmem:[%s215 + $0xfc] sm:$0xf] %v1462
      $region52: #{bottleneck_forward.3} parent=35 // pred_fallthru
        _
      %s1591 = smul.u32 %s20, %s19
      %s1592 = smul.u32 64, %s1591
      %p1593 = scmp.lt.s32.totalorder %s1592, 127
      %s1594 = scalar_select %p1593, %s1592, 127
      %s1595 = smul.addr %s1594, 4
      %s1596 = scalar_lea.vmem %s4, %s1595
      // Predicated region
      $region53: #{bottleneck_forward.3} parent=35 // pred_check
        %p1597 = pneg %p136
      $region54: #{bottleneck_forward.3} parent=35 // pred_check_branch
        %1599 = sbr.rel (%p1597) target = $region56
      $region55: #{bottleneck_forward.3} parent=35 // pred_region
        %s1600 = smul.u32 %s20, %s19
        %s1601 = smul.u32 64, %s1600
      $region56: #{bottleneck_forward.3} parent=35 // pred_fallthru
        _
    $region36: #{bottleneck_forward.3} parent=5 // pred_fallthru
      _
    %p1602 = scmp.le.s32.totalorder 2, %s10
    // Predicated region
    $region57: #{bottleneck_forward.3} parent=5 // pred_check
      %p1603 = pneg %p1602
    $region58: #{bottleneck_forward.3} parent=5 // pred_check_branch
      %1605 = sbr.rel (%p1603) target = $region60
    $region59: #{bottleneck_forward.3} parent=5 // pred_region
      %s1606 = ssub.s32 %s10, 2
      // Predicated region
      $region61: #{bottleneck_forward.3} parent=59 // pred_check
        %p1607 = pneg %p142
      $region62: #{bottleneck_forward.3} parent=59 // pred_check_branch
        %1609 = sbr.rel (%p1607) target = $region64
      $region63: #{bottleneck_forward.3} parent=59 // pred_region
        %s1610 = smul.u32 %s22, %s21
        %s1611 = smul.u32 64, %s1610
        %p1612 = scmp.lt.s32.totalorder %s1611, 127
        %s1613 = scalar_select %p1612, %s1611, 127
        %s1614 = smul.addr %s1613, 4
        %s1615 = scalar_lea.vmem %s4, %s1614
      $region64: #{bottleneck_forward.3} parent=59 // pred_fallthru
        _
    $region60: #{bottleneck_forward.3} parent=5 // pred_fallthru
      _
  $region6: #{bottleneck_forward.3} parent=0 // loop_footer
    %s14 = sadd.s32 1, %s10
  $region7: #{bottleneck_forward.3} parent=0 // loop_footer_branch
    %9 = sbr.rel target = $region3
  $region8: #{bottleneck_forward.3} parent=0 // loop_exit
    _

// kernel: bottleneck_forward.5
$region0: #{bottleneck_forward.5}
  #allocation0 [shape = 'u32[]', space=smem, size = 0x4, offset = 0x4, fixed_abs, tag = 'smem constant byte address 0x4 - core index']
  #allocation1 [shape = 'u32[144,128]{1,0:T(1,128)}', space=vmem, size = 0x12000, scoped, tag = 'internal scratch']
  #allocation2 [shape = 'f32[2,128]{1,0:T(2,128)}', space=vmem, size = 0x400, scoped, tag = 'scratch operand']
  #allocation3 [shape = 'f32[2,128]{1,0:T(2,128)}', space=vmem, size = 0x400, scoped, tag = 'scratch operand']
  %s0 = inlined_call_operand.vmem [shape: bf16[1024,128], index: 0, kind: input, shape index: {}]
  %s1 = inlined_call_operand.vmem [shape: bf16[128,128], index: 1, kind: input, shape index: {}]
  %s2 = inlined_call_operand.vmem [shape: f32[1,128], index: 2, kind: input, shape index: {}]
  %s3 = inlined_call_operand.vmem [shape: f32[1,128], index: 3, kind: input, shape index: {}]
  %s4 = inlined_call_operand.vmem [shape: bf16[1024,128], index: 4, kind: input, shape index: {}]
  %s5 = inlined_call_operand.vmem [shape: f32[1024,128], index: 5, kind: output, shape index: {}]
  %s6 = sld [smem:[#allocation0]]
  $region69: #{bottleneck_forward.5} parent=0
    _
  %s8 = ssub.s32 1, %s6
  %s9 = scalar_select 0, %s8, %s6
  loop: start=0, step=1, limit=6
  $region2: #{bottleneck_forward.5} parent=0 // loop_pre_header
    _
  $region3: #{bottleneck_forward.5} parent=0 // loop_header
    %s11 = sphi 0, %s15
    %p12 = scmp.ge.s32.totalorder %s11, 6
    %s18 = sphi 0, %s30
    %s19 = sphi 0, %s26
    %s20 = sphi 0, %s18
    %s21 = sphi 0, %s19
    %s22 = sphi 0, %s20
    %s23 = sphi 0, %s21
    %s33 = sphi 0, %s35
    %s36 = sphi 0, %s33
    %s37 = sphi 0, %s36
    %s53 = sphi 0, %s37
    %s57 = sphi 0, %s57
    %s59 = sphi 0, %s57
    %s60 = sphi 0, %s59
    %s74 = sphi 0, %s60
    %s78 = sphi 0, %s78
    %s80 = sphi 0, %s78
    %s81 = sphi 0, %s80
    %s95 = sphi 0, %s81
    %s99 = sphi 0, %s99
    %s101 = sphi 0, %s99
    %s102 = sphi 0, %s101
    %s116 = sphi 0, %s102
    %s122 = sphi 0, %s124
    %s125 = sphi 0, %s122
    %s126 = sphi 0, %s125
    %s142 = sphi 0, %s126
    %s150 = sphi 0, %s152
    %s153 = sphi 0, %s150
    %s154 = sphi 0, %s153
    %s170 = sphi 0, %s154
  $region4: #{bottleneck_forward.5} parent=0 // loop_header_branch
    %14 = sbr.rel (%p12) target = $region8
  $region5: #{bottleneck_forward.5} parent=0 // loop_body
    %s16 = ssub.s32 %s11, 1
    %s17 = ssub.s32 %s11, 2
    %s24 = sadd.s32 1, %s19
    %p25 = scmp.ge.s32.totalorder %s24, 2
    %s26 = scalar_select %p25, 0, %s24
    %s27 = sadd.s32 1, %s18
    %s28 = scalar_select %p25, %s27, %s18
    %p29 = scmp.ge.s32.totalorder %s28, 2
    %s30 = scalar_select %p29, 0, %s28
    %s31 = ssub.s32 %s19, %s26
    %p32 = scmp.eq.s32.totalorder %s31, 0
    %s34 = sadd.s32 %s33, 1
    %s35 = scalar_select %p32, %s33, %s34
    %p38 = pneg %p32
    %p39 = scmp.eq.s32.totalorder %s11, 3
    %p40 = por %p38, %p39
    %p41 = scmp.ne.s32.totalorder %s33, %s36
    %p42 = scmp.eq.s32.totalorder %s11, 0
    %p43 = por %p41, %p42
    %p44 = scmp.ne.s32.totalorder %s33, %s36
    %p45 = scmp.eq.s32.totalorder %s16, 3
    %p46 = por %p44, %p45
    %p47 = scmp.ne.s32.totalorder %s36, %s37
    %p48 = scmp.eq.s32.totalorder %s16, 0
    %p49 = por %p47, %p48
    %p50 = scmp.ne.s32.totalorder %s36, %s37
    %p51 = scmp.eq.s32.totalorder %s17, 3
    %p52 = por %p50, %p51
    %p54 = scmp.ne.s32.totalorder %s37, %s53
    %p55 = scmp.eq.s32.totalorder %s17, 0
    %p56 = por %p54, %p55
    %s58 = sadd.s32 %s57, 1
    %p61 = scmp.eq.s32.totalorder %s11, 3
    %p62 = scmp.ne.s32.totalorder %s57, %s59
    %p63 = scmp.eq.s32.totalorder %s11, 0
    %p64 = por %p62, %p63
    %p65 = scmp.ne.s32.totalorder %s57, %s59
    %p66 = scmp.eq.s32.totalorder %s16, 3
    %p67 = por %p65, %p66
    %p68 = scmp.ne.s32.totalorder %s59, %s60
    %p69 = scmp.eq.s32.totalorder %s16, 0
    %p70 = por %p68, %p69
    %p71 = scmp.ne.s32.totalorder %s59, %s60
    %p72 = scmp.eq.s32.totalorder %s17, 3
    %p73 = por %p71, %p72
    %p75 = scmp.ne.s32.totalorder %s60, %s74
    %p76 = scmp.eq.s32.totalorder %s17, 0
    %p77 = por %p75, %p76
    %s79 = sadd.s32 %s78, 1
    %p82 = scmp.eq.s32.totalorder %s11, 3
    %p83 = scmp.ne.s32.totalorder %s78, %s80
    %p84 = scmp.eq.s32.totalorder %s11, 0
    %p85 = por %p83, %p84
    %p86 = scmp.ne.s32.totalorder %s78, %s80
    %p87 = scmp.eq.s32.totalorder %s16, 3
    %p88 = por %p86, %p87
    %p89 = scmp.ne.s32.totalorder %s80, %s81
    %p90 = scmp.eq.s32.totalorder %s16, 0
    %p91 = por %p89, %p90
    %p92 = scmp.ne.s32.totalorder %s80, %s81
    %p93 = scmp.eq.s32.totalorder %s17, 3
    %p94 = por %p92, %p93
    %p96 = scmp.ne.s32.totalorder %s81, %s95
    %p97 = scmp.eq.s32.totalorder %s17, 0
    %p98 = por %p96, %p97
    %s100 = sadd.s32 %s99, 1
    %p103 = scmp.eq.s32.totalorder %s11, 3
    %p104 = scmp.ne.s32.totalorder %s99, %s101
    %p105 = scmp.eq.s32.totalorder %s11, 0
    %p106 = por %p104, %p105
    %p107 = scmp.ne.s32.totalorder %s99, %s101
    %p108 = scmp.eq.s32.totalorder %s16, 3
    %p109 = por %p107, %p108
    %p110 = scmp.ne.s32.totalorder %s101, %s102
    %p111 = scmp.eq.s32.totalorder %s16, 0
    %p112 = por %p110, %p111
    %p113 = scmp.ne.s32.totalorder %s101, %s102
    %p114 = scmp.eq.s32.totalorder %s17, 3
    %p115 = por %p113, %p114
    %p117 = scmp.ne.s32.totalorder %s102, %s116
    %p118 = scmp.eq.s32.totalorder %s17, 0
    %p119 = por %p117, %p118
    %s120 = ssub.s32 %s19, %s26
    %p121 = scmp.eq.s32.totalorder %s120, 0
    %s123 = sadd.s32 %s122, 1
    %s124 = scalar_select %p121, %s122, %s123
    %p127 = pneg %p121
    %p128 = scmp.eq.s32.totalorder %s11, 3
    %p129 = por %p127, %p128
    %p130 = scmp.ne.s32.totalorder %s122, %s125
    %p131 = scmp.eq.s32.totalorder %s11, 0
    %p132 = por %p130, %p131
    %p133 = scmp.ne.s32.totalorder %s122, %s125
    %p134 = scmp.eq.s32.totalorder %s16, 3
    %p135 = por %p133, %p134
    %p136 = scmp.ne.s32.totalorder %s125, %s126
    %p137 = scmp.eq.s32.totalorder %s16, 0
    %p138 = por %p136, %p137
    %p139 = scmp.ne.s32.totalorder %s125, %s126
    %p140 = scmp.eq.s32.totalorder %s17, 3
    %p141 = por %p139, %p140
    %p143 = scmp.ne.s32.totalorder %s126, %s142
    %p144 = scmp.eq.s32.totalorder %s17, 0
    %p145 = por %p143, %p144
    %s146 = smul.u32 %s19, %s18
    %s147 = smul.u32 %s26, %s30
    %s148 = ssub.s32 %s146, %s147
    %p149 = scmp.eq.s32.totalorder %s148, 0
    %s151 = sadd.s32 %s150, 1
    %s152 = scalar_select %p149, %s150, %s151
    %p155 = pneg %p149
    %p156 = scmp.eq.s32.totalorder %s11, 3
    %p157 = por %p155, %p156
    %p158 = scmp.ne.s32.totalorder %s150, %s153
    %p159 = scmp.eq.s32.totalorder %s11, 0
    %p160 = por %p158, %p159
    %p161 = scmp.ne.s32.totalorder %s150, %s153
    %p162 = scmp.eq.s32.totalorder %s16, 3
    %p163 = por %p161, %p162
    %p164 = scmp.ne.s32.totalorder %s153, %s154
    %p165 = scmp.eq.s32.totalorder %s16, 0
    %p166 = por %p164, %p165
    %p167 = scmp.ne.s32.totalorder %s153, %s154
    %p168 = scmp.eq.s32.totalorder %s17, 3
    %p169 = por %p167, %p168
    %p171 = scmp.ne.s32.totalorder %s154, %s170
    %p172 = scmp.eq.s32.totalorder %s17, 0
    %p173 = por %p171, %p172
    %p174 = scmp.le.s32.totalorder 1, %s11
    %p175 = scmp.lt.s32.totalorder %s11, 5
    %p176 = pnand %p174, %p175
    %p177 = pneg %p176
    // Predicated region
    $region9: #{bottleneck_forward.5} parent=5 // pred_check
      _
    $region10: #{bottleneck_forward.5} parent=5 // pred_check_branch
      %179 = sbr.rel (%p176) target = $region12
    $region11: #{bottleneck_forward.5} parent=5 // pred_region
      %s180 = ssub.s32 %s11, 1
      // Predicated region
      $region13: #{bottleneck_forward.5} parent=11 // pred_check
        %p181 = pneg %p70
      $region14: #{bottleneck_forward.5} parent=11 // pred_check_branch
        %183 = sbr.rel (%p181) target = $region16
      $region15: #{bottleneck_forward.5} parent=11 // pred_region
        _
      $region16: #{bottleneck_forward.5} parent=11 // pred_fallthru
        _
      // Predicated region
      $region17: #{bottleneck_forward.5} parent=11 // pred_check
        %p184 = pneg %p91
      $region18: #{bottleneck_forward.5} parent=11 // pred_check_branch
        %186 = sbr.rel (%p184) target = $region20
      $region19: #{bottleneck_forward.5} parent=11 // pred_region
        _
      $region20: #{bottleneck_forward.5} parent=11 // pred_fallthru
        _
      // Predicated region
      $region21: #{bottleneck_forward.5} parent=11 // pred_check
        %p187 = pneg %p112
      $region22: #{bottleneck_forward.5} parent=11 // pred_check_branch
        %189 = sbr.rel (%p187) target = $region24
      $region23: #{bottleneck_forward.5} parent=11 // pred_region
        _
      $region24: #{bottleneck_forward.5} parent=11 // pred_fallthru
        _
    $region12: #{bottleneck_forward.5} parent=5 // pred_fallthru
      _
    %p190 = scmp.lt.s32.totalorder %s11, 4
    // Predicated region
    $region25: #{bottleneck_forward.5} parent=5 // pred_check
      %p191 = pneg %p190
    $region26: #{bottleneck_forward.5} parent=5 // pred_check_branch
      %193 = sbr.rel (%p191) target = $region28
    $region27: #{bottleneck_forward.5} parent=5 // pred_region
      // Predicated region
      $region29: #{bottleneck_forward.5} parent=27 // pred_check
        %p194 = pneg %p43
      $region30: #{bottleneck_forward.5} parent=27 // pred_check_branch
        %196 = sbr.rel (%p194) target = $region32
      $region31: #{bottleneck_forward.5} parent=27 // pred_region
        %s197 = smul.u32 64, %s19
        %p198 = scmp.lt.s32.totalorder %s197, 127
        %s199 = scalar_select %p198, %s197, 127
        %s200 = smul.addr %s199, 4
        %s201 = scalar_lea.vmem %s0, %s200
        %s202 = smul.u32 64, %s19
      $region32: #{bottleneck_forward.5} parent=27 // pred_fallthru
        _
      // Predicated region
      $region33: #{bottleneck_forward.5} parent=27 // pred_check
        %p203 = pneg %p132
      $region34: #{bottleneck_forward.5} parent=27 // pred_check_branch
        %205 = sbr.rel (%p203) target = $region36
      $region35: #{bottleneck_forward.5} parent=27 // pred_region
        %s206 = smul.u32 64, %s19
        %p207 = scmp.lt.s32.totalorder %s206, 127
        %s208 = scalar_select %p207, %s206, 127
        %s209 = smul.addr %s208, 4
        %s210 = scalar_lea.vmem %s4, %s209
        %s211 = smul.u32 64, %s19
      $region36: #{bottleneck_forward.5} parent=27 // pred_fallthru
        _
    $region28: #{bottleneck_forward.5} parent=5 // pred_fallthru
      _
    %p212 = scmp.le.s32.totalorder 1, %s11
    %p213 = scmp.lt.s32.totalorder %s11, 5
    %p214 = pnand %p212, %p213
    %p215 = pneg %p214
    // Predicated region
    $region37: #{bottleneck_forward.5} parent=5 // pred_check
      _
    $region38: #{bottleneck_forward.5} parent=5 // pred_check_branch
      %217 = sbr.rel (%p214) target = $region40
    $region39: #{bottleneck_forward.5} parent=5 // pred_region
      %s218 = ssub.s32 %s11, 1
      %s219 = smul.u32 64, %s21
      %p220 = scmp.lt.s32.totalorder %s219, 127
      %s221 = scalar_select %p220, %s219, 127
      %s222 = smul.addr %s221, 4
      %s223 = scalar_lea.vmem %s0, %s222
      %p224 = pneg %p49
      %p225 = pneg %p46
      %p226 = pneg %p70
      %p227 = pneg %p67
      %p228 = pneg %p91
      %p229 = pneg %p88
      %p230 = pneg %p112
      %p231 = pneg %p109
      %s232 = smul.u32 64, %s21
      %p233 = scmp.lt.s32.totalorder %s232, 127
      %s234 = scalar_select %p233, %s232, 127
      %s235 = smul.addr %s234, 4
      %s236 = scalar_lea.vmem %s4, %s235
      %p237 = pneg %p138
      %p238 = pneg %p135
      %p239 = pneg %p166
      %p240 = pneg %p163
      %s241 = smul.u32 %s21, %s20
      %s242 = smul.u32 64, %s241
      %p243 = scmp.lt.s32.totalorder %s242, 127
      %s244 = scalar_select %p243, %s242, 127
      %s245 = smul.addr %s244, 8
      %s246 = scalar_lea.vmem %s5, %s245
      %s247 = smul.u32 64, %s21
      %p248 = scmp.lt.s32.totalorder %s247, 127
      %s249 = scalar_select %p248, %s247, 127
      %s250 = smul.addr %s249, 4
      %s251 = scalar_lea.vmem %s0, %s250
      %s252 = smul.u32 64, %s21
      %s253 = smul.u32 64, %s21
      %p254 = scmp.lt.s32.totalorder %s253, 127
      %s255 = scalar_select %p254, %s253, 127
      %s256 = smul.addr %s255, 4
      %s257 = scalar_lea.vmem %s4, %s256
      %s258 = smul.u32 64, %s21
      %s259 = smul.u32 %s21, %s20
      %s260 = smul.u32 64, %s259
      %p261 = scmp.lt.s32.totalorder %s260, 127
      %s262 = scalar_select %p261, %s260, 127
      %s263 = smul.addr %s262, 8
      %s264 = scalar_lea.vmem %s5, %s263
      %s265 = smul.u32 %s21, %s20
      %s266 = smul.u32 64, %s265
      %p268 = scmp.eq.s32.totalorder %s20, 0
      %p269 = scmp.eq.s32.totalorder %s21, 0
      %p270 = pnand %p268, %p269
      %p271 = pneg %p270
      // Predicated region
      $region41: #{bottleneck_forward.5} parent=39 // pred_check
        _
      $region42: #{bottleneck_forward.5} parent=39 // pred_check_branch
        %273 = sbr.rel (%p270) target = $region44
      $region43: #{bottleneck_forward.5} parent=39 // pred_region
        %274 = vst [vmem:[#allocation2] sm:$0x3] 0.0
      $region44: #{bottleneck_forward.5} parent=39 // pred_fallthru
        _
      %v275 = vld [vmem:[%s251] sm:$0xf]
      %v276 = vld [vmem:[%s251 + $0x4] sm:$0xf]
      %v277 = vld [vmem:[%s251 + $0x8] sm:$0xf]
      %v278 = vld [vmem:[%s251 + $0xc] sm:$0xf]
      %v279 = vld [vmem:[%s251 + $0x10] sm:$0xf]
      %v280 = vld [vmem:[%s251 + $0x14] sm:$0xf]
      %v281 = vld [vmem:[%s251 + $0x18] sm:$0xf]
      %v282 = vld [vmem:[%s251 + $0x1c] sm:$0xf]
      %v283 = vld [vmem:[%s251 + $0x20] sm:$0xf]
      %v284 = vld [vmem:[%s251 + $0x24] sm:$0xf]
      %v285 = vld [vmem:[%s251 + $0x28] sm:$0xf]
      %v286 = vld [vmem:[%s251 + $0x2c] sm:$0xf]
      %v287 = vld [vmem:[%s251 + $0x30] sm:$0xf]
      %v288 = vld [vmem:[%s251 + $0x34] sm:$0xf]
      %v289 = vld [vmem:[%s251 + $0x38] sm:$0xf]
      %v290 = vld [vmem:[%s251 + $0x3c] sm:$0xf]
      %v291 = vld [vmem:[%s251 + $0x40] sm:$0xf]
      %v292 = vld [vmem:[%s251 + $0x44] sm:$0xf]
      %v293 = vld [vmem:[%s251 + $0x48] sm:$0xf]
      %v294 = vld [vmem:[%s251 + $0x4c] sm:$0xf]
      %v295 = vld [vmem:[%s251 + $0x50] sm:$0xf]
      %v296 = vld [vmem:[%s251 + $0x54] sm:$0xf]
      %v297 = vld [vmem:[%s251 + $0x58] sm:$0xf]
      %v298 = vld [vmem:[%s251 + $0x5c] sm:$0xf]
      %v299 = vld [vmem:[%s251 + $0x60] sm:$0xf]
      %v300 = vld [vmem:[%s251 + $0x64] sm:$0xf]
      %v301 = vld [vmem:[%s251 + $0x68] sm:$0xf]
      %v302 = vld [vmem:[%s251 + $0x6c] sm:$0xf]
      %v303 = vld [vmem:[%s251 + $0x70] sm:$0xf]
      %v304 = vld [vmem:[%s251 + $0x74] sm:$0xf]
      %v305 = vld [vmem:[%s251 + $0x78] sm:$0xf]
      %v306 = vld [vmem:[%s251 + $0x7c] sm:$0xf]
      %v307 = vld [vmem:[%s251 + $0x80] sm:$0xf]
      %v308 = vld [vmem:[%s251 + $0x84] sm:$0xf]
      %v309 = vld [vmem:[%s251 + $0x88] sm:$0xf]
      %v310 = vld [vmem:[%s251 + $0x8c] sm:$0xf]
      %v311 = vld [vmem:[%s251 + $0x90] sm:$0xf]
      %v312 = vld [vmem:[%s251 + $0x94] sm:$0xf]
      %v313 = vld [vmem:[%s251 + $0x98] sm:$0xf]
      %v314 = vld [vmem:[%s251 + $0x9c] sm:$0xf]
      %v315 = vld [vmem:[%s251 + $0xa0] sm:$0xf]
      %v316 = vld [vmem:[%s251 + $0xa4] sm:$0xf]
      %v317 = vld [vmem:[%s251 + $0xa8] sm:$0xf]
      %v318 = vld [vmem:[%s251 + $0xac] sm:$0xf]
      %v319 = vld [vmem:[%s251 + $0xb0] sm:$0xf]
      %v320 = vld [vmem:[%s251 + $0xb4] sm:$0xf]
      %v321 = vld [vmem:[%s251 + $0xb8] sm:$0xf]
      %v322 = vld [vmem:[%s251 + $0xbc] sm:$0xf]
      %v323 = vld [vmem:[%s251 + $0xc0] sm:$0xf]
      %v324 = vld [vmem:[%s251 + $0xc4] sm:$0xf]
      %v325 = vld [vmem:[%s251 + $0xc8] sm:$0xf]
      %v326 = vld [vmem:[%s251 + $0xcc] sm:$0xf]
      %v327 = vld [vmem:[%s251 + $0xd0] sm:$0xf]
      %v328 = vld [vmem:[%s251 + $0xd4] sm:$0xf]
      %v329 = vld [vmem:[%s251 + $0xd8] sm:$0xf]
      %v330 = vld [vmem:[%s251 + $0xdc] sm:$0xf]
      %v331 = vld [vmem:[%s251 + $0xe0] sm:$0xf]
      %v332 = vld [vmem:[%s251 + $0xe4] sm:$0xf]
      %v333 = vld [vmem:[%s251 + $0xe8] sm:$0xf]
      %v334 = vld [vmem:[%s251 + $0xec] sm:$0xf]
      %v335 = vld [vmem:[%s251 + $0xf0] sm:$0xf]
      %v336 = vld [vmem:[%s251 + $0xf4] sm:$0xf]
      %v337 = vld [vmem:[%s251 + $0xf8] sm:$0xf]
      %v338 = vld [vmem:[%s251 + $0xfc] sm:$0xf]
      %v339 = vld [vmem:[%s1] sm:$0xf]
      %v340 = vld [vmem:[%s1 + $0x4] sm:$0xf]
      %v341 = vld [vmem:[%s1 + $0x8] sm:$0xf]
      %v342 = vld [vmem:[%s1 + $0xc] sm:$0xf]
      %v343 = vld [vmem:[%s1 + $0x10] sm:$0xf]
      %v344 = vld [vmem:[%s1 + $0x14] sm:$0xf]
      %v345 = vld [vmem:[%s1 + $0x18] sm:$0xf]
      %v346 = vld [vmem:[%s1 + $0x1c] sm:$0xf]
      %v347 = vld [vmem:[%s1 + $0x20] sm:$0xf]
      %v348 = vld [vmem:[%s1 + $0x24] sm:$0xf]
      %v349 = vld [vmem:[%s1 + $0x28] sm:$0xf]
      %v350 = vld [vmem:[%s1 + $0x2c] sm:$0xf]
      %v351 = vld [vmem:[%s1 + $0x30] sm:$0xf]
      %v352 = vld [vmem:[%s1 + $0x34] sm:$0xf]
      %v353 = vld [vmem:[%s1 + $0x38] sm:$0xf]
      %v354 = vld [vmem:[%s1 + $0x3c] sm:$0xf]
      %v419 = vunpack.c.l.b16 %v275
      %v420 = vunpack.c.l.b16 %v276
      %v421 = vunpack.c.l.b16 %v277
      %v422 = vunpack.c.l.b16 %v278
      %v423 = vunpack.c.l.b16 %v279
      %v424 = vunpack.c.l.b16 %v280
      %v425 = vunpack.c.l.b16 %v281
      %v426 = vunpack.c.l.b16 %v282
      %v427 = vunpack.c.l.b16 %v283
      %v428 = vunpack.c.l.b16 %v284
      %v429 = vunpack.c.l.b16 %v285
      %v430 = vunpack.c.l.b16 %v286
      %v431 = vunpack.c.l.b16 %v287
      %v432 = vunpack.c.l.b16 %v288
      %v433 = vunpack.c.l.b16 %v289
      %v434 = vunpack.c.l.b16 %v290
      %v435 = vunpack.c.l.b16 %v291
      %v436 = vunpack.c.l.b16 %v292
      %v437 = vunpack.c.l.b16 %v293
      %v438 = vunpack.c.l.b16 %v294
      %v439 = vunpack.c.l.b16 %v295
      %v440 = vunpack.c.l.b16 %v296
      %v441 = vunpack.c.l.b16 %v297
      %v442 = vunpack.c.l.b16 %v298
      %v443 = vunpack.c.l.b16 %v299
      %v444 = vunpack.c.l.b16 %v300
      %v445 = vunpack.c.l.b16 %v301
      %v446 = vunpack.c.l.b16 %v302
      %v447 = vunpack.c.l.b16 %v303
      %v448 = vunpack.c.l.b16 %v304
      %v449 = vunpack.c.l.b16 %v305
      %v450 = vunpack.c.l.b16 %v306
      %v451 = vunpack.c.l.b16 %v307
      %v452 = vunpack.c.l.b16 %v308
      %v453 = vunpack.c.l.b16 %v309
      %v454 = vunpack.c.l.b16 %v310
      %v455 = vunpack.c.l.b16 %v311
      %v456 = vunpack.c.l.b16 %v312
      %v457 = vunpack.c.l.b16 %v313
      %v458 = vunpack.c.l.b16 %v314
      %v459 = vunpack.c.l.b16 %v315
      %v460 = vunpack.c.l.b16 %v316
      %v461 = vunpack.c.l.b16 %v317
      %v462 = vunpack.c.l.b16 %v318
      %v463 = vunpack.c.l.b16 %v319
      %v464 = vunpack.c.l.b16 %v320
      %v465 = vunpack.c.l.b16 %v321
      %v466 = vunpack.c.l.b16 %v322
      %v467 = vunpack.c.l.b16 %v323
      %v468 = vunpack.c.l.b16 %v324
      %v469 = vunpack.c.l.b16 %v325
      %v470 = vunpack.c.l.b16 %v326
      %v471 = vunpack.c.l.b16 %v327
      %v472 = vunpack.c.l.b16 %v328
      %v473 = vunpack.c.l.b16 %v329
      %v474 = vunpack.c.l.b16 %v330
      %v475 = vunpack.c.l.b16 %v331
      %v476 = vunpack.c.l.b16 %v332
      %v477 = vunpack.c.l.b16 %v333
      %v478 = vunpack.c.l.b16 %v334
      %v479 = vunpack.c.l.b16 %v335
      %v480 = vunpack.c.l.b16 %v336
      %v481 = vunpack.c.l.b16 %v337
      %v482 = vunpack.c.l.b16 %v338
      %v483 = vpack.c.b16 %v420, %v419
      %v484 = vpack.c.b16 %v422, %v421
      %v485 = vpack.c.b16 %v424, %v423
      %v486 = vpack.c.b16 %v426, %v425
      %v487 = vpack.c.b16 %v428, %v427
      %v488 = vpack.c.b16 %v430, %v429
      %v489 = vpack.c.b16 %v432, %v431
      %v490 = vpack.c.b16 %v434, %v433
      %v491 = vpack.c.b16 %v436, %v435
      %v492 = vpack.c.b16 %v438, %v437
      %v493 = vpack.c.b16 %v440, %v439
      %v494 = vpack.c.b16 %v442, %v441
      %v495 = vpack.c.b16 %v444, %v443
      %v496 = vpack.c.b16 %v446, %v445
      %v497 = vpack.c.b16 %v448, %v447
      %v498 = vpack.c.b16 %v450, %v449
      %v499 = vpack.c.b16 %v452, %v451
      %v500 = vpack.c.b16 %v454, %v453
      %v501 = vpack.c.b16 %v456, %v455
      %v502 = vpack.c.b16 %v458, %v457
      %v503 = vpack.c.b16 %v460, %v459
      %v504 = vpack.c.b16 %v462, %v461
      %v505 = vpack.c.b16 %v464, %v463
      %v506 = vpack.c.b16 %v466, %v465
      %v507 = vpack.c.b16 %v468, %v467
      %v508 = vpack.c.b16 %v470, %v469
      %v509 = vpack.c.b16 %v472, %v471
      %v510 = vpack.c.b16 %v474, %v473
      %v511 = vpack.c.b16 %v476, %v475
      %v512 = vpack.c.b16 %v478, %v477
      %v513 = vpack.c.b16 %v480, %v479
      %v514 = vpack.c.b16 %v482, %v481
      %v563 = vunpack.c.l.b16 %v339
      %v564 = vunpack.c.l.b16 %v340
      %v565 = vunpack.c.l.b16 %v341
      %v566 = vunpack.c.l.b16 %v342
      %v567 = vunpack.c.l.b16 %v343
      %v568 = vunpack.c.l.b16 %v344
      %v569 = vunpack.c.l.b16 %v345
      %v570 = vunpack.c.l.b16 %v346
      %v571 = vunpack.c.l.b16 %v347
      %v572 = vunpack.c.l.b16 %v348
      %v573 = vunpack.c.l.b16 %v349
      %v574 = vunpack.c.l.b16 %v350
      %v575 = vunpack.c.l.b16 %v351
      %v576 = vunpack.c.l.b16 %v352
      %v577 = vunpack.c.l.b16 %v353
      %v578 = vunpack.c.l.b16 %v354
      %v579 = vpack.c.b16 %v564, %v563
      %v580 = vpack.c.b16 %v566, %v565
      %v581 = vpack.c.b16 %v568, %v567
      %v582 = vpack.c.b16 %v570, %v569
      %v583 = vpack.c.b16 %v572, %v571
      %v584 = vpack.c.b16 %v574, %v573
      %v585 = vpack.c.b16 %v576, %v575
      %v586 = vpack.c.b16 %v578, %v577
      %595 = vmatprep.subr.bf16.mxu0 0
      %596 = vmatpush1.bf16.msra.mxu0 %v586
      %597 = vmatprep.subr.bf16.mxu0 0
      %598 = vmatpush1.bf16.msra.mxu0 %v585
      %599 = vmatprep.subr.bf16.mxu0 0
      %600 = vmatpush1.bf16.msra.mxu0 %v584
      %601 = vmatprep.subr.bf16.mxu0 0
      %602 = vmatpush1.bf16.msra.mxu0 %v583
      %603 = vmatprep.subr.bf16.mxu0 0
      %604 = vmatpush1.bf16.msra.mxu0 %v582
      %605 = vmatprep.subr.bf16.mxu0 0
      %606 = vmatpush1.bf16.msra.mxu0 %v581
      %607 = vmatprep.subr.bf16.mxu0 0
      %608 = vmatpush1.bf16.msra.mxu0 %v580
      %609 = vmatprep.subr.bf16.mxu0 0
      %610 = vmatpush1.bf16.msra.mxu0 %v579
      %611 = vmatprep.subr.bf16.mxu0 0
      %612 = vmatpush2.bf16.msra.mxu0 0
      %613 = vmatprep.subr.bf16.mxu0 0
      %614 = vmatpush2.bf16.msra.mxu0 0
      %615 = vmatprep.subr.bf16.mxu0 0
      %616 = vmatpush2.bf16.msra.mxu0 0
      %617 = vmatprep.subr.bf16.mxu0 0
      %618 = vmatpush2.bf16.msra.mxu0 0
      %619 = vmatprep.subr.bf16.mxu0 0
      %620 = vmatpush2.bf16.msra.mxu0 0
      %621 = vmatprep.subr.bf16.mxu0 0
      %622 = vmatpush2.bf16.msra.mxu0 0
      %623 = vmatprep.subr.bf16.mxu0 0
      %624 = vmatpush2.bf16.msra.mxu0 0
      %625 = vmatprep.subr.bf16.mxu0 0
      %626 = vmatpush2.bf16.msra.mxu0 0
      %627 = vmatprep.mubr.bf16.mxu0 0
      %628 = vmatmul.mubr.bf16.gmra.mxu0 %v483
      %v629 = vpop.f32.mrf.mxu0
      %v630 = vadd.f32 0.0, %v629
      %v631 = vpop.f32.mrf.mxu0
      %v632 = vpop.f32.mrf.mxu0
      %v633 = vadd.f32 0.0, %v632
      %v634 = vpop.f32.mrf.mxu0
      %635 = vmatprep.mubr.bf16.mxu0 0
      %636 = vmatmul.mubr.bf16.gmra.mxu0 %v484
      %v637 = vpop.f32.mrf.mxu0
      %v638 = vadd.f32 0.0, %v637
      %v639 = vpop.f32.mrf.mxu0
      %v640 = vpop.f32.mrf.mxu0
      %v641 = vadd.f32 0.0, %v640
      %v642 = vpop.f32.mrf.mxu0
      %643 = vmatprep.mubr.bf16.mxu0 0
      %644 = vmatmul.mubr.bf16.gmra.mxu0 %v485
      %v645 = vpop.f32.mrf.mxu0
      %v646 = vadd.f32 0.0, %v645
      %v647 = vpop.f32.mrf.mxu0
      %v648 = vpop.f32.mrf.mxu0
      %v649 = vadd.f32 0.0, %v648
      %v650 = vpop.f32.mrf.mxu0
      %651 = vmatprep.mubr.bf16.mxu0 0
      %652 = vmatmul.mubr.bf16.gmra.mxu0 %v486
      %v653 = vpop.f32.mrf.mxu0
      %v654 = vadd.f32 0.0, %v653
      %v655 = vpop.f32.mrf.mxu0
      %v656 = vpop.f32.mrf.mxu0
      %v657 = vadd.f32 0.0, %v656
      %v658 = vpop.f32.mrf.mxu0
      %659 = vmatprep.mubr.bf16.mxu0 0
      %660 = vmatmul.mubr.bf16.gmra.mxu0 %v487
      %v661 = vpop.f32.mrf.mxu0
      %v662 = vadd.f32 0.0, %v661
      %v663 = vpop.f32.mrf.mxu0
      %v664 = vpop.f32.mrf.mxu0
      %v665 = vadd.f32 0.0, %v664
      %v666 = vpop.f32.mrf.mxu0
      %667 = vmatprep.mubr.bf16.mxu0 0
      %668 = vmatmul.mubr.bf16.gmra.mxu0 %v488
      %v669 = vpop.f32.mrf.mxu0
      %v670 = vadd.f32 0.0, %v669
      %v671 = vpop.f32.mrf.mxu0
      %v672 = vpop.f32.mrf.mxu0
      %v673 = vadd.f32 0.0, %v672
      %v674 = vpop.f32.mrf.mxu0
      %675 = vmatprep.mubr.bf16.mxu0 0
      %676 = vmatmul.mubr.bf16.gmra.mxu0 %v489
      %v677 = vpop.f32.mrf.mxu0
      %v678 = vadd.f32 0.0, %v677
      %v679 = vpop.f32.mrf.mxu0
      %v680 = vpop.f32.mrf.mxu0
      %v681 = vadd.f32 0.0, %v680
      %v682 = vpop.f32.mrf.mxu0
      %683 = vmatprep.mubr.bf16.mxu0 0
      %684 = vmatmul.mubr.bf16.gmra.mxu0 %v490
      %v685 = vpop.f32.mrf.mxu0
      %v686 = vadd.f32 0.0, %v685
      %v687 = vpop.f32.mrf.mxu0
      %v688 = vpop.f32.mrf.mxu0
      %v689 = vadd.f32 0.0, %v688
      %v690 = vpop.f32.mrf.mxu0
      %691 = vmatprep.mubr.bf16.mxu0 0
      %692 = vmatmul.mubr.bf16.gmra.mxu0 %v491
      %v693 = vpop.f32.mrf.mxu0
      %v694 = vadd.f32 0.0, %v693
      %v695 = vpop.f32.mrf.mxu0
      %v696 = vpop.f32.mrf.mxu0
      %v697 = vadd.f32 0.0, %v696
      %v698 = vpop.f32.mrf.mxu0
      %699 = vmatprep.mubr.bf16.mxu0 0
      %700 = vmatmul.mubr.bf16.gmra.mxu0 %v492
      %v701 = vpop.f32.mrf.mxu0
      %v702 = vadd.f32 0.0, %v701
      %v703 = vpop.f32.mrf.mxu0
      %v704 = vpop.f32.mrf.mxu0
      %v705 = vadd.f32 0.0, %v704
      %v706 = vpop.f32.mrf.mxu0
      %707 = vmatprep.mubr.bf16.mxu0 0
      %708 = vmatmul.mubr.bf16.gmra.mxu0 %v493
      %v709 = vpop.f32.mrf.mxu0
      %v710 = vadd.f32 0.0, %v709
      %v711 = vpop.f32.mrf.mxu0
      %v712 = vpop.f32.mrf.mxu0
      %v713 = vadd.f32 0.0, %v712
      %v714 = vpop.f32.mrf.mxu0
      %715 = vmatprep.mubr.bf16.mxu0 0
      %716 = vmatmul.mubr.bf16.gmra.mxu0 %v494
      %v717 = vpop.f32.mrf.mxu0
      %v718 = vadd.f32 0.0, %v717
      %v719 = vpop.f32.mrf.mxu0
      %v720 = vpop.f32.mrf.mxu0
      %v721 = vadd.f32 0.0, %v720
      %v722 = vpop.f32.mrf.mxu0
      %723 = vmatprep.mubr.bf16.mxu0 0
      %724 = vmatmul.mubr.bf16.gmra.mxu0 %v495
      %v725 = vpop.f32.mrf.mxu0
      %v726 = vadd.f32 0.0, %v725
      %v727 = vpop.f32.mrf.mxu0
      %v728 = vpop.f32.mrf.mxu0
      %v729 = vadd.f32 0.0, %v728
      %v730 = vpop.f32.mrf.mxu0
      %731 = vmatprep.mubr.bf16.mxu0 0
      %732 = vmatmul.mubr.bf16.gmra.mxu0 %v496
      %v733 = vpop.f32.mrf.mxu0
      %v734 = vadd.f32 0.0, %v733
      %v735 = vpop.f32.mrf.mxu0
      %v736 = vpop.f32.mrf.mxu0
      %v737 = vadd.f32 0.0, %v736
      %v738 = vpop.f32.mrf.mxu0
      %739 = vmatprep.mubr.bf16.mxu0 0
      %740 = vmatmul.mubr.bf16.gmra.mxu0 %v497
      %v741 = vpop.f32.mrf.mxu0
      %v742 = vadd.f32 0.0, %v741
      %v743 = vpop.f32.mrf.mxu0
      %v744 = vpop.f32.mrf.mxu0
      %v745 = vadd.f32 0.0, %v744
      %v746 = vpop.f32.mrf.mxu0
      %747 = vmatprep.mubr.bf16.mxu0 0
      %748 = vmatmul.mubr.bf16.gmra.mxu0 %v498
      %v749 = vpop.f32.mrf.mxu0
      %v750 = vadd.f32 0.0, %v749
      %v751 = vpop.f32.mrf.mxu0
      %v752 = vpop.f32.mrf.mxu0
      %v753 = vadd.f32 0.0, %v752
      %v754 = vpop.f32.mrf.mxu0
      %755 = vmatprep.mubr.bf16.mxu0 0
      %756 = vmatmul.mubr.bf16.gmra.mxu0 %v499
      %v757 = vpop.f32.mrf.mxu0
      %v758 = vadd.f32 0.0, %v757
      %v759 = vpop.f32.mrf.mxu0
      %v760 = vpop.f32.mrf.mxu0
      %v761 = vadd.f32 0.0, %v760
      %v762 = vpop.f32.mrf.mxu0
      %763 = vmatprep.mubr.bf16.mxu0 0
      %764 = vmatmul.mubr.bf16.gmra.mxu0 %v500
      %v765 = vpop.f32.mrf.mxu0
      %v766 = vadd.f32 0.0, %v765
      %v767 = vpop.f32.mrf.mxu0
      %v768 = vpop.f32.mrf.mxu0
      %v769 = vadd.f32 0.0, %v768
      %v770 = vpop.f32.mrf.mxu0
      %771 = vmatprep.mubr.bf16.mxu0 0
      %772 = vmatmul.mubr.bf16.gmra.mxu0 %v501
      %v773 = vpop.f32.mrf.mxu0
      %v774 = vadd.f32 0.0, %v773
      %v775 = vpop.f32.mrf.mxu0
      %v776 = vpop.f32.mrf.mxu0
      %v777 = vadd.f32 0.0, %v776
      %v778 = vpop.f32.mrf.mxu0
      %779 = vmatprep.mubr.bf16.mxu0 0
      %780 = vmatmul.mubr.bf16.gmra.mxu0 %v502
      %v781 = vpop.f32.mrf.mxu0
      %v782 = vadd.f32 0.0, %v781
      %v783 = vpop.f32.mrf.mxu0
      %v784 = vpop.f32.mrf.mxu0
      %v785 = vadd.f32 0.0, %v784
      %v786 = vpop.f32.mrf.mxu0
      %787 = vmatprep.mubr.bf16.mxu0 0
      %788 = vmatmul.mubr.bf16.gmra.mxu0 %v503
      %v789 = vpop.f32.mrf.mxu0
      %v790 = vadd.f32 0.0, %v789
      %v791 = vpop.f32.mrf.mxu0
      %v792 = vpop.f32.mrf.mxu0
      %v793 = vadd.f32 0.0, %v792
      %v794 = vpop.f32.mrf.mxu0
      %795 = vmatprep.mubr.bf16.mxu0 0
      %796 = vmatmul.mubr.bf16.gmra.mxu0 %v504
      %v797 = vpop.f32.mrf.mxu0
      %v798 = vadd.f32 0.0, %v797
      %v799 = vpop.f32.mrf.mxu0
      %v800 = vpop.f32.mrf.mxu0
      %v801 = vadd.f32 0.0, %v800
      %v802 = vpop.f32.mrf.mxu0
      %803 = vmatprep.mubr.bf16.mxu0 0
      %804 = vmatmul.mubr.bf16.gmra.mxu0 %v505
      %v805 = vpop.f32.mrf.mxu0
      %v806 = vadd.f32 0.0, %v805
      %v807 = vpop.f32.mrf.mxu0
      %v808 = vpop.f32.mrf.mxu0
      %v809 = vadd.f32 0.0, %v808
      %v810 = vpop.f32.mrf.mxu0
      %811 = vmatprep.mubr.bf16.mxu0 0
      %812 = vmatmul.mubr.bf16.gmra.mxu0 %v506
      %v813 = vpop.f32.mrf.mxu0
      %v814 = vadd.f32 0.0, %v813
      %v815 = vpop.f32.mrf.mxu0
      %v816 = vpop.f32.mrf.mxu0
      %v817 = vadd.f32 0.0, %v816
      %v818 = vpop.f32.mrf.mxu0
      %819 = vmatprep.mubr.bf16.mxu0 0
      %820 = vmatmul.mubr.bf16.gmra.mxu0 %v507
      %v821 = vpop.f32.mrf.mxu0
      %v822 = vadd.f32 0.0, %v821
      %v823 = vpop.f32.mrf.mxu0
      %v824 = vpop.f32.mrf.mxu0
      %v825 = vadd.f32 0.0, %v824
      %v826 = vpop.f32.mrf.mxu0
      %827 = vmatprep.mubr.bf16.mxu0 0
      %828 = vmatmul.mubr.bf16.gmra.mxu0 %v508
      %v829 = vpop.f32.mrf.mxu0
      %v830 = vadd.f32 0.0, %v829
      %v831 = vpop.f32.mrf.mxu0
      %v832 = vpop.f32.mrf.mxu0
      %v833 = vadd.f32 0.0, %v832
      %v834 = vpop.f32.mrf.mxu0
      %835 = vmatprep.mubr.bf16.mxu0 0
      %836 = vmatmul.mubr.bf16.gmra.mxu0 %v509
      %v837 = vpop.f32.mrf.mxu0
      %v838 = vadd.f32 0.0, %v837
      %v839 = vpop.f32.mrf.mxu0
      %v840 = vpop.f32.mrf.mxu0
      %v841 = vadd.f32 0.0, %v840
      %v842 = vpop.f32.mrf.mxu0
      %843 = vmatprep.mubr.bf16.mxu0 0
      %844 = vmatmul.mubr.bf16.gmra.mxu0 %v510
      %v845 = vpop.f32.mrf.mxu0
      %v846 = vadd.f32 0.0, %v845
      %v847 = vpop.f32.mrf.mxu0
      %v848 = vpop.f32.mrf.mxu0
      %v849 = vadd.f32 0.0, %v848
      %v850 = vpop.f32.mrf.mxu0
      %851 = vmatprep.mubr.bf16.mxu0 0
      %852 = vmatmul.mubr.bf16.gmra.mxu0 %v511
      %v853 = vpop.f32.mrf.mxu0
      %v854 = vadd.f32 0.0, %v853
      %v855 = vpop.f32.mrf.mxu0
      %v856 = vpop.f32.mrf.mxu0
      %v857 = vadd.f32 0.0, %v856
      %v858 = vpop.f32.mrf.mxu0
      %859 = vmatprep.mubr.bf16.mxu0 0
      %860 = vmatmul.mubr.bf16.gmra.mxu0 %v512
      %v861 = vpop.f32.mrf.mxu0
      %v862 = vadd.f32 0.0, %v861
      %v863 = vpop.f32.mrf.mxu0
      %v864 = vpop.f32.mrf.mxu0
      %v865 = vadd.f32 0.0, %v864
      %v866 = vpop.f32.mrf.mxu0
      %867 = vmatprep.mubr.bf16.mxu0 0
      %868 = vmatmul.mubr.bf16.gmra.mxu0 %v513
      %v869 = vpop.f32.mrf.mxu0
      %v870 = vadd.f32 0.0, %v869
      %v871 = vpop.f32.mrf.mxu0
      %v872 = vpop.f32.mrf.mxu0
      %v873 = vadd.f32 0.0, %v872
      %v874 = vpop.f32.mrf.mxu0
      %875 = vmatprep.mubr.bf16.mxu0 0
      %876 = vmatmul.mubr.bf16.gmra.mxu0 %v514
      %v877 = vpop.f32.mrf.mxu0
      %v878 = vadd.f32 0.0, %v877
      %v879 = vpop.f32.mrf.mxu0
      %v880 = vpop.f32.mrf.mxu0
      %v881 = vadd.f32 0.0, %v880
      %v882 = vpop.f32.mrf.mxu0
      %883 = vdwg.mxu0
      // Predicated region
      $region45: #{bottleneck_forward.5} parent=39 // pred_check
        %p884 = pneg %p268
      $region46: #{bottleneck_forward.5} parent=39 // pred_check_branch
        %886 = sbr.rel (%p884) target = $region48
      $region47: #{bottleneck_forward.5} parent=39 // pred_region
        %v887 = vld [vmem:[#allocation2] sm:$0x1]
        %v888 = vadd.f32 %v630, %v633
        %v889 = vadd.f32 %v888, %v638
        %v890 = vadd.f32 %v889, %v641
        %v891 = vadd.f32 %v890, %v646
        %v892 = vadd.f32 %v891, %v649
        %v893 = vadd.f32 %v892, %v654
        %v894 = vadd.f32 %v893, %v657
        %v895 = vadd.f32 %v894, %v662
        %v896 = vadd.f32 %v895, %v665
        %v897 = vadd.f32 %v896, %v670
        %v898 = vadd.f32 %v897, %v673
        %v899 = vadd.f32 %v898, %v678
        %v900 = vadd.f32 %v899, %v681
        %v901 = vadd.f32 %v900, %v686
        %v902 = vadd.f32 %v901, %v689
        %v903 = vadd.f32 %v902, %v694
        %v904 = vadd.f32 %v903, %v697
        %v905 = vadd.f32 %v904, %v702
        %v906 = vadd.f32 %v905, %v705
        %v907 = vadd.f32 %v906, %v710
        %v908 = vadd.f32 %v907, %v713
        %v909 = vadd.f32 %v908, %v718
        %v910 = vadd.f32 %v909, %v721
        %v911 = vadd.f32 %v910, %v726
        %v912 = vadd.f32 %v911, %v729
        %v913 = vadd.f32 %v912, %v734
        %v914 = vadd.f32 %v913, %v737
        %v915 = vadd.f32 %v914, %v742
        %v916 = vadd.f32 %v915, %v745
        %v917 = vadd.f32 %v916, %v750
        %v918 = vadd.f32 %v917, %v753
        %v919 = vadd.f32 %v918, %v758
        %v920 = vadd.f32 %v919, %v761
        %v921 = vadd.f32 %v920, %v766
        %v922 = vadd.f32 %v921, %v769
        %v923 = vadd.f32 %v922, %v774
        %v924 = vadd.f32 %v923, %v777
        %v925 = vadd.f32 %v924, %v782
        %v926 = vadd.f32 %v925, %v785
        %v927 = vadd.f32 %v926, %v790
        %v928 = vadd.f32 %v927, %v793
        %v929 = vadd.f32 %v928, %v798
        %v930 = vadd.f32 %v929, %v801
        %v931 = vadd.f32 %v930, %v806
        %v932 = vadd.f32 %v931, %v809
        %v933 = vadd.f32 %v932, %v814
        %v934 = vadd.f32 %v933, %v817
        %v935 = vadd.f32 %v934, %v822
        %v936 = vadd.f32 %v935, %v825
        %v937 = vadd.f32 %v936, %v830
        %v938 = vadd.f32 %v937, %v833
        %v939 = vadd.f32 %v938, %v838
        %v940 = vadd.f32 %v939, %v841
        %v941 = vadd.f32 %v940, %v846
        %v942 = vadd.f32 %v941, %v849
        %v943 = vadd.f32 %v942, %v854
        %v944 = vadd.f32 %v943, %v857
        %v945 = vadd.f32 %v944, %v862
        %v946 = vadd.f32 %v945, %v865
        %v947 = vadd.f32 %v946, %v870
        %v948 = vadd.f32 %v947, %v873
        %v949 = vadd.f32 %v948, %v878
        %v950 = vadd.f32 %v949, %v881
        %v951 = vrot.slane %v950, 4
        %v952 = vadd.f32 %v950, %v951
        %v953 = vrot.slane %v952, 2
        %v954 = vadd.f32 %v952, %v953
        %v955 = vrot.slane %v954, 1
        %v956 = vadd.f32 %v954, %v955
        %v957 = vadd.f32 %v887, %v956
        %958 = vst [vmem:[#allocation2] sm:$0x1] %v957
        %v959 = vld [vmem:[#allocation2 + $0x1] sm:$0x1]
        %v960 = vmul.f32 %v630, %v630
        %v961 = vmul.f32 %v633, %v633
        %v962 = vmul.f32 %v638, %v638
        %v963 = vmul.f32 %v641, %v641
        %v964 = vmul.f32 %v646, %v646
        %v965 = vmul.f32 %v649, %v649
        %v966 = vmul.f32 %v654, %v654
        %v967 = vmul.f32 %v657, %v657
        %v968 = vmul.f32 %v662, %v662
        %v969 = vmul.f32 %v665, %v665
        %v970 = vmul.f32 %v670, %v670
        %v971 = vmul.f32 %v673, %v673
        %v972 = vmul.f32 %v678, %v678
        %v973 = vmul.f32 %v681, %v681
        %v974 = vmul.f32 %v686, %v686
        %v975 = vmul.f32 %v689, %v689
        %v976 = vmul.f32 %v694, %v694
        %v977 = vmul.f32 %v697, %v697
        %v978 = vmul.f32 %v702, %v702
        %v979 = vmul.f32 %v705, %v705
        %v980 = vmul.f32 %v710, %v710
        %v981 = vmul.f32 %v713, %v713
        %v982 = vmul.f32 %v718, %v718
        %v983 = vmul.f32 %v721, %v721
        %v984 = vmul.f32 %v726, %v726
        %v985 = vmul.f32 %v729, %v729
        %v986 = vmul.f32 %v734, %v734
        %v987 = vmul.f32 %v737, %v737
        %v988 = vmul.f32 %v742, %v742
        %v989 = vmul.f32 %v745, %v745
        %v990 = vmul.f32 %v750, %v750
        %v991 = vmul.f32 %v753, %v753
        %v992 = vmul.f32 %v758, %v758
        %v993 = vmul.f32 %v761, %v761
        %v994 = vmul.f32 %v766, %v766
        %v995 = vmul.f32 %v769, %v769
        %v996 = vmul.f32 %v774, %v774
        %v997 = vmul.f32 %v777, %v777
        %v998 = vmul.f32 %v782, %v782
        %v999 = vmul.f32 %v785, %v785
        %v1000 = vmul.f32 %v790, %v790
        %v1001 = vmul.f32 %v793, %v793
        %v1002 = vmul.f32 %v798, %v798
        %v1003 = vmul.f32 %v801, %v801
        %v1004 = vmul.f32 %v806, %v806
        %v1005 = vmul.f32 %v809, %v809
        %v1006 = vmul.f32 %v814, %v814
        %v1007 = vmul.f32 %v817, %v817
        %v1008 = vmul.f32 %v822, %v822
        %v1009 = vmul.f32 %v825, %v825
        %v1010 = vmul.f32 %v830, %v830
        %v1011 = vmul.f32 %v833, %v833
        %v1012 = vmul.f32 %v838, %v838
        %v1013 = vmul.f32 %v841, %v841
        %v1014 = vmul.f32 %v846, %v846
        %v1015 = vmul.f32 %v849, %v849
        %v1016 = vmul.f32 %v854, %v854
        %v1017 = vmul.f32 %v857, %v857
        %v1018 = vmul.f32 %v862, %v862
        %v1019 = vmul.f32 %v865, %v865
        %v1020 = vmul.f32 %v870, %v870
        %v1021 = vmul.f32 %v873, %v873
        %v1022 = vmul.f32 %v878, %v878
        %v1023 = vmul.f32 %v881, %v881
        %v1024 = vadd.f32 %v960, %v961
        %v1025 = vadd.f32 %v1024, %v962
        %v1026 = vadd.f32 %v1025, %v963
        %v1027 = vadd.f32 %v1026, %v964
        %v1028 = vadd.f32 %v1027, %v965
        %v1029 = vadd.f32 %v1028, %v966
        %v1030 = vadd.f32 %v1029, %v967
        %v1031 = vadd.f32 %v1030, %v968
        %v1032 = vadd.f32 %v1031, %v969
        %v1033 = vadd.f32 %v1032, %v970
        %v1034 = vadd.f32 %v1033, %v971
        %v1035 = vadd.f32 %v1034, %v972
        %v1036 = vadd.f32 %v1035, %v973
        %v1037 = vadd.f32 %v1036, %v974
        %v1038 = vadd.f32 %v1037, %v975
        %v1039 = vadd.f32 %v1038, %v976
        %v1040 = vadd.f32 %v1039, %v977
        %v1041 = vadd.f32 %v1040, %v978
        %v1042 = vadd.f32 %v1041, %v979
        %v1043 = vadd.f32 %v1042, %v980
        %v1044 = vadd.f32 %v1043, %v981
        %v1045 = vadd.f32 %v1044, %v982
        %v1046 = vadd.f32 %v1045, %v983
        %v1047 = vadd.f32 %v1046, %v984
        %v1048 = vadd.f32 %v1047, %v985
        %v1049 = vadd.f32 %v1048, %v986
        %v1050 = vadd.f32 %v1049, %v987
        %v1051 = vadd.f32 %v1050, %v988
        %v1052 = vadd.f32 %v1051, %v989
        %v1053 = vadd.f32 %v1052, %v990
        %v1054 = vadd.f32 %v1053, %v991
        %v1055 = vadd.f32 %v1054, %v992
        %v1056 = vadd.f32 %v1055, %v993
        %v1057 = vadd.f32 %v1056, %v994
        %v1058 = vadd.f32 %v1057, %v995
        %v1059 = vadd.f32 %v1058, %v996
        %v1060 = vadd.f32 %v1059, %v997
        %v1061 = vadd.f32 %v1060, %v998
        %v1062 = vadd.f32 %v1061, %v999
        %v1063 = vadd.f32 %v1062, %v1000
        %v1064 = vadd.f32 %v1063, %v1001
        %v1065 = vadd.f32 %v1064, %v1002
        %v1066 = vadd.f32 %v1065, %v1003
        %v1067 = vadd.f32 %v1066, %v1004
        %v1068 = vadd.f32 %v1067, %v1005
        %v1069 = vadd.f32 %v1068, %v1006
        %v1070 = vadd.f32 %v1069, %v1007
        %v1071 = vadd.f32 %v1070, %v1008
        %v1072 = vadd.f32 %v1071, %v1009
        %v1073 = vadd.f32 %v1072, %v1010
        %v1074 = vadd.f32 %v1073, %v1011
        %v1075 = vadd.f32 %v1074, %v1012
        %v1076 = vadd.f32 %v1075, %v1013
        %v1077 = vadd.f32 %v1076, %v1014
        %v1078 = vadd.f32 %v1077, %v1015
        %v1079 = vadd.f32 %v1078, %v1016
        %v1080 = vadd.f32 %v1079, %v1017
        %v1081 = vadd.f32 %v1080, %v1018
        %v1082 = vadd.f32 %v1081, %v1019
        %v1083 = vadd.f32 %v1082, %v1020
        %v1084 = vadd.f32 %v1083, %v1021
        %v1085 = vadd.f32 %v1084, %v1022
        %v1086 = vadd.f32 %v1085, %v1023
        %v1087 = vrot.slane %v1086, 4
        %v1088 = vadd.f32 %v1086, %v1087
        %v1089 = vrot.slane %v1088, 2
        %v1090 = vadd.f32 %v1088, %v1089
        %v1091 = vrot.slane %v1090, 1
        %v1092 = vadd.f32 %v1090, %v1091
        %v1093 = vadd.f32 %v959, %v1092
        %1094 = vst [vmem:[#allocation2 + $0x1] sm:$0x1] %v1093
      $region48: #{bottleneck_forward.5} parent=39 // pred_fallthru
        _
      %p1095 = scmp.eq.s32.totalorder %s20, 1
      %p1096 = pnand %p1095, %p269
      %p1097 = pneg %p1096
      // Predicated region
      $region49: #{bottleneck_forward.5} parent=39 // pred_check
        _
      $region50: #{bottleneck_forward.5} parent=39 // pred_check_branch
        %1099 = sbr.rel (%p1096) target = $region52
      $region51: #{bottleneck_forward.5} parent=39 // pred_region
        %v1100 = vld [vmem:[#allocation2] sm:$0x1]
        %v1101 = vmul.f32 %v1100, 0.0009765625
        %v1102 = vld [vmem:[#allocation2 + $0x1] sm:$0x1]
        %v1103 = vmul.f32 %v1102, 0.0009765625
        %v1104 = vmul.f32 %v1101, %v1101
        %v1105 = vsub.f32 %v1103, %v1104
        %v1106 = vld [vmem:[%s2] sm:$0x1]
        %v1107 = vadd.f32 %v1105, 1e-05
        %v1108 = vrsqrt.pop %v1107
        %v1109 = vmul.f32 %v1106, %v1108
        %1110 = vst [vmem:[#allocation3] sm:$0x1] %v1109
        %v1111 = vld [vmem:[%s3] sm:$0x1]
        %v1112 = vmul.f32 %v1101, %v1109
        %v1113 = vsub.f32 %v1111, %v1112
        %1114 = vst [vmem:[#allocation3 + $0x1] sm:$0x1] %v1113
      $region52: #{bottleneck_forward.5} parent=39 // pred_fallthru
        _
      // Predicated region
      $region53: #{bottleneck_forward.5} parent=39 // pred_check
        %p1115 = pneg %p1095
      $region54: #{bottleneck_forward.5} parent=39 // pred_check_branch
        %1117 = sbr.rel (%p1115) target = $region56
      $region55: #{bottleneck_forward.5} parent=39 // pred_region
        %v1118 = vld [vmem:[%s257] sm:$0xf]
        %v1119 = vld [vmem:[%s257 + $0x4] sm:$0xf]
        %v1120 = vld [vmem:[%s257 + $0x8] sm:$0xf]
        %v1121 = vld [vmem:[%s257 + $0xc] sm:$0xf]
        %v1122 = vld [vmem:[%s257 + $0x10] sm:$0xf]
        %v1123 = vld [vmem:[%s257 + $0x14] sm:$0xf]
        %v1124 = vld [vmem:[%s257 + $0x18] sm:$0xf]
        %v1125 = vld [vmem:[%s257 + $0x1c] sm:$0xf]
        %v1126 = vld [vmem:[%s257 + $0x20] sm:$0xf]
        %v1127 = vld [vmem:[%s257 + $0x24] sm:$0xf]
        %v1128 = vld [vmem:[%s257 + $0x28] sm:$0xf]
        %v1129 = vld [vmem:[%s257 + $0x2c] sm:$0xf]
        %v1130 = vld [vmem:[%s257 + $0x30] sm:$0xf]
        %v1131 = vld [vmem:[%s257 + $0x34] sm:$0xf]
        %v1132 = vld [vmem:[%s257 + $0x38] sm:$0xf]
        %v1133 = vld [vmem:[%s257 + $0x3c] sm:$0xf]
        %v1134 = vld [vmem:[%s257 + $0x40] sm:$0xf]
        %v1135 = vld [vmem:[%s257 + $0x44] sm:$0xf]
        %v1136 = vld [vmem:[%s257 + $0x48] sm:$0xf]
        %v1137 = vld [vmem:[%s257 + $0x4c] sm:$0xf]
        %v1138 = vld [vmem:[%s257 + $0x50] sm:$0xf]
        %v1139 = vld [vmem:[%s257 + $0x54] sm:$0xf]
        %v1140 = vld [vmem:[%s257 + $0x58] sm:$0xf]
        %v1141 = vld [vmem:[%s257 + $0x5c] sm:$0xf]
        %v1142 = vld [vmem:[%s257 + $0x60] sm:$0xf]
        %v1143 = vld [vmem:[%s257 + $0x64] sm:$0xf]
        %v1144 = vld [vmem:[%s257 + $0x68] sm:$0xf]
        %v1145 = vld [vmem:[%s257 + $0x6c] sm:$0xf]
        %v1146 = vld [vmem:[%s257 + $0x70] sm:$0xf]
        %v1147 = vld [vmem:[%s257 + $0x74] sm:$0xf]
        %v1148 = vld [vmem:[%s257 + $0x78] sm:$0xf]
        %v1149 = vld [vmem:[%s257 + $0x7c] sm:$0xf]
        %v1150 = vld [vmem:[%s257 + $0x80] sm:$0xf]
        %v1151 = vld [vmem:[%s257 + $0x84] sm:$0xf]
        %v1152 = vld [vmem:[%s257 + $0x88] sm:$0xf]
        %v1153 = vld [vmem:[%s257 + $0x8c] sm:$0xf]
        %v1154 = vld [vmem:[%s257 + $0x90] sm:$0xf]
        %v1155 = vld [vmem:[%s257 + $0x94] sm:$0xf]
        %v1156 = vld [vmem:[%s257 + $0x98] sm:$0xf]
        %v1157 = vld [vmem:[%s257 + $0x9c] sm:$0xf]
        %v1158 = vld [vmem:[%s257 + $0xa0] sm:$0xf]
        %v1159 = vld [vmem:[%s257 + $0xa4] sm:$0xf]
        %v1160 = vld [vmem:[%s257 + $0xa8] sm:$0xf]
        %v1161 = vld [vmem:[%s257 + $0xac] sm:$0xf]
        %v1162 = vld [vmem:[%s257 + $0xb0] sm:$0xf]
        %v1163 = vld [vmem:[%s257 + $0xb4] sm:$0xf]
        %v1164 = vld [vmem:[%s257 + $0xb8] sm:$0xf]
        %v1165 = vld [vmem:[%s257 + $0xbc] sm:$0xf]
        %v1166 = vld [vmem:[%s257 + $0xc0] sm:$0xf]
        %v1167 = vld [vmem:[%s257 + $0xc4] sm:$0xf]
        %v1168 = vld [vmem:[%s257 + $0xc8] sm:$0xf]
        %v1169 = vld [vmem:[%s257 + $0xcc] sm:$0xf]
        %v1170 = vld [vmem:[%s257 + $0xd0] sm:$0xf]
        %v1171 = vld [vmem:[%s257 + $0xd4] sm:$0xf]
        %v1172 = vld [vmem:[%s257 + $0xd8] sm:$0xf]
        %v1173 = vld [vmem:[%s257 + $0xdc] sm:$0xf]
        %v1174 = vld [vmem:[%s257 + $0xe0] sm:$0xf]
        %v1175 = vld [vmem:[%s257 + $0xe4] sm:$0xf]
        %v1176 = vld [vmem:[%s257 + $0xe8] sm:$0xf]
        %v1177 = vld [vmem:[%s257 + $0xec] sm:$0xf]
        %v1178 = vld [vmem:[%s257 + $0xf0] sm:$0xf]
        %v1179 = vld [vmem:[%s257 + $0xf4] sm:$0xf]
        %v1180 = vld [vmem:[%s257 + $0xf8] sm:$0xf]
        %v1181 = vld [vmem:[%s257 + $0xfc] sm:$0xf]
        %v1182 = vunpack.c.l.bf16 %v1118
        %v1183 = vunpack.c.l.bf16 %v1119
        %v1184 = vunpack.c.l.bf16 %v1120
        %v1185 = vunpack.c.l.bf16 %v1121
        %v1186 = vunpack.c.l.bf16 %v1122
        %v1187 = vunpack.c.l.bf16 %v1123
        %v1188 = vunpack.c.l.bf16 %v1124
        %v1189 = vunpack.c.l.bf16 %v1125
        %v1190 = vunpack.c.l.bf16 %v1126
        %v1191 = vunpack.c.l.bf16 %v1127
        %v1192 = vunpack.c.l.bf16 %v1128
        %v1193 = vunpack.c.l.bf16 %v1129
        %v1194 = vunpack.c.l.bf16 %v1130
        %v1195 = vunpack.c.l.bf16 %v1131
        %v1196 = vunpack.c.l.bf16 %v1132
        %v1197 = vunpack.c.l.bf16 %v1133
        %v1198 = vunpack.c.l.bf16 %v1134
        %v1199 = vunpack.c.l.bf16 %v1135
        %v1200 = vunpack.c.l.bf16 %v1136
        %v1201 = vunpack.c.l.bf16 %v1137
        %v1202 = vunpack.c.l.bf16 %v1138
        %v1203 = vunpack.c.l.bf16 %v1139
        %v1204 = vunpack.c.l.bf16 %v1140
        %v1205 = vunpack.c.l.bf16 %v1141
        %v1206 = vunpack.c.l.bf16 %v1142
        %v1207 = vunpack.c.l.bf16 %v1143
        %v1208 = vunpack.c.l.bf16 %v1144
        %v1209 = vunpack.c.l.bf16 %v1145
        %v1210 = vunpack.c.l.bf16 %v1146
        %v1211 = vunpack.c.l.bf16 %v1147
        %v1212 = vunpack.c.l.bf16 %v1148
        %v1213 = vunpack.c.l.bf16 %v1149
        %v1214 = vunpack.c.l.bf16 %v1150
        %v1215 = vunpack.c.l.bf16 %v1151
        %v1216 = vunpack.c.l.bf16 %v1152
        %v1217 = vunpack.c.l.bf16 %v1153
        %v1218 = vunpack.c.l.bf16 %v1154
        %v1219 = vunpack.c.l.bf16 %v1155
        %v1220 = vunpack.c.l.bf16 %v1156
        %v1221 = vunpack.c.l.bf16 %v1157
        %v1222 = vunpack.c.l.bf16 %v1158
        %v1223 = vunpack.c.l.bf16 %v1159
        %v1224 = vunpack.c.l.bf16 %v1160
        %v1225 = vunpack.c.l.bf16 %v1161
        %v1226 = vunpack.c.l.bf16 %v1162
        %v1227 = vunpack.c.l.bf16 %v1163
        %v1228 = vunpack.c.l.bf16 %v1164
        %v1229 = vunpack.c.l.bf16 %v1165
        %v1230 = vunpack.c.l.bf16 %v1166
        %v1231 = vunpack.c.l.bf16 %v1167
        %v1232 = vunpack.c.l.bf16 %v1168
        %v1233 = vunpack.c.l.bf16 %v1169
        %v1234 = vunpack.c.l.bf16 %v1170
        %v1235 = vunpack.c.l.bf16 %v1171
        %v1236 = vunpack.c.l.bf16 %v1172
        %v1237 = vunpack.c.l.bf16 %v1173
        %v1238 = vunpack.c.l.bf16 %v1174
        %v1239 = vunpack.c.l.bf16 %v1175
        %v1240 = vunpack.c.l.bf16 %v1176
        %v1241 = vunpack.c.l.bf16 %v1177
        %v1242 = vunpack.c.l.bf16 %v1178
        %v1243 = vunpack.c.l.bf16 %v1179
        %v1244 = vunpack.c.l.bf16 %v1180
        %v1245 = vunpack.c.l.bf16 %v1181
        %v1246 = vld [vmem:[#allocation3] sm:$0x1]
        %v1247 = vlaneseq
        %v1248 = vshrl.u32 %v1247, 7
        %v1249 = vsub.s32 0, %v1248
        %v1250 = vrot.slane %v1246, %v1249
        %v1251 = vmul.f32 %v630, %v1250
        %v1252 = vmul.f32 %v633, %v1250
        %v1253 = vmul.f32 %v638, %v1250
        %v1254 = vmul.f32 %v641, %v1250
        %v1255 = vmul.f32 %v646, %v1250
        %v1256 = vmul.f32 %v649, %v1250
        %v1257 = vmul.f32 %v654, %v1250
        %v1258 = vmul.f32 %v657, %v1250
        %v1259 = vmul.f32 %v662, %v1250
        %v1260 = vmul.f32 %v665, %v1250
        %v1261 = vmul.f32 %v670, %v1250
        %v1262 = vmul.f32 %v673, %v1250
        %v1263 = vmul.f32 %v678, %v1250
        %v1264 = vmul.f32 %v681, %v1250
        %v1265 = vmul.f32 %v686, %v1250
        %v1266 = vmul.f32 %v689, %v1250
        %v1267 = vmul.f32 %v694, %v1250
        %v1268 = vmul.f32 %v697, %v1250
        %v1269 = vmul.f32 %v702, %v1250
        %v1270 = vmul.f32 %v705, %v1250
        %v1271 = vmul.f32 %v710, %v1250
        %v1272 = vmul.f32 %v713, %v1250
        %v1273 = vmul.f32 %v718, %v1250
        %v1274 = vmul.f32 %v721, %v1250
        %v1275 = vmul.f32 %v726, %v1250
        %v1276 = vmul.f32 %v729, %v1250
        %v1277 = vmul.f32 %v734, %v1250
        %v1278 = vmul.f32 %v737, %v1250
        %v1279 = vmul.f32 %v742, %v1250
        %v1280 = vmul.f32 %v745, %v1250
        %v1281 = vmul.f32 %v750, %v1250
        %v1282 = vmul.f32 %v753, %v1250
        %v1283 = vmul.f32 %v758, %v1250
        %v1284 = vmul.f32 %v761, %v1250
        %v1285 = vmul.f32 %v766, %v1250
        %v1286 = vmul.f32 %v769, %v1250
        %v1287 = vmul.f32 %v774, %v1250
        %v1288 = vmul.f32 %v777, %v1250
        %v1289 = vmul.f32 %v782, %v1250
        %v1290 = vmul.f32 %v785, %v1250
        %v1291 = vmul.f32 %v790, %v1250
        %v1292 = vmul.f32 %v793, %v1250
        %v1293 = vmul.f32 %v798, %v1250
        %v1294 = vmul.f32 %v801, %v1250
        %v1295 = vmul.f32 %v806, %v1250
        %v1296 = vmul.f32 %v809, %v1250
        %v1297 = vmul.f32 %v814, %v1250
        %v1298 = vmul.f32 %v817, %v1250
        %v1299 = vmul.f32 %v822, %v1250
        %v1300 = vmul.f32 %v825, %v1250
        %v1301 = vmul.f32 %v830, %v1250
        %v1302 = vmul.f32 %v833, %v1250
        %v1303 = vmul.f32 %v838, %v1250
        %v1304 = vmul.f32 %v841, %v1250
        %v1305 = vmul.f32 %v846, %v1250
        %v1306 = vmul.f32 %v849, %v1250
        %v1307 = vmul.f32 %v854, %v1250
        %v1308 = vmul.f32 %v857, %v1250
        %v1309 = vmul.f32 %v862, %v1250
        %v1310 = vmul.f32 %v865, %v1250
        %v1311 = vmul.f32 %v870, %v1250
        %v1312 = vmul.f32 %v873, %v1250
        %v1313 = vmul.f32 %v878, %v1250
        %v1314 = vmul.f32 %v881, %v1250
        %v1315 = vld [vmem:[#allocation3 + $0x1] sm:$0x1]
        %v1316 = vlaneseq
        %v1317 = vshrl.u32 %v1316, 7
        %v1318 = vsub.s32 0, %v1317
        %v1319 = vrot.slane %v1315, %v1318
        %v1320 = vadd.f32 %v1251, %v1319
        %v1321 = vadd.f32 %v1252, %v1319
        %v1322 = vadd.f32 %v1253, %v1319
        %v1323 = vadd.f32 %v1254, %v1319
        %v1324 = vadd.f32 %v1255, %v1319
        %v1325 = vadd.f32 %v1256, %v1319
        %v1326 = vadd.f32 %v1257, %v1319
        %v1327 = vadd.f32 %v1258, %v1319
        %v1328 = vadd.f32 %v1259, %v1319
        %v1329 = vadd.f32 %v1260, %v1319
        %v1330 = vadd.f32 %v1261, %v1319
        %v1331 = vadd.f32 %v1262, %v1319
        %v1332 = vadd.f32 %v1263, %v1319
        %v1333 = vadd.f32 %v1264, %v1319
        %v1334 = vadd.f32 %v1265, %v1319
        %v1335 = vadd.f32 %v1266, %v1319
        %v1336 = vadd.f32 %v1267, %v1319
        %v1337 = vadd.f32 %v1268, %v1319
        %v1338 = vadd.f32 %v1269, %v1319
        %v1339 = vadd.f32 %v1270, %v1319
        %v1340 = vadd.f32 %v1271, %v1319
        %v1341 = vadd.f32 %v1272, %v1319
        %v1342 = vadd.f32 %v1273, %v1319
        %v1343 = vadd.f32 %v1274, %v1319
        %v1344 = vadd.f32 %v1275, %v1319
        %v1345 = vadd.f32 %v1276, %v1319
        %v1346 = vadd.f32 %v1277, %v1319
        %v1347 = vadd.f32 %v1278, %v1319
        %v1348 = vadd.f32 %v1279, %v1319
        %v1349 = vadd.f32 %v1280, %v1319
        %v1350 = vadd.f32 %v1281, %v1319
        %v1351 = vadd.f32 %v1282, %v1319
        %v1352 = vadd.f32 %v1283, %v1319
        %v1353 = vadd.f32 %v1284, %v1319
        %v1354 = vadd.f32 %v1285, %v1319
        %v1355 = vadd.f32 %v1286, %v1319
        %v1356 = vadd.f32 %v1287, %v1319
        %v1357 = vadd.f32 %v1288, %v1319
        %v1358 = vadd.f32 %v1289, %v1319
        %v1359 = vadd.f32 %v1290, %v1319
        %v1360 = vadd.f32 %v1291, %v1319
        %v1361 = vadd.f32 %v1292, %v1319
        %v1362 = vadd.f32 %v1293, %v1319
        %v1363 = vadd.f32 %v1294, %v1319
        %v1364 = vadd.f32 %v1295, %v1319
        %v1365 = vadd.f32 %v1296, %v1319
        %v1366 = vadd.f32 %v1297, %v1319
        %v1367 = vadd.f32 %v1298, %v1319
        %v1368 = vadd.f32 %v1299, %v1319
        %v1369 = vadd.f32 %v1300, %v1319
        %v1370 = vadd.f32 %v1301, %v1319
        %v1371 = vadd.f32 %v1302, %v1319
        %v1372 = vadd.f32 %v1303, %v1319
        %v1373 = vadd.f32 %v1304, %v1319
        %v1374 = vadd.f32 %v1305, %v1319
        %v1375 = vadd.f32 %v1306, %v1319
        %v1376 = vadd.f32 %v1307, %v1319
        %v1377 = vadd.f32 %v1308, %v1319
        %v1378 = vadd.f32 %v1309, %v1319
        %v1379 = vadd.f32 %v1310, %v1319
        %v1380 = vadd.f32 %v1311, %v1319
        %v1381 = vadd.f32 %v1312, %v1319
        %v1382 = vadd.f32 %v1313, %v1319
        %v1383 = vadd.f32 %v1314, %v1319
        %v1384 = vadd.f32 %v1320, %v1182
        %v1385 = vadd.f32 %v1321, %v1183
        %v1386 = vadd.f32 %v1322, %v1184
        %v1387 = vadd.f32 %v1323, %v1185
        %v1388 = vadd.f32 %v1324, %v1186
        %v1389 = vadd.f32 %v1325, %v1187
        %v1390 = vadd.f32 %v1326, %v1188
        %v1391 = vadd.f32 %v1327, %v1189
        %v1392 = vadd.f32 %v1328, %v1190
        %v1393 = vadd.f32 %v1329, %v1191
        %v1394 = vadd.f32 %v1330, %v1192
        %v1395 = vadd.f32 %v1331, %v1193
        %v1396 = vadd.f32 %v1332, %v1194
        %v1397 = vadd.f32 %v1333, %v1195
        %v1398 = vadd.f32 %v1334, %v1196
        %v1399 = vadd.f32 %v1335, %v1197
        %v1400 = vadd.f32 %v1336, %v1198
        %v1401 = vadd.f32 %v1337, %v1199
        %v1402 = vadd.f32 %v1338, %v1200
        %v1403 = vadd.f32 %v1339, %v1201
        %v1404 = vadd.f32 %v1340, %v1202
        %v1405 = vadd.f32 %v1341, %v1203
        %v1406 = vadd.f32 %v1342, %v1204
        %v1407 = vadd.f32 %v1343, %v1205
        %v1408 = vadd.f32 %v1344, %v1206
        %v1409 = vadd.f32 %v1345, %v1207
        %v1410 = vadd.f32 %v1346, %v1208
        %v1411 = vadd.f32 %v1347, %v1209
        %v1412 = vadd.f32 %v1348, %v1210
        %v1413 = vadd.f32 %v1349, %v1211
        %v1414 = vadd.f32 %v1350, %v1212
        %v1415 = vadd.f32 %v1351, %v1213
        %v1416 = vadd.f32 %v1352, %v1214
        %v1417 = vadd.f32 %v1353, %v1215
        %v1418 = vadd.f32 %v1354, %v1216
        %v1419 = vadd.f32 %v1355, %v1217
        %v1420 = vadd.f32 %v1356, %v1218
        %v1421 = vadd.f32 %v1357, %v1219
        %v1422 = vadd.f32 %v1358, %v1220
        %v1423 = vadd.f32 %v1359, %v1221
        %v1424 = vadd.f32 %v1360, %v1222
        %v1425 = vadd.f32 %v1361, %v1223
        %v1426 = vadd.f32 %v1362, %v1224
        %v1427 = vadd.f32 %v1363, %v1225
        %v1428 = vadd.f32 %v1364, %v1226
        %v1429 = vadd.f32 %v1365, %v1227
        %v1430 = vadd.f32 %v1366, %v1228
        %v1431 = vadd.f32 %v1367, %v1229
        %v1432 = vadd.f32 %v1368, %v1230
        %v1433 = vadd.f32 %v1369, %v1231
        %v1434 = vadd.f32 %v1370, %v1232
        %v1435 = vadd.f32 %v1371, %v1233
        %v1436 = vadd.f32 %v1372, %v1234
        %v1437 = vadd.f32 %v1373, %v1235
        %v1438 = vadd.f32 %v1374, %v1236
        %v1439 = vadd.f32 %v1375, %v1237
        %v1440 = vadd.f32 %v1376, %v1238
        %v1441 = vadd.f32 %v1377, %v1239
        %v1442 = vadd.f32 %v1378, %v1240
        %v1443 = vadd.f32 %v1379, %v1241
        %v1444 = vadd.f32 %v1380, %v1242
        %v1445 = vadd.f32 %v1381, %v1243
        %v1446 = vadd.f32 %v1382, %v1244
        %v1447 = vadd.f32 %v1383, %v1245
        %v1448 = vmax.f32 %v1384, 0.0
        %v1449 = vmax.f32 %v1385, 0.0
        %v1450 = vmax.f32 %v1386, 0.0
        %v1451 = vmax.f32 %v1387, 0.0
        %v1452 = vmax.f32 %v1388, 0.0
        %v1453 = vmax.f32 %v1389, 0.0
        %v1454 = vmax.f32 %v1390, 0.0
        %v1455 = vmax.f32 %v1391, 0.0
        %v1456 = vmax.f32 %v1392, 0.0
        %v1457 = vmax.f32 %v1393, 0.0
        %v1458 = vmax.f32 %v1394, 0.0
        %v1459 = vmax.f32 %v1395, 0.0
        %v1460 = vmax.f32 %v1396, 0.0
        %v1461 = vmax.f32 %v1397, 0.0
        %v1462 = vmax.f32 %v1398, 0.0
        %v1463 = vmax.f32 %v1399, 0.0
        %v1464 = vmax.f32 %v1400, 0.0
        %v1465 = vmax.f32 %v1401, 0.0
        %v1466 = vmax.f32 %v1402, 0.0
        %v1467 = vmax.f32 %v1403, 0.0
        %v1468 = vmax.f32 %v1404, 0.0
        %v1469 = vmax.f32 %v1405, 0.0
        %v1470 = vmax.f32 %v1406, 0.0
        %v1471 = vmax.f32 %v1407, 0.0
        %v1472 = vmax.f32 %v1408, 0.0
        %v1473 = vmax.f32 %v1409, 0.0
        %v1474 = vmax.f32 %v1410, 0.0
        %v1475 = vmax.f32 %v1411, 0.0
        %v1476 = vmax.f32 %v1412, 0.0
        %v1477 = vmax.f32 %v1413, 0.0
        %v1478 = vmax.f32 %v1414, 0.0
        %v1479 = vmax.f32 %v1415, 0.0
        %v1480 = vmax.f32 %v1416, 0.0
        %v1481 = vmax.f32 %v1417, 0.0
        %v1482 = vmax.f32 %v1418, 0.0
        %v1483 = vmax.f32 %v1419, 0.0
        %v1484 = vmax.f32 %v1420, 0.0
        %v1485 = vmax.f32 %v1421, 0.0
        %v1486 = vmax.f32 %v1422, 0.0
        %v1487 = vmax.f32 %v1423, 0.0
        %v1488 = vmax.f32 %v1424, 0.0
        %v1489 = vmax.f32 %v1425, 0.0
        %v1490 = vmax.f32 %v1426, 0.0
        %v1491 = vmax.f32 %v1427, 0.0
        %v1492 = vmax.f32 %v1428, 0.0
        %v1493 = vmax.f32 %v1429, 0.0
        %v1494 = vmax.f32 %v1430, 0.0
        %v1495 = vmax.f32 %v1431, 0.0
        %v1496 = vmax.f32 %v1432, 0.0
        %v1497 = vmax.f32 %v1433, 0.0
        %v1498 = vmax.f32 %v1434, 0.0
        %v1499 = vmax.f32 %v1435, 0.0
        %v1500 = vmax.f32 %v1436, 0.0
        %v1501 = vmax.f32 %v1437, 0.0
        %v1502 = vmax.f32 %v1438, 0.0
        %v1503 = vmax.f32 %v1439, 0.0
        %v1504 = vmax.f32 %v1440, 0.0
        %v1505 = vmax.f32 %v1441, 0.0
        %v1506 = vmax.f32 %v1442, 0.0
        %v1507 = vmax.f32 %v1443, 0.0
        %v1508 = vmax.f32 %v1444, 0.0
        %v1509 = vmax.f32 %v1445, 0.0
        %v1510 = vmax.f32 %v1446, 0.0
        %v1511 = vmax.f32 %v1447, 0.0
        %1512 = vst [vmem:[%s264] sm:$0xff] %v1448
        %1513 = vst [vmem:[%s264 + $0x8] sm:$0xff] %v1449
        %1514 = vst [vmem:[%s264 + $0x10] sm:$0xff] %v1450
        %1515 = vst [vmem:[%s264 + $0x18] sm:$0xff] %v1451
        %1516 = vst [vmem:[%s264 + $0x20] sm:$0xff] %v1452
        %1517 = vst [vmem:[%s264 + $0x28] sm:$0xff] %v1453
        %1518 = vst [vmem:[%s264 + $0x30] sm:$0xff] %v1454
        %1519 = vst [vmem:[%s264 + $0x38] sm:$0xff] %v1455
        %1520 = vst [vmem:[%s264 + $0x40] sm:$0xff] %v1456
        %1521 = vst [vmem:[%s264 + $0x48] sm:$0xff] %v1457
        %1522 = vst [vmem:[%s264 + $0x50] sm:$0xff] %v1458
        %1523 = vst [vmem:[%s264 + $0x58] sm:$0xff] %v1459
        %1524 = vst [vmem:[%s264 + $0x60] sm:$0xff] %v1460
        %1525 = vst [vmem:[%s264 + $0x68] sm:$0xff] %v1461
        %1526 = vst [vmem:[%s264 + $0x70] sm:$0xff] %v1462
        %1527 = vst [vmem:[%s264 + $0x78] sm:$0xff] %v1463
        %1528 = vst [vmem:[%s264 + $0x80] sm:$0xff] %v1464
        %1529 = vst [vmem:[%s264 + $0x88] sm:$0xff] %v1465
        %1530 = vst [vmem:[%s264 + $0x90] sm:$0xff] %v1466
        %1531 = vst [vmem:[%s264 + $0x98] sm:$0xff] %v1467
        %1532 = vst [vmem:[%s264 + $0xa0] sm:$0xff] %v1468
        %1533 = vst [vmem:[%s264 + $0xa8] sm:$0xff] %v1469
        %1534 = vst [vmem:[%s264 + $0xb0] sm:$0xff] %v1470
        %1535 = vst [vmem:[%s264 + $0xb8] sm:$0xff] %v1471
        %1536 = vst [vmem:[%s264 + $0xc0] sm:$0xff] %v1472
        %1537 = vst [vmem:[%s264 + $0xc8] sm:$0xff] %v1473
        %1538 = vst [vmem:[%s264 + $0xd0] sm:$0xff] %v1474
        %1539 = vst [vmem:[%s264 + $0xd8] sm:$0xff] %v1475
        %1540 = vst [vmem:[%s264 + $0xe0] sm:$0xff] %v1476
        %1541 = vst [vmem:[%s264 + $0xe8] sm:$0xff] %v1477
        %1542 = vst [vmem:[%s264 + $0xf0] sm:$0xff] %v1478
        %1543 = vst [vmem:[%s264 + $0xf8] sm:$0xff] %v1479
        %1544 = vst [vmem:[%s264 + $0x100] sm:$0xff] %v1480
        %1545 = vst [vmem:[%s264 + $0x108] sm:$0xff] %v1481
        %1546 = vst [vmem:[%s264 + $0x110] sm:$0xff] %v1482
        %1547 = vst [vmem:[%s264 + $0x118] sm:$0xff] %v1483
        %1548 = vst [vmem:[%s264 + $0x120] sm:$0xff] %v1484
        %1549 = vst [vmem:[%s264 + $0x128] sm:$0xff] %v1485
        %1550 = vst [vmem:[%s264 + $0x130] sm:$0xff] %v1486
        %1551 = vst [vmem:[%s264 + $0x138] sm:$0xff] %v1487
        %1552 = vst [vmem:[%s264 + $0x140] sm:$0xff] %v1488
        %1553 = vst [vmem:[%s264 + $0x148] sm:$0xff] %v1489
        %1554 = vst [vmem:[%s264 + $0x150] sm:$0xff] %v1490
        %1555 = vst [vmem:[%s264 + $0x158] sm:$0xff] %v1491
        %1556 = vst [vmem:[%s264 + $0x160] sm:$0xff] %v1492
        %1557 = vst [vmem:[%s264 + $0x168] sm:$0xff] %v1493
        %1558 = vst [vmem:[%s264 + $0x170] sm:$0xff] %v1494
        %1559 = vst [vmem:[%s264 + $0x178] sm:$0xff] %v1495
        %1560 = vst [vmem:[%s264 + $0x180] sm:$0xff] %v1496
        %1561 = vst [vmem:[%s264 + $0x188] sm:$0xff] %v1497
        %1562 = vst [vmem:[%s264 + $0x190] sm:$0xff] %v1498
        %1563 = vst [vmem:[%s264 + $0x198] sm:$0xff] %v1499
        %1564 = vst [vmem:[%s264 + $0x1a0] sm:$0xff] %v1500
        %1565 = vst [vmem:[%s264 + $0x1a8] sm:$0xff] %v1501
        %1566 = vst [vmem:[%s264 + $0x1b0] sm:$0xff] %v1502
        %1567 = vst [vmem:[%s264 + $0x1b8] sm:$0xff] %v1503
        %1568 = vst [vmem:[%s264 + $0x1c0] sm:$0xff] %v1504
        %1569 = vst [vmem:[%s264 + $0x1c8] sm:$0xff] %v1505
        %1570 = vst [vmem:[%s264 + $0x1d0] sm:$0xff] %v1506
        %1571 = vst [vmem:[%s264 + $0x1d8] sm:$0xff] %v1507
        %1572 = vst [vmem:[%s264 + $0x1e0] sm:$0xff] %v1508
        %1573 = vst [vmem:[%s264 + $0x1e8] sm:$0xff] %v1509
        %1574 = vst [vmem:[%s264 + $0x1f0] sm:$0xff] %v1510
        %1575 = vst [vmem:[%s264 + $0x1f8] sm:$0xff] %v1511
      $region56: #{bottleneck_forward.5} parent=39 // pred_fallthru
        _
      %s1576 = smul.u32 %s21, %s20
      %s1577 = smul.u32 64, %s1576
      %p1578 = scmp.lt.s32.totalorder %s1577, 127
      %s1579 = scalar_select %p1578, %s1577, 127
      %s1580 = smul.addr %s1579, 8
      %s1581 = scalar_lea.vmem %s5, %s1580
      // Predicated region
      $region57: #{bottleneck_forward.5} parent=39 // pred_check
        %p1582 = pneg %p163
      $region58: #{bottleneck_forward.5} parent=39 // pred_check_branch
        %1584 = sbr.rel (%p1582) target = $region60
      $region59: #{bottleneck_forward.5} parent=39 // pred_region
        %s1585 = smul.u32 %s21, %s20
        %s1586 = smul.u32 64, %s1585
      $region60: #{bottleneck_forward.5} parent=39 // pred_fallthru
        _
    $region40: #{bottleneck_forward.5} parent=5 // pred_fallthru
      _
    %p1587 = scmp.le.s32.totalorder 2, %s11
    // Predicated region
    $region61: #{bottleneck_forward.5} parent=5 // pred_check
      %p1588 = pneg %p1587
    $region62: #{bottleneck_forward.5} parent=5 // pred_check_branch
      %1590 = sbr.rel (%p1588) target = $region64
    $region63: #{bottleneck_forward.5} parent=5 // pred_region
      %s1591 = ssub.s32 %s11, 2
      // Predicated region
      $region65: #{bottleneck_forward.5} parent=63 // pred_check
        %p1592 = pneg %p169
      $region66: #{bottleneck_forward.5} parent=63 // pred_check_branch
        %1594 = sbr.rel (%p1592) target = $region68
      $region67: #{bottleneck_forward.5} parent=63 // pred_region
        %s1595 = smul.u32 %s23, %s22
        %s1596 = smul.u32 64, %s1595
        %p1597 = scmp.lt.s32.totalorder %s1596, 127
        %s1598 = scalar_select %p1597, %s1596, 127
        %s1599 = smul.addr %s1598, 8
        %s1600 = scalar_lea.vmem %s5, %s1599
      $region68: #{bottleneck_forward.5} parent=63 // pred_fallthru
        _
    $region64: #{bottleneck_forward.5} parent=5 // pred_fallthru
      _
  $region6: #{bottleneck_forward.5} parent=0 // loop_footer
    %s15 = sadd.s32 1, %s11
  $region7: #{bottleneck_forward.5} parent=0 // loop_footer_branch
    %10 = sbr.rel target = $region3
  $region8: #{bottleneck_forward.5} parent=0 // loop_exit
    _

// kernel: bottleneck_forward.4
$region0: #{bottleneck_forward.4}
  #allocation0 [shape = 'u32[]', space=smem, size = 0x4, offset = 0x4, fixed_abs, tag = 'smem constant byte address 0x4 - core index']
  #allocation1 [shape = 'u32[144,128]{1,0:T(1,128)}', space=vmem, size = 0x12000, scoped, tag = 'internal scratch']
  #allocation2 [shape = 'f32[2,128]{1,0:T(2,128)}', space=vmem, size = 0x400, scoped, tag = 'scratch operand']
  #allocation3 [shape = 'f32[2,128]{1,0:T(2,128)}', space=vmem, size = 0x400, scoped, tag = 'scratch operand']
  %s0 = inlined_call_operand.vmem [shape: bf16[4,256,128], index: 0, kind: input, shape index: {}]
  %s1 = inlined_call_operand.vmem [shape: bf16[9,128,128], index: 1, kind: input, shape index: {}]
  %s2 = inlined_call_operand.vmem [shape: f32[1,128], index: 2, kind: input, shape index: {}]
  %s3 = inlined_call_operand.vmem [shape: f32[1,128], index: 3, kind: input, shape index: {}]
  %s4 = inlined_call_operand.vmem [shape: bf16[4,256,128], index: 4, kind: output, shape index: {}]
  %s5 = sld [smem:[#allocation0]]
  $region65: #{bottleneck_forward.4} parent=0
    _
  %s7 = ssub.s32 1, %s5
  %s8 = scalar_select 0, %s7, %s5
  loop: start=0, step=1, limit=10
  $region2: #{bottleneck_forward.4} parent=0 // loop_pre_header
    _
  $region3: #{bottleneck_forward.4} parent=0 // loop_header
    %s10 = sphi 0, %s14
    %p11 = scmp.ge.s32.totalorder %s10, 10
    %s17 = sphi 0, %s29
    %s18 = sphi 0, %s25
    %s19 = sphi 0, %s17
    %s20 = sphi 0, %s18
    %s21 = sphi 0, %s19
    %s22 = sphi 0, %s20
    %s32 = sphi 0, %s34
    %s35 = sphi 0, %s32
    %s36 = sphi 0, %s35
    %s52 = sphi 0, %s36
    %s56 = sphi 0, %s56
    %s58 = sphi 0, %s56
    %s59 = sphi 0, %s58
    %s73 = sphi 0, %s59
    %s77 = sphi 0, %s77
    %s79 = sphi 0, %s77
    %s80 = sphi 0, %s79
    %s94 = sphi 0, %s80
    %s98 = sphi 0, %s98
    %s100 = sphi 0, %s98
    %s101 = sphi 0, %s100
    %s115 = sphi 0, %s101
    %s123 = sphi 0, %s125
    %s126 = sphi 0, %s123
    %s127 = sphi 0, %s126
    %s143 = sphi 0, %s127
  $region4: #{bottleneck_forward.4} parent=0 // loop_header_branch
    %13 = sbr.rel (%p11) target = $region8
  $region5: #{bottleneck_forward.4} parent=0 // loop_body
    %s15 = ssub.s32 %s10, 1
    %s16 = ssub.s32 %s10, 2
    %s23 = sadd.s32 1, %s18
    %p24 = scmp.ge.s32.totalorder %s23, 4
    %s25 = scalar_select %p24, 0, %s23
    %s26 = sadd.s32 1, %s17
    %s27 = scalar_select %p24, %s26, %s17
    %p28 = scmp.ge.s32.totalorder %s27, 2
    %s29 = scalar_select %p28, 0, %s27
    %s30 = ssub.s32 %s18, %s25
    %p31 = scmp.eq.s32.totalorder %s30, 0
    %s33 = sadd.s32 %s32, 1
    %s34 = scalar_select %p31, %s32, %s33
    %p37 = pneg %p31
    %p38 = scmp.eq.s32.totalorder %s10, 7
    %p39 = por %p37, %p38
    %p40 = scmp.ne.s32.totalorder %s32, %s35
    %p41 = scmp.eq.s32.totalorder %s10, 0
    %p42 = por %p40, %p41
    %p43 = scmp.ne.s32.totalorder %s32, %s35
    %p44 = scmp.eq.s32.totalorder %s15, 7
    %p45 = por %p43, %p44
    %p46 = scmp.ne.s32.totalorder %s35, %s36
    %p47 = scmp.eq.s32.totalorder %s15, 0
    %p48 = por %p46, %p47
    %p49 = scmp.ne.s32.totalorder %s35, %s36
    %p50 = scmp.eq.s32.totalorder %s16, 7
    %p51 = por %p49, %p50
    %p53 = scmp.ne.s32.totalorder %s36, %s52
    %p54 = scmp.eq.s32.totalorder %s16, 0
    %p55 = por %p53, %p54
    %s57 = sadd.s32 %s56, 1
    %p60 = scmp.eq.s32.totalorder %s10, 7
    %p61 = scmp.ne.s32.totalorder %s56, %s58
    %p62 = scmp.eq.s32.totalorder %s10, 0
    %p63 = por %p61, %p62
    %p64 = scmp.ne.s32.totalorder %s56, %s58
    %p65 = scmp.eq.s32.totalorder %s15, 7
    %p66 = por %p64, %p65
    %p67 = scmp.ne.s32.totalorder %s58, %s59
    %p68 = scmp.eq.s32.totalorder %s15, 0
    %p69 = por %p67, %p68
    %p70 = scmp.ne.s32.totalorder %s58, %s59
    %p71 = scmp.eq.s32.totalorder %s16, 7
    %p72 = por %p70, %p71
    %p74 = scmp.ne.s32.totalorder %s59, %s73
    %p75 = scmp.eq.s32.totalorder %s16, 0
    %p76 = por %p74, %p75
    %s78 = sadd.s32 %s77, 1
    %p81 = scmp.eq.s32.totalorder %s10, 7
    %p82 = scmp.ne.s32.totalorder %s77, %s79
    %p83 = scmp.eq.s32.totalorder %s10, 0
    %p84 = por %p82, %p83
    %p85 = scmp.ne.s32.totalorder %s77, %s79
    %p86 = scmp.eq.s32.totalorder %s15, 7
    %p87 = por %p85, %p86
    %p88 = scmp.ne.s32.totalorder %s79, %s80
    %p89 = scmp.eq.s32.totalorder %s15, 0
    %p90 = por %p88, %p89
    %p91 = scmp.ne.s32.totalorder %s79, %s80
    %p92 = scmp.eq.s32.totalorder %s16, 7
    %p93 = por %p91, %p92
    %p95 = scmp.ne.s32.totalorder %s80, %s94
    %p96 = scmp.eq.s32.totalorder %s16, 0
    %p97 = por %p95, %p96
    %s99 = sadd.s32 %s98, 1
    %p102 = scmp.eq.s32.totalorder %s10, 7
    %p103 = scmp.ne.s32.totalorder %s98, %s100
    %p104 = scmp.eq.s32.totalorder %s10, 0
    %p105 = por %p103, %p104
    %p106 = scmp.ne.s32.totalorder %s98, %s100
    %p107 = scmp.eq.s32.totalorder %s15, 7
    %p108 = por %p106, %p107
    %p109 = scmp.ne.s32.totalorder %s100, %s101
    %p110 = scmp.eq.s32.totalorder %s15, 0
    %p111 = por %p109, %p110
    %p112 = scmp.ne.s32.totalorder %s100, %s101
    %p113 = scmp.eq.s32.totalorder %s16, 7
    %p114 = por %p112, %p113
    %p116 = scmp.ne.s32.totalorder %s101, %s115
    %p117 = scmp.eq.s32.totalorder %s16, 0
    %p118 = por %p116, %p117
    %s119 = smul.u32 %s18, %s17
    %s120 = smul.u32 %s25, %s29
    %s121 = ssub.s32 %s119, %s120
    %p122 = scmp.eq.s32.totalorder %s121, 0
    %s124 = sadd.s32 %s123, 1
    %s125 = scalar_select %p122, %s123, %s124
    %p128 = pneg %p122
    %p129 = scmp.eq.s32.totalorder %s10, 7
    %p130 = por %p128, %p129
    %p131 = scmp.ne.s32.totalorder %s123, %s126
    %p132 = scmp.eq.s32.totalorder %s10, 0
    %p133 = por %p131, %p132
    %p134 = scmp.ne.s32.totalorder %s123, %s126
    %p135 = scmp.eq.s32.totalorder %s15, 7
    %p136 = por %p134, %p135
    %p137 = scmp.ne.s32.totalorder %s126, %s127
    %p138 = scmp.eq.s32.totalorder %s15, 0
    %p139 = por %p137, %p138
    %p140 = scmp.ne.s32.totalorder %s126, %s127
    %p141 = scmp.eq.s32.totalorder %s16, 7
    %p142 = por %p140, %p141
    %p144 = scmp.ne.s32.totalorder %s127, %s143
    %p145 = scmp.eq.s32.totalorder %s16, 0
    %p146 = por %p144, %p145
    %p147 = scmp.le.s32.totalorder 1, %s10
    %p148 = scmp.lt.s32.totalorder %s10, 9
    %p149 = pnand %p147, %p148
    %p150 = pneg %p149
    // Predicated region
    $region9: #{bottleneck_forward.4} parent=5 // pred_check
      _
    $region10: #{bottleneck_forward.4} parent=5 // pred_check_branch
      %152 = sbr.rel (%p149) target = $region12
    $region11: #{bottleneck_forward.4} parent=5 // pred_region
      %s153 = ssub.s32 %s10, 1
      // Predicated region
      $region13: #{bottleneck_forward.4} parent=11 // pred_check
        %p154 = pneg %p69
      $region14: #{bottleneck_forward.4} parent=11 // pred_check_branch
        %156 = sbr.rel (%p154) target = $region16
      $region15: #{bottleneck_forward.4} parent=11 // pred_region
        _
      $region16: #{bottleneck_forward.4} parent=11 // pred_fallthru
        _
      // Predicated region
      $region17: #{bottleneck_forward.4} parent=11 // pred_check
        %p157 = pneg %p90
      $region18: #{bottleneck_forward.4} parent=11 // pred_check_branch
        %159 = sbr.rel (%p157) target = $region20
      $region19: #{bottleneck_forward.4} parent=11 // pred_region
        _
      $region20: #{bottleneck_forward.4} parent=11 // pred_fallthru
        _
      // Predicated region
      $region21: #{bottleneck_forward.4} parent=11 // pred_check
        %p160 = pneg %p111
      $region22: #{bottleneck_forward.4} parent=11 // pred_check_branch
        %162 = sbr.rel (%p160) target = $region24
      $region23: #{bottleneck_forward.4} parent=11 // pred_region
        _
      $region24: #{bottleneck_forward.4} parent=11 // pred_fallthru
        _
    $region12: #{bottleneck_forward.4} parent=5 // pred_fallthru
      _
    %p163 = scmp.lt.s32.totalorder %s10, 8
    // Predicated region
    $region25: #{bottleneck_forward.4} parent=5 // pred_check
      %p164 = pneg %p163
    $region26: #{bottleneck_forward.4} parent=5 // pred_check_branch
      %166 = sbr.rel (%p164) target = $region28
    $region27: #{bottleneck_forward.4} parent=5 // pred_region
      // Predicated region
      $region29: #{bottleneck_forward.4} parent=27 // pred_check
        %p167 = pneg %p42
      $region30: #{bottleneck_forward.4} parent=27 // pred_check_branch
        %169 = sbr.rel (%p167) target = $region32
      $region31: #{bottleneck_forward.4} parent=27 // pred_region
        %p170 = scmp.lt.s32.totalorder %s18, 3
        %s171 = scalar_select %p170, %s18, 3
        %s172 = smul.addr %s171, 32
        %s173 = smul.addr %s172, 4
        %s174 = scalar_lea.vmem %s0, %s173
      $region32: #{bottleneck_forward.4} parent=27 // pred_fallthru
        _
    $region28: #{bottleneck_forward.4} parent=5 // pred_fallthru
      _
    %p175 = scmp.le.s32.totalorder 1, %s10
    %p176 = scmp.lt.s32.totalorder %s10, 9
    %p177 = pnand %p175, %p176
    %p178 = pneg %p177
    // Predicated region
    $region33: #{bottleneck_forward.4} parent=5 // pred_check
      _
    $region34: #{bottleneck_forward.4} parent=5 // pred_check_branch
      %180 = sbr.rel (%p177) target = $region36
    $region35: #{bottleneck_forward.4} parent=5 // pred_region
      %s181 = ssub.s32 %s10, 1
      %p182 = scmp.lt.s32.totalorder %s20, 3
      %s183 = scalar_select %p182, %s20, 3
      %s184 = smul.addr %s183, 32
      %s185 = smul.addr %s184, 4
      %s186 = scalar_lea.vmem %s0, %s185
      %p187 = pneg %p48
      %p188 = pneg %p45
      %p189 = pneg %p69
      %p190 = pneg %p66
      %p191 = pneg %p90
      %p192 = pneg %p87
      %p193 = pneg %p111
      %p194 = pneg %p108
      %p195 = pneg %p139
      %p196 = pneg %p136
      %s197 = smul.u32 %s20, %s19
      %p198 = scmp.lt.s32.totalorder %s197, 3
      %s199 = scalar_select %p198, %s197, 3
      %s200 = smul.addr %s199, 32
      %s201 = smul.addr %s200, 4
      %s202 = scalar_lea.vmem %s4, %s201
      %p203 = scmp.lt.s32.totalorder %s20, 3
      %s204 = scalar_select %p203, %s20, 3
      %s205 = smul.addr %s204, 32
      %s206 = smul.addr %s205, 4
      %s207 = scalar_lea.vmem %s0, %s206
      %s208 = smul.u32 %s20, %s19
      %p209 = scmp.lt.s32.totalorder %s208, 3
      %s210 = scalar_select %p209, %s208, 3
      %s211 = smul.addr %s210, 32
      %s212 = smul.addr %s211, 4
      %s213 = scalar_lea.vmem %s4, %s212
      %s214 = smul.u32 %s20, %s19
      %p216 = scmp.eq.s32.totalorder %s19, 0
      %p217 = scmp.eq.s32.totalorder %s20, 0
      %p218 = pnand %p216, %p217
      %p219 = pneg %p218
      // Predicated region
      $region37: #{bottleneck_forward.4} parent=35 // pred_check
        _
      $region38: #{bottleneck_forward.4} parent=35 // pred_check_branch
        %221 = sbr.rel (%p218) target = $region40
      $region39: #{bottleneck_forward.4} parent=35 // pred_region
        %222 = vst [vmem:[#allocation2] sm:$0x3] 0.0
      $region40: #{bottleneck_forward.4} parent=35 // pred_fallthru
        _
      %v223 = vld [vmem:[%s207] sm:$0xf]
      %v224 = vld [vmem:[%s207 + $0x4] sm:$0xf]
      %v225 = vld [vmem:[%s207 + $0x8] sm:$0xf]
      %v226 = vld [vmem:[%s207 + $0xc] sm:$0xf]
      %v227 = vld [vmem:[%s207 + $0x10] sm:$0xf]
      %v228 = vld [vmem:[%s207 + $0x14] sm:$0xf]
      %v229 = vld [vmem:[%s207 + $0x18] sm:$0xf]
      %v230 = vld [vmem:[%s207 + $0x1c] sm:$0xf]
      %v231 = vld [vmem:[%s207 + $0x20] sm:$0xf]
      %v232 = vld [vmem:[%s207 + $0x24] sm:$0xf]
      %v233 = vld [vmem:[%s207 + $0x28] sm:$0xf]
      %v234 = vld [vmem:[%s207 + $0x2c] sm:$0xf]
      %v235 = vld [vmem:[%s207 + $0x30] sm:$0xf]
      %v236 = vld [vmem:[%s207 + $0x34] sm:$0xf]
      %v237 = vld [vmem:[%s207 + $0x38] sm:$0xf]
      %v238 = vld [vmem:[%s207 + $0x3c] sm:$0xf]
      %v239 = vld [vmem:[%s207 + $0x40] sm:$0xf]
      %v240 = vld [vmem:[%s207 + $0x44] sm:$0xf]
      %v241 = vld [vmem:[%s207 + $0x48] sm:$0xf]
      %v242 = vld [vmem:[%s207 + $0x4c] sm:$0xf]
      %v243 = vld [vmem:[%s207 + $0x50] sm:$0xf]
      %v244 = vld [vmem:[%s207 + $0x54] sm:$0xf]
      %v245 = vld [vmem:[%s207 + $0x58] sm:$0xf]
      %v246 = vld [vmem:[%s207 + $0x5c] sm:$0xf]
      %v247 = vld [vmem:[%s207 + $0x60] sm:$0xf]
      %v248 = vld [vmem:[%s207 + $0x64] sm:$0xf]
      %v249 = vld [vmem:[%s207 + $0x68] sm:$0xf]
      %v250 = vld [vmem:[%s207 + $0x6c] sm:$0xf]
      %v251 = vld [vmem:[%s207 + $0x70] sm:$0xf]
      %v252 = vld [vmem:[%s207 + $0x74] sm:$0xf]
      %v253 = vld [vmem:[%s207 + $0x78] sm:$0xf]
      %v254 = vld [vmem:[%s207 + $0x7c] sm:$0xf]
      %v255 = vlaneseq
      %v256 = vshrl.u32 %v255, 7
      %v257 = vadd.s32 %v256, 8
      %v258 = vadd.s32 %v256, 16
      %v259 = vadd.s32 %v256, 24
      %v260 = vadd.s32 %v256, 32
      %v261 = vadd.s32 %v256, 40
      %v262 = vadd.s32 %v256, 48
      %v263 = vadd.s32 %v256, 56
      %v264 = vadd.s32 %v256, 64
      %v265 = vadd.s32 %v256, 72
      %v266 = vadd.s32 %v256, 80
      %v267 = vadd.s32 %v256, 88
      %v268 = vadd.s32 %v256, 96
      %v269 = vadd.s32 %v256, 104
      %v270 = vadd.s32 %v256, 112
      %v271 = vadd.s32 %v256, 120
      %v272 = vadd.s32 %v256, 128
      %v273 = vadd.s32 %v256, 136
      %v274 = vadd.s32 %v256, 144
      %v275 = vadd.s32 %v256, 152
      %v276 = vadd.s32 %v256, 160
      %v277 = vadd.s32 %v256, 168
      %v278 = vadd.s32 %v256, 176
      %v279 = vadd.s32 %v256, 184
      %v280 = vadd.s32 %v256, 192
      %v281 = vadd.s32 %v256, 200
      %v282 = vadd.s32 %v256, 208
      %v283 = vadd.s32 %v256, 216
      %v284 = vadd.s32 %v256, 224
      %v285 = vadd.s32 %v256, 232
      %v286 = vadd.s32 %v256, 240
      %v287 = vadd.s32 %v256, 248
      %vm288 = vcmp.lt.s32.totalorder %v256, 0
      %v289 = vsub.s32 0, %v256
      %v290 = vsel %vm288, %v289, %v256
      %v291 = vshrl.u32 %v290, 4
      %v292 = vand.u32 %v290, 15
      %v293 = vsub.s32 0, %v292
      %v294 = vsel %vm288, %v293, %v292
      %vm295 = vcmp.lt.s32.totalorder %v257, 0
      %v296 = vsub.s32 0, %v257
      %v297 = vsel %vm295, %v296, %v257
      %v298 = vshrl.u32 %v297, 4
      %v299 = vand.u32 %v297, 15
      %v300 = vsub.s32 0, %v299
      %v301 = vsel %vm295, %v300, %v299
      %vm302 = vcmp.lt.s32.totalorder %v258, 0
      %v303 = vsub.s32 0, %v258
      %v304 = vsel %vm302, %v303, %v258
      %v305 = vshrl.u32 %v304, 4
      %v306 = vand.u32 %v304, 15
      %v307 = vsub.s32 0, %v306
      %v308 = vsel %vm302, %v307, %v306
      %vm309 = vcmp.lt.s32.totalorder %v259, 0
      %v310 = vsub.s32 0, %v259
      %v311 = vsel %vm309, %v310, %v259
      %v312 = vshrl.u32 %v311, 4
      %v313 = vand.u32 %v311, 15
      %v314 = vsub.s32 0, %v313
      %v315 = vsel %vm309, %v314, %v313
      %vm316 = vcmp.lt.s32.totalorder %v260, 0
      %v317 = vsub.s32 0, %v260
      %v318 = vsel %vm316, %v317, %v260
      %v319 = vshrl.u32 %v318, 4
      %v320 = vand.u32 %v318, 15
      %v321 = vsub.s32 0, %v320
      %v322 = vsel %vm316, %v321, %v320
      %vm323 = vcmp.lt.s32.totalorder %v261, 0
      %v324 = vsub.s32 0, %v261
      %v325 = vsel %vm323, %v324, %v261
      %v326 = vshrl.u32 %v325, 4
      %v327 = vand.u32 %v325, 15
      %v328 = vsub.s32 0, %v327
      %v329 = vsel %vm323, %v328, %v327
      %vm330 = vcmp.lt.s32.totalorder %v262, 0
      %v331 = vsub.s32 0, %v262
      %v332 = vsel %vm330, %v331, %v262
      %v333 = vshrl.u32 %v332, 4
      %v334 = vand.u32 %v332, 15
      %v335 = vsub.s32 0, %v334
      %v336 = vsel %vm330, %v335, %v334
      %vm337 = vcmp.lt.s32.totalorder %v263, 0
      %v338 = vsub.s32 0, %v263
      %v339 = vsel %vm337, %v338, %v263
      %v340 = vshrl.u32 %v339, 4
      %v341 = vand.u32 %v339, 15
      %v342 = vsub.s32 0, %v341
      %v343 = vsel %vm337, %v342, %v341
      %vm344 = vcmp.lt.s32.totalorder %v264, 0
      %v345 = vsub.s32 0, %v264
      %v346 = vsel %vm344, %v345, %v264
      %v347 = vshrl.u32 %v346, 4
      %v348 = vand.u32 %v346, 15
      %v349 = vsub.s32 0, %v348
      %v350 = vsel %vm344, %v349, %v348
      %vm351 = vcmp.lt.s32.totalorder %v265, 0
      %v352 = vsub.s32 0, %v265
      %v353 = vsel %vm351, %v352, %v265
      %v354 = vshrl.u32 %v353, 4
      %v355 = vand.u32 %v353, 15
      %v356 = vsub.s32 0, %v355
      %v357 = vsel %vm351, %v356, %v355
      %vm358 = vcmp.lt.s32.totalorder %v266, 0
      %v359 = vsub.s32 0, %v266
      %v360 = vsel %vm358, %v359, %v266
      %v361 = vshrl.u32 %v360, 4
      %v362 = vand.u32 %v360, 15
      %v363 = vsub.s32 0, %v362
      %v364 = vsel %vm358, %v363, %v362
      %vm365 = vcmp.lt.s32.totalorder %v267, 0
      %v366 = vsub.s32 0, %v267
      %v367 = vsel %vm365, %v366, %v267
      %v368 = vshrl.u32 %v367, 4
      %v369 = vand.u32 %v367, 15
      %v370 = vsub.s32 0, %v369
      %v371 = vsel %vm365, %v370, %v369
      %vm372 = vcmp.lt.s32.totalorder %v268, 0
      %v373 = vsub.s32 0, %v268
      %v374 = vsel %vm372, %v373, %v268
      %v375 = vshrl.u32 %v374, 4
      %v376 = vand.u32 %v374, 15
      %v377 = vsub.s32 0, %v376
      %v378 = vsel %vm372, %v377, %v376
      %vm379 = vcmp.lt.s32.totalorder %v269, 0
      %v380 = vsub.s32 0, %v269
      %v381 = vsel %vm379, %v380, %v269
      %v382 = vshrl.u32 %v381, 4
      %v383 = vand.u32 %v381, 15
      %v384 = vsub.s32 0, %v383
      %v385 = vsel %vm379, %v384, %v383
      %vm386 = vcmp.lt.s32.totalorder %v270, 0
      %v387 = vsub.s32 0, %v270
      %v388 = vsel %vm386, %v387, %v270
      %v389 = vshrl.u32 %v388, 4
      %v390 = vand.u32 %v388, 15
      %v391 = vsub.s32 0, %v390
      %v392 = vsel %vm386, %v391, %v390
      %vm393 = vcmp.lt.s32.totalorder %v271, 0
      %v394 = vsub.s32 0, %v271
      %v395 = vsel %vm393, %v394, %v271
      %v396 = vshrl.u32 %v395, 4
      %v397 = vand.u32 %v395, 15
      %v398 = vsub.s32 0, %v397
      %v399 = vsel %vm393, %v398, %v397
      %vm400 = vcmp.lt.s32.totalorder %v272, 0
      %v401 = vsub.s32 0, %v272
      %v402 = vsel %vm400, %v401, %v272
      %v403 = vshrl.u32 %v402, 4
      %v404 = vand.u32 %v402, 15
      %v405 = vsub.s32 0, %v404
      %v406 = vsel %vm400, %v405, %v404
      %vm407 = vcmp.lt.s32.totalorder %v273, 0
      %v408 = vsub.s32 0, %v273
      %v409 = vsel %vm407, %v408, %v273
      %v410 = vshrl.u32 %v409, 4
      %v411 = vand.u32 %v409, 15
      %v412 = vsub.s32 0, %v411
      %v413 = vsel %vm407, %v412, %v411
      %vm414 = vcmp.lt.s32.totalorder %v274, 0
      %v415 = vsub.s32 0, %v274
      %v416 = vsel %vm414, %v415, %v274
      %v417 = vshrl.u32 %v416, 4
      %v418 = vand.u32 %v416, 15
      %v419 = vsub.s32 0, %v418
      %v420 = vsel %vm414, %v419, %v418
      %vm421 = vcmp.lt.s32.totalorder %v275, 0
      %v422 = vsub.s32 0, %v275
      %v423 = vsel %vm421, %v422, %v275
      %v424 = vshrl.u32 %v423, 4
      %v425 = vand.u32 %v423, 15
      %v426 = vsub.s32 0, %v425
      %v427 = vsel %vm421, %v426, %v425
      %vm428 = vcmp.lt.s32.totalorder %v276, 0
      %v429 = vsub.s32 0, %v276
      %v430 = vsel %vm428, %v429, %v276
      %v431 = vshrl.u32 %v430, 4
      %v432 = vand.u32 %v430, 15
      %v433 = vsub.s32 0, %v432
      %v434 = vsel %vm428, %v433, %v432
      %vm435 = vcmp.lt.s32.totalorder %v277, 0
      %v436 = vsub.s32 0, %v277
      %v437 = vsel %vm435, %v436, %v277
      %v438 = vshrl.u32 %v437, 4
      %v439 = vand.u32 %v437, 15
      %v440 = vsub.s32 0, %v439
      %v441 = vsel %vm435, %v440, %v439
      %vm442 = vcmp.lt.s32.totalorder %v278, 0
      %v443 = vsub.s32 0, %v278
      %v444 = vsel %vm442, %v443, %v278
      %v445 = vshrl.u32 %v444, 4
      %v446 = vand.u32 %v444, 15
      %v447 = vsub.s32 0, %v446
      %v448 = vsel %vm442, %v447, %v446
      %vm449 = vcmp.lt.s32.totalorder %v279, 0
      %v450 = vsub.s32 0, %v279
      %v451 = vsel %vm449, %v450, %v279
      %v452 = vshrl.u32 %v451, 4
      %v453 = vand.u32 %v451, 15
      %v454 = vsub.s32 0, %v453
      %v455 = vsel %vm449, %v454, %v453
      %vm456 = vcmp.lt.s32.totalorder %v280, 0
      %v457 = vsub.s32 0, %v280
      %v458 = vsel %vm456, %v457, %v280
      %v459 = vshrl.u32 %v458, 4
      %v460 = vand.u32 %v458, 15
      %v461 = vsub.s32 0, %v460
      %v462 = vsel %vm456, %v461, %v460
      %vm463 = vcmp.lt.s32.totalorder %v281, 0
      %v464 = vsub.s32 0, %v281
      %v465 = vsel %vm463, %v464, %v281
      %v466 = vshrl.u32 %v465, 4
      %v467 = vand.u32 %v465, 15
      %v468 = vsub.s32 0, %v467
      %v469 = vsel %vm463, %v468, %v467
      %vm470 = vcmp.lt.s32.totalorder %v282, 0
      %v471 = vsub.s32 0, %v282
      %v472 = vsel %vm470, %v471, %v282
      %v473 = vshrl.u32 %v472, 4
      %v474 = vand.u32 %v472, 15
      %v475 = vsub.s32 0, %v474
      %v476 = vsel %vm470, %v475, %v474
      %vm477 = vcmp.lt.s32.totalorder %v283, 0
      %v478 = vsub.s32 0, %v283
      %v479 = vsel %vm477, %v478, %v283
      %v480 = vshrl.u32 %v479, 4
      %v481 = vand.u32 %v479, 15
      %v482 = vsub.s32 0, %v481
      %v483 = vsel %vm477, %v482, %v481
      %vm484 = vcmp.lt.s32.totalorder %v284, 0
      %v485 = vsub.s32 0, %v284
      %v486 = vsel %vm484, %v485, %v284
      %v487 = vshrl.u32 %v486, 4
      %v488 = vand.u32 %v486, 15
      %v489 = vsub.s32 0, %v488
      %v490 = vsel %vm484, %v489, %v488
      %vm491 = vcmp.lt.s32.totalorder %v285, 0
      %v492 = vsub.s32 0, %v285
      %v493 = vsel %vm491, %v492, %v285
      %v494 = vshrl.u32 %v493, 4
      %v495 = vand.u32 %v493, 15
      %v496 = vsub.s32 0, %v495
      %v497 = vsel %vm491, %v496, %v495
      %vm498 = vcmp.lt.s32.totalorder %v286, 0
      %v499 = vsub.s32 0, %v286
      %v500 = vsel %vm498, %v499, %v286
      %v501 = vshrl.u32 %v500, 4
      %v502 = vand.u32 %v500, 15
      %v503 = vsub.s32 0, %v502
      %v504 = vsel %vm498, %v503, %v502
      %vm505 = vcmp.lt.s32.totalorder %v287, 0
      %v506 = vsub.s32 0, %v287
      %v507 = vsel %vm505, %v506, %v287
      %v508 = vshrl.u32 %v507, 4
      %v509 = vand.u32 %v507, 15
      %v510 = vsub.s32 0, %v509
      %v511 = vsel %vm505, %v510, %v509
      %vm512 = vcmp.ne.s32.totalorder %v294, 0
      %vm513 = vcmp.ne.s32.totalorder %v301, 0
      %vm514 = vcmp.ne.s32.totalorder %v308, 0
      %vm515 = vcmp.ne.s32.totalorder %v315, 0
      %vm516 = vcmp.ne.s32.totalorder %v322, 0
      %vm517 = vcmp.ne.s32.totalorder %v329, 0
      %vm518 = vcmp.ne.s32.totalorder %v336, 0
      %vm519 = vcmp.ne.s32.totalorder %v343, 0
      %vm520 = vcmp.ne.s32.totalorder %v350, 0
      %vm521 = vcmp.ne.s32.totalorder %v357, 0
      %vm522 = vcmp.ne.s32.totalorder %v364, 0
      %vm523 = vcmp.ne.s32.totalorder %v371, 0
      %vm524 = vcmp.ne.s32.totalorder %v378, 0
      %vm525 = vcmp.ne.s32.totalorder %v385, 0
      %vm526 = vcmp.ne.s32.totalorder %v392, 0
      %vm527 = vcmp.ne.s32.totalorder %v399, 0
      %vm528 = vcmp.ne.s32.totalorder %v406, 0
      %vm529 = vcmp.ne.s32.totalorder %v413, 0
      %vm530 = vcmp.ne.s32.totalorder %v420, 0
      %vm531 = vcmp.ne.s32.totalorder %v427, 0
      %vm532 = vcmp.ne.s32.totalorder %v434, 0
      %vm533 = vcmp.ne.s32.totalorder %v441, 0
      %vm534 = vcmp.ne.s32.totalorder %v448, 0
      %vm535 = vcmp.ne.s32.totalorder %v455, 0
      %vm536 = vcmp.ne.s32.totalorder %v462, 0
      %vm537 = vcmp.ne.s32.totalorder %v469, 0
      %vm538 = vcmp.ne.s32.totalorder %v476, 0
      %vm539 = vcmp.ne.s32.totalorder %v483, 0
      %vm540 = vcmp.ne.s32.totalorder %v490, 0
      %vm541 = vcmp.ne.s32.totalorder %v497, 0
      %vm542 = vcmp.ne.s32.totalorder %v504, 0
      %vm543 = vcmp.ne.s32.totalorder %v511, 0
      %vm544 = vcmp.lt.s32.totalorder %v294, 0
      %vm545 = vcmp.lt.s32.totalorder %v301, 0
      %vm546 = vcmp.lt.s32.totalorder %v308, 0
      %vm547 = vcmp.lt.s32.totalorder %v315, 0
      %vm548 = vcmp.lt.s32.totalorder %v322, 0
      %vm549 = vcmp.lt.s32.totalorder %v329, 0
      %vm550 = vcmp.lt.s32.totalorder %v336, 0
      %vm551 = vcmp.lt.s32.totalorder %v343, 0
      %vm552 = vcmp.lt.s32.totalorder %v350, 0
      %vm553 = vcmp.lt.s32.totalorder %v357, 0
      %vm554 = vcmp.lt.s32.totalorder %v364, 0
      %vm555 = vcmp.lt.s32.totalorder %v371, 0
      %vm556 = vcmp.lt.s32.totalorder %v378, 0
      %vm557 = vcmp.lt.s32.totalorder %v385, 0
      %vm558 = vcmp.lt.s32.totalorder %v392, 0
      %vm559 = vcmp.lt.s32.totalorder %v399, 0
      %vm560 = vcmp.lt.s32.totalorder %v406, 0
      %vm561 = vcmp.lt.s32.totalorder %v413, 0
      %vm562 = vcmp.lt.s32.totalorder %v420, 0
      %vm563 = vcmp.lt.s32.totalorder %v427, 0
      %vm564 = vcmp.lt.s32.totalorder %v434, 0
      %vm565 = vcmp.lt.s32.totalorder %v441, 0
      %vm566 = vcmp.lt.s32.totalorder %v448, 0
      %vm567 = vcmp.lt.s32.totalorder %v455, 0
      %vm568 = vcmp.lt.s32.totalorder %v462, 0
      %vm569 = vcmp.lt.s32.totalorder %v469, 0
      %vm570 = vcmp.lt.s32.totalorder %v476, 0
      %vm571 = vcmp.lt.s32.totalorder %v483, 0
      %vm572 = vcmp.lt.s32.totalorder %v490, 0
      %vm573 = vcmp.lt.s32.totalorder %v497, 0
      %vm574 = vcmp.lt.s32.totalorder %v504, 0
      %vm575 = vcmp.lt.s32.totalorder %v511, 0
      %vm576 = vmand %vm544, %vm512
      %vm577 = vmand %vm545, %vm513
      %vm578 = vmand %vm546, %vm514
      %vm579 = vmand %vm547, %vm515
      %vm580 = vmand %vm548, %vm516
      %vm581 = vmand %vm549, %vm517
      %vm582 = vmand %vm550, %vm518
      %vm583 = vmand %vm551, %vm519
      %vm584 = vmand %vm552, %vm520
      %vm585 = vmand %vm553, %vm521
      %vm586 = vmand %vm554, %vm522
      %vm587 = vmand %vm555, %vm523
      %vm588 = vmand %vm556, %vm524
      %vm589 = vmand %vm557, %vm525
      %vm590 = vmand %vm558, %vm526
      %vm591 = vmand %vm559, %vm527
      %vm592 = vmand %vm560, %vm528
      %vm593 = vmand %vm561, %vm529
      %vm594 = vmand %vm562, %vm530
      %vm595 = vmand %vm563, %vm531
      %vm596 = vmand %vm564, %vm532
      %vm597 = vmand %vm565, %vm533
      %vm598 = vmand %vm566, %vm534
      %vm599 = vmand %vm567, %vm535
      %vm600 = vmand %vm568, %vm536
      %vm601 = vmand %vm569, %vm537
      %vm602 = vmand %vm570, %vm538
      %vm603 = vmand %vm571, %vm539
      %vm604 = vmand %vm572, %vm540
      %vm605 = vmand %vm573, %vm541
      %vm606 = vmand %vm574, %vm542
      %vm607 = vmand %vm575, %vm543
      %v608 = vadd.s32 %v294, 16
      %v609 = vadd.s32 %v301, 16
      %v610 = vadd.s32 %v308, 16
      %v611 = vadd.s32 %v315, 16
      %v612 = vadd.s32 %v322, 16
      %v613 = vadd.s32 %v329, 16
      %v614 = vadd.s32 %v336, 16
      %v615 = vadd.s32 %v343, 16
      %v616 = vadd.s32 %v350, 16
      %v617 = vadd.s32 %v357, 16
      %v618 = vadd.s32 %v364, 16
      %v619 = vadd.s32 %v371, 16
      %v620 = vadd.s32 %v378, 16
      %v621 = vadd.s32 %v385, 16
      %v622 = vadd.s32 %v392, 16
      %v623 = vadd.s32 %v399, 16
      %v624 = vadd.s32 %v406, 16
      %v625 = vadd.s32 %v413, 16
      %v626 = vadd.s32 %v420, 16
      %v627 = vadd.s32 %v427, 16
      %v628 = vadd.s32 %v434, 16
      %v629 = vadd.s32 %v441, 16
      %v630 = vadd.s32 %v448, 16
      %v631 = vadd.s32 %v455, 16
      %v632 = vadd.s32 %v462, 16
      %v633 = vadd.s32 %v469, 16
      %v634 = vadd.s32 %v476, 16
      %v635 = vadd.s32 %v483, 16
      %v636 = vadd.s32 %v490, 16
      %v637 = vadd.s32 %v497, 16
      %v638 = vadd.s32 %v504, 16
      %v639 = vadd.s32 %v511, 16
      %v640 = vsel %vm576, %v608, %v294
      %v641 = vsel %vm577, %v609, %v301
      %v642 = vsel %vm578, %v610, %v308
      %v643 = vsel %vm579, %v611, %v315
      %v644 = vsel %vm580, %v612, %v322
      %v645 = vsel %vm581, %v613, %v329
      %v646 = vsel %vm582, %v614, %v336
      %v647 = vsel %vm583, %v615, %v343
      %v648 = vsel %vm584, %v616, %v350
      %v649 = vsel %vm585, %v617, %v357
      %v650 = vsel %vm586, %v618, %v364
      %v651 = vsel %vm587, %v619, %v371
      %v652 = vsel %vm588, %v620, %v378
      %v653 = vsel %vm589, %v621, %v385
      %v654 = vsel %vm590, %v622, %v392
      %v655 = vsel %vm591, %v623, %v399
      %v656 = vsel %vm592, %v624, %v406
      %v657 = vsel %vm593, %v625, %v413
      %v658 = vsel %vm594, %v626, %v420
      %v659 = vsel %vm595, %v627, %v427
      %v660 = vsel %vm596, %v628, %v434
      %v661 = vsel %vm597, %v629, %v441
      %v662 = vsel %vm598, %v630, %v448
      %v663 = vsel %vm599, %v631, %v455
      %v664 = vsel %vm600, %v632, %v462
      %v665 = vsel %vm601, %v633, %v469
      %v666 = vsel %vm602, %v634, %v476
      %v667 = vsel %vm603, %v635, %v483
      %v668 = vsel %vm604, %v636, %v490
      %v669 = vsel %vm605, %v637, %v497
      %v670 = vsel %vm606, %v638, %v504
      %v671 = vsel %vm607, %v639, %v511
      %vm672 = vcmp.eq.s32.totalorder %v640, 15
      %vm673 = vcmp.eq.s32.totalorder %v641, 15
      %vm674 = vcmp.eq.s32.totalorder %v642, 15
      %vm675 = vcmp.eq.s32.totalorder %v643, 15
      %vm676 = vcmp.eq.s32.totalorder %v644, 15
      %vm677 = vcmp.eq.s32.totalorder %v645, 15
      %vm678 = vcmp.eq.s32.totalorder %v646, 15
      %vm679 = vcmp.eq.s32.totalorder %v647, 15
      %vm680 = vcmp.eq.s32.totalorder %v648, 15
      %vm681 = vcmp.eq.s32.totalorder %v649, 15
      %vm682 = vcmp.eq.s32.totalorder %v650, 15
      %vm683 = vcmp.eq.s32.totalorder %v651, 15
      %vm684 = vcmp.eq.s32.totalorder %v652, 15
      %vm685 = vcmp.eq.s32.totalorder %v653, 15
      %vm686 = vcmp.eq.s32.totalorder %v654, 15
      %vm687 = vcmp.eq.s32.totalorder %v655, 15
      %vm688 = vcmp.eq.s32.totalorder %v656, 15
      %vm689 = vcmp.eq.s32.totalorder %v657, 15
      %vm690 = vcmp.eq.s32.totalorder %v658, 15
      %vm691 = vcmp.eq.s32.totalorder %v659, 15
      %vm692 = vcmp.eq.s32.totalorder %v660, 15
      %vm693 = vcmp.eq.s32.totalorder %v661, 15
      %vm694 = vcmp.eq.s32.totalorder %v662, 15
      %vm695 = vcmp.eq.s32.totalorder %v663, 15
      %vm696 = vcmp.eq.s32.totalorder %v664, 15
      %vm697 = vcmp.eq.s32.totalorder %v665, 15
      %vm698 = vcmp.eq.s32.totalorder %v666, 15
      %vm699 = vcmp.eq.s32.totalorder %v667, 15
      %vm700 = vcmp.eq.s32.totalorder %v668, 15
      %vm701 = vcmp.eq.s32.totalorder %v669, 15
      %vm702 = vcmp.eq.s32.totalorder %v670, 15
      %vm703 = vcmp.eq.s32.totalorder %v671, 15
      %v704 = vsel %vm672, 1, 0
      %v705 = vsel %vm673, 1, 0
      %v706 = vsel %vm674, 1, 0
      %v707 = vsel %vm675, 1, 0
      %v708 = vsel %vm676, 1, 0
      %v709 = vsel %vm677, 1, 0
      %v710 = vsel %vm678, 1, 0
      %v711 = vsel %vm679, 1, 0
      %v712 = vsel %vm680, 1, 0
      %v713 = vsel %vm681, 1, 0
      %v714 = vsel %vm682, 1, 0
      %v715 = vsel %vm683, 1, 0
      %v716 = vsel %vm684, 1, 0
      %v717 = vsel %vm685, 1, 0
      %v718 = vsel %vm686, 1, 0
      %v719 = vsel %vm687, 1, 0
      %v720 = vsel %vm688, 1, 0
      %v721 = vsel %vm689, 1, 0
      %v722 = vsel %vm690, 1, 0
      %v723 = vsel %vm691, 1, 0
      %v724 = vsel %vm692, 1, 0
      %v725 = vsel %vm693, 1, 0
      %v726 = vsel %vm694, 1, 0
      %v727 = vsel %vm695, 1, 0
      %v728 = vsel %vm696, 1, 0
      %v729 = vsel %vm697, 1, 0
      %v730 = vsel %vm698, 1, 0
      %v731 = vsel %vm699, 1, 0
      %v732 = vsel %vm700, 1, 0
      %v733 = vsel %vm701, 1, 0
      %v734 = vsel %vm702, 1, 0
      %v735 = vsel %vm703, 1, 0
      %vm736 = vcmp.eq.s32.totalorder %v704, 1
      %vm737 = vcmp.eq.s32.totalorder %v705, 1
      %vm738 = vcmp.eq.s32.totalorder %v706, 1
      %vm739 = vcmp.eq.s32.totalorder %v707, 1
      %vm740 = vcmp.eq.s32.totalorder %v708, 1
      %vm741 = vcmp.eq.s32.totalorder %v709, 1
      %vm742 = vcmp.eq.s32.totalorder %v710, 1
      %vm743 = vcmp.eq.s32.totalorder %v711, 1
      %vm744 = vcmp.eq.s32.totalorder %v712, 1
      %vm745 = vcmp.eq.s32.totalorder %v713, 1
      %vm746 = vcmp.eq.s32.totalorder %v714, 1
      %vm747 = vcmp.eq.s32.totalorder %v715, 1
      %vm748 = vcmp.eq.s32.totalorder %v716, 1
      %vm749 = vcmp.eq.s32.totalorder %v717, 1
      %vm750 = vcmp.eq.s32.totalorder %v718, 1
      %vm751 = vcmp.eq.s32.totalorder %v719, 1
      %vm752 = vcmp.eq.s32.totalorder %v720, 1
      %vm753 = vcmp.eq.s32.totalorder %v721, 1
      %vm754 = vcmp.eq.s32.totalorder %v722, 1
      %vm755 = vcmp.eq.s32.totalorder %v723, 1
      %vm756 = vcmp.eq.s32.totalorder %v724, 1
      %vm757 = vcmp.eq.s32.totalorder %v725, 1
      %vm758 = vcmp.eq.s32.totalorder %v726, 1
      %vm759 = vcmp.eq.s32.totalorder %v727, 1
      %vm760 = vcmp.eq.s32.totalorder %v728, 1
      %vm761 = vcmp.eq.s32.totalorder %v729, 1
      %vm762 = vcmp.eq.s32.totalorder %v730, 1
      %vm763 = vcmp.eq.s32.totalorder %v731, 1
      %vm764 = vcmp.eq.s32.totalorder %v732, 1
      %vm765 = vcmp.eq.s32.totalorder %v733, 1
      %vm766 = vcmp.eq.s32.totalorder %v734, 1
      %vm767 = vcmp.eq.s32.totalorder %v735, 1
      %vm768 = vmpackc.low %vm736, %vm736
      %vm769 = vmpackc.low %vm737, %vm737
      %vm770 = vmpackc.low %vm738, %vm738
      %vm771 = vmpackc.low %vm739, %vm739
      %vm772 = vmpackc.low %vm740, %vm740
      %vm773 = vmpackc.low %vm741, %vm741
      %vm774 = vmpackc.low %vm742, %vm742
      %vm775 = vmpackc.low %vm743, %vm743
      %vm776 = vmpackc.low %vm744, %vm744
      %vm777 = vmpackc.low %vm745, %vm745
      %vm778 = vmpackc.low %vm746, %vm746
      %vm779 = vmpackc.low %vm747, %vm747
      %vm780 = vmpackc.low %vm748, %vm748
      %vm781 = vmpackc.low %vm749, %vm749
      %vm782 = vmpackc.low %vm750, %vm750
      %vm783 = vmpackc.low %vm751, %vm751
      %vm784 = vmpackc.low %vm752, %vm752
      %vm785 = vmpackc.low %vm753, %vm753
      %vm786 = vmpackc.low %vm754, %vm754
      %vm787 = vmpackc.low %vm755, %vm755
      %vm788 = vmpackc.low %vm756, %vm756
      %vm789 = vmpackc.low %vm757, %vm757
      %vm790 = vmpackc.low %vm758, %vm758
      %vm791 = vmpackc.low %vm759, %vm759
      %vm792 = vmpackc.low %vm760, %vm760
      %vm793 = vmpackc.low %vm761, %vm761
      %vm794 = vmpackc.low %vm762, %vm762
      %vm795 = vmpackc.low %vm763, %vm763
      %vm796 = vmpackc.low %vm764, %vm764
      %vm797 = vmpackc.low %vm765, %vm765
      %vm798 = vmpackc.low %vm766, %vm766
      %vm799 = vmpackc.low %vm767, %vm767
      %v800 = vsel %vm768, 0, %v223
      %v801 = vsel %vm769, 0, %v224
      %v802 = vsel %vm770, 0, %v225
      %v803 = vsel %vm771, 0, %v226
      %v804 = vsel %vm772, 0, %v227
      %v805 = vsel %vm773, 0, %v228
      %v806 = vsel %vm774, 0, %v229
      %v807 = vsel %vm775, 0, %v230
      %v808 = vsel %vm776, 0, %v231
      %v809 = vsel %vm777, 0, %v232
      %v810 = vsel %vm778, 0, %v233
      %v811 = vsel %vm779, 0, %v234
      %v812 = vsel %vm780, 0, %v235
      %v813 = vsel %vm781, 0, %v236
      %v814 = vsel %vm782, 0, %v237
      %v815 = vsel %vm783, 0, %v238
      %v816 = vsel %vm784, 0, %v239
      %v817 = vsel %vm785, 0, %v240
      %v818 = vsel %vm786, 0, %v241
      %v819 = vsel %vm787, 0, %v242
      %v820 = vsel %vm788, 0, %v243
      %v821 = vsel %vm789, 0, %v244
      %v822 = vsel %vm790, 0, %v245
      %v823 = vsel %vm791, 0, %v246
      %v824 = vsel %vm792, 0, %v247
      %v825 = vsel %vm793, 0, %v248
      %v826 = vsel %vm794, 0, %v249
      %v827 = vsel %vm795, 0, %v250
      %v828 = vsel %vm796, 0, %v251
      %v829 = vsel %vm797, 0, %v252
      %v830 = vsel %vm798, 0, %v253
      %v831 = vsel %vm799, 0, %v254
      %vm832 = vcmp.eq.s32.totalorder %v640, 0
      %vm833 = vcmp.eq.s32.totalorder %v641, 0
      %vm834 = vcmp.eq.s32.totalorder %v642, 0
      %vm835 = vcmp.eq.s32.totalorder %v643, 0
      %vm836 = vcmp.eq.s32.totalorder %v644, 0
      %vm837 = vcmp.eq.s32.totalorder %v645, 0
      %vm838 = vcmp.eq.s32.totalorder %v646, 0
      %vm839 = vcmp.eq.s32.totalorder %v647, 0
      %vm840 = vcmp.eq.s32.totalorder %v648, 0
      %vm841 = vcmp.eq.s32.totalorder %v649, 0
      %vm842 = vcmp.eq.s32.totalorder %v650, 0
      %vm843 = vcmp.eq.s32.totalorder %v651, 0
      %vm844 = vcmp.eq.s32.totalorder %v652, 0
      %vm845 = vcmp.eq.s32.totalorder %v653, 0
      %vm846 = vcmp.eq.s32.totalorder %v654, 0
      %vm847 = vcmp.eq.s32.totalorder %v655, 0
      %vm848 = vcmp.eq.s32.totalorder %v656, 0
      %vm849 = vcmp.eq.s32.totalorder %v657, 0
      %vm850 = vcmp.eq.s32.totalorder %v658, 0
      %vm851 = vcmp.eq.s32.totalorder %v659, 0
      %vm852 = vcmp.eq.s32.totalorder %v660, 0
      %vm853 = vcmp.eq.s32.totalorder %v661, 0
      %vm854 = vcmp.eq.s32.totalorder %v662, 0
      %vm855 = vcmp.eq.s32.totalorder %v663, 0
      %vm856 = vcmp.eq.s32.totalorder %v664, 0
      %vm857 = vcmp.eq.s32.totalorder %v665, 0
      %vm858 = vcmp.eq.s32.totalorder %v666, 0
      %vm859 = vcmp.eq.s32.totalorder %v667, 0
      %vm860 = vcmp.eq.s32.totalorder %v668, 0
      %vm861 = vcmp.eq.s32.totalorder %v669, 0
      %vm862 = vcmp.eq.s32.totalorder %v670, 0
      %vm863 = vcmp.eq.s32.totalorder %v671, 0
      %v864 = vsel %vm832, 1, 0
      %v865 = vsel %vm833, 1, 0
      %v866 = vsel %vm834, 1, 0
      %v867 = vsel %vm835, 1, 0
      %v868 = vsel %vm836, 1, 0
      %v869 = vsel %vm837, 1, 0
      %v870 = vsel %vm838, 1, 0
      %v871 = vsel %vm839, 1, 0
      %v872 = vsel %vm840, 1, 0
      %v873 = vsel %vm841, 1, 0
      %v874 = vsel %vm842, 1, 0
      %v875 = vsel %vm843, 1, 0
      %v876 = vsel %vm844, 1, 0
      %v877 = vsel %vm845, 1, 0
      %v878 = vsel %vm846, 1, 0
      %v879 = vsel %vm847, 1, 0
      %v880 = vsel %vm848, 1, 0
      %v881 = vsel %vm849, 1, 0
      %v882 = vsel %vm850, 1, 0
      %v883 = vsel %vm851, 1, 0
      %v884 = vsel %vm852, 1, 0
      %v885 = vsel %vm853, 1, 0
      %v886 = vsel %vm854, 1, 0
      %v887 = vsel %vm855, 1, 0
      %v888 = vsel %vm856, 1, 0
      %v889 = vsel %vm857, 1, 0
      %v890 = vsel %vm858, 1, 0
      %v891 = vsel %vm859, 1, 0
      %v892 = vsel %vm860, 1, 0
      %v893 = vsel %vm861, 1, 0
      %v894 = vsel %vm862, 1, 0
      %v895 = vsel %vm863, 1, 0
      %vm896 = vcmp.eq.s32.totalorder %v864, 1
      %vm897 = vcmp.eq.s32.totalorder %v865, 1
      %vm898 = vcmp.eq.s32.totalorder %v866, 1
      %vm899 = vcmp.eq.s32.totalorder %v867, 1
      %vm900 = vcmp.eq.s32.totalorder %v868, 1
      %vm901 = vcmp.eq.s32.totalorder %v869, 1
      %vm902 = vcmp.eq.s32.totalorder %v870, 1
      %vm903 = vcmp.eq.s32.totalorder %v871, 1
      %vm904 = vcmp.eq.s32.totalorder %v872, 1
      %vm905 = vcmp.eq.s32.totalorder %v873, 1
      %vm906 = vcmp.eq.s32.totalorder %v874, 1
      %vm907 = vcmp.eq.s32.totalorder %v875, 1
      %vm908 = vcmp.eq.s32.totalorder %v876, 1
      %vm909 = vcmp.eq.s32.totalorder %v877, 1
      %vm910 = vcmp.eq.s32.totalorder %v878, 1
      %vm911 = vcmp.eq.s32.totalorder %v879, 1
      %vm912 = vcmp.eq.s32.totalorder %v880, 1
      %vm913 = vcmp.eq.s32.totalorder %v881, 1
      %vm914 = vcmp.eq.s32.totalorder %v882, 1
      %vm915 = vcmp.eq.s32.totalorder %v883, 1
      %vm916 = vcmp.eq.s32.totalorder %v884, 1
      %vm917 = vcmp.eq.s32.totalorder %v885, 1
      %vm918 = vcmp.eq.s32.totalorder %v886, 1
      %vm919 = vcmp.eq.s32.totalorder %v887, 1
      %vm920 = vcmp.eq.s32.totalorder %v888, 1
      %vm921 = vcmp.eq.s32.totalorder %v889, 1
      %vm922 = vcmp.eq.s32.totalorder %v890, 1
      %vm923 = vcmp.eq.s32.totalorder %v891, 1
      %vm924 = vcmp.eq.s32.totalorder %v892, 1
      %vm925 = vcmp.eq.s32.totalorder %v893, 1
      %vm926 = vcmp.eq.s32.totalorder %v894, 1
      %vm927 = vcmp.eq.s32.totalorder %v895, 1
      %vm928 = vmpackc.low %vm896, %vm896
      %vm929 = vmpackc.low %vm897, %vm897
      %vm930 = vmpackc.low %vm898, %vm898
      %vm931 = vmpackc.low %vm899, %vm899
      %vm932 = vmpackc.low %vm900, %vm900
      %vm933 = vmpackc.low %vm901, %vm901
      %vm934 = vmpackc.low %vm902, %vm902
      %vm935 = vmpackc.low %vm903, %vm903
      %vm936 = vmpackc.low %vm904, %vm904
      %vm937 = vmpackc.low %vm905, %vm905
      %vm938 = vmpackc.low %vm906, %vm906
      %vm939 = vmpackc.low %vm907, %vm907
      %vm940 = vmpackc.low %vm908, %vm908
      %vm941 = vmpackc.low %vm909, %vm909
      %vm942 = vmpackc.low %vm910, %vm910
      %vm943 = vmpackc.low %vm911, %vm911
      %vm944 = vmpackc.low %vm912, %vm912
      %vm945 = vmpackc.low %vm913, %vm913
      %vm946 = vmpackc.low %vm914, %vm914
      %vm947 = vmpackc.low %vm915, %vm915
      %vm948 = vmpackc.low %vm916, %vm916
      %vm949 = vmpackc.low %vm917, %vm917
      %vm950 = vmpackc.low %vm918, %vm918
      %vm951 = vmpackc.low %vm919, %vm919
      %vm952 = vmpackc.low %vm920, %vm920
      %vm953 = vmpackc.low %vm921, %vm921
      %vm954 = vmpackc.low %vm922, %vm922
      %vm955 = vmpackc.low %vm923, %vm923
      %vm956 = vmpackc.low %vm924, %vm924
      %vm957 = vmpackc.low %vm925, %vm925
      %vm958 = vmpackc.low %vm926, %vm926
      %vm959 = vmpackc.low %vm927, %vm927
      %v960 = vsel %vm928, 0, %v223
      %v961 = vsel %vm929, 0, %v224
      %v962 = vsel %vm930, 0, %v225
      %v963 = vsel %vm931, 0, %v226
      %v964 = vsel %vm932, 0, %v227
      %v965 = vsel %vm933, 0, %v228
      %v966 = vsel %vm934, 0, %v229
      %v967 = vsel %vm935, 0, %v230
      %v968 = vsel %vm936, 0, %v231
      %v969 = vsel %vm937, 0, %v232
      %v970 = vsel %vm938, 0, %v233
      %v971 = vsel %vm939, 0, %v234
      %v972 = vsel %vm940, 0, %v235
      %v973 = vsel %vm941, 0, %v236
      %v974 = vsel %vm942, 0, %v237
      %v975 = vsel %vm943, 0, %v238
      %v976 = vsel %vm944, 0, %v239
      %v977 = vsel %vm945, 0, %v240
      %v978 = vsel %vm946, 0, %v241
      %v979 = vsel %vm947, 0, %v242
      %v980 = vsel %vm948, 0, %v243
      %v981 = vsel %vm949, 0, %v244
      %v982 = vsel %vm950, 0, %v245
      %v983 = vsel %vm951, 0, %v246
      %v984 = vsel %vm952, 0, %v247
      %v985 = vsel %vm953, 0, %v248
      %v986 = vsel %vm954, 0, %v249
      %v987 = vsel %vm955, 0, %v250
      %v988 = vsel %vm956, 0, %v251
      %v989 = vsel %vm957, 0, %v252
      %v990 = vsel %vm958, 0, %v253
      %v991 = vsel %vm959, 0, %v254
      %v1022 = vunpack.c.l.b16 %v800
      %v1023 = vunpack.c.l.b16 %v801
      %v1024 = vunpack.c.l.b16 %v802
      %v1025 = vunpack.c.l.b16 %v803
      %v1026 = vunpack.c.l.b16 %v804
      %v1027 = vunpack.c.l.b16 %v805
      %v1028 = vunpack.c.l.b16 %v806
      %v1029 = vunpack.c.l.b16 %v807
      %v1030 = vunpack.c.l.b16 %v808
      %v1031 = vunpack.c.l.b16 %v809
      %v1032 = vunpack.c.l.b16 %v810
      %v1033 = vunpack.c.l.b16 %v811
      %v1034 = vunpack.c.l.b16 %v812
      %v1035 = vunpack.c.l.b16 %v813
      %v1036 = vunpack.c.l.b16 %v814
      %v1037 = vunpack.c.l.b16 %v815
      %v1038 = vunpack.c.l.b16 %v816
      %v1039 = vunpack.c.l.b16 %v817
      %v1040 = vunpack.c.l.b16 %v818
      %v1041 = vunpack.c.l.b16 %v819
      %v1042 = vunpack.c.l.b16 %v820
      %v1043 = vunpack.c.l.b16 %v821
      %v1044 = vunpack.c.l.b16 %v822
      %v1045 = vunpack.c.l.b16 %v823
      %v1046 = vunpack.c.l.b16 %v824
      %v1047 = vunpack.c.l.b16 %v825
      %v1048 = vunpack.c.l.b16 %v826
      %v1049 = vunpack.c.l.b16 %v827
      %v1050 = vunpack.c.l.b16 %v828
      %v1051 = vunpack.c.l.b16 %v829
      %v1052 = vpack.c.b16 %v1023, %v1022
      %v1053 = vpack.c.b16 %v1025, %v1024
      %v1054 = vpack.c.b16 %v1027, %v1026
      %v1055 = vpack.c.b16 %v1029, %v1028
      %v1056 = vpack.c.b16 %v1031, %v1030
      %v1057 = vpack.c.b16 %v1033, %v1032
      %v1058 = vpack.c.b16 %v1035, %v1034
      %v1059 = vpack.c.b16 %v1037, %v1036
      %v1060 = vpack.c.b16 %v1039, %v1038
      %v1061 = vpack.c.b16 %v1041, %v1040
      %v1062 = vpack.c.b16 %v1043, %v1042
      %v1063 = vpack.c.b16 %v1045, %v1044
      %v1064 = vpack.c.b16 %v1047, %v1046
      %v1065 = vpack.c.b16 %v1049, %v1048
      %v1066 = vpack.c.b16 %v1051, %v1050
      %vm1067 = vsmask.f32 256
      %v1069 = vshrl.u32 %v1052, 16
      %v1071 = vrot.slane %v1069, 7
      %v1072 = vshll.u32 %v1052, 16
      %v1074 = vor.u32 %v1071, %v1072
      %v1076 = vshrl.u32 %v1053, 16
      %v1078 = vrot.slane %v1076, 7
      %v1079 = vshll.u32 %v1053, 16
      %v1081 = vor.u32 %v1078, %v1079
      %v1082 = vsel %vm1067, %v1071, %v1081
      %v1084 = vshrl.u32 %v1054, 16
      %v1086 = vrot.slane %v1084, 7
      %v1087 = vshll.u32 %v1054, 16
      %v1089 = vor.u32 %v1086, %v1087
      %v1090 = vsel %vm1067, %v1078, %v1089
      %v1092 = vshrl.u32 %v1055, 16
      %v1094 = vrot.slane %v1092, 7
      %v1095 = vshll.u32 %v1055, 16
      %v1097 = vor.u32 %v1094, %v1095
      %v1098 = vsel %vm1067, %v1086, %v1097
      %v1100 = vshrl.u32 %v1056, 16
      %v1102 = vrot.slane %v1100, 7
      %v1103 = vshll.u32 %v1056, 16
      %v1105 = vor.u32 %v1102, %v1103
      %v1106 = vsel %vm1067, %v1094, %v1105
      %v1108 = vshrl.u32 %v1057, 16
      %v1110 = vrot.slane %v1108, 7
      %v1111 = vshll.u32 %v1057, 16
      %v1113 = vor.u32 %v1110, %v1111
      %v1114 = vsel %vm1067, %v1102, %v1113
      %v1116 = vshrl.u32 %v1058, 16
      %v1118 = vrot.slane %v1116, 7
      %v1119 = vshll.u32 %v1058, 16
      %v1121 = vor.u32 %v1118, %v1119
      %v1122 = vsel %vm1067, %v1110, %v1121
      %v1124 = vshrl.u32 %v1059, 16
      %v1126 = vrot.slane %v1124, 7
      %v1127 = vshll.u32 %v1059, 16
      %v1129 = vor.u32 %v1126, %v1127
      %v1130 = vsel %vm1067, %v1118, %v1129
      %v1132 = vshrl.u32 %v1060, 16
      %v1134 = vrot.slane %v1132, 7
      %v1135 = vshll.u32 %v1060, 16
      %v1137 = vor.u32 %v1134, %v1135
      %v1138 = vsel %vm1067, %v1126, %v1137
      %v1140 = vshrl.u32 %v1061, 16
      %v1142 = vrot.slane %v1140, 7
      %v1143 = vshll.u32 %v1061, 16
      %v1145 = vor.u32 %v1142, %v1143
      %v1146 = vsel %vm1067, %v1134, %v1145
      %v1148 = vshrl.u32 %v1062, 16
      %v1150 = vrot.slane %v1148, 7
      %v1151 = vshll.u32 %v1062, 16
      %v1153 = vor.u32 %v1150, %v1151
      %v1154 = vsel %vm1067, %v1142, %v1153
      %v1156 = vshrl.u32 %v1063, 16
      %v1158 = vrot.slane %v1156, 7
      %v1159 = vshll.u32 %v1063, 16
      %v1161 = vor.u32 %v1158, %v1159
      %v1162 = vsel %vm1067, %v1150, %v1161
      %v1164 = vshrl.u32 %v1064, 16
      %v1166 = vrot.slane %v1164, 7
      %v1167 = vshll.u32 %v1064, 16
      %v1169 = vor.u32 %v1166, %v1167
      %v1170 = vsel %vm1067, %v1158, %v1169
      %v1172 = vshrl.u32 %v1065, 16
      %v1174 = vrot.slane %v1172, 7
      %v1175 = vshll.u32 %v1065, 16
      %v1177 = vor.u32 %v1174, %v1175
      %v1178 = vsel %vm1067, %v1166, %v1177
      %v1180 = vshrl.u32 %v1066, 16
      %v1182 = vrot.slane %v1180, 7
      %v1183 = vshll.u32 %v1066, 16
      %v1185 = vor.u32 %v1182, %v1183
      %v1186 = vsel %vm1067, %v1174, %v1185
      %vm1202 = vcmask 1040384
      %vm1203 = vmand %vm1202, %vm1067
      %v1204 = vsel %vm1203, 0, %v1074
      %v1205 = vld [vmem:[%s1] sm:$0xf]
      %v1206 = vld [vmem:[%s1 + $0x4] sm:$0xf]
      %v1207 = vld [vmem:[%s1 + $0x8] sm:$0xf]
      %v1208 = vld [vmem:[%s1 + $0xc] sm:$0xf]
      %v1209 = vld [vmem:[%s1 + $0x10] sm:$0xf]
      %v1210 = vld [vmem:[%s1 + $0x14] sm:$0xf]
      %v1211 = vld [vmem:[%s1 + $0x18] sm:$0xf]
      %v1212 = vld [vmem:[%s1 + $0x1c] sm:$0xf]
      %v1213 = vld [vmem:[%s1 + $0x20] sm:$0xf]
      %v1214 = vld [vmem:[%s1 + $0x24] sm:$0xf]
      %v1215 = vld [vmem:[%s1 + $0x28] sm:$0xf]
      %v1216 = vld [vmem:[%s1 + $0x2c] sm:$0xf]
      %v1217 = vld [vmem:[%s1 + $0x30] sm:$0xf]
      %v1218 = vld [vmem:[%s1 + $0x34] sm:$0xf]
      %v1219 = vld [vmem:[%s1 + $0x38] sm:$0xf]
      %v1220 = vld [vmem:[%s1 + $0x3c] sm:$0xf]
      %v1251 = vunpack.c.l.b16 %v223
      %v1252 = vunpack.c.l.b16 %v224
      %v1253 = vunpack.c.l.b16 %v225
      %v1254 = vunpack.c.l.b16 %v226
      %v1255 = vunpack.c.l.b16 %v227
      %v1256 = vunpack.c.l.b16 %v228
      %v1257 = vunpack.c.l.b16 %v229
      %v1258 = vunpack.c.l.b16 %v230
      %v1259 = vunpack.c.l.b16 %v231
      %v1260 = vunpack.c.l.b16 %v232
      %v1261 = vunpack.c.l.b16 %v233
      %v1262 = vunpack.c.l.b16 %v234
      %v1263 = vunpack.c.l.b16 %v235
      %v1264 = vunpack.c.l.b16 %v236
      %v1265 = vunpack.c.l.b16 %v237
      %v1266 = vunpack.c.l.b16 %v238
      %v1267 = vunpack.c.l.b16 %v239
      %v1268 = vunpack.c.l.b16 %v240
      %v1269 = vunpack.c.l.b16 %v241
      %v1270 = vunpack.c.l.b16 %v242
      %v1271 = vunpack.c.l.b16 %v243
      %v1272 = vunpack.c.l.b16 %v244
      %v1273 = vunpack.c.l.b16 %v245
      %v1274 = vunpack.c.l.b16 %v246
      %v1275 = vunpack.c.l.b16 %v247
      %v1276 = vunpack.c.l.b16 %v248
      %v1277 = vunpack.c.l.b16 %v249
      %v1278 = vunpack.c.l.b16 %v250
      %v1279 = vunpack.c.l.b16 %v251
      %v1280 = vunpack.c.l.b16 %v252
      %v1281 = vpack.c.b16 %v1252, %v1251
      %v1282 = vpack.c.b16 %v1254, %v1253
      %v1283 = vpack.c.b16 %v1256, %v1255
      %v1284 = vpack.c.b16 %v1258, %v1257
      %v1285 = vpack.c.b16 %v1260, %v1259
      %v1286 = vpack.c.b16 %v1262, %v1261
      %v1287 = vpack.c.b16 %v1264, %v1263
      %v1288 = vpack.c.b16 %v1266, %v1265
      %v1289 = vpack.c.b16 %v1268, %v1267
      %v1290 = vpack.c.b16 %v1270, %v1269
      %v1291 = vpack.c.b16 %v1272, %v1271
      %v1292 = vpack.c.b16 %v1274, %v1273
      %v1293 = vpack.c.b16 %v1276, %v1275
      %v1294 = vpack.c.b16 %v1278, %v1277
      %v1295 = vpack.c.b16 %v1280, %v1279
      %s1311 = scalar_lea.vmem %s1, 64
      %v1312 = vld [vmem:[%s1311] sm:$0xf]
      %v1313 = vld [vmem:[%s1311 + $0x4] sm:$0xf]
      %v1314 = vld [vmem:[%s1311 + $0x8] sm:$0xf]
      %v1315 = vld [vmem:[%s1311 + $0xc] sm:$0xf]
      %v1316 = vld [vmem:[%s1311 + $0x10] sm:$0xf]
      %v1317 = vld [vmem:[%s1311 + $0x14] sm:$0xf]
      %v1318 = vld [vmem:[%s1311 + $0x18] sm:$0xf]
      %v1319 = vld [vmem:[%s1311 + $0x1c] sm:$0xf]
      %v1320 = vld [vmem:[%s1311 + $0x20] sm:$0xf]
      %v1321 = vld [vmem:[%s1311 + $0x24] sm:$0xf]
      %v1322 = vld [vmem:[%s1311 + $0x28] sm:$0xf]
      %v1323 = vld [vmem:[%s1311 + $0x2c] sm:$0xf]
      %v1324 = vld [vmem:[%s1311 + $0x30] sm:$0xf]
      %v1325 = vld [vmem:[%s1311 + $0x34] sm:$0xf]
      %v1326 = vld [vmem:[%s1311 + $0x38] sm:$0xf]
      %v1327 = vld [vmem:[%s1311 + $0x3c] sm:$0xf]
      %v1344 = vunpack.c.l.b16 %v1312
      %v1345 = vunpack.c.l.b16 %v1313
      %v1346 = vunpack.c.l.b16 %v1314
      %v1347 = vunpack.c.l.b16 %v1315
      %v1348 = vunpack.c.l.b16 %v1316
      %v1349 = vunpack.c.l.b16 %v1317
      %v1350 = vunpack.c.l.b16 %v1318
      %v1351 = vunpack.c.l.b16 %v1319
      %v1352 = vunpack.c.l.b16 %v1320
      %v1353 = vunpack.c.l.b16 %v1321
      %v1354 = vunpack.c.l.b16 %v1322
      %v1355 = vunpack.c.l.b16 %v1323
      %v1356 = vunpack.c.l.b16 %v1324
      %v1357 = vunpack.c.l.b16 %v1325
      %v1358 = vunpack.c.l.b16 %v1326
      %v1359 = vunpack.c.l.b16 %v1327
      %v1360 = vpack.c.b16 %v1345, %v1344
      %v1361 = vpack.c.b16 %v1347, %v1346
      %v1362 = vpack.c.b16 %v1349, %v1348
      %v1363 = vpack.c.b16 %v1351, %v1350
      %v1364 = vpack.c.b16 %v1353, %v1352
      %v1365 = vpack.c.b16 %v1355, %v1354
      %v1366 = vpack.c.b16 %v1357, %v1356
      %v1367 = vpack.c.b16 %v1359, %v1358
      %1376 = vmatprep.subr.bf16.mxu0 0
      %1377 = vmatpush1.bf16.msra.mxu0 %v1367
      %1378 = vmatprep.subr.bf16.mxu0 0
      %1379 = vmatpush1.bf16.msra.mxu0 %v1366
      %1380 = vmatprep.subr.bf16.mxu0 0
      %1381 = vmatpush1.bf16.msra.mxu0 %v1365
      %1382 = vmatprep.subr.bf16.mxu0 0
      %1383 = vmatpush1.bf16.msra.mxu0 %v1364
      %1384 = vmatprep.subr.bf16.mxu0 0
      %1385 = vmatpush1.bf16.msra.mxu0 %v1363
      %1386 = vmatprep.subr.bf16.mxu0 0
      %1387 = vmatpush1.bf16.msra.mxu0 %v1362
      %1388 = vmatprep.subr.bf16.mxu0 0
      %1389 = vmatpush1.bf16.msra.mxu0 %v1361
      %1390 = vmatprep.subr.bf16.mxu0 0
      %1391 = vmatpush1.bf16.msra.mxu0 %v1360
      %1392 = vmatprep.subr.bf16.mxu0 0
      %1393 = vmatpush2.bf16.msra.mxu0 0
      %1394 = vmatprep.subr.bf16.mxu0 0
      %1395 = vmatpush2.bf16.msra.mxu0 0
      %1396 = vmatprep.subr.bf16.mxu0 0
      %1397 = vmatpush2.bf16.msra.mxu0 0
      %1398 = vmatprep.subr.bf16.mxu0 0
      %1399 = vmatpush2.bf16.msra.mxu0 0
      %1400 = vmatprep.subr.bf16.mxu0 0
      %1401 = vmatpush2.bf16.msra.mxu0 0
      %1402 = vmatprep.subr.bf16.mxu0 0
      %1403 = vmatpush2.bf16.msra.mxu0 0
      %1404 = vmatprep.subr.bf16.mxu0 0
      %1405 = vmatpush2.bf16.msra.mxu0 0
      %1406 = vmatprep.subr.bf16.mxu0 0
      %1407 = vmatpush2.bf16.msra.mxu0 0
      %1408 = vmatprep.mubr.bf16.mxu0 0
      %1409 = vmatmul.mubr.bf16.gmra.mxu0 0
      %v1410 = vpop.f32.mrf.mxu0
      %v1411 = vadd.f32 0.0, %v1410
      %v1412 = vpop.f32.mrf.mxu0
      %v1413 = vpop.f32.mrf.mxu0
      %v1414 = vadd.f32 0.0, %v1413
      %v1415 = vpop.f32.mrf.mxu0
      %1416 = vmatprep.mubr.bf16.mxu0 0
      %1417 = vmatmul.mubr.bf16.gmra.mxu0 %v1281
      %v1418 = vpop.f32.mrf.mxu0
      %v1419 = vadd.f32 0.0, %v1418
      %v1420 = vpop.f32.mrf.mxu0
      %v1421 = vpop.f32.mrf.mxu0
      %v1422 = vadd.f32 0.0, %v1421
      %v1423 = vpop.f32.mrf.mxu0
      %1424 = vmatprep.mubr.bf16.mxu0 0
      %1425 = vmatmul.mubr.bf16.gmra.mxu0 %v1282
      %v1426 = vpop.f32.mrf.mxu0
      %v1427 = vadd.f32 0.0, %v1426
      %v1428 = vpop.f32.mrf.mxu0
      %v1429 = vpop.f32.mrf.mxu0
      %v1430 = vadd.f32 0.0, %v1429
      %v1431 = vpop.f32.mrf.mxu0
      %1432 = vmatprep.mubr.bf16.mxu0 0
      %1433 = vmatmul.mubr.bf16.gmra.mxu0 %v1283
      %v1434 = vpop.f32.mrf.mxu0
      %v1435 = vadd.f32 0.0, %v1434
      %v1436 = vpop.f32.mrf.mxu0
      %v1437 = vpop.f32.mrf.mxu0
      %v1438 = vadd.f32 0.0, %v1437
      %v1439 = vpop.f32.mrf.mxu0
      %1440 = vmatprep.mubr.bf16.mxu0 0
      %1441 = vmatmul.mubr.bf16.gmra.mxu0 %v1284
      %v1442 = vpop.f32.mrf.mxu0
      %v1443 = vadd.f32 0.0, %v1442
      %v1444 = vpop.f32.mrf.mxu0
      %v1445 = vpop.f32.mrf.mxu0
      %v1446 = vadd.f32 0.0, %v1445
      %v1447 = vpop.f32.mrf.mxu0
      %1448 = vmatprep.mubr.bf16.mxu0 0
      %1449 = vmatmul.mubr.bf16.gmra.mxu0 %v1285
      %v1450 = vpop.f32.mrf.mxu0
      %v1451 = vadd.f32 0.0, %v1450
      %v1452 = vpop.f32.mrf.mxu0
      %v1453 = vpop.f32.mrf.mxu0
      %v1454 = vadd.f32 0.0, %v1453
      %v1455 = vpop.f32.mrf.mxu0
      %1456 = vmatprep.mubr.bf16.mxu0 0
      %1457 = vmatmul.mubr.bf16.gmra.mxu0 %v1286
      %v1458 = vpop.f32.mrf.mxu0
      %v1459 = vadd.f32 0.0, %v1458
      %v1460 = vpop.f32.mrf.mxu0
      %v1461 = vpop.f32.mrf.mxu0
      %v1462 = vadd.f32 0.0, %v1461
      %v1463 = vpop.f32.mrf.mxu0
      %1464 = vmatprep.mubr.bf16.mxu0 0
      %1465 = vmatmul.mubr.bf16.gmra.mxu0 %v1287
      %v1466 = vpop.f32.mrf.mxu0
      %v1467 = vadd.f32 0.0, %v1466
      %v1468 = vpop.f32.mrf.mxu0
      %v1469 = vpop.f32.mrf.mxu0
      %v1470 = vadd.f32 0.0, %v1469
      %v1471 = vpop.f32.mrf.mxu0
      %1472 = vmatprep.mubr.bf16.mxu0 0
      %1473 = vmatmul.mubr.bf16.gmra.mxu0 %v1288
      %v1474 = vpop.f32.mrf.mxu0
      %v1475 = vadd.f32 0.0, %v1474
      %v1476 = vpop.f32.mrf.mxu0
      %v1477 = vpop.f32.mrf.mxu0
      %v1478 = vadd.f32 0.0, %v1477
      %v1479 = vpop.f32.mrf.mxu0
      %1480 = vmatprep.mubr.bf16.mxu0 0
      %1481 = vmatmul.mubr.bf16.gmra.mxu0 %v1289
      %v1482 = vpop.f32.mrf.mxu0
      %v1483 = vadd.f32 0.0, %v1482
      %v1484 = vpop.f32.mrf.mxu0
      %v1485 = vpop.f32.mrf.mxu0
      %v1486 = vadd.f32 0.0, %v1485
      %v1487 = vpop.f32.mrf.mxu0
      %1488 = vmatprep.mubr.bf16.mxu0 0
      %1489 = vmatmul.mubr.bf16.gmra.mxu0 %v1290
      %v1490 = vpop.f32.mrf.mxu0
      %v1491 = vadd.f32 0.0, %v1490
      %v1492 = vpop.f32.mrf.mxu0
      %v1493 = vpop.f32.mrf.mxu0
      %v1494 = vadd.f32 0.0, %v1493
      %v1495 = vpop.f32.mrf.mxu0
      %1496 = vmatprep.mubr.bf16.mxu0 0
      %1497 = vmatmul.mubr.bf16.gmra.mxu0 %v1291
      %v1498 = vpop.f32.mrf.mxu0
      %v1499 = vadd.f32 0.0, %v1498
      %v1500 = vpop.f32.mrf.mxu0
      %v1501 = vpop.f32.mrf.mxu0
      %v1502 = vadd.f32 0.0, %v1501
      %v1503 = vpop.f32.mrf.mxu0
      %1504 = vmatprep.mubr.bf16.mxu0 0
      %1505 = vmatmul.mubr.bf16.gmra.mxu0 %v1292
      %v1506 = vpop.f32.mrf.mxu0
      %v1507 = vadd.f32 0.0, %v1506
      %v1508 = vpop.f32.mrf.mxu0
      %v1509 = vpop.f32.mrf.mxu0
      %v1510 = vadd.f32 0.0, %v1509
      %v1511 = vpop.f32.mrf.mxu0
      %1512 = vmatprep.mubr.bf16.mxu0 0
      %1513 = vmatmul.mubr.bf16.gmra.mxu0 %v1293
      %v1514 = vpop.f32.mrf.mxu0
      %v1515 = vadd.f32 0.0, %v1514
      %v1516 = vpop.f32.mrf.mxu0
      %v1517 = vpop.f32.mrf.mxu0
      %v1518 = vadd.f32 0.0, %v1517
      %v1519 = vpop.f32.mrf.mxu0
      %1520 = vmatprep.mubr.bf16.mxu0 0
      %1521 = vmatmul.mubr.bf16.gmra.mxu0 %v1294
      %v1522 = vpop.f32.mrf.mxu0
      %v1523 = vadd.f32 0.0, %v1522
      %v1524 = vpop.f32.mrf.mxu0
      %v1525 = vpop.f32.mrf.mxu0
      %v1526 = vadd.f32 0.0, %v1525
      %v1527 = vpop.f32.mrf.mxu0
      %1528 = vmatprep.mubr.bf16.mxu0 0
      %1529 = vmatmul.mubr.bf16.gmra.mxu0 %v1295
      %v1530 = vpop.f32.mrf.mxu0
      %v1531 = vadd.f32 0.0, %v1530
      %v1532 = vpop.f32.mrf.mxu0
      %v1533 = vpop.f32.mrf.mxu0
      %v1534 = vadd.f32 0.0, %v1533
      %v1535 = vpop.f32.mrf.mxu0
      %1536 = vdwg.mxu0
      %v1553 = vunpack.c.l.b16 %v1205
      %v1554 = vunpack.c.l.b16 %v1206
      %v1555 = vunpack.c.l.b16 %v1207
      %v1556 = vunpack.c.l.b16 %v1208
      %v1557 = vunpack.c.l.b16 %v1209
      %v1558 = vunpack.c.l.b16 %v1210
      %v1559 = vunpack.c.l.b16 %v1211
      %v1560 = vunpack.c.l.b16 %v1212
      %v1561 = vunpack.c.l.b16 %v1213
      %v1562 = vunpack.c.l.b16 %v1214
      %v1563 = vunpack.c.l.b16 %v1215
      %v1564 = vunpack.c.l.b16 %v1216
      %v1565 = vunpack.c.l.b16 %v1217
      %v1566 = vunpack.c.l.b16 %v1218
      %v1567 = vunpack.c.l.b16 %v1219
      %v1568 = vunpack.c.l.b16 %v1220
      %v1569 = vpack.c.b16 %v1554, %v1553
      %v1570 = vpack.c.b16 %v1556, %v1555
      %v1571 = vpack.c.b16 %v1558, %v1557
      %v1572 = vpack.c.b16 %v1560, %v1559
      %v1573 = vpack.c.b16 %v1562, %v1561
      %v1574 = vpack.c.b16 %v1564, %v1563
      %v1575 = vpack.c.b16 %v1566, %v1565
      %v1576 = vpack.c.b16 %v1568, %v1567
      %1585 = vmatprep.subr.bf16.mxu0 0
      %1586 = vmatpush1.bf16.msra.mxu0 %v1576
      %1587 = vmatprep.subr.bf16.mxu0 0
      %1588 = vmatpush1.bf16.msra.mxu0 %v1575
      %1589 = vmatprep.subr.bf16.mxu0 0
      %1590 = vmatpush1.bf16.msra.mxu0 %v1574
      %1591 = vmatprep.subr.bf16.mxu0 0
      %1592 = vmatpush1.bf16.msra.mxu0 %v1573
      %1593 = vmatprep.subr.bf16.mxu0 0
      %1594 = vmatpush1.bf16.msra.mxu0 %v1572
      %1595 = vmatprep.subr.bf16.mxu0 0
      %1596 = vmatpush1.bf16.msra.mxu0 %v1571
      %1597 = vmatprep.subr.bf16.mxu0 0
      %1598 = vmatpush1.bf16.msra.mxu0 %v1570
      %1599 = vmatprep.subr.bf16.mxu0 0
      %1600 = vmatpush1.bf16.msra.mxu0 %v1569
      %1601 = vmatprep.subr.bf16.mxu0 0
      %1602 = vmatpush2.bf16.msra.mxu0 0
      %1603 = vmatprep.subr.bf16.mxu0 0
      %1604 = vmatpush2.bf16.msra.mxu0 0
      %1605 = vmatprep.subr.bf16.mxu0 0
      %1606 = vmatpush2.bf16.msra.mxu0 0
      %1607 = vmatprep.subr.bf16.mxu0 0
      %1608 = vmatpush2.bf16.msra.mxu0 0
      %1609 = vmatprep.subr.bf16.mxu0 0
      %1610 = vmatpush2.bf16.msra.mxu0 0
      %1611 = vmatprep.subr.bf16.mxu0 0
      %1612 = vmatpush2.bf16.msra.mxu0 0
      %1613 = vmatprep.subr.bf16.mxu0 0
      %1614 = vmatpush2.bf16.msra.mxu0 0
      %1615 = vmatprep.subr.bf16.mxu0 0
      %1616 = vmatpush2.bf16.msra.mxu0 0
      %1617 = vmatprep.mubr.bf16.mxu0 0
      %1618 = vmatmul.mubr.bf16.gmra.mxu0 0
      %v1619 = vpop.f32.mrf.mxu0
      %v1620 = vadd.f32 %v1411, %v1619
      %v1621 = vpop.f32.mrf.mxu0
      %v1622 = vpop.f32.mrf.mxu0
      %v1623 = vadd.f32 %v1414, %v1622
      %v1624 = vpop.f32.mrf.mxu0
      %1625 = vmatprep.mubr.bf16.mxu0 0
      %1626 = vmatmul.mubr.bf16.gmra.mxu0 %v1204
      %v1627 = vpop.f32.mrf.mxu0
      %v1628 = vadd.f32 %v1419, %v1627
      %v1629 = vpop.f32.mrf.mxu0
      %v1630 = vpop.f32.mrf.mxu0
      %v1631 = vadd.f32 %v1422, %v1630
      %v1632 = vpop.f32.mrf.mxu0
      %1633 = vmatprep.mubr.bf16.mxu0 0
      %1634 = vmatmul.mubr.bf16.gmra.mxu0 %v1082
      %v1635 = vpop.f32.mrf.mxu0
      %v1636 = vadd.f32 %v1427, %v1635
      %v1637 = vpop.f32.mrf.mxu0
      %v1638 = vpop.f32.mrf.mxu0
      %v1639 = vadd.f32 %v1430, %v1638
      %v1640 = vpop.f32.mrf.mxu0
      %1641 = vmatprep.mubr.bf16.mxu0 0
      %1642 = vmatmul.mubr.bf16.gmra.mxu0 %v1090
      %v1643 = vpop.f32.mrf.mxu0
      %v1644 = vadd.f32 %v1435, %v1643
      %v1645 = vpop.f32.mrf.mxu0
      %v1646 = vpop.f32.mrf.mxu0
      %v1647 = vadd.f32 %v1438, %v1646
      %v1648 = vpop.f32.mrf.mxu0
      %1649 = vmatprep.mubr.bf16.mxu0 0
      %1650 = vmatmul.mubr.bf16.gmra.mxu0 %v1098
      %v1651 = vpop.f32.mrf.mxu0
      %v1652 = vadd.f32 %v1443, %v1651
      %v1653 = vpop.f32.mrf.mxu0
      %v1654 = vpop.f32.mrf.mxu0
      %v1655 = vadd.f32 %v1446, %v1654
      %v1656 = vpop.f32.mrf.mxu0
      %1657 = vmatprep.mubr.bf16.mxu0 0
      %1658 = vmatmul.mubr.bf16.gmra.mxu0 %v1106
      %v1659 = vpop.f32.mrf.mxu0
      %v1660 = vadd.f32 %v1451, %v1659
      %v1661 = vpop.f32.mrf.mxu0
      %v1662 = vpop.f32.mrf.mxu0
      %v1663 = vadd.f32 %v1454, %v1662
      %v1664 = vpop.f32.mrf.mxu0
      %1665 = vmatprep.mubr.bf16.mxu0 0
      %1666 = vmatmul.mubr.bf16.gmra.mxu0 %v1114
      %v1667 = vpop.f32.mrf.mxu0
      %v1668 = vadd.f32 %v1459, %v1667
      %v1669 = vpop.f32.mrf.mxu0
      %v1670 = vpop.f32.mrf.mxu0
      %v1671 = vadd.f32 %v1462, %v1670
      %v1672 = vpop.f32.mrf.mxu0
      %1673 = vmatprep.mubr.bf16.mxu0 0
      %1674 = vmatmul.mubr.bf16.gmra.mxu0 %v1122
      %v1675 = vpop.f32.mrf.mxu0
      %v1676 = vadd.f32 %v1467, %v1675
      %v1677 = vpop.f32.mrf.mxu0
      %v1678 = vpop.f32.mrf.mxu0
      %v1679 = vadd.f32 %v1470, %v1678
      %v1680 = vpop.f32.mrf.mxu0
      %1681 = vmatprep.mubr.bf16.mxu0 0
      %1682 = vmatmul.mubr.bf16.gmra.mxu0 %v1130
      %v1683 = vpop.f32.mrf.mxu0
      %v1684 = vadd.f32 %v1475, %v1683
      %v1685 = vpop.f32.mrf.mxu0
      %v1686 = vpop.f32.mrf.mxu0
      %v1687 = vadd.f32 %v1478, %v1686
      %v1688 = vpop.f32.mrf.mxu0
      %1689 = vmatprep.mubr.bf16.mxu0 0
      %1690 = vmatmul.mubr.bf16.gmra.mxu0 %v1138
      %v1691 = vpop.f32.mrf.mxu0
      %v1692 = vadd.f32 %v1483, %v1691
      %v1693 = vpop.f32.mrf.mxu0
      %v1694 = vpop.f32.mrf.mxu0
      %v1695 = vadd.f32 %v1486, %v1694
      %v1696 = vpop.f32.mrf.mxu0
      %1697 = vmatprep.mubr.bf16.mxu0 0
      %1698 = vmatmul.mubr.bf16.gmra.mxu0 %v1146
      %v1699 = vpop.f32.mrf.mxu0
      %v1700 = vadd.f32 %v1491, %v1699
      %v1701 = vpop.f32.mrf.mxu0
      %v1702 = vpop.f32.mrf.mxu0
      %v1703 = vadd.f32 %v1494, %v1702
      %v1704 = vpop.f32.mrf.mxu0
      %1705 = vmatprep.mubr.bf16.mxu0 0
      %1706 = vmatmul.mubr.bf16.gmra.mxu0 %v1154
      %v1707 = vpop.f32.mrf.mxu0
      %v1708 = vadd.f32 %v1499, %v1707
      %v1709 = vpop.f32.mrf.mxu0
      %v1710 = vpop.f32.mrf.mxu0
      %v1711 = vadd.f32 %v1502, %v1710
      %v1712 = vpop.f32.mrf.mxu0
      %1713 = vmatprep.mubr.bf16.mxu0 0
      %1714 = vmatmul.mubr.bf16.gmra.mxu0 %v1162
      %v1715 = vpop.f32.mrf.mxu0
      %v1716 = vadd.f32 %v1507, %v1715
      %v1717 = vpop.f32.mrf.mxu0
      %v1718 = vpop.f32.mrf.mxu0
      %v1719 = vadd.f32 %v1510, %v1718
      %v1720 = vpop.f32.mrf.mxu0
      %1721 = vmatprep.mubr.bf16.mxu0 0
      %1722 = vmatmul.mubr.bf16.gmra.mxu0 %v1170
      %v1723 = vpop.f32.mrf.mxu0
      %v1724 = vadd.f32 %v1515, %v1723
      %v1725 = vpop.f32.mrf.mxu0
      %v1726 = vpop.f32.mrf.mxu0
      %v1727 = vadd.f32 %v1518, %v1726
      %v1728 = vpop.f32.mrf.mxu0
      %1729 = vmatprep.mubr.bf16.mxu0 0
      %1730 = vmatmul.mubr.bf16.gmra.mxu0 %v1178
      %v1731 = vpop.f32.mrf.mxu0
      %v1732 = vadd.f32 %v1523, %v1731
      %v1733 = vpop.f32.mrf.mxu0
      %v1734 = vpop.f32.mrf.mxu0
      %v1735 = vadd.f32 %v1526, %v1734
      %v1736 = vpop.f32.mrf.mxu0
      %1737 = vmatprep.mubr.bf16.mxu0 0
      %1738 = vmatmul.mubr.bf16.gmra.mxu0 %v1186
      %v1739 = vpop.f32.mrf.mxu0
      %v1740 = vadd.f32 %v1531, %v1739
      %v1741 = vpop.f32.mrf.mxu0
      %v1742 = vpop.f32.mrf.mxu0
      %v1743 = vadd.f32 %v1534, %v1742
      %v1744 = vpop.f32.mrf.mxu0
      %1745 = vdwg.mxu0
      %v1777 = vunpack.c.l.b16 %v960
      %v1778 = vunpack.c.l.b16 %v961
      %v1779 = vunpack.c.l.b16 %v962
      %v1780 = vunpack.c.l.b16 %v963
      %v1781 = vunpack.c.l.b16 %v964
      %v1782 = vunpack.c.l.b16 %v965
      %v1783 = vunpack.c.l.b16 %v966
      %v1784 = vunpack.c.l.b16 %v967
      %v1785 = vunpack.c.l.b16 %v968
      %v1786 = vunpack.c.l.b16 %v969
      %v1787 = vunpack.c.l.b16 %v970
      %v1788 = vunpack.c.l.b16 %v971
      %v1789 = vunpack.c.l.b16 %v972
      %v1790 = vunpack.c.l.b16 %v973
      %v1791 = vunpack.c.l.b16 %v974
      %v1792 = vunpack.c.l.b16 %v975
      %v1793 = vunpack.c.l.b16 %v976
      %v1794 = vunpack.c.l.b16 %v977
      %v1795 = vunpack.c.l.b16 %v978
      %v1796 = vunpack.c.l.b16 %v979
      %v1797 = vunpack.c.l.b16 %v980
      %v1798 = vunpack.c.l.b16 %v981
      %v1799 = vunpack.c.l.b16 %v982
      %v1800 = vunpack.c.l.b16 %v983
      %v1801 = vunpack.c.l.b16 %v984
      %v1802 = vunpack.c.l.b16 %v985
      %v1803 = vunpack.c.l.b16 %v986
      %v1804 = vunpack.c.l.b16 %v987
      %v1805 = vunpack.c.l.b16 %v988
      %v1806 = vunpack.c.l.b16 %v989
      %v1807 = vunpack.c.l.b16 %v990
      %v1808 = vpack.c.b16 %v1778, %v1777
      %v1809 = vpack.c.b16 %v1780, %v1779
      %v1810 = vpack.c.b16 %v1782, %v1781
      %v1811 = vpack.c.b16 %v1784, %v1783
      %v1812 = vpack.c.b16 %v1786, %v1785
      %v1813 = vpack.c.b16 %v1788, %v1787
      %v1814 = vpack.c.b16 %v1790, %v1789
      %v1815 = vpack.c.b16 %v1792, %v1791
      %v1816 = vpack.c.b16 %v1794, %v1793
      %v1817 = vpack.c.b16 %v1796, %v1795
      %v1818 = vpack.c.b16 %v1798, %v1797
      %v1819 = vpack.c.b16 %v1800, %v1799
      %v1820 = vpack.c.b16 %v1802, %v1801
      %v1821 = vpack.c.b16 %v1804, %v1803
      %v1822 = vpack.c.b16 %v1806, %v1805
      %v1823 = vpack.c.b16 %v1807, %v1807
      %vm1824 = vsmask.f32 7424
      %v1826 = vshll.u32 %v1808, 16
      %v1828 = vrot.slane %v1826, 1
      %v1829 = vshrl.u32 %v1808, 16
      %v1831 = vor.u32 %v1829, %v1828
      %v1833 = vshll.u32 %v1809, 16
      %v1835 = vrot.slane %v1833, 1
      %v1836 = vsel %vm1824, %v1831, %v1835
      %v1837 = vshrl.u32 %v1809, 16
      %v1839 = vor.u32 %v1837, %v1835
      %v1841 = vshll.u32 %v1810, 16
      %v1843 = vrot.slane %v1841, 1
      %v1844 = vsel %vm1824, %v1839, %v1843
      %v1845 = vshrl.u32 %v1810, 16
      %v1847 = vor.u32 %v1845, %v1843
      %v1849 = vshll.u32 %v1811, 16
      %v1851 = vrot.slane %v1849, 1
      %v1852 = vsel %vm1824, %v1847, %v1851
      %v1853 = vshrl.u32 %v1811, 16
      %v1855 = vor.u32 %v1853, %v1851
      %v1857 = vshll.u32 %v1812, 16
      %v1859 = vrot.slane %v1857, 1
      %v1860 = vsel %vm1824, %v1855, %v1859
      %v1861 = vshrl.u32 %v1812, 16
      %v1863 = vor.u32 %v1861, %v1859
      %v1865 = vshll.u32 %v1813, 16
      %v1867 = vrot.slane %v1865, 1
      %v1868 = vsel %vm1824, %v1863, %v1867
      %v1869 = vshrl.u32 %v1813, 16
      %v1871 = vor.u32 %v1869, %v1867
      %v1873 = vshll.u32 %v1814, 16
      %v1875 = vrot.slane %v1873, 1
      %v1876 = vsel %vm1824, %v1871, %v1875
      %v1877 = vshrl.u32 %v1814, 16
      %v1879 = vor.u32 %v1877, %v1875
      %v1881 = vshll.u32 %v1815, 16
      %v1883 = vrot.slane %v1881, 1
      %v1884 = vsel %vm1824, %v1879, %v1883
      %v1885 = vshrl.u32 %v1815, 16
      %v1887 = vor.u32 %v1885, %v1883
      %v1889 = vshll.u32 %v1816, 16
      %v1891 = vrot.slane %v1889, 1
      %v1892 = vsel %vm1824, %v1887, %v1891
      %v1893 = vshrl.u32 %v1816, 16
      %v1895 = vor.u32 %v1893, %v1891
      %v1897 = vshll.u32 %v1817, 16
      %v1899 = vrot.slane %v1897, 1
      %v1900 = vsel %vm1824, %v1895, %v1899
      %v1901 = vshrl.u32 %v1817, 16
      %v1903 = vor.u32 %v1901, %v1899
      %v1905 = vshll.u32 %v1818, 16
      %v1907 = vrot.slane %v1905, 1
      %v1908 = vsel %vm1824, %v1903, %v1907
      %v1909 = vshrl.u32 %v1818, 16
      %v1911 = vor.u32 %v1909, %v1907
      %v1913 = vshll.u32 %v1819, 16
      %v1915 = vrot.slane %v1913, 1
      %v1916 = vsel %vm1824, %v1911, %v1915
      %v1917 = vshrl.u32 %v1819, 16
      %v1919 = vor.u32 %v1917, %v1915
      %v1921 = vshll.u32 %v1820, 16
      %v1923 = vrot.slane %v1921, 1
      %v1924 = vsel %vm1824, %v1919, %v1923
      %v1925 = vshrl.u32 %v1820, 16
      %v1927 = vor.u32 %v1925, %v1923
      %v1929 = vshll.u32 %v1821, 16
      %v1931 = vrot.slane %v1929, 1
      %v1932 = vsel %vm1824, %v1927, %v1931
      %v1933 = vshrl.u32 %v1821, 16
      %v1935 = vor.u32 %v1933, %v1931
      %v1937 = vshll.u32 %v1822, 16
      %v1939 = vrot.slane %v1937, 1
      %v1940 = vsel %vm1824, %v1935, %v1939
      %v1941 = vshrl.u32 %v1822, 16
      %v1943 = vor.u32 %v1941, %v1939
      %v1945 = vshll.u32 %v1823, 16
      %v1947 = vrot.slane %v1945, 1
      %v1948 = vsel %vm1824, %v1943, %v1947
      %vm1965 = vcmask 1047552
      %vm1966 = vmand %vm1965, %vm1824
      %v1967 = vsel %vm1966, 0, %v1828
      %s1968 = scalar_lea.vmem %s1, 128
      %v1969 = vld [vmem:[%s1968] sm:$0xf]
      %v1970 = vld [vmem:[%s1968 + $0x4] sm:$0xf]
      %v1971 = vld [vmem:[%s1968 + $0x8] sm:$0xf]
      %v1972 = vld [vmem:[%s1968 + $0xc] sm:$0xf]
      %v1973 = vld [vmem:[%s1968 + $0x10] sm:$0xf]
      %v1974 = vld [vmem:[%s1968 + $0x14] sm:$0xf]
      %v1975 = vld [vmem:[%s1968 + $0x18] sm:$0xf]
      %v1976 = vld [vmem:[%s1968 + $0x1c] sm:$0xf]
      %v1977 = vld [vmem:[%s1968 + $0x20] sm:$0xf]
      %v1978 = vld [vmem:[%s1968 + $0x24] sm:$0xf]
      %v1979 = vld [vmem:[%s1968 + $0x28] sm:$0xf]
      %v1980 = vld [vmem:[%s1968 + $0x2c] sm:$0xf]
      %v1981 = vld [vmem:[%s1968 + $0x30] sm:$0xf]
      %v1982 = vld [vmem:[%s1968 + $0x34] sm:$0xf]
      %v1983 = vld [vmem:[%s1968 + $0x38] sm:$0xf]
      %v1984 = vld [vmem:[%s1968 + $0x3c] sm:$0xf]
      %v2001 = vunpack.c.l.b16 %v1969
      %v2002 = vunpack.c.l.b16 %v1970
      %v2003 = vunpack.c.l.b16 %v1971
      %v2004 = vunpack.c.l.b16 %v1972
      %v2005 = vunpack.c.l.b16 %v1973
      %v2006 = vunpack.c.l.b16 %v1974
      %v2007 = vunpack.c.l.b16 %v1975
      %v2008 = vunpack.c.l.b16 %v1976
      %v2009 = vunpack.c.l.b16 %v1977
      %v2010 = vunpack.c.l.b16 %v1978
      %v2011 = vunpack.c.l.b16 %v1979
      %v2012 = vunpack.c.l.b16 %v1980
      %v2013 = vunpack.c.l.b16 %v1981
      %v2014 = vunpack.c.l.b16 %v1982
      %v2015 = vunpack.c.l.b16 %v1983
      %v2016 = vunpack.c.l.b16 %v1984
      %v2017 = vpack.c.b16 %v2002, %v2001
      %v2018 = vpack.c.b16 %v2004, %v2003
      %v2019 = vpack.c.b16 %v2006, %v2005
      %v2020 = vpack.c.b16 %v2008, %v2007
      %v2021 = vpack.c.b16 %v2010, %v2009
      %v2022 = vpack.c.b16 %v2012, %v2011
      %v2023 = vpack.c.b16 %v2014, %v2013
      %v2024 = vpack.c.b16 %v2016, %v2015
      %2033 = vmatprep.subr.bf16.mxu0 0
      %2034 = vmatpush1.bf16.msra.mxu0 %v2024
      %2035 = vmatprep.subr.bf16.mxu0 0
      %2036 = vmatpush1.bf16.msra.mxu0 %v2023
      %2037 = vmatprep.subr.bf16.mxu0 0
      %2038 = vmatpush1.bf16.msra.mxu0 %v2022
      %2039 = vmatprep.subr.bf16.mxu0 0
      %2040 = vmatpush1.bf16.msra.mxu0 %v2021
      %2041 = vmatprep.subr.bf16.mxu0 0
      %2042 = vmatpush1.bf16.msra.mxu0 %v2020
      %2043 = vmatprep.subr.bf16.mxu0 0
      %2044 = vmatpush1.bf16.msra.mxu0 %v2019
      %2045 = vmatprep.subr.bf16.mxu0 0
      %2046 = vmatpush1.bf16.msra.mxu0 %v2018
      %2047 = vmatprep.subr.bf16.mxu0 0
      %2048 = vmatpush1.bf16.msra.mxu0 %v2017
      %2049 = vmatprep.subr.bf16.mxu0 0
      %2050 = vmatpush2.bf16.msra.mxu0 0
      %2051 = vmatprep.subr.bf16.mxu0 0
      %2052 = vmatpush2.bf16.msra.mxu0 0
      %2053 = vmatprep.subr.bf16.mxu0 0
      %2054 = vmatpush2.bf16.msra.mxu0 0
      %2055 = vmatprep.subr.bf16.mxu0 0
      %2056 = vmatpush2.bf16.msra.mxu0 0
      %2057 = vmatprep.subr.bf16.mxu0 0
      %2058 = vmatpush2.bf16.msra.mxu0 0
      %2059 = vmatprep.subr.bf16.mxu0 0
      %2060 = vmatpush2.bf16.msra.mxu0 0
      %2061 = vmatprep.subr.bf16.mxu0 0
      %2062 = vmatpush2.bf16.msra.mxu0 0
      %2063 = vmatprep.subr.bf16.mxu0 0
      %2064 = vmatpush2.bf16.msra.mxu0 0
      %2065 = vmatprep.mubr.bf16.mxu0 0
      %2066 = vmatmul.mubr.bf16.gmra.mxu0 %v1967
      %v2067 = vpop.f32.mrf.mxu0
      %v2068 = vadd.f32 0.0, %v2067
      %v2069 = vpop.f32.mrf.mxu0
      %v2070 = vpop.f32.mrf.mxu0
      %v2071 = vadd.f32 0.0, %v2070
      %v2072 = vpop.f32.mrf.mxu0
      %2073 = vmatprep.mubr.bf16.mxu0 0
      %2074 = vmatmul.mubr.bf16.gmra.mxu0 %v1836
      %v2075 = vpop.f32.mrf.mxu0
      %v2076 = vadd.f32 0.0, %v2075
      %v2077 = vpop.f32.mrf.mxu0
      %v2078 = vpop.f32.mrf.mxu0
      %v2079 = vadd.f32 0.0, %v2078
      %v2080 = vpop.f32.mrf.mxu0
      %2081 = vmatprep.mubr.bf16.mxu0 0
      %2082 = vmatmul.mubr.bf16.gmra.mxu0 %v1844
      %v2083 = vpop.f32.mrf.mxu0
      %v2084 = vadd.f32 0.0, %v2083
      %v2085 = vpop.f32.mrf.mxu0
      %v2086 = vpop.f32.mrf.mxu0
      %v2087 = vadd.f32 0.0, %v2086
      %v2088 = vpop.f32.mrf.mxu0
      %2089 = vmatprep.mubr.bf16.mxu0 0
      %2090 = vmatmul.mubr.bf16.gmra.mxu0 %v1852
      %v2091 = vpop.f32.mrf.mxu0
      %v2092 = vadd.f32 0.0, %v2091
      %v2093 = vpop.f32.mrf.mxu0
      %v2094 = vpop.f32.mrf.mxu0
      %v2095 = vadd.f32 0.0, %v2094
      %v2096 = vpop.f32.mrf.mxu0
      %2097 = vmatprep.mubr.bf16.mxu0 0
      %2098 = vmatmul.mubr.bf16.gmra.mxu0 %v1860
      %v2099 = vpop.f32.mrf.mxu0
      %v2100 = vadd.f32 0.0, %v2099
      %v2101 = vpop.f32.mrf.mxu0
      %v2102 = vpop.f32.mrf.mxu0
      %v2103 = vadd.f32 0.0, %v2102
      %v2104 = vpop.f32.mrf.mxu0
      %2105 = vmatprep.mubr.bf16.mxu0 0
      %2106 = vmatmul.mubr.bf16.gmra.mxu0 %v1868
      %v2107 = vpop.f32.mrf.mxu0
      %v2108 = vadd.f32 0.0, %v2107
      %v2109 = vpop.f32.mrf.mxu0
      %v2110 = vpop.f32.mrf.mxu0
      %v2111 = vadd.f32 0.0, %v2110
      %v2112 = vpop.f32.mrf.mxu0
      %2113 = vmatprep.mubr.bf16.mxu0 0
      %2114 = vmatmul.mubr.bf16.gmra.mxu0 %v1876
      %v2115 = vpop.f32.mrf.mxu0
      %v2116 = vadd.f32 0.0, %v2115
      %v2117 = vpop.f32.mrf.mxu0
      %v2118 = vpop.f32.mrf.mxu0
      %v2119 = vadd.f32 0.0, %v2118
      %v2120 = vpop.f32.mrf.mxu0
      %2121 = vmatprep.mubr.bf16.mxu0 0
      %2122 = vmatmul.mubr.bf16.gmra.mxu0 %v1884
      %v2123 = vpop.f32.mrf.mxu0
      %v2124 = vadd.f32 0.0, %v2123
      %v2125 = vpop.f32.mrf.mxu0
      %v2126 = vpop.f32.mrf.mxu0
      %v2127 = vadd.f32 0.0, %v2126
      %v2128 = vpop.f32.mrf.mxu0
      %2129 = vmatprep.mubr.bf16.mxu0 0
      %2130 = vmatmul.mubr.bf16.gmra.mxu0 %v1892
      %v2131 = vpop.f32.mrf.mxu0
      %v2132 = vadd.f32 0.0, %v2131
      %v2133 = vpop.f32.mrf.mxu0
      %v2134 = vpop.f32.mrf.mxu0
      %v2135 = vadd.f32 0.0, %v2134
      %v2136 = vpop.f32.mrf.mxu0
      %2137 = vmatprep.mubr.bf16.mxu0 0
      %2138 = vmatmul.mubr.bf16.gmra.mxu0 %v1900
      %v2139 = vpop.f32.mrf.mxu0
      %v2140 = vadd.f32 0.0, %v2139
      %v2141 = vpop.f32.mrf.mxu0
      %v2142 = vpop.f32.mrf.mxu0
      %v2143 = vadd.f32 0.0, %v2142
      %v2144 = vpop.f32.mrf.mxu0
      %2145 = vmatprep.mubr.bf16.mxu0 0
      %2146 = vmatmul.mubr.bf16.gmra.mxu0 %v1908
      %v2147 = vpop.f32.mrf.mxu0
      %v2148 = vadd.f32 0.0, %v2147
      %v2149 = vpop.f32.mrf.mxu0
      %v2150 = vpop.f32.mrf.mxu0
      %v2151 = vadd.f32 0.0, %v2150
      %v2152 = vpop.f32.mrf.mxu0
      %2153 = vmatprep.mubr.bf16.mxu0 0
      %2154 = vmatmul.mubr.bf16.gmra.mxu0 %v1916
      %v2155 = vpop.f32.mrf.mxu0
      %v2156 = vadd.f32 0.0, %v2155
      %v2157 = vpop.f32.mrf.mxu0
      %v2158 = vpop.f32.mrf.mxu0
      %v2159 = vadd.f32 0.0, %v2158
      %v2160 = vpop.f32.mrf.mxu0
      %2161 = vmatprep.mubr.bf16.mxu0 0
      %2162 = vmatmul.mubr.bf16.gmra.mxu0 %v1924
      %v2163 = vpop.f32.mrf.mxu0
      %v2164 = vadd.f32 0.0, %v2163
      %v2165 = vpop.f32.mrf.mxu0
      %v2166 = vpop.f32.mrf.mxu0
      %v2167 = vadd.f32 0.0, %v2166
      %v2168 = vpop.f32.mrf.mxu0
      %2169 = vmatprep.mubr.bf16.mxu0 0
      %2170 = vmatmul.mubr.bf16.gmra.mxu0 %v1932
      %v2171 = vpop.f32.mrf.mxu0
      %v2172 = vadd.f32 0.0, %v2171
      %v2173 = vpop.f32.mrf.mxu0
      %v2174 = vpop.f32.mrf.mxu0
      %v2175 = vadd.f32 0.0, %v2174
      %v2176 = vpop.f32.mrf.mxu0
      %2177 = vmatprep.mubr.bf16.mxu0 0
      %2178 = vmatmul.mubr.bf16.gmra.mxu0 %v1940
      %v2179 = vpop.f32.mrf.mxu0
      %v2180 = vadd.f32 0.0, %v2179
      %v2181 = vpop.f32.mrf.mxu0
      %v2182 = vpop.f32.mrf.mxu0
      %v2183 = vadd.f32 0.0, %v2182
      %v2184 = vpop.f32.mrf.mxu0
      %2185 = vmatprep.mubr.bf16.mxu0 0
      %2186 = vmatmul.mubr.bf16.gmra.mxu0 %v1948
      %v2187 = vpop.f32.mrf.mxu0
      %v2188 = vadd.f32 0.0, %v2187
      %v2189 = vpop.f32.mrf.mxu0
      %v2190 = vpop.f32.mrf.mxu0
      %v2191 = vadd.f32 0.0, %v2190
      %v2192 = vpop.f32.mrf.mxu0
      %2193 = vdwg.mxu0
      %v2194 = vadd.f32 %v1620, %v2068
      %v2195 = vadd.f32 %v1623, %v2071
      %v2196 = vadd.f32 %v1628, %v2076
      %v2197 = vadd.f32 %v1631, %v2079
      %v2198 = vadd.f32 %v1636, %v2084
      %v2199 = vadd.f32 %v1639, %v2087
      %v2200 = vadd.f32 %v1644, %v2092
      %v2201 = vadd.f32 %v1647, %v2095
      %v2202 = vadd.f32 %v1652, %v2100
      %v2203 = vadd.f32 %v1655, %v2103
      %v2204 = vadd.f32 %v1660, %v2108
      %v2205 = vadd.f32 %v1663, %v2111
      %v2206 = vadd.f32 %v1668, %v2116
      %v2207 = vadd.f32 %v1671, %v2119
      %v2208 = vadd.f32 %v1676, %v2124
      %v2209 = vadd.f32 %v1679, %v2127
      %v2210 = vadd.f32 %v1684, %v2132
      %v2211 = vadd.f32 %v1687, %v2135
      %v2212 = vadd.f32 %v1692, %v2140
      %v2213 = vadd.f32 %v1695, %v2143
      %v2214 = vadd.f32 %v1700, %v2148
      %v2215 = vadd.f32 %v1703, %v2151
      %v2216 = vadd.f32 %v1708, %v2156
      %v2217 = vadd.f32 %v1711, %v2159
      %v2218 = vadd.f32 %v1716, %v2164
      %v2219 = vadd.f32 %v1719, %v2167
      %v2220 = vadd.f32 %v1724, %v2172
      %v2221 = vadd.f32 %v1727, %v2175
      %v2222 = vadd.f32 %v1732, %v2180
      %v2223 = vadd.f32 %v1735, %v2183
      %v2224 = vadd.f32 %v1740, %v2188
      %v2225 = vadd.f32 %v1743, %v2191
      %v2228 = vunpack.c.l.b16 %v830
      %v2229 = vunpack.c.l.b16 %v831
      %v2230 = vpack.c.b16 %v2229, %v2228
      %v2232 = vshrl.u32 %v2230, 16
      %v2234 = vrot.slane %v2232, 7
      %v2235 = vshll.u32 %v2230, 16
      %v2237 = vor.u32 %v2234, %v2235
      %v2238 = vsel %vm1067, %v1182, %v2237
      %s2240 = scalar_lea.vmem %s1, 192
      %v2241 = vld [vmem:[%s2240] sm:$0xf]
      %v2242 = vld [vmem:[%s2240 + $0x4] sm:$0xf]
      %v2243 = vld [vmem:[%s2240 + $0x8] sm:$0xf]
      %v2244 = vld [vmem:[%s2240 + $0xc] sm:$0xf]
      %v2245 = vld [vmem:[%s2240 + $0x10] sm:$0xf]
      %v2246 = vld [vmem:[%s2240 + $0x14] sm:$0xf]
      %v2247 = vld [vmem:[%s2240 + $0x18] sm:$0xf]
      %v2248 = vld [vmem:[%s2240 + $0x1c] sm:$0xf]
      %v2249 = vld [vmem:[%s2240 + $0x20] sm:$0xf]
      %v2250 = vld [vmem:[%s2240 + $0x24] sm:$0xf]
      %v2251 = vld [vmem:[%s2240 + $0x28] sm:$0xf]
      %v2252 = vld [vmem:[%s2240 + $0x2c] sm:$0xf]
      %v2253 = vld [vmem:[%s2240 + $0x30] sm:$0xf]
      %v2254 = vld [vmem:[%s2240 + $0x34] sm:$0xf]
      %v2255 = vld [vmem:[%s2240 + $0x38] sm:$0xf]
      %v2256 = vld [vmem:[%s2240 + $0x3c] sm:$0xf]
      %v2273 = vunpack.c.l.b16 %v2241
      %v2274 = vunpack.c.l.b16 %v2242
      %v2275 = vunpack.c.l.b16 %v2243
      %v2276 = vunpack.c.l.b16 %v2244
      %v2277 = vunpack.c.l.b16 %v2245
      %v2278 = vunpack.c.l.b16 %v2246
      %v2279 = vunpack.c.l.b16 %v2247
      %v2280 = vunpack.c.l.b16 %v2248
      %v2281 = vunpack.c.l.b16 %v2249
      %v2282 = vunpack.c.l.b16 %v2250
      %v2283 = vunpack.c.l.b16 %v2251
      %v2284 = vunpack.c.l.b16 %v2252
      %v2285 = vunpack.c.l.b16 %v2253
      %v2286 = vunpack.c.l.b16 %v2254
      %v2287 = vunpack.c.l.b16 %v2255
      %v2288 = vunpack.c.l.b16 %v2256
      %v2289 = vpack.c.b16 %v2274, %v2273
      %v2290 = vpack.c.b16 %v2276, %v2275
      %v2291 = vpack.c.b16 %v2278, %v2277
      %v2292 = vpack.c.b16 %v2280, %v2279
      %v2293 = vpack.c.b16 %v2282, %v2281
      %v2294 = vpack.c.b16 %v2284, %v2283
      %v2295 = vpack.c.b16 %v2286, %v2285
      %v2296 = vpack.c.b16 %v2288, %v2287
      %2305 = vmatprep.subr.bf16.mxu0 0
      %2306 = vmatpush1.bf16.msra.mxu0 %v2296
      %2307 = vmatprep.subr.bf16.mxu0 0
      %2308 = vmatpush1.bf16.msra.mxu0 %v2295
      %2309 = vmatprep.subr.bf16.mxu0 0
      %2310 = vmatpush1.bf16.msra.mxu0 %v2294
      %2311 = vmatprep.subr.bf16.mxu0 0
      %2312 = vmatpush1.bf16.msra.mxu0 %v2293
      %2313 = vmatprep.subr.bf16.mxu0 0
      %2314 = vmatpush1.bf16.msra.mxu0 %v2292
      %2315 = vmatprep.subr.bf16.mxu0 0
      %2316 = vmatpush1.bf16.msra.mxu0 %v2291
      %2317 = vmatprep.subr.bf16.mxu0 0
      %2318 = vmatpush1.bf16.msra.mxu0 %v2290
      %2319 = vmatprep.subr.bf16.mxu0 0
      %2320 = vmatpush1.bf16.msra.mxu0 %v2289
      %2321 = vmatprep.subr.bf16.mxu0 0
      %2322 = vmatpush2.bf16.msra.mxu0 0
      %2323 = vmatprep.subr.bf16.mxu0 0
      %2324 = vmatpush2.bf16.msra.mxu0 0
      %2325 = vmatprep.subr.bf16.mxu0 0
      %2326 = vmatpush2.bf16.msra.mxu0 0
      %2327 = vmatprep.subr.bf16.mxu0 0
      %2328 = vmatpush2.bf16.msra.mxu0 0
      %2329 = vmatprep.subr.bf16.mxu0 0
      %2330 = vmatpush2.bf16.msra.mxu0 0
      %2331 = vmatprep.subr.bf16.mxu0 0
      %2332 = vmatpush2.bf16.msra.mxu0 0
      %2333 = vmatprep.subr.bf16.mxu0 0
      %2334 = vmatpush2.bf16.msra.mxu0 0
      %2335 = vmatprep.subr.bf16.mxu0 0
      %2336 = vmatpush2.bf16.msra.mxu0 0
      %2337 = vmatprep.mubr.bf16.mxu0 0
      %2338 = vmatmul.mubr.bf16.gmra.mxu0 %v1204
      %v2339 = vpop.f32.mrf.mxu0
      %v2340 = vadd.f32 0.0, %v2339
      %v2341 = vpop.f32.mrf.mxu0
      %v2342 = vpop.f32.mrf.mxu0
      %v2343 = vadd.f32 0.0, %v2342
      %v2344 = vpop.f32.mrf.mxu0
      %2345 = vmatprep.mubr.bf16.mxu0 0
      %2346 = vmatmul.mubr.bf16.gmra.mxu0 %v1082
      %v2347 = vpop.f32.mrf.mxu0
      %v2348 = vadd.f32 0.0, %v2347
      %v2349 = vpop.f32.mrf.mxu0
      %v2350 = vpop.f32.mrf.mxu0
      %v2351 = vadd.f32 0.0, %v2350
      %v2352 = vpop.f32.mrf.mxu0
      %2353 = vmatprep.mubr.bf16.mxu0 0
      %2354 = vmatmul.mubr.bf16.gmra.mxu0 %v1090
      %v2355 = vpop.f32.mrf.mxu0
      %v2356 = vadd.f32 0.0, %v2355
      %v2357 = vpop.f32.mrf.mxu0
      %v2358 = vpop.f32.mrf.mxu0
      %v2359 = vadd.f32 0.0, %v2358
      %v2360 = vpop.f32.mrf.mxu0
      %2361 = vmatprep.mubr.bf16.mxu0 0
      %2362 = vmatmul.mubr.bf16.gmra.mxu0 %v1098
      %v2363 = vpop.f32.mrf.mxu0
      %v2364 = vadd.f32 0.0, %v2363
      %v2365 = vpop.f32.mrf.mxu0
      %v2366 = vpop.f32.mrf.mxu0
      %v2367 = vadd.f32 0.0, %v2366
      %v2368 = vpop.f32.mrf.mxu0
      %2369 = vmatprep.mubr.bf16.mxu0 0
      %2370 = vmatmul.mubr.bf16.gmra.mxu0 %v1106
      %v2371 = vpop.f32.mrf.mxu0
      %v2372 = vadd.f32 0.0, %v2371
      %v2373 = vpop.f32.mrf.mxu0
      %v2374 = vpop.f32.mrf.mxu0
      %v2375 = vadd.f32 0.0, %v2374
      %v2376 = vpop.f32.mrf.mxu0
      %2377 = vmatprep.mubr.bf16.mxu0 0
      %2378 = vmatmul.mubr.bf16.gmra.mxu0 %v1114
      %v2379 = vpop.f32.mrf.mxu0
      %v2380 = vadd.f32 0.0, %v2379
      %v2381 = vpop.f32.mrf.mxu0
      %v2382 = vpop.f32.mrf.mxu0
      %v2383 = vadd.f32 0.0, %v2382
      %v2384 = vpop.f32.mrf.mxu0
      %2385 = vmatprep.mubr.bf16.mxu0 0
      %2386 = vmatmul.mubr.bf16.gmra.mxu0 %v1122
      %v2387 = vpop.f32.mrf.mxu0
      %v2388 = vadd.f32 0.0, %v2387
      %v2389 = vpop.f32.mrf.mxu0
      %v2390 = vpop.f32.mrf.mxu0
      %v2391 = vadd.f32 0.0, %v2390
      %v2392 = vpop.f32.mrf.mxu0
      %2393 = vmatprep.mubr.bf16.mxu0 0
      %2394 = vmatmul.mubr.bf16.gmra.mxu0 %v1130
      %v2395 = vpop.f32.mrf.mxu0
      %v2396 = vadd.f32 0.0, %v2395
      %v2397 = vpop.f32.mrf.mxu0
      %v2398 = vpop.f32.mrf.mxu0
      %v2399 = vadd.f32 0.0, %v2398
      %v2400 = vpop.f32.mrf.mxu0
      %2401 = vmatprep.mubr.bf16.mxu0 0
      %2402 = vmatmul.mubr.bf16.gmra.mxu0 %v1138
      %v2403 = vpop.f32.mrf.mxu0
      %v2404 = vadd.f32 0.0, %v2403
      %v2405 = vpop.f32.mrf.mxu0
      %v2406 = vpop.f32.mrf.mxu0
      %v2407 = vadd.f32 0.0, %v2406
      %v2408 = vpop.f32.mrf.mxu0
      %2409 = vmatprep.mubr.bf16.mxu0 0
      %2410 = vmatmul.mubr.bf16.gmra.mxu0 %v1146
      %v2411 = vpop.f32.mrf.mxu0
      %v2412 = vadd.f32 0.0, %v2411
      %v2413 = vpop.f32.mrf.mxu0
      %v2414 = vpop.f32.mrf.mxu0
      %v2415 = vadd.f32 0.0, %v2414
      %v2416 = vpop.f32.mrf.mxu0
      %2417 = vmatprep.mubr.bf16.mxu0 0
      %2418 = vmatmul.mubr.bf16.gmra.mxu0 %v1154
      %v2419 = vpop.f32.mrf.mxu0
      %v2420 = vadd.f32 0.0, %v2419
      %v2421 = vpop.f32.mrf.mxu0
      %v2422 = vpop.f32.mrf.mxu0
      %v2423 = vadd.f32 0.0, %v2422
      %v2424 = vpop.f32.mrf.mxu0
      %2425 = vmatprep.mubr.bf16.mxu0 0
      %2426 = vmatmul.mubr.bf16.gmra.mxu0 %v1162
      %v2427 = vpop.f32.mrf.mxu0
      %v2428 = vadd.f32 0.0, %v2427
      %v2429 = vpop.f32.mrf.mxu0
      %v2430 = vpop.f32.mrf.mxu0
      %v2431 = vadd.f32 0.0, %v2430
      %v2432 = vpop.f32.mrf.mxu0
      %2433 = vmatprep.mubr.bf16.mxu0 0
      %2434 = vmatmul.mubr.bf16.gmra.mxu0 %v1170
      %v2435 = vpop.f32.mrf.mxu0
      %v2436 = vadd.f32 0.0, %v2435
      %v2437 = vpop.f32.mrf.mxu0
      %v2438 = vpop.f32.mrf.mxu0
      %v2439 = vadd.f32 0.0, %v2438
      %v2440 = vpop.f32.mrf.mxu0
      %2441 = vmatprep.mubr.bf16.mxu0 0
      %2442 = vmatmul.mubr.bf16.gmra.mxu0 %v1178
      %v2443 = vpop.f32.mrf.mxu0
      %v2444 = vadd.f32 0.0, %v2443
      %v2445 = vpop.f32.mrf.mxu0
      %v2446 = vpop.f32.mrf.mxu0
      %v2447 = vadd.f32 0.0, %v2446
      %v2448 = vpop.f32.mrf.mxu0
      %2449 = vmatprep.mubr.bf16.mxu0 0
      %2450 = vmatmul.mubr.bf16.gmra.mxu0 %v1186
      %v2451 = vpop.f32.mrf.mxu0
      %v2452 = vadd.f32 0.0, %v2451
      %v2453 = vpop.f32.mrf.mxu0
      %v2454 = vpop.f32.mrf.mxu0
      %v2455 = vadd.f32 0.0, %v2454
      %v2456 = vpop.f32.mrf.mxu0
      %2457 = vmatprep.mubr.bf16.mxu0 0
      %2458 = vmatmul.mubr.bf16.gmra.mxu0 %v2238
      %v2459 = vpop.f32.mrf.mxu0
      %v2460 = vadd.f32 0.0, %v2459
      %v2461 = vpop.f32.mrf.mxu0
      %v2462 = vpop.f32.mrf.mxu0
      %v2463 = vadd.f32 0.0, %v2462
      %v2464 = vpop.f32.mrf.mxu0
      %2465 = vdwg.mxu0
      %v2466 = vadd.f32 %v2194, %v2340
      %v2467 = vadd.f32 %v2195, %v2343
      %v2468 = vadd.f32 %v2196, %v2348
      %v2469 = vadd.f32 %v2197, %v2351
      %v2470 = vadd.f32 %v2198, %v2356
      %v2471 = vadd.f32 %v2199, %v2359
      %v2472 = vadd.f32 %v2200, %v2364
      %v2473 = vadd.f32 %v2201, %v2367
      %v2474 = vadd.f32 %v2202, %v2372
      %v2475 = vadd.f32 %v2203, %v2375
      %v2476 = vadd.f32 %v2204, %v2380
      %v2477 = vadd.f32 %v2205, %v2383
      %v2478 = vadd.f32 %v2206, %v2388
      %v2479 = vadd.f32 %v2207, %v2391
      %v2480 = vadd.f32 %v2208, %v2396
      %v2481 = vadd.f32 %v2209, %v2399
      %v2482 = vadd.f32 %v2210, %v2404
      %v2483 = vadd.f32 %v2211, %v2407
      %v2484 = vadd.f32 %v2212, %v2412
      %v2485 = vadd.f32 %v2213, %v2415
      %v2486 = vadd.f32 %v2214, %v2420
      %v2487 = vadd.f32 %v2215, %v2423
      %v2488 = vadd.f32 %v2216, %v2428
      %v2489 = vadd.f32 %v2217, %v2431
      %v2490 = vadd.f32 %v2218, %v2436
      %v2491 = vadd.f32 %v2219, %v2439
      %v2492 = vadd.f32 %v2220, %v2444
      %v2493 = vadd.f32 %v2221, %v2447
      %v2494 = vadd.f32 %v2222, %v2452
      %v2495 = vadd.f32 %v2223, %v2455
      %v2496 = vadd.f32 %v2224, %v2460
      %v2497 = vadd.f32 %v2225, %v2463
      %s2498 = scalar_lea.vmem %s1, 256
      %v2499 = vld [vmem:[%s2498] sm:$0xf]
      %v2500 = vld [vmem:[%s2498 + $0x4] sm:$0xf]
      %v2501 = vld [vmem:[%s2498 + $0x8] sm:$0xf]
      %v2502 = vld [vmem:[%s2498 + $0xc] sm:$0xf]
      %v2503 = vld [vmem:[%s2498 + $0x10] sm:$0xf]
      %v2504 = vld [vmem:[%s2498 + $0x14] sm:$0xf]
      %v2505 = vld [vmem:[%s2498 + $0x18] sm:$0xf]
      %v2506 = vld [vmem:[%s2498 + $0x1c] sm:$0xf]
      %v2507 = vld [vmem:[%s2498 + $0x20] sm:$0xf]
      %v2508 = vld [vmem:[%s2498 + $0x24] sm:$0xf]
      %v2509 = vld [vmem:[%s2498 + $0x28] sm:$0xf]
      %v2510 = vld [vmem:[%s2498 + $0x2c] sm:$0xf]
      %v2511 = vld [vmem:[%s2498 + $0x30] sm:$0xf]
      %v2512 = vld [vmem:[%s2498 + $0x34] sm:$0xf]
      %v2513 = vld [vmem:[%s2498 + $0x38] sm:$0xf]
      %v2514 = vld [vmem:[%s2498 + $0x3c] sm:$0xf]
      %v2517 = vunpack.c.l.b16 %v253
      %v2518 = vunpack.c.l.b16 %v254
      %v2519 = vpack.c.b16 %v2518, %v2517
      %v2537 = vunpack.c.l.b16 %v2499
      %v2538 = vunpack.c.l.b16 %v2500
      %v2539 = vunpack.c.l.b16 %v2501
      %v2540 = vunpack.c.l.b16 %v2502
      %v2541 = vunpack.c.l.b16 %v2503
      %v2542 = vunpack.c.l.b16 %v2504
      %v2543 = vunpack.c.l.b16 %v2505
      %v2544 = vunpack.c.l.b16 %v2506
      %v2545 = vunpack.c.l.b16 %v2507
      %v2546 = vunpack.c.l.b16 %v2508
      %v2547 = vunpack.c.l.b16 %v2509
      %v2548 = vunpack.c.l.b16 %v2510
      %v2549 = vunpack.c.l.b16 %v2511
      %v2550 = vunpack.c.l.b16 %v2512
      %v2551 = vunpack.c.l.b16 %v2513
      %v2552 = vunpack.c.l.b16 %v2514
      %v2553 = vpack.c.b16 %v2538, %v2537
      %v2554 = vpack.c.b16 %v2540, %v2539
      %v2555 = vpack.c.b16 %v2542, %v2541
      %v2556 = vpack.c.b16 %v2544, %v2543
      %v2557 = vpack.c.b16 %v2546, %v2545
      %v2558 = vpack.c.b16 %v2548, %v2547
      %v2559 = vpack.c.b16 %v2550, %v2549
      %v2560 = vpack.c.b16 %v2552, %v2551
      %2569 = vmatprep.subr.bf16.mxu0 0
      %2570 = vmatpush1.bf16.msra.mxu0 %v2560
      %2571 = vmatprep.subr.bf16.mxu0 0
      %2572 = vmatpush1.bf16.msra.mxu0 %v2559
      %2573 = vmatprep.subr.bf16.mxu0 0
      %2574 = vmatpush1.bf16.msra.mxu0 %v2558
      %2575 = vmatprep.subr.bf16.mxu0 0
      %2576 = vmatpush1.bf16.msra.mxu0 %v2557
      %2577 = vmatprep.subr.bf16.mxu0 0
      %2578 = vmatpush1.bf16.msra.mxu0 %v2556
      %2579 = vmatprep.subr.bf16.mxu0 0
      %2580 = vmatpush1.bf16.msra.mxu0 %v2555
      %2581 = vmatprep.subr.bf16.mxu0 0
      %2582 = vmatpush1.bf16.msra.mxu0 %v2554
      %2583 = vmatprep.subr.bf16.mxu0 0
      %2584 = vmatpush1.bf16.msra.mxu0 %v2553
      %2585 = vmatprep.subr.bf16.mxu0 0
      %2586 = vmatpush2.bf16.msra.mxu0 0
      %2587 = vmatprep.subr.bf16.mxu0 0
      %2588 = vmatpush2.bf16.msra.mxu0 0
      %2589 = vmatprep.subr.bf16.mxu0 0
      %2590 = vmatpush2.bf16.msra.mxu0 0
      %2591 = vmatprep.subr.bf16.mxu0 0
      %2592 = vmatpush2.bf16.msra.mxu0 0
      %2593 = vmatprep.subr.bf16.mxu0 0
      %2594 = vmatpush2.bf16.msra.mxu0 0
      %2595 = vmatprep.subr.bf16.mxu0 0
      %2596 = vmatpush2.bf16.msra.mxu0 0
      %2597 = vmatprep.subr.bf16.mxu0 0
      %2598 = vmatpush2.bf16.msra.mxu0 0
      %2599 = vmatprep.subr.bf16.mxu0 0
      %2600 = vmatpush2.bf16.msra.mxu0 0
      %2601 = vmatprep.mubr.bf16.mxu0 0
      %2602 = vmatmul.mubr.bf16.gmra.mxu0 %v1281
      %v2603 = vpop.f32.mrf.mxu0
      %v2604 = vadd.f32 0.0, %v2603
      %v2605 = vpop.f32.mrf.mxu0
      %v2606 = vpop.f32.mrf.mxu0
      %v2607 = vadd.f32 0.0, %v2606
      %v2608 = vpop.f32.mrf.mxu0
      %2609 = vmatprep.mubr.bf16.mxu0 0
      %2610 = vmatmul.mubr.bf16.gmra.mxu0 %v1282
      %v2611 = vpop.f32.mrf.mxu0
      %v2612 = vadd.f32 0.0, %v2611
      %v2613 = vpop.f32.mrf.mxu0
      %v2614 = vpop.f32.mrf.mxu0
      %v2615 = vadd.f32 0.0, %v2614
      %v2616 = vpop.f32.mrf.mxu0
      %2617 = vmatprep.mubr.bf16.mxu0 0
      %2618 = vmatmul.mubr.bf16.gmra.mxu0 %v1283
      %v2619 = vpop.f32.mrf.mxu0
      %v2620 = vadd.f32 0.0, %v2619
      %v2621 = vpop.f32.mrf.mxu0
      %v2622 = vpop.f32.mrf.mxu0
      %v2623 = vadd.f32 0.0, %v2622
      %v2624 = vpop.f32.mrf.mxu0
      %2625 = vmatprep.mubr.bf16.mxu0 0
      %2626 = vmatmul.mubr.bf16.gmra.mxu0 %v1284
      %v2627 = vpop.f32.mrf.mxu0
      %v2628 = vadd.f32 0.0, %v2627
      %v2629 = vpop.f32.mrf.mxu0
      %v2630 = vpop.f32.mrf.mxu0
      %v2631 = vadd.f32 0.0, %v2630
      %v2632 = vpop.f32.mrf.mxu0
      %2633 = vmatprep.mubr.bf16.mxu0 0
      %2634 = vmatmul.mubr.bf16.gmra.mxu0 %v1285
      %v2635 = vpop.f32.mrf.mxu0
      %v2636 = vadd.f32 0.0, %v2635
      %v2637 = vpop.f32.mrf.mxu0
      %v2638 = vpop.f32.mrf.mxu0
      %v2639 = vadd.f32 0.0, %v2638
      %v2640 = vpop.f32.mrf.mxu0
      %2641 = vmatprep.mubr.bf16.mxu0 0
      %2642 = vmatmul.mubr.bf16.gmra.mxu0 %v1286
      %v2643 = vpop.f32.mrf.mxu0
      %v2644 = vadd.f32 0.0, %v2643
      %v2645 = vpop.f32.mrf.mxu0
      %v2646 = vpop.f32.mrf.mxu0
      %v2647 = vadd.f32 0.0, %v2646
      %v2648 = vpop.f32.mrf.mxu0
      %2649 = vmatprep.mubr.bf16.mxu0 0
      %2650 = vmatmul.mubr.bf16.gmra.mxu0 %v1287
      %v2651 = vpop.f32.mrf.mxu0
      %v2652 = vadd.f32 0.0, %v2651
      %v2653 = vpop.f32.mrf.mxu0
      %v2654 = vpop.f32.mrf.mxu0
      %v2655 = vadd.f32 0.0, %v2654
      %v2656 = vpop.f32.mrf.mxu0
      %2657 = vmatprep.mubr.bf16.mxu0 0
      %2658 = vmatmul.mubr.bf16.gmra.mxu0 %v1288
      %v2659 = vpop.f32.mrf.mxu0
      %v2660 = vadd.f32 0.0, %v2659
      %v2661 = vpop.f32.mrf.mxu0
      %v2662 = vpop.f32.mrf.mxu0
      %v2663 = vadd.f32 0.0, %v2662
      %v2664 = vpop.f32.mrf.mxu0
      %2665 = vmatprep.mubr.bf16.mxu0 0
      %2666 = vmatmul.mubr.bf16.gmra.mxu0 %v1289
      %v2667 = vpop.f32.mrf.mxu0
      %v2668 = vadd.f32 0.0, %v2667
      %v2669 = vpop.f32.mrf.mxu0
      %v2670 = vpop.f32.mrf.mxu0
      %v2671 = vadd.f32 0.0, %v2670
      %v2672 = vpop.f32.mrf.mxu0
      %2673 = vmatprep.mubr.bf16.mxu0 0
      %2674 = vmatmul.mubr.bf16.gmra.mxu0 %v1290
      %v2675 = vpop.f32.mrf.mxu0
      %v2676 = vadd.f32 0.0, %v2675
      %v2677 = vpop.f32.mrf.mxu0
      %v2678 = vpop.f32.mrf.mxu0
      %v2679 = vadd.f32 0.0, %v2678
      %v2680 = vpop.f32.mrf.mxu0
      %2681 = vmatprep.mubr.bf16.mxu0 0
      %2682 = vmatmul.mubr.bf16.gmra.mxu0 %v1291
      %v2683 = vpop.f32.mrf.mxu0
      %v2684 = vadd.f32 0.0, %v2683
      %v2685 = vpop.f32.mrf.mxu0
      %v2686 = vpop.f32.mrf.mxu0
      %v2687 = vadd.f32 0.0, %v2686
      %v2688 = vpop.f32.mrf.mxu0
      %2689 = vmatprep.mubr.bf16.mxu0 0
      %2690 = vmatmul.mubr.bf16.gmra.mxu0 %v1292
      %v2691 = vpop.f32.mrf.mxu0
      %v2692 = vadd.f32 0.0, %v2691
      %v2693 = vpop.f32.mrf.mxu0
      %v2694 = vpop.f32.mrf.mxu0
      %v2695 = vadd.f32 0.0, %v2694
      %v2696 = vpop.f32.mrf.mxu0
      %2697 = vmatprep.mubr.bf16.mxu0 0
      %2698 = vmatmul.mubr.bf16.gmra.mxu0 %v1293
      %v2699 = vpop.f32.mrf.mxu0
      %v2700 = vadd.f32 0.0, %v2699
      %v2701 = vpop.f32.mrf.mxu0
      %v2702 = vpop.f32.mrf.mxu0
      %v2703 = vadd.f32 0.0, %v2702
      %v2704 = vpop.f32.mrf.mxu0
      %2705 = vmatprep.mubr.bf16.mxu0 0
      %2706 = vmatmul.mubr.bf16.gmra.mxu0 %v1294
      %v2707 = vpop.f32.mrf.mxu0
      %v2708 = vadd.f32 0.0, %v2707
      %v2709 = vpop.f32.mrf.mxu0
      %v2710 = vpop.f32.mrf.mxu0
      %v2711 = vadd.f32 0.0, %v2710
      %v2712 = vpop.f32.mrf.mxu0
      %2713 = vmatprep.mubr.bf16.mxu0 0
      %2714 = vmatmul.mubr.bf16.gmra.mxu0 %v1295
      %v2715 = vpop.f32.mrf.mxu0
      %v2716 = vadd.f32 0.0, %v2715
      %v2717 = vpop.f32.mrf.mxu0
      %v2718 = vpop.f32.mrf.mxu0
      %v2719 = vadd.f32 0.0, %v2718
      %v2720 = vpop.f32.mrf.mxu0
      %2721 = vmatprep.mubr.bf16.mxu0 0
      %2722 = vmatmul.mubr.bf16.gmra.mxu0 %v2519
      %v2723 = vpop.f32.mrf.mxu0
      %v2724 = vadd.f32 0.0, %v2723
      %v2725 = vpop.f32.mrf.mxu0
      %v2726 = vpop.f32.mrf.mxu0
      %v2727 = vadd.f32 0.0, %v2726
      %v2728 = vpop.f32.mrf.mxu0
      %2729 = vdwg.mxu0
      %v2730 = vadd.f32 %v2466, %v2604
      %v2731 = vadd.f32 %v2467, %v2607
      %v2732 = vadd.f32 %v2468, %v2612
      %v2733 = vadd.f32 %v2469, %v2615
      %v2734 = vadd.f32 %v2470, %v2620
      %v2735 = vadd.f32 %v2471, %v2623
      %v2736 = vadd.f32 %v2472, %v2628
      %v2737 = vadd.f32 %v2473, %v2631
      %v2738 = vadd.f32 %v2474, %v2636
      %v2739 = vadd.f32 %v2475, %v2639
      %v2740 = vadd.f32 %v2476, %v2644
      %v2741 = vadd.f32 %v2477, %v2647
      %v2742 = vadd.f32 %v2478, %v2652
      %v2743 = vadd.f32 %v2479, %v2655
      %v2744 = vadd.f32 %v2480, %v2660
      %v2745 = vadd.f32 %v2481, %v2663
      %v2746 = vadd.f32 %v2482, %v2668
      %v2747 = vadd.f32 %v2483, %v2671
      %v2748 = vadd.f32 %v2484, %v2676
      %v2749 = vadd.f32 %v2485, %v2679
      %v2750 = vadd.f32 %v2486, %v2684
      %v2751 = vadd.f32 %v2487, %v2687
      %v2752 = vadd.f32 %v2488, %v2692
      %v2753 = vadd.f32 %v2489, %v2695
      %v2754 = vadd.f32 %v2490, %v2700
      %v2755 = vadd.f32 %v2491, %v2703
      %v2756 = vadd.f32 %v2492, %v2708
      %v2757 = vadd.f32 %v2493, %v2711
      %v2758 = vadd.f32 %v2494, %v2716
      %v2759 = vadd.f32 %v2495, %v2719
      %v2760 = vadd.f32 %v2496, %v2724
      %v2761 = vadd.f32 %v2497, %v2727
      %v2763 = vunpack.c.l.b16 %v991
      %v2764 = vpack.c.b16 %v2763, %v1807
      %v2766 = vshll.u32 %v2764, 16
      %v2768 = vrot.slane %v2766, 1
      %v2769 = vsel %vm1824, %v1943, %v2768
      %v2770 = vshrl.u32 %v2764, 16
      %v2772 = vor.u32 %v2770, %v2768
      %v2775 = vsel %vm1966, %v2772, 0
      %s2776 = scalar_lea.vmem %s1, 320
      %v2777 = vld [vmem:[%s2776] sm:$0xf]
      %v2778 = vld [vmem:[%s2776 + $0x4] sm:$0xf]
      %v2779 = vld [vmem:[%s2776 + $0x8] sm:$0xf]
      %v2780 = vld [vmem:[%s2776 + $0xc] sm:$0xf]
      %v2781 = vld [vmem:[%s2776 + $0x10] sm:$0xf]
      %v2782 = vld [vmem:[%s2776 + $0x14] sm:$0xf]
      %v2783 = vld [vmem:[%s2776 + $0x18] sm:$0xf]
      %v2784 = vld [vmem:[%s2776 + $0x1c] sm:$0xf]
      %v2785 = vld [vmem:[%s2776 + $0x20] sm:$0xf]
      %v2786 = vld [vmem:[%s2776 + $0x24] sm:$0xf]
      %v2787 = vld [vmem:[%s2776 + $0x28] sm:$0xf]
      %v2788 = vld [vmem:[%s2776 + $0x2c] sm:$0xf]
      %v2789 = vld [vmem:[%s2776 + $0x30] sm:$0xf]
      %v2790 = vld [vmem:[%s2776 + $0x34] sm:$0xf]
      %v2791 = vld [vmem:[%s2776 + $0x38] sm:$0xf]
      %v2792 = vld [vmem:[%s2776 + $0x3c] sm:$0xf]
      %v2809 = vunpack.c.l.b16 %v2777
      %v2810 = vunpack.c.l.b16 %v2778
      %v2811 = vunpack.c.l.b16 %v2779
      %v2812 = vunpack.c.l.b16 %v2780
      %v2813 = vunpack.c.l.b16 %v2781
      %v2814 = vunpack.c.l.b16 %v2782
      %v2815 = vunpack.c.l.b16 %v2783
      %v2816 = vunpack.c.l.b16 %v2784
      %v2817 = vunpack.c.l.b16 %v2785
      %v2818 = vunpack.c.l.b16 %v2786
      %v2819 = vunpack.c.l.b16 %v2787
      %v2820 = vunpack.c.l.b16 %v2788
      %v2821 = vunpack.c.l.b16 %v2789
      %v2822 = vunpack.c.l.b16 %v2790
      %v2823 = vunpack.c.l.b16 %v2791
      %v2824 = vunpack.c.l.b16 %v2792
      %v2825 = vpack.c.b16 %v2810, %v2809
      %v2826 = vpack.c.b16 %v2812, %v2811
      %v2827 = vpack.c.b16 %v2814, %v2813
      %v2828 = vpack.c.b16 %v2816, %v2815
      %v2829 = vpack.c.b16 %v2818, %v2817
      %v2830 = vpack.c.b16 %v2820, %v2819
      %v2831 = vpack.c.b16 %v2822, %v2821
      %v2832 = vpack.c.b16 %v2824, %v2823
      %2841 = vmatprep.subr.bf16.mxu0 0
      %2842 = vmatpush1.bf16.msra.mxu0 %v2832
      %2843 = vmatprep.subr.bf16.mxu0 0
      %2844 = vmatpush1.bf16.msra.mxu0 %v2831
      %2845 = vmatprep.subr.bf16.mxu0 0
      %2846 = vmatpush1.bf16.msra.mxu0 %v2830
      %2847 = vmatprep.subr.bf16.mxu0 0
      %2848 = vmatpush1.bf16.msra.mxu0 %v2829
      %2849 = vmatprep.subr.bf16.mxu0 0
      %2850 = vmatpush1.bf16.msra.mxu0 %v2828
      %2851 = vmatprep.subr.bf16.mxu0 0
      %2852 = vmatpush1.bf16.msra.mxu0 %v2827
      %2853 = vmatprep.subr.bf16.mxu0 0
      %2854 = vmatpush1.bf16.msra.mxu0 %v2826
      %2855 = vmatprep.subr.bf16.mxu0 0
      %2856 = vmatpush1.bf16.msra.mxu0 %v2825
      %2857 = vmatprep.subr.bf16.mxu0 0
      %2858 = vmatpush2.bf16.msra.mxu0 0
      %2859 = vmatprep.subr.bf16.mxu0 0
      %2860 = vmatpush2.bf16.msra.mxu0 0
      %2861 = vmatprep.subr.bf16.mxu0 0
      %2862 = vmatpush2.bf16.msra.mxu0 0
      %2863 = vmatprep.subr.bf16.mxu0 0
      %2864 = vmatpush2.bf16.msra.mxu0 0
      %2865 = vmatprep.subr.bf16.mxu0 0
      %2866 = vmatpush2.bf16.msra.mxu0 0
      %2867 = vmatprep.subr.bf16.mxu0 0
      %2868 = vmatpush2.bf16.msra.mxu0 0
      %2869 = vmatprep.subr.bf16.mxu0 0
      %2870 = vmatpush2.bf16.msra.mxu0 0
      %2871 = vmatprep.subr.bf16.mxu0 0
      %2872 = vmatpush2.bf16.msra.mxu0 0
      %2873 = vmatprep.mubr.bf16.mxu0 0
      %2874 = vmatmul.mubr.bf16.gmra.mxu0 %v1836
      %v2875 = vpop.f32.mrf.mxu0
      %v2876 = vadd.f32 0.0, %v2875
      %v2877 = vpop.f32.mrf.mxu0
      %v2878 = vpop.f32.mrf.mxu0
      %v2879 = vadd.f32 0.0, %v2878
      %v2880 = vpop.f32.mrf.mxu0
      %2881 = vmatprep.mubr.bf16.mxu0 0
      %2882 = vmatmul.mubr.bf16.gmra.mxu0 %v1844
      %v2883 = vpop.f32.mrf.mxu0
      %v2884 = vadd.f32 0.0, %v2883
      %v2885 = vpop.f32.mrf.mxu0
      %v2886 = vpop.f32.mrf.mxu0
      %v2887 = vadd.f32 0.0, %v2886
      %v2888 = vpop.f32.mrf.mxu0
      %2889 = vmatprep.mubr.bf16.mxu0 0
      %2890 = vmatmul.mubr.bf16.gmra.mxu0 %v1852
      %v2891 = vpop.f32.mrf.mxu0
      %v2892 = vadd.f32 0.0, %v2891
      %v2893 = vpop.f32.mrf.mxu0
      %v2894 = vpop.f32.mrf.mxu0
      %v2895 = vadd.f32 0.0, %v2894
      %v2896 = vpop.f32.mrf.mxu0
      %2897 = vmatprep.mubr.bf16.mxu0 0
      %2898 = vmatmul.mubr.bf16.gmra.mxu0 %v1860
      %v2899 = vpop.f32.mrf.mxu0
      %v2900 = vadd.f32 0.0, %v2899
      %v2901 = vpop.f32.mrf.mxu0
      %v2902 = vpop.f32.mrf.mxu0
      %v2903 = vadd.f32 0.0, %v2902
      %v2904 = vpop.f32.mrf.mxu0
      %2905 = vmatprep.mubr.bf16.mxu0 0
      %2906 = vmatmul.mubr.bf16.gmra.mxu0 %v1868
      %v2907 = vpop.f32.mrf.mxu0
      %v2908 = vadd.f32 0.0, %v2907
      %v2909 = vpop.f32.mrf.mxu0
      %v2910 = vpop.f32.mrf.mxu0
      %v2911 = vadd.f32 0.0, %v2910
      %v2912 = vpop.f32.mrf.mxu0
      %2913 = vmatprep.mubr.bf16.mxu0 0
      %2914 = vmatmul.mubr.bf16.gmra.mxu0 %v1876
      %v2915 = vpop.f32.mrf.mxu0
      %v2916 = vadd.f32 0.0, %v2915
      %v2917 = vpop.f32.mrf.mxu0
      %v2918 = vpop.f32.mrf.mxu0
      %v2919 = vadd.f32 0.0, %v2918
      %v2920 = vpop.f32.mrf.mxu0
      %2921 = vmatprep.mubr.bf16.mxu0 0
      %2922 = vmatmul.mubr.bf16.gmra.mxu0 %v1884
      %v2923 = vpop.f32.mrf.mxu0
      %v2924 = vadd.f32 0.0, %v2923
      %v2925 = vpop.f32.mrf.mxu0
      %v2926 = vpop.f32.mrf.mxu0
      %v2927 = vadd.f32 0.0, %v2926
      %v2928 = vpop.f32.mrf.mxu0
      %2929 = vmatprep.mubr.bf16.mxu0 0
      %2930 = vmatmul.mubr.bf16.gmra.mxu0 %v1892
      %v2931 = vpop.f32.mrf.mxu0
      %v2932 = vadd.f32 0.0, %v2931
      %v2933 = vpop.f32.mrf.mxu0
      %v2934 = vpop.f32.mrf.mxu0
      %v2935 = vadd.f32 0.0, %v2934
      %v2936 = vpop.f32.mrf.mxu0
      %2937 = vmatprep.mubr.bf16.mxu0 0
      %2938 = vmatmul.mubr.bf16.gmra.mxu0 %v1900
      %v2939 = vpop.f32.mrf.mxu0
      %v2940 = vadd.f32 0.0, %v2939
      %v2941 = vpop.f32.mrf.mxu0
      %v2942 = vpop.f32.mrf.mxu0
      %v2943 = vadd.f32 0.0, %v2942
      %v2944 = vpop.f32.mrf.mxu0
      %2945 = vmatprep.mubr.bf16.mxu0 0
      %2946 = vmatmul.mubr.bf16.gmra.mxu0 %v1908
      %v2947 = vpop.f32.mrf.mxu0
      %v2948 = vadd.f32 0.0, %v2947
      %v2949 = vpop.f32.mrf.mxu0
      %v2950 = vpop.f32.mrf.mxu0
      %v2951 = vadd.f32 0.0, %v2950
      %v2952 = vpop.f32.mrf.mxu0
      %2953 = vmatprep.mubr.bf16.mxu0 0
      %2954 = vmatmul.mubr.bf16.gmra.mxu0 %v1916
      %v2955 = vpop.f32.mrf.mxu0
      %v2956 = vadd.f32 0.0, %v2955
      %v2957 = vpop.f32.mrf.mxu0
      %v2958 = vpop.f32.mrf.mxu0
      %v2959 = vadd.f32 0.0, %v2958
      %v2960 = vpop.f32.mrf.mxu0
      %2961 = vmatprep.mubr.bf16.mxu0 0
      %2962 = vmatmul.mubr.bf16.gmra.mxu0 %v1924
      %v2963 = vpop.f32.mrf.mxu0
      %v2964 = vadd.f32 0.0, %v2963
      %v2965 = vpop.f32.mrf.mxu0
      %v2966 = vpop.f32.mrf.mxu0
      %v2967 = vadd.f32 0.0, %v2966
      %v2968 = vpop.f32.mrf.mxu0
      %2969 = vmatprep.mubr.bf16.mxu0 0
      %2970 = vmatmul.mubr.bf16.gmra.mxu0 %v1932
      %v2971 = vpop.f32.mrf.mxu0
      %v2972 = vadd.f32 0.0, %v2971
      %v2973 = vpop.f32.mrf.mxu0
      %v2974 = vpop.f32.mrf.mxu0
      %v2975 = vadd.f32 0.0, %v2974
      %v2976 = vpop.f32.mrf.mxu0
      %2977 = vmatprep.mubr.bf16.mxu0 0
      %2978 = vmatmul.mubr.bf16.gmra.mxu0 %v1940
      %v2979 = vpop.f32.mrf.mxu0
      %v2980 = vadd.f32 0.0, %v2979
      %v2981 = vpop.f32.mrf.mxu0
      %v2982 = vpop.f32.mrf.mxu0
      %v2983 = vadd.f32 0.0, %v2982
      %v2984 = vpop.f32.mrf.mxu0
      %2985 = vmatprep.mubr.bf16.mxu0 0
      %2986 = vmatmul.mubr.bf16.gmra.mxu0 %v2769
      %v2987 = vpop.f32.mrf.mxu0
      %v2988 = vadd.f32 0.0, %v2987
      %v2989 = vpop.f32.mrf.mxu0
      %v2990 = vpop.f32.mrf.mxu0
      %v2991 = vadd.f32 0.0, %v2990
      %v2992 = vpop.f32.mrf.mxu0
      %2993 = vmatprep.mubr.bf16.mxu0 0
      %2994 = vmatmul.mubr.bf16.gmra.mxu0 %v2775
      %v2995 = vpop.f32.mrf.mxu0
      %v2996 = vadd.f32 0.0, %v2995
      %v2997 = vpop.f32.mrf.mxu0
      %v2998 = vpop.f32.mrf.mxu0
      %v2999 = vadd.f32 0.0, %v2998
      %v3000 = vpop.f32.mrf.mxu0
      %3001 = vdwg.mxu0
      %v3002 = vadd.f32 %v2730, %v2876
      %v3003 = vadd.f32 %v2731, %v2879
      %v3004 = vadd.f32 %v2732, %v2884
      %v3005 = vadd.f32 %v2733, %v2887
      %v3006 = vadd.f32 %v2734, %v2892
      %v3007 = vadd.f32 %v2735, %v2895
      %v3008 = vadd.f32 %v2736, %v2900
      %v3009 = vadd.f32 %v2737, %v2903
      %v3010 = vadd.f32 %v2738, %v2908
      %v3011 = vadd.f32 %v2739, %v2911
      %v3012 = vadd.f32 %v2740, %v2916
      %v3013 = vadd.f32 %v2741, %v2919
      %v3014 = vadd.f32 %v2742, %v2924
      %v3015 = vadd.f32 %v2743, %v2927
      %v3016 = vadd.f32 %v2744, %v2932
      %v3017 = vadd.f32 %v2745, %v2935
      %v3018 = vadd.f32 %v2746, %v2940
      %v3019 = vadd.f32 %v2747, %v2943
      %v3020 = vadd.f32 %v2748, %v2948
      %v3021 = vadd.f32 %v2749, %v2951
      %v3022 = vadd.f32 %v2750, %v2956
      %v3023 = vadd.f32 %v2751, %v2959
      %v3024 = vadd.f32 %v2752, %v2964
      %v3025 = vadd.f32 %v2753, %v2967
      %v3026 = vadd.f32 %v2754, %v2972
      %v3027 = vadd.f32 %v2755, %v2975
      %v3028 = vadd.f32 %v2756, %v2980
      %v3029 = vadd.f32 %v2757, %v2983
      %v3030 = vadd.f32 %v2758, %v2988
      %v3031 = vadd.f32 %v2759, %v2991
      %v3032 = vadd.f32 %v2760, %v2996
      %v3033 = vadd.f32 %v2761, %v2999
      %v3034 = vpack.c.b16 %v1024, %v1023
      %v3035 = vpack.c.b16 %v1026, %v1025
      %v3036 = vpack.c.b16 %v1028, %v1027
      %v3037 = vpack.c.b16 %v1030, %v1029
      %v3038 = vpack.c.b16 %v1032, %v1031
      %v3039 = vpack.c.b16 %v1034, %v1033
      %v3040 = vpack.c.b16 %v1036, %v1035
      %v3041 = vpack.c.b16 %v1038, %v1037
      %v3042 = vpack.c.b16 %v1040, %v1039
      %v3043 = vpack.c.b16 %v1042, %v1041
      %v3044 = vpack.c.b16 %v1044, %v1043
      %v3045 = vpack.c.b16 %v1046, %v1045
      %v3046 = vpack.c.b16 %v1048, %v1047
      %v3047 = vpack.c.b16 %v1050, %v1049
      %v3048 = vpack.c.b16 %v2228, %v1051
      %v3049 = vpack.c.b16 %v2229, %v2229
      %vm3050 = vsmask.f32 4352
      %v3052 = vshrl.u32 %v3034, 16
      %v3054 = vrot.slane %v3052, 3
      %v3055 = vshll.u32 %v3034, 16
      %v3057 = vrot.slane %v3055, 4
      %v3058 = vor.u32 %v3054, %v3057
      %v3060 = vshrl.u32 %v3035, 16
      %v3062 = vrot.slane %v3060, 3
      %v3063 = vshll.u32 %v3035, 16
      %v3065 = vrot.slane %v3063, 4
      %v3066 = vor.u32 %v3062, %v3065
      %v3067 = vsel %vm3050, %v3058, %v3066
      %v3069 = vshrl.u32 %v3036, 16
      %v3071 = vrot.slane %v3069, 3
      %v3072 = vshll.u32 %v3036, 16
      %v3074 = vrot.slane %v3072, 4
      %v3075 = vor.u32 %v3071, %v3074
      %v3076 = vsel %vm3050, %v3066, %v3075
      %v3078 = vshrl.u32 %v3037, 16
      %v3080 = vrot.slane %v3078, 3
      %v3081 = vshll.u32 %v3037, 16
      %v3083 = vrot.slane %v3081, 4
      %v3084 = vor.u32 %v3080, %v3083
      %v3085 = vsel %vm3050, %v3075, %v3084
      %v3087 = vshrl.u32 %v3038, 16
      %v3089 = vrot.slane %v3087, 3
      %v3090 = vshll.u32 %v3038, 16
      %v3092 = vrot.slane %v3090, 4
      %v3093 = vor.u32 %v3089, %v3092
      %v3094 = vsel %vm3050, %v3084, %v3093
      %v3096 = vshrl.u32 %v3039, 16
      %v3098 = vrot.slane %v3096, 3
      %v3099 = vshll.u32 %v3039, 16
      %v3101 = vrot.slane %v3099, 4
      %v3102 = vor.u32 %v3098, %v3101
      %v3103 = vsel %vm3050, %v3093, %v3102
      %v3105 = vshrl.u32 %v3040, 16
      %v3107 = vrot.slane %v3105, 3
      %v3108 = vshll.u32 %v3040, 16
      %v3110 = vrot.slane %v3108, 4
      %v3111 = vor.u32 %v3107, %v3110
      %v3112 = vsel %vm3050, %v3102, %v3111
      %v3114 = vshrl.u32 %v3041, 16
      %v3116 = vrot.slane %v3114, 3
      %v3117 = vshll.u32 %v3041, 16
      %v3119 = vrot.slane %v3117, 4
      %v3120 = vor.u32 %v3116, %v3119
      %v3121 = vsel %vm3050, %v3111, %v3120
      %v3123 = vshrl.u32 %v3042, 16
      %v3125 = vrot.slane %v3123, 3
      %v3126 = vshll.u32 %v3042, 16
      %v3128 = vrot.slane %v3126, 4
      %v3129 = vor.u32 %v3125, %v3128
      %v3130 = vsel %vm3050, %v3120, %v3129
      %v3132 = vshrl.u32 %v3043, 16
      %v3134 = vrot.slane %v3132, 3
      %v3135 = vshll.u32 %v3043, 16
      %v3137 = vrot.slane %v3135, 4
      %v3138 = vor.u32 %v3134, %v3137
      %v3139 = vsel %vm3050, %v3129, %v3138
      %v3141 = vshrl.u32 %v3044, 16
      %v3143 = vrot.slane %v3141, 3
      %v3144 = vshll.u32 %v3044, 16
      %v3146 = vrot.slane %v3144, 4
      %v3147 = vor.u32 %v3143, %v3146
      %v3148 = vsel %vm3050, %v3138, %v3147
      %v3150 = vshrl.u32 %v3045, 16
      %v3152 = vrot.slane %v3150, 3
      %v3153 = vshll.u32 %v3045, 16
      %v3155 = vrot.slane %v3153, 4
      %v3156 = vor.u32 %v3152, %v3155
      %v3157 = vsel %vm3050, %v3147, %v3156
      %v3159 = vshrl.u32 %v3046, 16
      %v3161 = vrot.slane %v3159, 3
      %v3162 = vshll.u32 %v3046, 16
      %v3164 = vrot.slane %v3162, 4
      %v3165 = vor.u32 %v3161, %v3164
      %v3166 = vsel %vm3050, %v3156, %v3165
      %v3168 = vshrl.u32 %v3047, 16
      %v3170 = vrot.slane %v3168, 3
      %v3171 = vshll.u32 %v3047, 16
      %v3173 = vrot.slane %v3171, 4
      %v3174 = vor.u32 %v3170, %v3173
      %v3175 = vsel %vm3050, %v3165, %v3174
      %v3177 = vshrl.u32 %v3048, 16
      %v3179 = vrot.slane %v3177, 3
      %v3180 = vshll.u32 %v3048, 16
      %v3182 = vrot.slane %v3180, 4
      %v3183 = vor.u32 %v3179, %v3182
      %v3184 = vsel %vm3050, %v3174, %v3183
      %v3186 = vshrl.u32 %v3049, 16
      %v3188 = vrot.slane %v3186, 3
      %v3189 = vshll.u32 %v3049, 16
      %v3191 = vrot.slane %v3189, 4
      %v3192 = vor.u32 %v3188, %v3191
      %v3193 = vsel %vm3050, %v3183, %v3192
      %v3210 = vsel %vm1203, %v3188, 0
      %s3211 = scalar_lea.vmem %s1, 384
      %v3212 = vld [vmem:[%s3211] sm:$0xf]
      %v3213 = vld [vmem:[%s3211 + $0x4] sm:$0xf]
      %v3214 = vld [vmem:[%s3211 + $0x8] sm:$0xf]
      %v3215 = vld [vmem:[%s3211 + $0xc] sm:$0xf]
      %v3216 = vld [vmem:[%s3211 + $0x10] sm:$0xf]
      %v3217 = vld [vmem:[%s3211 + $0x14] sm:$0xf]
      %v3218 = vld [vmem:[%s3211 + $0x18] sm:$0xf]
      %v3219 = vld [vmem:[%s3211 + $0x1c] sm:$0xf]
      %v3220 = vld [vmem:[%s3211 + $0x20] sm:$0xf]
      %v3221 = vld [vmem:[%s3211 + $0x24] sm:$0xf]
      %v3222 = vld [vmem:[%s3211 + $0x28] sm:$0xf]
      %v3223 = vld [vmem:[%s3211 + $0x2c] sm:$0xf]
      %v3224 = vld [vmem:[%s3211 + $0x30] sm:$0xf]
      %v3225 = vld [vmem:[%s3211 + $0x34] sm:$0xf]
      %v3226 = vld [vmem:[%s3211 + $0x38] sm:$0xf]
      %v3227 = vld [vmem:[%s3211 + $0x3c] sm:$0xf]
      %v3244 = vunpack.c.l.b16 %v3212
      %v3245 = vunpack.c.l.b16 %v3213
      %v3246 = vunpack.c.l.b16 %v3214
      %v3247 = vunpack.c.l.b16 %v3215
      %v3248 = vunpack.c.l.b16 %v3216
      %v3249 = vunpack.c.l.b16 %v3217
      %v3250 = vunpack.c.l.b16 %v3218
      %v3251 = vunpack.c.l.b16 %v3219
      %v3252 = vunpack.c.l.b16 %v3220
      %v3253 = vunpack.c.l.b16 %v3221
      %v3254 = vunpack.c.l.b16 %v3222
      %v3255 = vunpack.c.l.b16 %v3223
      %v3256 = vunpack.c.l.b16 %v3224
      %v3257 = vunpack.c.l.b16 %v3225
      %v3258 = vunpack.c.l.b16 %v3226
      %v3259 = vunpack.c.l.b16 %v3227
      %v3260 = vpack.c.b16 %v3245, %v3244
      %v3261 = vpack.c.b16 %v3247, %v3246
      %v3262 = vpack.c.b16 %v3249, %v3248
      %v3263 = vpack.c.b16 %v3251, %v3250
      %v3264 = vpack.c.b16 %v3253, %v3252
      %v3265 = vpack.c.b16 %v3255, %v3254
      %v3266 = vpack.c.b16 %v3257, %v3256
      %v3267 = vpack.c.b16 %v3259, %v3258
      %3276 = vmatprep.subr.bf16.mxu0 0
      %3277 = vmatpush1.bf16.msra.mxu0 %v3267
      %3278 = vmatprep.subr.bf16.mxu0 0
      %3279 = vmatpush1.bf16.msra.mxu0 %v3266
      %3280 = vmatprep.subr.bf16.mxu0 0
      %3281 = vmatpush1.bf16.msra.mxu0 %v3265
      %3282 = vmatprep.subr.bf16.mxu0 0
      %3283 = vmatpush1.bf16.msra.mxu0 %v3264
      %3284 = vmatprep.subr.bf16.mxu0 0
      %3285 = vmatpush1.bf16.msra.mxu0 %v3263
      %3286 = vmatprep.subr.bf16.mxu0 0
      %3287 = vmatpush1.bf16.msra.mxu0 %v3262
      %3288 = vmatprep.subr.bf16.mxu0 0
      %3289 = vmatpush1.bf16.msra.mxu0 %v3261
      %3290 = vmatprep.subr.bf16.mxu0 0
      %3291 = vmatpush1.bf16.msra.mxu0 %v3260
      %3292 = vmatprep.subr.bf16.mxu0 0
      %3293 = vmatpush2.bf16.msra.mxu0 0
      %3294 = vmatprep.subr.bf16.mxu0 0
      %3295 = vmatpush2.bf16.msra.mxu0 0
      %3296 = vmatprep.subr.bf16.mxu0 0
      %3297 = vmatpush2.bf16.msra.mxu0 0
      %3298 = vmatprep.subr.bf16.mxu0 0
      %3299 = vmatpush2.bf16.msra.mxu0 0
      %3300 = vmatprep.subr.bf16.mxu0 0
      %3301 = vmatpush2.bf16.msra.mxu0 0
      %3302 = vmatprep.subr.bf16.mxu0 0
      %3303 = vmatpush2.bf16.msra.mxu0 0
      %3304 = vmatprep.subr.bf16.mxu0 0
      %3305 = vmatpush2.bf16.msra.mxu0 0
      %3306 = vmatprep.subr.bf16.mxu0 0
      %3307 = vmatpush2.bf16.msra.mxu0 0
      %3308 = vmatprep.mubr.bf16.mxu0 0
      %3309 = vmatmul.mubr.bf16.gmra.mxu0 %v3067
      %v3310 = vpop.f32.mrf.mxu0
      %v3311 = vadd.f32 0.0, %v3310
      %v3312 = vpop.f32.mrf.mxu0
      %v3313 = vpop.f32.mrf.mxu0
      %v3314 = vadd.f32 0.0, %v3313
      %v3315 = vpop.f32.mrf.mxu0
      %3316 = vmatprep.mubr.bf16.mxu0 0
      %3317 = vmatmul.mubr.bf16.gmra.mxu0 %v3076
      %v3318 = vpop.f32.mrf.mxu0
      %v3319 = vadd.f32 0.0, %v3318
      %v3320 = vpop.f32.mrf.mxu0
      %v3321 = vpop.f32.mrf.mxu0
      %v3322 = vadd.f32 0.0, %v3321
      %v3323 = vpop.f32.mrf.mxu0
      %3324 = vmatprep.mubr.bf16.mxu0 0
      %3325 = vmatmul.mubr.bf16.gmra.mxu0 %v3085
      %v3326 = vpop.f32.mrf.mxu0
      %v3327 = vadd.f32 0.0, %v3326
      %v3328 = vpop.f32.mrf.mxu0
      %v3329 = vpop.f32.mrf.mxu0
      %v3330 = vadd.f32 0.0, %v3329
      %v3331 = vpop.f32.mrf.mxu0
      %3332 = vmatprep.mubr.bf16.mxu0 0
      %3333 = vmatmul.mubr.bf16.gmra.mxu0 %v3094
      %v3334 = vpop.f32.mrf.mxu0
      %v3335 = vadd.f32 0.0, %v3334
      %v3336 = vpop.f32.mrf.mxu0
      %v3337 = vpop.f32.mrf.mxu0
      %v3338 = vadd.f32 0.0, %v3337
      %v3339 = vpop.f32.mrf.mxu0
      %3340 = vmatprep.mubr.bf16.mxu0 0
      %3341 = vmatmul.mubr.bf16.gmra.mxu0 %v3103
      %v3342 = vpop.f32.mrf.mxu0
      %v3343 = vadd.f32 0.0, %v3342
      %v3344 = vpop.f32.mrf.mxu0
      %v3345 = vpop.f32.mrf.mxu0
      %v3346 = vadd.f32 0.0, %v3345
      %v3347 = vpop.f32.mrf.mxu0
      %3348 = vmatprep.mubr.bf16.mxu0 0
      %3349 = vmatmul.mubr.bf16.gmra.mxu0 %v3112
      %v3350 = vpop.f32.mrf.mxu0
      %v3351 = vadd.f32 0.0, %v3350
      %v3352 = vpop.f32.mrf.mxu0
      %v3353 = vpop.f32.mrf.mxu0
      %v3354 = vadd.f32 0.0, %v3353
      %v3355 = vpop.f32.mrf.mxu0
      %3356 = vmatprep.mubr.bf16.mxu0 0
      %3357 = vmatmul.mubr.bf16.gmra.mxu0 %v3121
      %v3358 = vpop.f32.mrf.mxu0
      %v3359 = vadd.f32 0.0, %v3358
      %v3360 = vpop.f32.mrf.mxu0
      %v3361 = vpop.f32.mrf.mxu0
      %v3362 = vadd.f32 0.0, %v3361
      %v3363 = vpop.f32.mrf.mxu0
      %3364 = vmatprep.mubr.bf16.mxu0 0
      %3365 = vmatmul.mubr.bf16.gmra.mxu0 %v3130
      %v3366 = vpop.f32.mrf.mxu0
      %v3367 = vadd.f32 0.0, %v3366
      %v3368 = vpop.f32.mrf.mxu0
      %v3369 = vpop.f32.mrf.mxu0
      %v3370 = vadd.f32 0.0, %v3369
      %v3371 = vpop.f32.mrf.mxu0
      %3372 = vmatprep.mubr.bf16.mxu0 0
      %3373 = vmatmul.mubr.bf16.gmra.mxu0 %v3139
      %v3374 = vpop.f32.mrf.mxu0
      %v3375 = vadd.f32 0.0, %v3374
      %v3376 = vpop.f32.mrf.mxu0
      %v3377 = vpop.f32.mrf.mxu0
      %v3378 = vadd.f32 0.0, %v3377
      %v3379 = vpop.f32.mrf.mxu0
      %3380 = vmatprep.mubr.bf16.mxu0 0
      %3381 = vmatmul.mubr.bf16.gmra.mxu0 %v3148
      %v3382 = vpop.f32.mrf.mxu0
      %v3383 = vadd.f32 0.0, %v3382
      %v3384 = vpop.f32.mrf.mxu0
      %v3385 = vpop.f32.mrf.mxu0
      %v3386 = vadd.f32 0.0, %v3385
      %v3387 = vpop.f32.mrf.mxu0
      %3388 = vmatprep.mubr.bf16.mxu0 0
      %3389 = vmatmul.mubr.bf16.gmra.mxu0 %v3157
      %v3390 = vpop.f32.mrf.mxu0
      %v3391 = vadd.f32 0.0, %v3390
      %v3392 = vpop.f32.mrf.mxu0
      %v3393 = vpop.f32.mrf.mxu0
      %v3394 = vadd.f32 0.0, %v3393
      %v3395 = vpop.f32.mrf.mxu0
      %3396 = vmatprep.mubr.bf16.mxu0 0
      %3397 = vmatmul.mubr.bf16.gmra.mxu0 %v3166
      %v3398 = vpop.f32.mrf.mxu0
      %v3399 = vadd.f32 0.0, %v3398
      %v3400 = vpop.f32.mrf.mxu0
      %v3401 = vpop.f32.mrf.mxu0
      %v3402 = vadd.f32 0.0, %v3401
      %v3403 = vpop.f32.mrf.mxu0
      %3404 = vmatprep.mubr.bf16.mxu0 0
      %3405 = vmatmul.mubr.bf16.gmra.mxu0 %v3175
      %v3406 = vpop.f32.mrf.mxu0
      %v3407 = vadd.f32 0.0, %v3406
      %v3408 = vpop.f32.mrf.mxu0
      %v3409 = vpop.f32.mrf.mxu0
      %v3410 = vadd.f32 0.0, %v3409
      %v3411 = vpop.f32.mrf.mxu0
      %3412 = vmatprep.mubr.bf16.mxu0 0
      %3413 = vmatmul.mubr.bf16.gmra.mxu0 %v3184
      %v3414 = vpop.f32.mrf.mxu0
      %v3415 = vadd.f32 0.0, %v3414
      %v3416 = vpop.f32.mrf.mxu0
      %v3417 = vpop.f32.mrf.mxu0
      %v3418 = vadd.f32 0.0, %v3417
      %v3419 = vpop.f32.mrf.mxu0
      %3420 = vmatprep.mubr.bf16.mxu0 0
      %3421 = vmatmul.mubr.bf16.gmra.mxu0 %v3193
      %v3422 = vpop.f32.mrf.mxu0
      %v3423 = vadd.f32 0.0, %v3422
      %v3424 = vpop.f32.mrf.mxu0
      %v3425 = vpop.f32.mrf.mxu0
      %v3426 = vadd.f32 0.0, %v3425
      %v3427 = vpop.f32.mrf.mxu0
      %3428 = vmatprep.mubr.bf16.mxu0 0
      %3429 = vmatmul.mubr.bf16.gmra.mxu0 %v3210
      %v3430 = vpop.f32.mrf.mxu0
      %v3431 = vadd.f32 0.0, %v3430
      %v3432 = vpop.f32.mrf.mxu0
      %v3433 = vpop.f32.mrf.mxu0
      %v3434 = vadd.f32 0.0, %v3433
      %v3435 = vpop.f32.mrf.mxu0
      %3436 = vdwg.mxu0
      %v3437 = vadd.f32 %v3002, %v3311
      %v3438 = vadd.f32 %v3003, %v3314
      %v3439 = vadd.f32 %v3004, %v3319
      %v3440 = vadd.f32 %v3005, %v3322
      %v3441 = vadd.f32 %v3006, %v3327
      %v3442 = vadd.f32 %v3007, %v3330
      %v3443 = vadd.f32 %v3008, %v3335
      %v3444 = vadd.f32 %v3009, %v3338
      %v3445 = vadd.f32 %v3010, %v3343
      %v3446 = vadd.f32 %v3011, %v3346
      %v3447 = vadd.f32 %v3012, %v3351
      %v3448 = vadd.f32 %v3013, %v3354
      %v3449 = vadd.f32 %v3014, %v3359
      %v3450 = vadd.f32 %v3015, %v3362
      %v3451 = vadd.f32 %v3016, %v3367
      %v3452 = vadd.f32 %v3017, %v3370
      %v3453 = vadd.f32 %v3018, %v3375
      %v3454 = vadd.f32 %v3019, %v3378
      %v3455 = vadd.f32 %v3020, %v3383
      %v3456 = vadd.f32 %v3021, %v3386
      %v3457 = vadd.f32 %v3022, %v3391
      %v3458 = vadd.f32 %v3023, %v3394
      %v3459 = vadd.f32 %v3024, %v3399
      %v3460 = vadd.f32 %v3025, %v3402
      %v3461 = vadd.f32 %v3026, %v3407
      %v3462 = vadd.f32 %v3027, %v3410
      %v3463 = vadd.f32 %v3028, %v3415
      %v3464 = vadd.f32 %v3029, %v3418
      %v3465 = vadd.f32 %v3030, %v3423
      %v3466 = vadd.f32 %v3031, %v3426
      %v3467 = vadd.f32 %v3032, %v3431
      %v3468 = vadd.f32 %v3033, %v3434
      %s3469 = scalar_lea.vmem %s1, 448
      %v3470 = vld [vmem:[%s3469] sm:$0xf]
      %v3471 = vld [vmem:[%s3469 + $0x4] sm:$0xf]
      %v3472 = vld [vmem:[%s3469 + $0x8] sm:$0xf]
      %v3473 = vld [vmem:[%s3469 + $0xc] sm:$0xf]
      %v3474 = vld [vmem:[%s3469 + $0x10] sm:$0xf]
      %v3475 = vld [vmem:[%s3469 + $0x14] sm:$0xf]
      %v3476 = vld [vmem:[%s3469 + $0x18] sm:$0xf]
      %v3477 = vld [vmem:[%s3469 + $0x1c] sm:$0xf]
      %v3478 = vld [vmem:[%s3469 + $0x20] sm:$0xf]
      %v3479 = vld [vmem:[%s3469 + $0x24] sm:$0xf]
      %v3480 = vld [vmem:[%s3469 + $0x28] sm:$0xf]
      %v3481 = vld [vmem:[%s3469 + $0x2c] sm:$0xf]
      %v3482 = vld [vmem:[%s3469 + $0x30] sm:$0xf]
      %v3483 = vld [vmem:[%s3469 + $0x34] sm:$0xf]
      %v3484 = vld [vmem:[%s3469 + $0x38] sm:$0xf]
      %v3485 = vld [vmem:[%s3469 + $0x3c] sm:$0xf]
      %v3502 = vunpack.c.l.b16 %v3470
      %v3503 = vunpack.c.l.b16 %v3471
      %v3504 = vunpack.c.l.b16 %v3472
      %v3505 = vunpack.c.l.b16 %v3473
      %v3506 = vunpack.c.l.b16 %v3474
      %v3507 = vunpack.c.l.b16 %v3475
      %v3508 = vunpack.c.l.b16 %v3476
      %v3509 = vunpack.c.l.b16 %v3477
      %v3510 = vunpack.c.l.b16 %v3478
      %v3511 = vunpack.c.l.b16 %v3479
      %v3512 = vunpack.c.l.b16 %v3480
      %v3513 = vunpack.c.l.b16 %v3481
      %v3514 = vunpack.c.l.b16 %v3482
      %v3515 = vunpack.c.l.b16 %v3483
      %v3516 = vunpack.c.l.b16 %v3484
      %v3517 = vunpack.c.l.b16 %v3485
      %v3518 = vpack.c.b16 %v3503, %v3502
      %v3519 = vpack.c.b16 %v3505, %v3504
      %v3520 = vpack.c.b16 %v3507, %v3506
      %v3521 = vpack.c.b16 %v3509, %v3508
      %v3522 = vpack.c.b16 %v3511, %v3510
      %v3523 = vpack.c.b16 %v3513, %v3512
      %v3524 = vpack.c.b16 %v3515, %v3514
      %v3525 = vpack.c.b16 %v3517, %v3516
      %3534 = vmatprep.subr.bf16.mxu0 0
      %3535 = vmatpush1.bf16.msra.mxu0 %v3525
      %3536 = vmatprep.subr.bf16.mxu0 0
      %3537 = vmatpush1.bf16.msra.mxu0 %v3524
      %3538 = vmatprep.subr.bf16.mxu0 0
      %3539 = vmatpush1.bf16.msra.mxu0 %v3523
      %3540 = vmatprep.subr.bf16.mxu0 0
      %3541 = vmatpush1.bf16.msra.mxu0 %v3522
      %3542 = vmatprep.subr.bf16.mxu0 0
      %3543 = vmatpush1.bf16.msra.mxu0 %v3521
      %3544 = vmatprep.subr.bf16.mxu0 0
      %3545 = vmatpush1.bf16.msra.mxu0 %v3520
      %3546 = vmatprep.subr.bf16.mxu0 0
      %3547 = vmatpush1.bf16.msra.mxu0 %v3519
      %3548 = vmatprep.subr.bf16.mxu0 0
      %3549 = vmatpush1.bf16.msra.mxu0 %v3518
      %3550 = vmatprep.subr.bf16.mxu0 0
      %3551 = vmatpush2.bf16.msra.mxu0 0
      %3552 = vmatprep.subr.bf16.mxu0 0
      %3553 = vmatpush2.bf16.msra.mxu0 0
      %3554 = vmatprep.subr.bf16.mxu0 0
      %3555 = vmatpush2.bf16.msra.mxu0 0
      %3556 = vmatprep.subr.bf16.mxu0 0
      %3557 = vmatpush2.bf16.msra.mxu0 0
      %3558 = vmatprep.subr.bf16.mxu0 0
      %3559 = vmatpush2.bf16.msra.mxu0 0
      %3560 = vmatprep.subr.bf16.mxu0 0
      %3561 = vmatpush2.bf16.msra.mxu0 0
      %3562 = vmatprep.subr.bf16.mxu0 0
      %3563 = vmatpush2.bf16.msra.mxu0 0
      %3564 = vmatprep.subr.bf16.mxu0 0
      %3565 = vmatpush2.bf16.msra.mxu0 0
      %3566 = vmatprep.mubr.bf16.mxu0 0
      %3567 = vmatmul.mubr.bf16.gmra.mxu0 %v1282
      %v3568 = vpop.f32.mrf.mxu0
      %v3569 = vadd.f32 0.0, %v3568
      %v3570 = vpop.f32.mrf.mxu0
      %v3571 = vpop.f32.mrf.mxu0
      %v3572 = vadd.f32 0.0, %v3571
      %v3573 = vpop.f32.mrf.mxu0
      %3574 = vmatprep.mubr.bf16.mxu0 0
      %3575 = vmatmul.mubr.bf16.gmra.mxu0 %v1283
      %v3576 = vpop.f32.mrf.mxu0
      %v3577 = vadd.f32 0.0, %v3576
      %v3578 = vpop.f32.mrf.mxu0
      %v3579 = vpop.f32.mrf.mxu0
      %v3580 = vadd.f32 0.0, %v3579
      %v3581 = vpop.f32.mrf.mxu0
      %3582 = vmatprep.mubr.bf16.mxu0 0
      %3583 = vmatmul.mubr.bf16.gmra.mxu0 %v1284
      %v3584 = vpop.f32.mrf.mxu0
      %v3585 = vadd.f32 0.0, %v3584
      %v3586 = vpop.f32.mrf.mxu0
      %v3587 = vpop.f32.mrf.mxu0
      %v3588 = vadd.f32 0.0, %v3587
      %v3589 = vpop.f32.mrf.mxu0
      %3590 = vmatprep.mubr.bf16.mxu0 0
      %3591 = vmatmul.mubr.bf16.gmra.mxu0 %v1285
      %v3592 = vpop.f32.mrf.mxu0
      %v3593 = vadd.f32 0.0, %v3592
      %v3594 = vpop.f32.mrf.mxu0
      %v3595 = vpop.f32.mrf.mxu0
      %v3596 = vadd.f32 0.0, %v3595
      %v3597 = vpop.f32.mrf.mxu0
      %3598 = vmatprep.mubr.bf16.mxu0 0
      %3599 = vmatmul.mubr.bf16.gmra.mxu0 %v1286
      %v3600 = vpop.f32.mrf.mxu0
      %v3601 = vadd.f32 0.0, %v3600
      %v3602 = vpop.f32.mrf.mxu0
      %v3603 = vpop.f32.mrf.mxu0
      %v3604 = vadd.f32 0.0, %v3603
      %v3605 = vpop.f32.mrf.mxu0
      %3606 = vmatprep.mubr.bf16.mxu0 0
      %3607 = vmatmul.mubr.bf16.gmra.mxu0 %v1287
      %v3608 = vpop.f32.mrf.mxu0
      %v3609 = vadd.f32 0.0, %v3608
      %v3610 = vpop.f32.mrf.mxu0
      %v3611 = vpop.f32.mrf.mxu0
      %v3612 = vadd.f32 0.0, %v3611
      %v3613 = vpop.f32.mrf.mxu0
      %3614 = vmatprep.mubr.bf16.mxu0 0
      %3615 = vmatmul.mubr.bf16.gmra.mxu0 %v1288
      %v3616 = vpop.f32.mrf.mxu0
      %v3617 = vadd.f32 0.0, %v3616
      %v3618 = vpop.f32.mrf.mxu0
      %v3619 = vpop.f32.mrf.mxu0
      %v3620 = vadd.f32 0.0, %v3619
      %v3621 = vpop.f32.mrf.mxu0
      %3622 = vmatprep.mubr.bf16.mxu0 0
      %3623 = vmatmul.mubr.bf16.gmra.mxu0 %v1289
      %v3624 = vpop.f32.mrf.mxu0
      %v3625 = vadd.f32 0.0, %v3624
      %v3626 = vpop.f32.mrf.mxu0
      %v3627 = vpop.f32.mrf.mxu0
      %v3628 = vadd.f32 0.0, %v3627
      %v3629 = vpop.f32.mrf.mxu0
      %3630 = vmatprep.mubr.bf16.mxu0 0
      %3631 = vmatmul.mubr.bf16.gmra.mxu0 %v1290
      %v3632 = vpop.f32.mrf.mxu0
      %v3633 = vadd.f32 0.0, %v3632
      %v3634 = vpop.f32.mrf.mxu0
      %v3635 = vpop.f32.mrf.mxu0
      %v3636 = vadd.f32 0.0, %v3635
      %v3637 = vpop.f32.mrf.mxu0
      %3638 = vmatprep.mubr.bf16.mxu0 0
      %3639 = vmatmul.mubr.bf16.gmra.mxu0 %v1291
      %v3640 = vpop.f32.mrf.mxu0
      %v3641 = vadd.f32 0.0, %v3640
      %v3642 = vpop.f32.mrf.mxu0
      %v3643 = vpop.f32.mrf.mxu0
      %v3644 = vadd.f32 0.0, %v3643
      %v3645 = vpop.f32.mrf.mxu0
      %3646 = vmatprep.mubr.bf16.mxu0 0
      %3647 = vmatmul.mubr.bf16.gmra.mxu0 %v1292
      %v3648 = vpop.f32.mrf.mxu0
      %v3649 = vadd.f32 0.0, %v3648
      %v3650 = vpop.f32.mrf.mxu0
      %v3651 = vpop.f32.mrf.mxu0
      %v3652 = vadd.f32 0.0, %v3651
      %v3653 = vpop.f32.mrf.mxu0
      %3654 = vmatprep.mubr.bf16.mxu0 0
      %3655 = vmatmul.mubr.bf16.gmra.mxu0 %v1293
      %v3656 = vpop.f32.mrf.mxu0
      %v3657 = vadd.f32 0.0, %v3656
      %v3658 = vpop.f32.mrf.mxu0
      %v3659 = vpop.f32.mrf.mxu0
      %v3660 = vadd.f32 0.0, %v3659
      %v3661 = vpop.f32.mrf.mxu0
      %3662 = vmatprep.mubr.bf16.mxu0 0
      %3663 = vmatmul.mubr.bf16.gmra.mxu0 %v1294
      %v3664 = vpop.f32.mrf.mxu0
      %v3665 = vadd.f32 0.0, %v3664
      %v3666 = vpop.f32.mrf.mxu0
      %v3667 = vpop.f32.mrf.mxu0
      %v3668 = vadd.f32 0.0, %v3667
      %v3669 = vpop.f32.mrf.mxu0
      %3670 = vmatprep.mubr.bf16.mxu0 0
      %3671 = vmatmul.mubr.bf16.gmra.mxu0 %v1295
      %v3672 = vpop.f32.mrf.mxu0
      %v3673 = vadd.f32 0.0, %v3672
      %v3674 = vpop.f32.mrf.mxu0
      %v3675 = vpop.f32.mrf.mxu0
      %v3676 = vadd.f32 0.0, %v3675
      %v3677 = vpop.f32.mrf.mxu0
      %3678 = vmatprep.mubr.bf16.mxu0 0
      %3679 = vmatmul.mubr.bf16.gmra.mxu0 %v2519
      %v3680 = vpop.f32.mrf.mxu0
      %v3681 = vadd.f32 0.0, %v3680
      %v3682 = vpop.f32.mrf.mxu0
      %v3683 = vpop.f32.mrf.mxu0
      %v3684 = vadd.f32 0.0, %v3683
      %v3685 = vpop.f32.mrf.mxu0
      %3686 = vmatprep.mubr.bf16.mxu0 0
      %3687 = vmatmul.mubr.bf16.gmra.mxu0 0
      %v3688 = vpop.f32.mrf.mxu0
      %v3689 = vadd.f32 0.0, %v3688
      %v3690 = vpop.f32.mrf.mxu0
      %v3691 = vpop.f32.mrf.mxu0
      %v3692 = vadd.f32 0.0, %v3691
      %v3693 = vpop.f32.mrf.mxu0
      %3694 = vdwg.mxu0
      %v3695 = vadd.f32 %v3437, %v3569
      %v3696 = vadd.f32 %v3438, %v3572
      %v3697 = vadd.f32 %v3439, %v3577
      %v3698 = vadd.f32 %v3440, %v3580
      %v3699 = vadd.f32 %v3441, %v3585
      %v3700 = vadd.f32 %v3442, %v3588
      %v3701 = vadd.f32 %v3443, %v3593
      %v3702 = vadd.f32 %v3444, %v3596
      %v3703 = vadd.f32 %v3445, %v3601
      %v3704 = vadd.f32 %v3446, %v3604
      %v3705 = vadd.f32 %v3447, %v3609
      %v3706 = vadd.f32 %v3448, %v3612
      %v3707 = vadd.f32 %v3449, %v3617
      %v3708 = vadd.f32 %v3450, %v3620
      %v3709 = vadd.f32 %v3451, %v3625
      %v3710 = vadd.f32 %v3452, %v3628
      %v3711 = vadd.f32 %v3453, %v3633
      %v3712 = vadd.f32 %v3454, %v3636
      %v3713 = vadd.f32 %v3455, %v3641
      %v3714 = vadd.f32 %v3456, %v3644
      %v3715 = vadd.f32 %v3457, %v3649
      %v3716 = vadd.f32 %v3458, %v3652
      %v3717 = vadd.f32 %v3459, %v3657
      %v3718 = vadd.f32 %v3460, %v3660
      %v3719 = vadd.f32 %v3461, %v3665
      %v3720 = vadd.f32 %v3462, %v3668
      %v3721 = vadd.f32 %v3463, %v3673
      %v3722 = vadd.f32 %v3464, %v3676
      %v3723 = vadd.f32 %v3465, %v3681
      %v3724 = vadd.f32 %v3466, %v3684
      %v3725 = vadd.f32 %v3467, %v3689
      %v3726 = vadd.f32 %v3468, %v3692
      %s3727 = scalar_lea.vmem %s1, 512
      %v3728 = vld [vmem:[%s3727] sm:$0xf]
      %v3729 = vld [vmem:[%s3727 + $0x4] sm:$0xf]
      %v3730 = vld [vmem:[%s3727 + $0x8] sm:$0xf]
      %v3731 = vld [vmem:[%s3727 + $0xc] sm:$0xf]
      %v3732 = vld [vmem:[%s3727 + $0x10] sm:$0xf]
      %v3733 = vld [vmem:[%s3727 + $0x14] sm:$0xf]
      %v3734 = vld [vmem:[%s3727 + $0x18] sm:$0xf]
      %v3735 = vld [vmem:[%s3727 + $0x1c] sm:$0xf]
      %v3736 = vld [vmem:[%s3727 + $0x20] sm:$0xf]
      %v3737 = vld [vmem:[%s3727 + $0x24] sm:$0xf]
      %v3738 = vld [vmem:[%s3727 + $0x28] sm:$0xf]
      %v3739 = vld [vmem:[%s3727 + $0x2c] sm:$0xf]
      %v3740 = vld [vmem:[%s3727 + $0x30] sm:$0xf]
      %v3741 = vld [vmem:[%s3727 + $0x34] sm:$0xf]
      %v3742 = vld [vmem:[%s3727 + $0x38] sm:$0xf]
      %v3743 = vld [vmem:[%s3727 + $0x3c] sm:$0xf]
      %v3760 = vunpack.c.l.b16 %v3728
      %v3761 = vunpack.c.l.b16 %v3729
      %v3762 = vunpack.c.l.b16 %v3730
      %v3763 = vunpack.c.l.b16 %v3731
      %v3764 = vunpack.c.l.b16 %v3732
      %v3765 = vunpack.c.l.b16 %v3733
      %v3766 = vunpack.c.l.b16 %v3734
      %v3767 = vunpack.c.l.b16 %v3735
      %v3768 = vunpack.c.l.b16 %v3736
      %v3769 = vunpack.c.l.b16 %v3737
      %v3770 = vunpack.c.l.b16 %v3738
      %v3771 = vunpack.c.l.b16 %v3739
      %v3772 = vunpack.c.l.b16 %v3740
      %v3773 = vunpack.c.l.b16 %v3741
      %v3774 = vunpack.c.l.b16 %v3742
      %v3775 = vunpack.c.l.b16 %v3743
      %v3776 = vpack.c.b16 %v3761, %v3760
      %v3777 = vpack.c.b16 %v3763, %v3762
      %v3778 = vpack.c.b16 %v3765, %v3764
      %v3779 = vpack.c.b16 %v3767, %v3766
      %v3780 = vpack.c.b16 %v3769, %v3768
      %v3781 = vpack.c.b16 %v3771, %v3770
      %v3782 = vpack.c.b16 %v3773, %v3772
      %v3783 = vpack.c.b16 %v3775, %v3774
      %3792 = vmatprep.subr.bf16.mxu0 0
      %3793 = vmatpush1.bf16.msra.mxu0 %v3783
      %3794 = vmatprep.subr.bf16.mxu0 0
      %3795 = vmatpush1.bf16.msra.mxu0 %v3782
      %3796 = vmatprep.subr.bf16.mxu0 0
      %3797 = vmatpush1.bf16.msra.mxu0 %v3781
      %3798 = vmatprep.subr.bf16.mxu0 0
      %3799 = vmatpush1.bf16.msra.mxu0 %v3780
      %3800 = vmatprep.subr.bf16.mxu0 0
      %3801 = vmatpush1.bf16.msra.mxu0 %v3779
      %3802 = vmatprep.subr.bf16.mxu0 0
      %3803 = vmatpush1.bf16.msra.mxu0 %v3778
      %3804 = vmatprep.subr.bf16.mxu0 0
      %3805 = vmatpush1.bf16.msra.mxu0 %v3777
      %3806 = vmatprep.subr.bf16.mxu0 0
      %3807 = vmatpush1.bf16.msra.mxu0 %v3776
      %3808 = vmatprep.subr.bf16.mxu0 0
      %3809 = vmatpush2.bf16.msra.mxu0 0
      %3810 = vmatprep.subr.bf16.mxu0 0
      %3811 = vmatpush2.bf16.msra.mxu0 0
      %3812 = vmatprep.subr.bf16.mxu0 0
      %3813 = vmatpush2.bf16.msra.mxu0 0
      %3814 = vmatprep.subr.bf16.mxu0 0
      %3815 = vmatpush2.bf16.msra.mxu0 0
      %3816 = vmatprep.subr.bf16.mxu0 0
      %3817 = vmatpush2.bf16.msra.mxu0 0
      %3818 = vmatprep.subr.bf16.mxu0 0
      %3819 = vmatpush2.bf16.msra.mxu0 0
      %3820 = vmatprep.subr.bf16.mxu0 0
      %3821 = vmatpush2.bf16.msra.mxu0 0
      %3822 = vmatprep.subr.bf16.mxu0 0
      %3823 = vmatpush2.bf16.msra.mxu0 0
      %3824 = vmatprep.mubr.bf16.mxu0 0
      %3825 = vmatmul.mubr.bf16.gmra.mxu0 %v1844
      %v3826 = vpop.f32.mrf.mxu0
      %v3827 = vadd.f32 0.0, %v3826
      %v3828 = vpop.f32.mrf.mxu0
      %v3829 = vpop.f32.mrf.mxu0
      %v3830 = vadd.f32 0.0, %v3829
      %v3831 = vpop.f32.mrf.mxu0
      %3832 = vmatprep.mubr.bf16.mxu0 0
      %3833 = vmatmul.mubr.bf16.gmra.mxu0 %v1852
      %v3834 = vpop.f32.mrf.mxu0
      %v3835 = vadd.f32 0.0, %v3834
      %v3836 = vpop.f32.mrf.mxu0
      %v3837 = vpop.f32.mrf.mxu0
      %v3838 = vadd.f32 0.0, %v3837
      %v3839 = vpop.f32.mrf.mxu0
      %3840 = vmatprep.mubr.bf16.mxu0 0
      %3841 = vmatmul.mubr.bf16.gmra.mxu0 %v1860
      %v3842 = vpop.f32.mrf.mxu0
      %v3843 = vadd.f32 0.0, %v3842
      %v3844 = vpop.f32.mrf.mxu0
      %v3845 = vpop.f32.mrf.mxu0
      %v3846 = vadd.f32 0.0, %v3845
      %v3847 = vpop.f32.mrf.mxu0
      %3848 = vmatprep.mubr.bf16.mxu0 0
      %3849 = vmatmul.mubr.bf16.gmra.mxu0 %v1868
      %v3850 = vpop.f32.mrf.mxu0
      %v3851 = vadd.f32 0.0, %v3850
      %v3852 = vpop.f32.mrf.mxu0
      %v3853 = vpop.f32.mrf.mxu0
      %v3854 = vadd.f32 0.0, %v3853
      %v3855 = vpop.f32.mrf.mxu0
      %3856 = vmatprep.mubr.bf16.mxu0 0
      %3857 = vmatmul.mubr.bf16.gmra.mxu0 %v1876
      %v3858 = vpop.f32.mrf.mxu0
      %v3859 = vadd.f32 0.0, %v3858
      %v3860 = vpop.f32.mrf.mxu0
      %v3861 = vpop.f32.mrf.mxu0
      %v3862 = vadd.f32 0.0, %v3861
      %v3863 = vpop.f32.mrf.mxu0
      %3864 = vmatprep.mubr.bf16.mxu0 0
      %3865 = vmatmul.mubr.bf16.gmra.mxu0 %v1884
      %v3866 = vpop.f32.mrf.mxu0
      %v3867 = vadd.f32 0.0, %v3866
      %v3868 = vpop.f32.mrf.mxu0
      %v3869 = vpop.f32.mrf.mxu0
      %v3870 = vadd.f32 0.0, %v3869
      %v3871 = vpop.f32.mrf.mxu0
      %3872 = vmatprep.mubr.bf16.mxu0 0
      %3873 = vmatmul.mubr.bf16.gmra.mxu0 %v1892
      %v3874 = vpop.f32.mrf.mxu0
      %v3875 = vadd.f32 0.0, %v3874
      %v3876 = vpop.f32.mrf.mxu0
      %v3877 = vpop.f32.mrf.mxu0
      %v3878 = vadd.f32 0.0, %v3877
      %v3879 = vpop.f32.mrf.mxu0
      %3880 = vmatprep.mubr.bf16.mxu0 0
      %3881 = vmatmul.mubr.bf16.gmra.mxu0 %v1900
      %v3882 = vpop.f32.mrf.mxu0
      %v3883 = vadd.f32 0.0, %v3882
      %v3884 = vpop.f32.mrf.mxu0
      %v3885 = vpop.f32.mrf.mxu0
      %v3886 = vadd.f32 0.0, %v3885
      %v3887 = vpop.f32.mrf.mxu0
      %3888 = vmatprep.mubr.bf16.mxu0 0
      %3889 = vmatmul.mubr.bf16.gmra.mxu0 %v1908
      %v3890 = vpop.f32.mrf.mxu0
      %v3891 = vadd.f32 0.0, %v3890
      %v3892 = vpop.f32.mrf.mxu0
      %v3893 = vpop.f32.mrf.mxu0
      %v3894 = vadd.f32 0.0, %v3893
      %v3895 = vpop.f32.mrf.mxu0
      %3896 = vmatprep.mubr.bf16.mxu0 0
      %3897 = vmatmul.mubr.bf16.gmra.mxu0 %v1916
      %v3898 = vpop.f32.mrf.mxu0
      %v3899 = vadd.f32 0.0, %v3898
      %v3900 = vpop.f32.mrf.mxu0
      %v3901 = vpop.f32.mrf.mxu0
      %v3902 = vadd.f32 0.0, %v3901
      %v3903 = vpop.f32.mrf.mxu0
      %3904 = vmatprep.mubr.bf16.mxu0 0
      %3905 = vmatmul.mubr.bf16.gmra.mxu0 %v1924
      %v3906 = vpop.f32.mrf.mxu0
      %v3907 = vadd.f32 0.0, %v3906
      %v3908 = vpop.f32.mrf.mxu0
      %v3909 = vpop.f32.mrf.mxu0
      %v3910 = vadd.f32 0.0, %v3909
      %v3911 = vpop.f32.mrf.mxu0
      %3912 = vmatprep.mubr.bf16.mxu0 0
      %3913 = vmatmul.mubr.bf16.gmra.mxu0 %v1932
      %v3914 = vpop.f32.mrf.mxu0
      %v3915 = vadd.f32 0.0, %v3914
      %v3916 = vpop.f32.mrf.mxu0
      %v3917 = vpop.f32.mrf.mxu0
      %v3918 = vadd.f32 0.0, %v3917
      %v3919 = vpop.f32.mrf.mxu0
      %3920 = vmatprep.mubr.bf16.mxu0 0
      %3921 = vmatmul.mubr.bf16.gmra.mxu0 %v1940
      %v3922 = vpop.f32.mrf.mxu0
      %v3923 = vadd.f32 0.0, %v3922
      %v3924 = vpop.f32.mrf.mxu0
      %v3925 = vpop.f32.mrf.mxu0
      %v3926 = vadd.f32 0.0, %v3925
      %v3927 = vpop.f32.mrf.mxu0
      %3928 = vmatprep.mubr.bf16.mxu0 0
      %3929 = vmatmul.mubr.bf16.gmra.mxu0 %v2769
      %v3930 = vpop.f32.mrf.mxu0
      %v3931 = vadd.f32 0.0, %v3930
      %v3932 = vpop.f32.mrf.mxu0
      %v3933 = vpop.f32.mrf.mxu0
      %v3934 = vadd.f32 0.0, %v3933
      %v3935 = vpop.f32.mrf.mxu0
      %3936 = vmatprep.mubr.bf16.mxu0 0
      %3937 = vmatmul.mubr.bf16.gmra.mxu0 %v2775
      %v3938 = vpop.f32.mrf.mxu0
      %v3939 = vadd.f32 0.0, %v3938
      %v3940 = vpop.f32.mrf.mxu0
      %v3941 = vpop.f32.mrf.mxu0
      %v3942 = vadd.f32 0.0, %v3941
      %v3943 = vpop.f32.mrf.mxu0
      %3944 = vmatprep.mubr.bf16.mxu0 0
      %3945 = vmatmul.mubr.bf16.gmra.mxu0 0
      %v3946 = vpop.f32.mrf.mxu0
      %v3947 = vadd.f32 0.0, %v3946
      %v3948 = vpop.f32.mrf.mxu0
      %v3949 = vpop.f32.mrf.mxu0
      %v3950 = vadd.f32 0.0, %v3949
      %v3951 = vpop.f32.mrf.mxu0
      %3952 = vdwg.mxu0
      %v3953 = vadd.f32 %v3695, %v3827
      %v3954 = vadd.f32 %v3696, %v3830
      %v3955 = vadd.f32 %v3697, %v3835
      %v3956 = vadd.f32 %v3698, %v3838
      %v3957 = vadd.f32 %v3699, %v3843
      %v3958 = vadd.f32 %v3700, %v3846
      %v3959 = vadd.f32 %v3701, %v3851
      %v3960 = vadd.f32 %v3702, %v3854
      %v3961 = vadd.f32 %v3703, %v3859
      %v3962 = vadd.f32 %v3704, %v3862
      %v3963 = vadd.f32 %v3705, %v3867
      %v3964 = vadd.f32 %v3706, %v3870
      %v3965 = vadd.f32 %v3707, %v3875
      %v3966 = vadd.f32 %v3708, %v3878
      %v3967 = vadd.f32 %v3709, %v3883
      %v3968 = vadd.f32 %v3710, %v3886
      %v3969 = vadd.f32 %v3711, %v3891
      %v3970 = vadd.f32 %v3712, %v3894
      %v3971 = vadd.f32 %v3713, %v3899
      %v3972 = vadd.f32 %v3714, %v3902
      %v3973 = vadd.f32 %v3715, %v3907
      %v3974 = vadd.f32 %v3716, %v3910
      %v3975 = vadd.f32 %v3717, %v3915
      %v3976 = vadd.f32 %v3718, %v3918
      %v3977 = vadd.f32 %v3719, %v3923
      %v3978 = vadd.f32 %v3720, %v3926
      %v3979 = vadd.f32 %v3721, %v3931
      %v3980 = vadd.f32 %v3722, %v3934
      %v3981 = vadd.f32 %v3723, %v3939
      %v3982 = vadd.f32 %v3724, %v3942
      %v3983 = vadd.f32 %v3725, %v3947
      %v3984 = vadd.f32 %v3726, %v3950
      // Predicated region
      $region41: #{bottleneck_forward.4} parent=35 // pred_check
        %p3985 = pneg %p216
      $region42: #{bottleneck_forward.4} parent=35 // pred_check_branch
        %3987 = sbr.rel (%p3985) target = $region44
      $region43: #{bottleneck_forward.4} parent=35 // pred_region
        %v3988 = vld [vmem:[#allocation2] sm:$0x1]
        %v3989 = vadd.f32 %v3953, %v3954
        %v3990 = vadd.f32 %v3989, %v3955
        %v3991 = vadd.f32 %v3990, %v3956
        %v3992 = vadd.f32 %v3991, %v3957
        %v3993 = vadd.f32 %v3992, %v3958
        %v3994 = vadd.f32 %v3993, %v3959
        %v3995 = vadd.f32 %v3994, %v3960
        %v3996 = vadd.f32 %v3995, %v3961
        %v3997 = vadd.f32 %v3996, %v3962
        %v3998 = vadd.f32 %v3997, %v3963
        %v3999 = vadd.f32 %v3998, %v3964
        %v4000 = vadd.f32 %v3999, %v3965
        %v4001 = vadd.f32 %v4000, %v3966
        %v4002 = vadd.f32 %v4001, %v3967
        %v4003 = vadd.f32 %v4002, %v3968
        %v4004 = vadd.f32 %v4003, %v3969
        %v4005 = vadd.f32 %v4004, %v3970
        %v4006 = vadd.f32 %v4005, %v3971
        %v4007 = vadd.f32 %v4006, %v3972
        %v4008 = vadd.f32 %v4007, %v3973
        %v4009 = vadd.f32 %v4008, %v3974
        %v4010 = vadd.f32 %v4009, %v3975
        %v4011 = vadd.f32 %v4010, %v3976
        %v4012 = vadd.f32 %v4011, %v3977
        %v4013 = vadd.f32 %v4012, %v3978
        %v4014 = vadd.f32 %v4013, %v3979
        %v4015 = vadd.f32 %v4014, %v3980
        %v4016 = vadd.f32 %v4015, %v3981
        %v4017 = vadd.f32 %v4016, %v3982
        %v4018 = vadd.f32 %v4017, %v3983
        %v4019 = vadd.f32 %v4018, %v3984
        %v4020 = vrot.slane %v4019, 4
        %v4021 = vadd.f32 %v4019, %v4020
        %v4022 = vrot.slane %v4021, 2
        %v4023 = vadd.f32 %v4021, %v4022
        %v4024 = vrot.slane %v4023, 1
        %v4025 = vadd.f32 %v4023, %v4024
        %v4026 = vadd.f32 %v3988, %v4025
        %4027 = vst [vmem:[#allocation2] sm:$0x1] %v4026
        %v4028 = vld [vmem:[#allocation2 + $0x1] sm:$0x1]
        %v4029 = vmul.f32 %v3953, %v3953
        %v4030 = vmul.f32 %v3954, %v3954
        %v4031 = vmul.f32 %v3955, %v3955
        %v4032 = vmul.f32 %v3956, %v3956
        %v4033 = vmul.f32 %v3957, %v3957
        %v4034 = vmul.f32 %v3958, %v3958
        %v4035 = vmul.f32 %v3959, %v3959
        %v4036 = vmul.f32 %v3960, %v3960
        %v4037 = vmul.f32 %v3961, %v3961
        %v4038 = vmul.f32 %v3962, %v3962
        %v4039 = vmul.f32 %v3963, %v3963
        %v4040 = vmul.f32 %v3964, %v3964
        %v4041 = vmul.f32 %v3965, %v3965
        %v4042 = vmul.f32 %v3966, %v3966
        %v4043 = vmul.f32 %v3967, %v3967
        %v4044 = vmul.f32 %v3968, %v3968
        %v4045 = vmul.f32 %v3969, %v3969
        %v4046 = vmul.f32 %v3970, %v3970
        %v4047 = vmul.f32 %v3971, %v3971
        %v4048 = vmul.f32 %v3972, %v3972
        %v4049 = vmul.f32 %v3973, %v3973
        %v4050 = vmul.f32 %v3974, %v3974
        %v4051 = vmul.f32 %v3975, %v3975
        %v4052 = vmul.f32 %v3976, %v3976
        %v4053 = vmul.f32 %v3977, %v3977
        %v4054 = vmul.f32 %v3978, %v3978
        %v4055 = vmul.f32 %v3979, %v3979
        %v4056 = vmul.f32 %v3980, %v3980
        %v4057 = vmul.f32 %v3981, %v3981
        %v4058 = vmul.f32 %v3982, %v3982
        %v4059 = vmul.f32 %v3983, %v3983
        %v4060 = vmul.f32 %v3984, %v3984
        %v4061 = vadd.f32 %v4029, %v4030
        %v4062 = vadd.f32 %v4061, %v4031
        %v4063 = vadd.f32 %v4062, %v4032
        %v4064 = vadd.f32 %v4063, %v4033
        %v4065 = vadd.f32 %v4064, %v4034
        %v4066 = vadd.f32 %v4065, %v4035
        %v4067 = vadd.f32 %v4066, %v4036
        %v4068 = vadd.f32 %v4067, %v4037
        %v4069 = vadd.f32 %v4068, %v4038
        %v4070 = vadd.f32 %v4069, %v4039
        %v4071 = vadd.f32 %v4070, %v4040
        %v4072 = vadd.f32 %v4071, %v4041
        %v4073 = vadd.f32 %v4072, %v4042
        %v4074 = vadd.f32 %v4073, %v4043
        %v4075 = vadd.f32 %v4074, %v4044
        %v4076 = vadd.f32 %v4075, %v4045
        %v4077 = vadd.f32 %v4076, %v4046
        %v4078 = vadd.f32 %v4077, %v4047
        %v4079 = vadd.f32 %v4078, %v4048
        %v4080 = vadd.f32 %v4079, %v4049
        %v4081 = vadd.f32 %v4080, %v4050
        %v4082 = vadd.f32 %v4081, %v4051
        %v4083 = vadd.f32 %v4082, %v4052
        %v4084 = vadd.f32 %v4083, %v4053
        %v4085 = vadd.f32 %v4084, %v4054
        %v4086 = vadd.f32 %v4085, %v4055
        %v4087 = vadd.f32 %v4086, %v4056
        %v4088 = vadd.f32 %v4087, %v4057
        %v4089 = vadd.f32 %v4088, %v4058
        %v4090 = vadd.f32 %v4089, %v4059
        %v4091 = vadd.f32 %v4090, %v4060
        %v4092 = vrot.slane %v4091, 4
        %v4093 = vadd.f32 %v4091, %v4092
        %v4094 = vrot.slane %v4093, 2
        %v4095 = vadd.f32 %v4093, %v4094
        %v4096 = vrot.slane %v4095, 1
        %v4097 = vadd.f32 %v4095, %v4096
        %v4098 = vadd.f32 %v4028, %v4097
        %4099 = vst [vmem:[#allocation2 + $0x1] sm:$0x1] %v4098
      $region44: #{bottleneck_forward.4} parent=35 // pred_fallthru
        _
      %p4100 = scmp.eq.s32.totalorder %s19, 1
      %p4101 = pnand %p4100, %p217
      %p4102 = pneg %p4101
      // Predicated region
      $region45: #{bottleneck_forward.4} parent=35 // pred_check
        _
      $region46: #{bottleneck_forward.4} parent=35 // pred_check_branch
        %4104 = sbr.rel (%p4101) target = $region48
      $region47: #{bottleneck_forward.4} parent=35 // pred_region
        %v4105 = vld [vmem:[#allocation2] sm:$0x1]
        %v4106 = vmul.f32 %v4105, 0.0009765625
        %v4107 = vld [vmem:[#allocation2 + $0x1] sm:$0x1]
        %v4108 = vmul.f32 %v4107, 0.0009765625
        %v4109 = vmul.f32 %v4106, %v4106
        %v4110 = vsub.f32 %v4108, %v4109
        %v4111 = vld [vmem:[%s2] sm:$0x1]
        %v4112 = vadd.f32 %v4110, 1e-05
        %v4113 = vrsqrt.pop %v4112
        %v4114 = vmul.f32 %v4111, %v4113
        %4115 = vst [vmem:[#allocation3] sm:$0x1] %v4114
        %v4116 = vld [vmem:[%s3] sm:$0x1]
        %v4117 = vmul.f32 %v4106, %v4114
        %v4118 = vsub.f32 %v4116, %v4117
        %4119 = vst [vmem:[#allocation3 + $0x1] sm:$0x1] %v4118
      $region48: #{bottleneck_forward.4} parent=35 // pred_fallthru
        _
      // Predicated region
      $region49: #{bottleneck_forward.4} parent=35 // pred_check
        %p4120 = pneg %p4100
      $region50: #{bottleneck_forward.4} parent=35 // pred_check_branch
        %4122 = sbr.rel (%p4120) target = $region52
      $region51: #{bottleneck_forward.4} parent=35 // pred_region
        %v4123 = vld [vmem:[#allocation3] sm:$0x1]
        %v4124 = vlaneseq
        %v4125 = vshrl.u32 %v4124, 7
        %v4126 = vsub.s32 0, %v4125
        %v4127 = vrot.slane %v4123, %v4126
        %v4128 = vmul.f32 %v3953, %v4127
        %v4129 = vmul.f32 %v3954, %v4127
        %v4130 = vmul.f32 %v3955, %v4127
        %v4131 = vmul.f32 %v3956, %v4127
        %v4132 = vmul.f32 %v3957, %v4127
        %v4133 = vmul.f32 %v3958, %v4127
        %v4134 = vmul.f32 %v3959, %v4127
        %v4135 = vmul.f32 %v3960, %v4127
        %v4136 = vmul.f32 %v3961, %v4127
        %v4137 = vmul.f32 %v3962, %v4127
        %v4138 = vmul.f32 %v3963, %v4127
        %v4139 = vmul.f32 %v3964, %v4127
        %v4140 = vmul.f32 %v3965, %v4127
        %v4141 = vmul.f32 %v3966, %v4127
        %v4142 = vmul.f32 %v3967, %v4127
        %v4143 = vmul.f32 %v3968, %v4127
        %v4144 = vmul.f32 %v3969, %v4127
        %v4145 = vmul.f32 %v3970, %v4127
        %v4146 = vmul.f32 %v3971, %v4127
        %v4147 = vmul.f32 %v3972, %v4127
        %v4148 = vmul.f32 %v3973, %v4127
        %v4149 = vmul.f32 %v3974, %v4127
        %v4150 = vmul.f32 %v3975, %v4127
        %v4151 = vmul.f32 %v3976, %v4127
        %v4152 = vmul.f32 %v3977, %v4127
        %v4153 = vmul.f32 %v3978, %v4127
        %v4154 = vmul.f32 %v3979, %v4127
        %v4155 = vmul.f32 %v3980, %v4127
        %v4156 = vmul.f32 %v3981, %v4127
        %v4157 = vmul.f32 %v3982, %v4127
        %v4158 = vmul.f32 %v3983, %v4127
        %v4159 = vmul.f32 %v3984, %v4127
        %v4160 = vld [vmem:[#allocation3 + $0x1] sm:$0x1]
        %v4161 = vlaneseq
        %v4162 = vshrl.u32 %v4161, 7
        %v4163 = vsub.s32 0, %v4162
        %v4164 = vrot.slane %v4160, %v4163
        %v4165 = vadd.f32 %v4128, %v4164
        %v4166 = vadd.f32 %v4129, %v4164
        %v4167 = vadd.f32 %v4130, %v4164
        %v4168 = vadd.f32 %v4131, %v4164
        %v4169 = vadd.f32 %v4132, %v4164
        %v4170 = vadd.f32 %v4133, %v4164
        %v4171 = vadd.f32 %v4134, %v4164
        %v4172 = vadd.f32 %v4135, %v4164
        %v4173 = vadd.f32 %v4136, %v4164
        %v4174 = vadd.f32 %v4137, %v4164
        %v4175 = vadd.f32 %v4138, %v4164
        %v4176 = vadd.f32 %v4139, %v4164
        %v4177 = vadd.f32 %v4140, %v4164
        %v4178 = vadd.f32 %v4141, %v4164
        %v4179 = vadd.f32 %v4142, %v4164
        %v4180 = vadd.f32 %v4143, %v4164
        %v4181 = vadd.f32 %v4144, %v4164
        %v4182 = vadd.f32 %v4145, %v4164
        %v4183 = vadd.f32 %v4146, %v4164
        %v4184 = vadd.f32 %v4147, %v4164
        %v4185 = vadd.f32 %v4148, %v4164
        %v4186 = vadd.f32 %v4149, %v4164
        %v4187 = vadd.f32 %v4150, %v4164
        %v4188 = vadd.f32 %v4151, %v4164
        %v4189 = vadd.f32 %v4152, %v4164
        %v4190 = vadd.f32 %v4153, %v4164
        %v4191 = vadd.f32 %v4154, %v4164
        %v4192 = vadd.f32 %v4155, %v4164
        %v4193 = vadd.f32 %v4156, %v4164
        %v4194 = vadd.f32 %v4157, %v4164
        %v4195 = vadd.f32 %v4158, %v4164
        %v4196 = vadd.f32 %v4159, %v4164
        %v4197 = vmax.f32 %v4165, 0.0
        %v4198 = vmax.f32 %v4166, 0.0
        %v4199 = vmax.f32 %v4167, 0.0
        %v4200 = vmax.f32 %v4168, 0.0
        %v4201 = vmax.f32 %v4169, 0.0
        %v4202 = vmax.f32 %v4170, 0.0
        %v4203 = vmax.f32 %v4171, 0.0
        %v4204 = vmax.f32 %v4172, 0.0
        %v4205 = vmax.f32 %v4173, 0.0
        %v4206 = vmax.f32 %v4174, 0.0
        %v4207 = vmax.f32 %v4175, 0.0
        %v4208 = vmax.f32 %v4176, 0.0
        %v4209 = vmax.f32 %v4177, 0.0
        %v4210 = vmax.f32 %v4178, 0.0
        %v4211 = vmax.f32 %v4179, 0.0
        %v4212 = vmax.f32 %v4180, 0.0
        %v4213 = vmax.f32 %v4181, 0.0
        %v4214 = vmax.f32 %v4182, 0.0
        %v4215 = vmax.f32 %v4183, 0.0
        %v4216 = vmax.f32 %v4184, 0.0
        %v4217 = vmax.f32 %v4185, 0.0
        %v4218 = vmax.f32 %v4186, 0.0
        %v4219 = vmax.f32 %v4187, 0.0
        %v4220 = vmax.f32 %v4188, 0.0
        %v4221 = vmax.f32 %v4189, 0.0
        %v4222 = vmax.f32 %v4190, 0.0
        %v4223 = vmax.f32 %v4191, 0.0
        %v4224 = vmax.f32 %v4192, 0.0
        %v4225 = vmax.f32 %v4193, 0.0
        %v4226 = vmax.f32 %v4194, 0.0
        %v4227 = vmax.f32 %v4195, 0.0
        %v4228 = vmax.f32 %v4196, 0.0
        %v4229 = vpack.c.bf16 %v4198, %v4197
        %v4230 = vpack.c.bf16 %v4200, %v4199
        %v4231 = vpack.c.bf16 %v4202, %v4201
        %v4232 = vpack.c.bf16 %v4204, %v4203
        %v4233 = vpack.c.bf16 %v4206, %v4205
        %v4234 = vpack.c.bf16 %v4208, %v4207
        %v4235 = vpack.c.bf16 %v4210, %v4209
        %v4236 = vpack.c.bf16 %v4212, %v4211
        %v4237 = vpack.c.bf16 %v4214, %v4213
        %v4238 = vpack.c.bf16 %v4216, %v4215
        %v4239 = vpack.c.bf16 %v4218, %v4217
        %v4240 = vpack.c.bf16 %v4220, %v4219
        %v4241 = vpack.c.bf16 %v4222, %v4221
        %v4242 = vpack.c.bf16 %v4224, %v4223
        %v4243 = vpack.c.bf16 %v4226, %v4225
        %v4244 = vpack.c.bf16 %v4228, %v4227
        %v4261 = vunpack.c.l.b16 %v4229
        %v4262 = vunpack.c.h.b16 %v4229
        %v4263 = vunpack.c.l.b16 %v4230
        %v4264 = vunpack.c.h.b16 %v4230
        %v4265 = vunpack.c.l.b16 %v4231
        %v4266 = vunpack.c.h.b16 %v4231
        %v4267 = vunpack.c.l.b16 %v4232
        %v4268 = vunpack.c.h.b16 %v4232
        %v4269 = vunpack.c.l.b16 %v4233
        %v4270 = vunpack.c.h.b16 %v4233
        %v4271 = vunpack.c.l.b16 %v4234
        %v4272 = vunpack.c.h.b16 %v4234
        %v4273 = vunpack.c.l.b16 %v4235
        %v4274 = vunpack.c.h.b16 %v4235
        %v4275 = vunpack.c.l.b16 %v4236
        %v4276 = vunpack.c.h.b16 %v4236
        %v4277 = vunpack.c.l.b16 %v4237
        %v4278 = vunpack.c.h.b16 %v4237
        %v4279 = vunpack.c.l.b16 %v4238
        %v4280 = vunpack.c.h.b16 %v4238
        %v4281 = vunpack.c.l.b16 %v4239
        %v4282 = vunpack.c.h.b16 %v4239
        %v4283 = vunpack.c.l.b16 %v4240
        %v4284 = vunpack.c.h.b16 %v4240
        %v4285 = vunpack.c.l.b16 %v4241
        %v4286 = vunpack.c.h.b16 %v4241
        %v4287 = vunpack.c.l.b16 %v4242
        %v4288 = vunpack.c.h.b16 %v4242
        %v4289 = vunpack.c.l.b16 %v4243
        %v4290 = vunpack.c.h.b16 %v4243
        %v4291 = vunpack.c.l.b16 %v4244
        %v4292 = vunpack.c.h.b16 %v4244
        %v4293 = vpack.c.b16 %v4261, %v4261
        %v4294 = vpack.c.b16 %v4262, %v4262
        %v4295 = vpack.c.b16 %v4263, %v4263
        %v4296 = vpack.c.b16 %v4264, %v4264
        %v4297 = vpack.c.b16 %v4265, %v4265
        %v4298 = vpack.c.b16 %v4266, %v4266
        %v4299 = vpack.c.b16 %v4267, %v4267
        %v4300 = vpack.c.b16 %v4268, %v4268
        %v4301 = vpack.c.b16 %v4269, %v4269
        %v4302 = vpack.c.b16 %v4270, %v4270
        %v4303 = vpack.c.b16 %v4271, %v4271
        %v4304 = vpack.c.b16 %v4272, %v4272
        %v4305 = vpack.c.b16 %v4273, %v4273
        %v4306 = vpack.c.b16 %v4274, %v4274
        %v4307 = vpack.c.b16 %v4275, %v4275
        %v4308 = vpack.c.b16 %v4276, %v4276
        %v4309 = vpack.c.b16 %v4277, %v4277
        %v4310 = vpack.c.b16 %v4278, %v4278
        %v4311 = vpack.c.b16 %v4279, %v4279
        %v4312 = vpack.c.b16 %v4280, %v4280
        %v4313 = vpack.c.b16 %v4281, %v4281
        %v4314 = vpack.c.b16 %v4282, %v4282
        %v4315 = vpack.c.b16 %v4283, %v4283
        %v4316 = vpack.c.b16 %v4284, %v4284
        %v4317 = vpack.c.b16 %v4285, %v4285
        %v4318 = vpack.c.b16 %v4286, %v4286
        %v4319 = vpack.c.b16 %v4287, %v4287
        %v4320 = vpack.c.b16 %v4288, %v4288
        %v4321 = vpack.c.b16 %v4289, %v4289
        %v4322 = vpack.c.b16 %v4290, %v4290
        %v4323 = vpack.c.b16 %v4291, %v4291
        %v4324 = vpack.c.b16 %v4292, %v4292
        %4357 = vst [vmem:[%s213] sm:$0xf] %v4293
        %4358 = vst [vmem:[%s213 + $0x4] sm:$0xf] %v4294
        %4359 = vst [vmem:[%s213 + $0x8] sm:$0xf] %v4295
        %4360 = vst [vmem:[%s213 + $0xc] sm:$0xf] %v4296
        %4361 = vst [vmem:[%s213 + $0x10] sm:$0xf] %v4297
        %4362 = vst [vmem:[%s213 + $0x14] sm:$0xf] %v4298
        %4363 = vst [vmem:[%s213 + $0x18] sm:$0xf] %v4299
        %4364 = vst [vmem:[%s213 + $0x1c] sm:$0xf] %v4300
        %4365 = vst [vmem:[%s213 + $0x20] sm:$0xf] %v4301
        %4366 = vst [vmem:[%s213 + $0x24] sm:$0xf] %v4302
        %4367 = vst [vmem:[%s213 + $0x28] sm:$0xf] %v4303
        %4368 = vst [vmem:[%s213 + $0x2c] sm:$0xf] %v4304
        %4369 = vst [vmem:[%s213 + $0x30] sm:$0xf] %v4305
        %4370 = vst [vmem:[%s213 + $0x34] sm:$0xf] %v4306
        %4371 = vst [vmem:[%s213 + $0x38] sm:$0xf] %v4307
        %4372 = vst [vmem:[%s213 + $0x3c] sm:$0xf] %v4308
        %4373 = vst [vmem:[%s213 + $0x40] sm:$0xf] %v4309
        %4374 = vst [vmem:[%s213 + $0x44] sm:$0xf] %v4310
        %4375 = vst [vmem:[%s213 + $0x48] sm:$0xf] %v4311
        %4376 = vst [vmem:[%s213 + $0x4c] sm:$0xf] %v4312
        %4377 = vst [vmem:[%s213 + $0x50] sm:$0xf] %v4313
        %4378 = vst [vmem:[%s213 + $0x54] sm:$0xf] %v4314
        %4379 = vst [vmem:[%s213 + $0x58] sm:$0xf] %v4315
        %4380 = vst [vmem:[%s213 + $0x5c] sm:$0xf] %v4316
        %4381 = vst [vmem:[%s213 + $0x60] sm:$0xf] %v4317
        %4382 = vst [vmem:[%s213 + $0x64] sm:$0xf] %v4318
        %4383 = vst [vmem:[%s213 + $0x68] sm:$0xf] %v4319
        %4384 = vst [vmem:[%s213 + $0x6c] sm:$0xf] %v4320
        %4385 = vst [vmem:[%s213 + $0x70] sm:$0xf] %v4321
        %4386 = vst [vmem:[%s213 + $0x74] sm:$0xf] %v4322
        %4387 = vst [vmem:[%s213 + $0x78] sm:$0xf] %v4323
        %4388 = vst [vmem:[%s213 + $0x7c] sm:$0xf] %v4324
      $region52: #{bottleneck_forward.4} parent=35 // pred_fallthru
        _
      %s4389 = smul.u32 %s20, %s19
      %p4390 = scmp.lt.s32.totalorder %s4389, 3
      %s4391 = scalar_select %p4390, %s4389, 3
      %s4392 = smul.addr %s4391, 32
      %s4393 = smul.addr %s4392, 4
      %s4394 = scalar_lea.vmem %s4, %s4393
      // Predicated region
      $region53: #{bottleneck_forward.4} parent=35 // pred_check
        %p4395 = pneg %p136
      $region54: #{bottleneck_forward.4} parent=35 // pred_check_branch
        %4397 = sbr.rel (%p4395) target = $region56
      $region55: #{bottleneck_forward.4} parent=35 // pred_region
        %s4398 = smul.u32 %s20, %s19
      $region56: #{bottleneck_forward.4} parent=35 // pred_fallthru
        _
    $region36: #{bottleneck_forward.4} parent=5 // pred_fallthru
      _
    %p4399 = scmp.le.s32.totalorder 2, %s10
    // Predicated region
    $region57: #{bottleneck_forward.4} parent=5 // pred_check
      %p4400 = pneg %p4399
    $region58: #{bottleneck_forward.4} parent=5 // pred_check_branch
      %4402 = sbr.rel (%p4400) target = $region60
    $region59: #{bottleneck_forward.4} parent=5 // pred_region
      %s4403 = ssub.s32 %s10, 2
      // Predicated region
      $region61: #{bottleneck_forward.4} parent=59 // pred_check
        %p4404 = pneg %p142
      $region62: #{bottleneck_forward.4} parent=59 // pred_check_branch
        %4406 = sbr.rel (%p4404) target = $region64
      $region63: #{bottleneck_forward.4} parent=59 // pred_region
        %s4407 = smul.u32 %s22, %s21
        %p4408 = scmp.lt.s32.totalorder %s4407, 3
        %s4409 = scalar_select %p4408, %s4407, 3
        %s4410 = smul.addr %s4409, 32
        %s4411 = smul.addr %s4410, 4
        %s4412 = scalar_lea.vmem %s4, %s4411
      $region64: #{bottleneck_forward.4} parent=59 // pred_fallthru
        _
    $region60: #{bottleneck_forward.4} parent=5 // pred_fallthru
      _
  $region6: #{bottleneck_forward.4} parent=0 // loop_footer
    %s14 = sadd.s32 1, %s10
  $region7: #{bottleneck_forward.4} parent=0 // loop_footer_branch
    %9 = sbr.rel target = $region3
  $region8: #{bottleneck_forward.4} parent=0 // loop_exit
    _

</llo_original>
